<compile_context>
chip_gen: v7x
topology: tpu7x:2x2x1
jax: 0.10.0
libtpu: 0.0.40
codegen_flags: <defaults>
</compile_context>

<pallas_src>
import functools

import jax
import jax.numpy as jnp
from jax import lax
from jax.experimental import pallas as pl
from jax.experimental.pallas import tpu as pltpu

EPS = 1e-5


def _fused_bn_relu_conv_bn_relu_kernel(
    x_ref,      # (C_in, M)   f32   activations, channels on sublanes, pixels on lanes
    w_ref,      # (C_out, C_in)     1x1 conv weight (bf16 or f32)
    g1_ref,     # (C_in, 1)   BN1 gamma
    b1_ref,     # (C_in, 1)   BN1 beta
    g2_ref,     # (C_out, 1)  BN2 gamma
    b2_ref,     # (C_out, 1)  BN2 beta
    o_ref,      # (C_out, M)  output
    *,
    use_bf16_matmul: bool,
):
    x = x_ref[...]
    m = x.shape[1]
    inv_m = jnp.float32(1.0 / m)

    # ---- BatchNorm2d(C_in), training mode: per-channel stats over M = N*H*W ----
    # single-pass stats: var = E[x^2] - mean^2  (biased, matches PyTorch normalization)
    s1 = jnp.sum(x, axis=1, keepdims=True)
    q1 = jnp.sum(x * x, axis=1, keepdims=True)
    mean1 = s1 * inv_m
    var1 = q1 * inv_m - mean1 * mean1
    scale1 = lax.rsqrt(var1 + EPS) * g1_ref[...]          # (C_in, 1)
    shift1 = b1_ref[...] - mean1 * scale1                 # (C_in, 1)
    a = jnp.maximum(x * scale1 + shift1, 0.0)             # ReLU, (C_in, M)

    # ---- 1x1 conv (no bias) == (C_out, C_in) @ (C_in, M) on the MXU ----
    w = w_ref[...]
    if use_bf16_matmul:
        a = a.astype(jnp.bfloat16)
        w = w.astype(jnp.bfloat16)
    y = jnp.dot(w, a, preferred_element_type=jnp.float32)  # (C_out, M) f32

    # ---- BatchNorm2d(C_out), training mode ----
    s2 = jnp.sum(y, axis=1, keepdims=True)
    q2 = jnp.sum(y * y, axis=1, keepdims=True)
    mean2 = s2 * inv_m
    var2 = q2 * inv_m - mean2 * mean2
    scale2 = lax.rsqrt(var2 + EPS) * g2_ref[...]
    shift2 = b2_ref[...] - mean2 * scale2
    o_ref[...] = jnp.maximum(y * scale2 + shift2, 0.0)     # ReLU


def _use_bf16_matmul() -> bool:
    # bf16 MXU operands pay off on v6e/v7x (and are harmless elsewhere); the
    # review asked to avoid the cast on v5e specifically.
    try:
        kind = jax.devices()[0].device_kind.lower()
    except Exception:  # pragma: no cover
        return True
    return not ("v5 lite" in kind or "v5lite" in kind or "v5e" in kind)


def fused_forward(x_nchw, conv_w, g1, b1, g2, b2):
    """x_nchw: (N, C_in, H, W); conv_w: (C_out, C_in, 1, 1)."""
    N, C_in, H, W = x_nchw.shape
    C_out = conv_w.shape[0]
    M = N * H * W

    # NCHW with N==1 is already a contiguous (C_in, H*W) matrix: free reshape.
    if N == 1:
        xm = x_nchw.reshape(C_in, M)
    else:
        # TODO(synk): for N>1 this re-introduces a transpose; a batch grid axis
        # with two-phase BN stats would be the scalable fix.
        xm = jnp.transpose(x_nchw, (1, 0, 2, 3)).reshape(C_in, M)

    use_bf16 = _use_bf16_matmul()

    wm = conv_w.reshape(C_out, C_in)                 # no transpose needed
    if use_bf16:
        wm = wm.astype(jnp.bfloat16)

    g1m = g1.reshape(C_in, 1).astype(jnp.float32)
    b1m = b1.reshape(C_in, 1).astype(jnp.float32)
    g2m = g2.reshape(C_out, 1).astype(jnp.float32)
    b2m = b2.reshape(C_out, 1).astype(jnp.float32)

    kernel = functools.partial(
        _fused_bn_relu_conv_bn_relu_kernel, use_bf16_matmul=use_bf16
    )

    out_m = pl.pallas_call(
        kernel,
        out_shape=jax.ShapeDtypeStruct((C_out, M), jnp.float32),
        in_specs=[
            pl.BlockSpec((C_in, M), lambda: (0, 0)),
            pl.BlockSpec((C_out, C_in), lambda: (0, 0)),
            pl.BlockSpec((C_in, 1), lambda: (0, 0)),
            pl.BlockSpec((C_in, 1), lambda: (0, 0)),
            pl.BlockSpec((C_out, 1), lambda: (0, 0)),
            pl.BlockSpec((C_out, 1), lambda: (0, 0)),
        ],
        out_specs=pl.BlockSpec((C_out, M), lambda: (0, 0)),
        compiler_params=pltpu.CompilerParams(vmem_limit_bytes=32 << 20),
    )(xm, wm, g1m, b1m, g2m, b2m)

    # (C_out, M) -> NCHW for free when N == 1.
    if N == 1:
        return out_m.reshape(1, C_out, H, W)
    return jnp.transpose(out_m.reshape(C_out, N, H, W), (1, 0, 2, 3))


def reference_forward(x_nchw, conv_w, g1, b1, g2, b2):
    """Plain-JAX reference of the PyTorch module (training-mode BN), f32 math."""
    def bn(x, g, b):
        mean = jnp.mean(x, axis=(0, 2, 3), keepdims=True)
        var = jnp.mean((x - mean) ** 2, axis=(0, 2, 3), keepdims=True)
        return (x - mean) * lax.rsqrt(var + EPS) * g.reshape(1, -1, 1, 1) \
            + b.reshape(1, -1, 1, 1)

    h = jnp.maximum(bn(x_nchw, g1, b1), 0.0)
    y = lax.conv_general_dilated(
        h, conv_w, window_strides=(1, 1), padding="VALID",
        dimension_numbers=("NCHW", "OIHW", "NCHW"),
        precision=lax.Precision.HIGHEST)
    return jnp.maximum(bn(y, g2, b2), 0.0)


if __name__ == "__main__":
    N, C_IN, H, W, C_OUT = 1, 720, 28, 28, 192

    key = jax.random.PRNGKey(0)
    kx, kw, kg1, kb1, kg2, kb2 = jax.random.split(key, 6)

    x = jax.random.normal(kx, (N, C_IN, H, W), dtype=jnp.float32)
    conv_w = jax.random.normal(kw, (C_OUT, C_IN, 1, 1), dtype=jnp.float32) * 0.05
    gamma1 = 1.0 + 0.1 * jax.random.normal(kg1, (C_IN,), dtype=jnp.float32)
    beta1 = 0.1 * jax.random.normal(kb1, (C_IN,), dtype=jnp.float32)
    gamma2 = 1.0 + 0.1 * jax.random.normal(kg2, (C_OUT,), dtype=jnp.float32)
    beta2 = 0.1 * jax.random.normal(kb2, (C_OUT,), dtype=jnp.float32)

    out = jax.jit(fused_forward)(x, conv_w, gamma1, beta1, gamma2, beta2)
    out = jax.block_until_ready(out)

    ref = reference_forward(x, conv_w, gamma1, beta1, gamma2, beta2)
    assert out.shape == (N, C_OUT, H, W)

    # bf16 MXU operands (f32 accumulation) need a slightly looser tolerance.
    tol = 3e-2 if _use_bf16_matmul() else 1e-3
    assert jnp.allclose(out, ref, atol=tol, rtol=tol), "mismatch vs reference"

    print("KERNEL_OK")
</pallas_src>

<mosaic_0001>
module attributes {stable_mosaic.version = 11 : i64} {
  func.func @_fused_bn_relu_conv_bn_relu_kernel(%arg0: memref<720x784xf32, #tpu.memory_space<vmem>>, %arg1: memref<192x720xbf16, #tpu.memory_space<vmem>>, %arg2: memref<720x1xf32, #tpu.memory_space<vmem>>, %arg3: memref<720x1xf32, #tpu.memory_space<vmem>>, %arg4: memref<192x1xf32, #tpu.memory_space<vmem>>, %arg5: memref<192x1xf32, #tpu.memory_space<vmem>>, %arg6: memref<192x784xf32, #tpu.memory_space<vmem>>) attributes {dimension_semantics = [], scalar_prefetch = 0 : i64, scratch_operands = 0 : i64, tpu.core_type = #tpu.core_type<tc>} {
    %c0 = arith.constant 0 : index
    %c0_0 = arith.constant 0 : index
    %0 = vector.load %arg0[%c0, %c0_0] : memref<720x784xf32, #tpu.memory_space<vmem>>, vector<720x784xf32>
    %cst = arith.constant dense<0.000000e+00> : vector<720xf32>
    %1 = vector.multi_reduction <add>, %0, %cst [1] : vector<720x784xf32> to vector<720xf32>
    %2 = vector.shape_cast %1 : vector<720xf32> to vector<720x1xf32>
    %3 = arith.mulf %0, %0 : vector<720x784xf32>
    %cst_1 = arith.constant dense<0.000000e+00> : vector<720xf32>
    %4 = vector.multi_reduction <add>, %3, %cst_1 [1] : vector<720x784xf32> to vector<720xf32>
    %5 = vector.shape_cast %4 : vector<720xf32> to vector<720x1xf32>
    %cst_2 = arith.constant 0.00127551018 : f32
    %6 = vector.broadcast %cst_2 : f32 to vector<720x1xf32>
    %7 = arith.mulf %2, %6 : vector<720x1xf32>
    %cst_3 = arith.constant 0.00127551018 : f32
    %8 = vector.broadcast %cst_3 : f32 to vector<720x1xf32>
    %9 = arith.mulf %5, %8 : vector<720x1xf32>
    %10 = arith.mulf %7, %7 : vector<720x1xf32>
    %11 = arith.subf %9, %10 : vector<720x1xf32>
    %cst_4 = arith.constant 9.99999974E-6 : f32
    %12 = vector.broadcast %cst_4 : f32 to vector<720x1xf32>
    %13 = arith.addf %11, %12 : vector<720x1xf32>
    %14 = math.rsqrt %13 : vector<720x1xf32>
    %c0_5 = arith.constant 0 : index
    %c0_6 = arith.constant 0 : index
    %15 = vector.load %arg2[%c0_5, %c0_6] : memref<720x1xf32, #tpu.memory_space<vmem>>, vector<720x1xf32>
    %16 = arith.mulf %14, %15 : vector<720x1xf32>
    %c0_7 = arith.constant 0 : index
    %c0_8 = arith.constant 0 : index
    %17 = vector.load %arg3[%c0_7, %c0_8] : memref<720x1xf32, #tpu.memory_space<vmem>>, vector<720x1xf32>
    %18 = arith.mulf %7, %16 : vector<720x1xf32>
    %19 = arith.subf %17, %18 : vector<720x1xf32>
    %20 = vector.broadcast %16 : vector<720x1xf32> to vector<720x784xf32>
    %21 = arith.mulf %0, %20 : vector<720x784xf32>
    %22 = vector.broadcast %19 : vector<720x1xf32> to vector<720x784xf32>
    %23 = arith.addf %21, %22 : vector<720x784xf32>
    %cst_9 = arith.constant 0.000000e+00 : f32
    %24 = vector.broadcast %cst_9 : f32 to vector<720x784xf32>
    %25 = arith.maximumf %23, %24 : vector<720x784xf32>
    %c0_10 = arith.constant 0 : index
    %c0_11 = arith.constant 0 : index
    %26 = vector.load %arg1[%c0_10, %c0_11] : memref<192x720xbf16, #tpu.memory_space<vmem>>, vector<192x720xbf16>
    %27 = arith.truncf %25 : vector<720x784xf32> to vector<720x784xbf16>
    %cst_12 = arith.constant dense<0.000000e+00> : vector<192x784xf32>
    %28 = tpu.matmul %26, %27, %cst_12 {dimension_numbers = #tpu.dot_dimension_numbers<[1], [0], [0], [1], [0, 0, 1, 1], [], []>} : vector<192x720xbf16>, vector<720x784xbf16>, vector<192x784xf32> -> vector<192x784xf32>
    %cst_13 = arith.constant dense<0.000000e+00> : vector<192xf32>
    %29 = vector.multi_reduction <add>, %28, %cst_13 [1] : vector<192x784xf32> to vector<192xf32>
    %30 = vector.shape_cast %29 : vector<192xf32> to vector<192x1xf32>
    %31 = arith.mulf %28, %28 : vector<192x784xf32>
    %cst_14 = arith.constant dense<0.000000e+00> : vector<192xf32>
    %32 = vector.multi_reduction <add>, %31, %cst_14 [1] : vector<192x784xf32> to vector<192xf32>
    %33 = vector.shape_cast %32 : vector<192xf32> to vector<192x1xf32>
    %cst_15 = arith.constant 0.00127551018 : f32
    %34 = vector.broadcast %cst_15 : f32 to vector<192x1xf32>
    %35 = arith.mulf %30, %34 : vector<192x1xf32>
    %cst_16 = arith.constant 0.00127551018 : f32
    %36 = vector.broadcast %cst_16 : f32 to vector<192x1xf32>
    %37 = arith.mulf %33, %36 : vector<192x1xf32>
    %38 = arith.mulf %35, %35 : vector<192x1xf32>
    %39 = arith.subf %37, %38 : vector<192x1xf32>
    %cst_17 = arith.constant 9.99999974E-6 : f32
    %40 = vector.broadcast %cst_17 : f32 to vector<192x1xf32>
    %41 = arith.addf %39, %40 : vector<192x1xf32>
    %42 = math.rsqrt %41 : vector<192x1xf32>
    %c0_18 = arith.constant 0 : index
    %c0_19 = arith.constant 0 : index
    %43 = vector.load %arg4[%c0_18, %c0_19] : memref<192x1xf32, #tpu.memory_space<vmem>>, vector<192x1xf32>
    %44 = arith.mulf %42, %43 : vector<192x1xf32>
    %c0_20 = arith.constant 0 : index
    %c0_21 = arith.constant 0 : index
    %45 = vector.load %arg5[%c0_20, %c0_21] : memref<192x1xf32, #tpu.memory_space<vmem>>, vector<192x1xf32>
    %46 = arith.mulf %35, %44 : vector<192x1xf32>
    %47 = arith.subf %45, %46 : vector<192x1xf32>
    %48 = vector.broadcast %44 : vector<192x1xf32> to vector<192x784xf32>
    %49 = arith.mulf %28, %48 : vector<192x784xf32>
    %50 = vector.broadcast %47 : vector<192x1xf32> to vector<192x784xf32>
    %51 = arith.addf %49, %50 : vector<192x784xf32>
    %cst_22 = arith.constant 0.000000e+00 : f32
    %52 = vector.broadcast %cst_22 : f32 to vector<192x784xf32>
    %53 = arith.maximumf %51, %52 : vector<192x784xf32>
    %c0_23 = arith.constant 0 : index
    %c0_24 = arith.constant 0 : index
    %54 = vector.load %arg6[%c0_23, %c0_24] : memref<192x784xf32, #tpu.memory_space<vmem>>, vector<192x784xf32>
    tpu.vector_store %arg6[%c0_23, %c0_24], %53 {strides = array<i32>} : memref<192x784xf32, #tpu.memory_space<vmem>>, vector<192x784xf32>,
    return
  }
}

</mosaic_0001>

<llo_original>
// kernel: fused_forward.1
$region0: #{fused_forward.1}
  #allocation0 [shape = 'u32[]', space=smem, size = 0x4, offset = 0x4, fixed_abs, tag = 'smem constant byte address 0x4 - core index']
  #allocation1 [shape = 'u32[144,128]{1,0:T(1,128)}', space=vmem, size = 0x12000, scoped, tag = 'internal scratch']
  %s0 = inlined_call_operand.vmem [shape: f32[720,784], index: 0, kind: input, shape index: {}]
  %s1 = inlined_call_operand.vmem [shape: bf16[192,720], index: 1, kind: input, shape index: {}]
  %s2 = inlined_call_operand.vmem [shape: f32[720,1], index: 2, kind: input, shape index: {}]
  %s3 = inlined_call_operand.vmem [shape: f32[720,1], index: 3, kind: input, shape index: {}]
  %s4 = inlined_call_operand.vmem [shape: f32[192,1], index: 4, kind: input, shape index: {}]
  %s5 = inlined_call_operand.vmem [shape: f32[192,1], index: 5, kind: input, shape index: {}]
  %s6 = inlined_call_operand.vmem [shape: f32[192,784], index: 6, kind: output, shape index: {}]
  %s7 = sld [smem:[#allocation0]]
  $region34: #{fused_forward.1} parent=0
    _
  %s9 = ssub.s32 1, %s7
  %s10 = scalar_select 0, %s9, %s7
  // Predicated region
  $region2: #{fused_forward.1} parent=0 // pred_check
    _
  $region3: #{fused_forward.1} parent=0 // pred_check_branch
    %12 = sbr.rel (0) target = $region5
  $region4: #{fused_forward.1} parent=0 // pred_region
    _
  $region5: #{fused_forward.1} parent=0 // pred_fallthru
    _
  // Predicated region
  $region6: #{fused_forward.1} parent=0 // pred_check
    _
  $region7: #{fused_forward.1} parent=0 // pred_check_branch
    %14 = sbr.rel (0) target = $region9
  $region8: #{fused_forward.1} parent=0 // pred_region
    _
  $region9: #{fused_forward.1} parent=0 // pred_fallthru
    _
  // Predicated region
  $region10: #{fused_forward.1} parent=0 // pred_check
    _
  $region11: #{fused_forward.1} parent=0 // pred_check_branch
    %16 = sbr.rel (0) target = $region13
  $region12: #{fused_forward.1} parent=0 // pred_region
    _
  $region13: #{fused_forward.1} parent=0 // pred_fallthru
    _
  // Predicated region
  $region14: #{fused_forward.1} parent=0 // pred_check
    _
  $region15: #{fused_forward.1} parent=0 // pred_check_branch
    %18 = sbr.rel (0) target = $region17
  $region16: #{fused_forward.1} parent=0 // pred_region
    _
  $region17: #{fused_forward.1} parent=0 // pred_fallthru
    _
  // Predicated region
  $region18: #{fused_forward.1} parent=0 // pred_check
    _
  $region19: #{fused_forward.1} parent=0 // pred_check_branch
    %20 = sbr.rel (0) target = $region21
  $region20: #{fused_forward.1} parent=0 // pred_region
    _
  $region21: #{fused_forward.1} parent=0 // pred_fallthru
    _
  // Predicated region
  $region22: #{fused_forward.1} parent=0 // pred_check
    _
  $region23: #{fused_forward.1} parent=0 // pred_check_branch
    %22 = sbr.rel (0) target = $region25
  $region24: #{fused_forward.1} parent=0 // pred_region
    _
  $region25: #{fused_forward.1} parent=0 // pred_fallthru
    _
  %v24 = vld [vmem:[%s0] sm:$0xff]
  %v25 = vld [vmem:[%s0 + $0x8] sm:$0xff]
  %v26 = vld [vmem:[%s0 + $0x10] sm:$0xff]
  %v27 = vld [vmem:[%s0 + $0x18] sm:$0xff]
  %v28 = vld [vmem:[%s0 + $0x20] sm:$0xff]
  %v29 = vld [vmem:[%s0 + $0x28] sm:$0xff]
  %v30 = vld [vmem:[%s0 + $0x30] sm:$0xff]
  %v31 = vld [vmem:[%s0 + $0x38] sm:$0xff]
  %v32 = vld [vmem:[%s0 + $0x40] sm:$0xff]
  %v33 = vld [vmem:[%s0 + $0x48] sm:$0xff]
  %v34 = vld [vmem:[%s0 + $0x50] sm:$0xff]
  %v35 = vld [vmem:[%s0 + $0x58] sm:$0xff]
  %v36 = vld [vmem:[%s0 + $0x60] sm:$0xff]
  %v37 = vld [vmem:[%s0 + $0x68] sm:$0xff]
  %v38 = vld [vmem:[%s0 + $0x70] sm:$0xff]
  %v39 = vld [vmem:[%s0 + $0x78] sm:$0xff]
  %v40 = vld [vmem:[%s0 + $0x80] sm:$0xff]
  %v41 = vld [vmem:[%s0 + $0x88] sm:$0xff]
  %v42 = vld [vmem:[%s0 + $0x90] sm:$0xff]
  %v43 = vld [vmem:[%s0 + $0x98] sm:$0xff]
  %v44 = vld [vmem:[%s0 + $0xa0] sm:$0xff]
  %v45 = vld [vmem:[%s0 + $0xa8] sm:$0xff]
  %v46 = vld [vmem:[%s0 + $0xb0] sm:$0xff]
  %v47 = vld [vmem:[%s0 + $0xb8] sm:$0xff]
  %v48 = vld [vmem:[%s0 + $0xc0] sm:$0xff]
  %v49 = vld [vmem:[%s0 + $0xc8] sm:$0xff]
  %v50 = vld [vmem:[%s0 + $0xd0] sm:$0xff]
  %v51 = vld [vmem:[%s0 + $0xd8] sm:$0xff]
  %v52 = vld [vmem:[%s0 + $0xe0] sm:$0xff]
  %v53 = vld [vmem:[%s0 + $0xe8] sm:$0xff]
  %v54 = vld [vmem:[%s0 + $0xf0] sm:$0xff]
  %v55 = vld [vmem:[%s0 + $0xf8] sm:$0xff]
  %v56 = vld [vmem:[%s0 + $0x100] sm:$0xff]
  %v57 = vld [vmem:[%s0 + $0x108] sm:$0xff]
  %v58 = vld [vmem:[%s0 + $0x110] sm:$0xff]
  %v59 = vld [vmem:[%s0 + $0x118] sm:$0xff]
  %v60 = vld [vmem:[%s0 + $0x120] sm:$0xff]
  %v61 = vld [vmem:[%s0 + $0x128] sm:$0xff]
  %v62 = vld [vmem:[%s0 + $0x130] sm:$0xff]
  %v63 = vld [vmem:[%s0 + $0x138] sm:$0xff]
  %v64 = vld [vmem:[%s0 + $0x140] sm:$0xff]
  %v65 = vld [vmem:[%s0 + $0x148] sm:$0xff]
  %v66 = vld [vmem:[%s0 + $0x150] sm:$0xff]
  %v67 = vld [vmem:[%s0 + $0x158] sm:$0xff]
  %v68 = vld [vmem:[%s0 + $0x160] sm:$0xff]
  %v69 = vld [vmem:[%s0 + $0x168] sm:$0xff]
  %v70 = vld [vmem:[%s0 + $0x170] sm:$0xff]
  %v71 = vld [vmem:[%s0 + $0x178] sm:$0xff]
  %v72 = vld [vmem:[%s0 + $0x180] sm:$0xff]
  %v73 = vld [vmem:[%s0 + $0x188] sm:$0xff]
  %v74 = vld [vmem:[%s0 + $0x190] sm:$0xff]
  %v75 = vld [vmem:[%s0 + $0x198] sm:$0xff]
  %v76 = vld [vmem:[%s0 + $0x1a0] sm:$0xff]
  %v77 = vld [vmem:[%s0 + $0x1a8] sm:$0xff]
  %v78 = vld [vmem:[%s0 + $0x1b0] sm:$0xff]
  %v79 = vld [vmem:[%s0 + $0x1b8] sm:$0xff]
  %v80 = vld [vmem:[%s0 + $0x1c0] sm:$0xff]
  %v81 = vld [vmem:[%s0 + $0x1c8] sm:$0xff]
  %v82 = vld [vmem:[%s0 + $0x1d0] sm:$0xff]
  %v83 = vld [vmem:[%s0 + $0x1d8] sm:$0xff]
  %v84 = vld [vmem:[%s0 + $0x1e0] sm:$0xff]
  %v85 = vld [vmem:[%s0 + $0x1e8] sm:$0xff]
  %v86 = vld [vmem:[%s0 + $0x1f0] sm:$0xff]
  %v87 = vld [vmem:[%s0 + $0x1f8] sm:$0xff]
  %v88 = vld [vmem:[%s0 + $0x200] sm:$0xff]
  %v89 = vld [vmem:[%s0 + $0x208] sm:$0xff]
  %v90 = vld [vmem:[%s0 + $0x210] sm:$0xff]
  %v91 = vld [vmem:[%s0 + $0x218] sm:$0xff]
  %v92 = vld [vmem:[%s0 + $0x220] sm:$0xff]
  %v93 = vld [vmem:[%s0 + $0x228] sm:$0xff]
  %v94 = vld [vmem:[%s0 + $0x230] sm:$0xff]
  %v95 = vld [vmem:[%s0 + $0x238] sm:$0xff]
  %v96 = vld [vmem:[%s0 + $0x240] sm:$0xff]
  %v97 = vld [vmem:[%s0 + $0x248] sm:$0xff]
  %v98 = vld [vmem:[%s0 + $0x250] sm:$0xff]
  %v99 = vld [vmem:[%s0 + $0x258] sm:$0xff]
  %v100 = vld [vmem:[%s0 + $0x260] sm:$0xff]
  %v101 = vld [vmem:[%s0 + $0x268] sm:$0xff]
  %v102 = vld [vmem:[%s0 + $0x270] sm:$0xff]
  %v103 = vld [vmem:[%s0 + $0x278] sm:$0xff]
  %v104 = vld [vmem:[%s0 + $0x280] sm:$0xff]
  %v105 = vld [vmem:[%s0 + $0x288] sm:$0xff]
  %v106 = vld [vmem:[%s0 + $0x290] sm:$0xff]
  %v107 = vld [vmem:[%s0 + $0x298] sm:$0xff]
  %v108 = vld [vmem:[%s0 + $0x2a0] sm:$0xff]
  %v109 = vld [vmem:[%s0 + $0x2a8] sm:$0xff]
  %v110 = vld [vmem:[%s0 + $0x2b0] sm:$0xff]
  %v111 = vld [vmem:[%s0 + $0x2b8] sm:$0xff]
  %v112 = vld [vmem:[%s0 + $0x2c0] sm:$0xff]
  %v113 = vld [vmem:[%s0 + $0x2c8] sm:$0xff]
  %v114 = vld [vmem:[%s0 + $0x2d0] sm:$0xff]
  %v115 = vld [vmem:[%s0 + $0x2d8] sm:$0xff]
  %v116 = vld [vmem:[%s0 + $0x2e0] sm:$0xff]
  %v117 = vld [vmem:[%s0 + $0x2e8] sm:$0xff]
  %v118 = vld [vmem:[%s0 + $0x2f0] sm:$0xff]
  %v119 = vld [vmem:[%s0 + $0x2f8] sm:$0xff]
  %v120 = vld [vmem:[%s0 + $0x300] sm:$0xff]
  %v121 = vld [vmem:[%s0 + $0x308] sm:$0xff]
  %v122 = vld [vmem:[%s0 + $0x310] sm:$0xff]
  %v123 = vld [vmem:[%s0 + $0x318] sm:$0xff]
  %v124 = vld [vmem:[%s0 + $0x320] sm:$0xff]
  %v125 = vld [vmem:[%s0 + $0x328] sm:$0xff]
  %v126 = vld [vmem:[%s0 + $0x330] sm:$0xff]
  %v127 = vld [vmem:[%s0 + $0x338] sm:$0xff]
  %v128 = vld [vmem:[%s0 + $0x340] sm:$0xff]
  %v129 = vld [vmem:[%s0 + $0x348] sm:$0xff]
  %v130 = vld [vmem:[%s0 + $0x350] sm:$0xff]
  %v131 = vld [vmem:[%s0 + $0x358] sm:$0xff]
  %v132 = vld [vmem:[%s0 + $0x360] sm:$0xff]
  %v133 = vld [vmem:[%s0 + $0x368] sm:$0xff]
  %v134 = vld [vmem:[%s0 + $0x370] sm:$0xff]
  %v135 = vld [vmem:[%s0 + $0x378] sm:$0xff]
  %v136 = vld [vmem:[%s0 + $0x380] sm:$0xff]
  %v137 = vld [vmem:[%s0 + $0x388] sm:$0xff]
  %v138 = vld [vmem:[%s0 + $0x390] sm:$0xff]
  %v139 = vld [vmem:[%s0 + $0x398] sm:$0xff]
  %v140 = vld [vmem:[%s0 + $0x3a0] sm:$0xff]
  %v141 = vld [vmem:[%s0 + $0x3a8] sm:$0xff]
  %v142 = vld [vmem:[%s0 + $0x3b0] sm:$0xff]
  %v143 = vld [vmem:[%s0 + $0x3b8] sm:$0xff]
  %v144 = vld [vmem:[%s0 + $0x3c0] sm:$0xff]
  %v145 = vld [vmem:[%s0 + $0x3c8] sm:$0xff]
  %v146 = vld [vmem:[%s0 + $0x3d0] sm:$0xff]
  %v147 = vld [vmem:[%s0 + $0x3d8] sm:$0xff]
  %v148 = vld [vmem:[%s0 + $0x3e0] sm:$0xff]
  %v149 = vld [vmem:[%s0 + $0x3e8] sm:$0xff]
  %v150 = vld [vmem:[%s0 + $0x3f0] sm:$0xff]
  %v151 = vld [vmem:[%s0 + $0x3f8] sm:$0xff]
  %v152 = vld [vmem:[%s0 + $0x400] sm:$0xff]
  %v153 = vld [vmem:[%s0 + $0x408] sm:$0xff]
  %v154 = vld [vmem:[%s0 + $0x410] sm:$0xff]
  %v155 = vld [vmem:[%s0 + $0x418] sm:$0xff]
  %v156 = vld [vmem:[%s0 + $0x420] sm:$0xff]
  %v157 = vld [vmem:[%s0 + $0x428] sm:$0xff]
  %v158 = vld [vmem:[%s0 + $0x430] sm:$0xff]
  %v159 = vld [vmem:[%s0 + $0x438] sm:$0xff]
  %v160 = vld [vmem:[%s0 + $0x440] sm:$0xff]
  %v161 = vld [vmem:[%s0 + $0x448] sm:$0xff]
  %v162 = vld [vmem:[%s0 + $0x450] sm:$0xff]
  %v163 = vld [vmem:[%s0 + $0x458] sm:$0xff]
  %v164 = vld [vmem:[%s0 + $0x460] sm:$0xff]
  %v165 = vld [vmem:[%s0 + $0x468] sm:$0xff]
  %v166 = vld [vmem:[%s0 + $0x470] sm:$0xff]
  %v167 = vld [vmem:[%s0 + $0x478] sm:$0xff]
  %v168 = vld [vmem:[%s0 + $0x480] sm:$0xff]
  %v169 = vld [vmem:[%s0 + $0x488] sm:$0xff]
  %v170 = vld [vmem:[%s0 + $0x490] sm:$0xff]
  %v171 = vld [vmem:[%s0 + $0x498] sm:$0xff]
  %v172 = vld [vmem:[%s0 + $0x4a0] sm:$0xff]
  %v173 = vld [vmem:[%s0 + $0x4a8] sm:$0xff]
  %v174 = vld [vmem:[%s0 + $0x4b0] sm:$0xff]
  %v175 = vld [vmem:[%s0 + $0x4b8] sm:$0xff]
  %v176 = vld [vmem:[%s0 + $0x4c0] sm:$0xff]
  %v177 = vld [vmem:[%s0 + $0x4c8] sm:$0xff]
  %v178 = vld [vmem:[%s0 + $0x4d0] sm:$0xff]
  %v179 = vld [vmem:[%s0 + $0x4d8] sm:$0xff]
  %v180 = vld [vmem:[%s0 + $0x4e0] sm:$0xff]
  %v181 = vld [vmem:[%s0 + $0x4e8] sm:$0xff]
  %v182 = vld [vmem:[%s0 + $0x4f0] sm:$0xff]
  %v183 = vld [vmem:[%s0 + $0x4f8] sm:$0xff]
  %v184 = vld [vmem:[%s0 + $0x500] sm:$0xff]
  %v185 = vld [vmem:[%s0 + $0x508] sm:$0xff]
  %v186 = vld [vmem:[%s0 + $0x510] sm:$0xff]
  %v187 = vld [vmem:[%s0 + $0x518] sm:$0xff]
  %v188 = vld [vmem:[%s0 + $0x520] sm:$0xff]
  %v189 = vld [vmem:[%s0 + $0x528] sm:$0xff]
  %v190 = vld [vmem:[%s0 + $0x530] sm:$0xff]
  %v191 = vld [vmem:[%s0 + $0x538] sm:$0xff]
  %v192 = vld [vmem:[%s0 + $0x540] sm:$0xff]
  %v193 = vld [vmem:[%s0 + $0x548] sm:$0xff]
  %v194 = vld [vmem:[%s0 + $0x550] sm:$0xff]
  %v195 = vld [vmem:[%s0 + $0x558] sm:$0xff]
  %v196 = vld [vmem:[%s0 + $0x560] sm:$0xff]
  %v197 = vld [vmem:[%s0 + $0x568] sm:$0xff]
  %v198 = vld [vmem:[%s0 + $0x570] sm:$0xff]
  %v199 = vld [vmem:[%s0 + $0x578] sm:$0xff]
  %v200 = vld [vmem:[%s0 + $0x580] sm:$0xff]
  %v201 = vld [vmem:[%s0 + $0x588] sm:$0xff]
  %v202 = vld [vmem:[%s0 + $0x590] sm:$0xff]
  %v203 = vld [vmem:[%s0 + $0x598] sm:$0xff]
  %v204 = vld [vmem:[%s0 + $0x5a0] sm:$0xff]
  %v205 = vld [vmem:[%s0 + $0x5a8] sm:$0xff]
  %v206 = vld [vmem:[%s0 + $0x5b0] sm:$0xff]
  %v207 = vld [vmem:[%s0 + $0x5b8] sm:$0xff]
  %v208 = vld [vmem:[%s0 + $0x5c0] sm:$0xff]
  %v209 = vld [vmem:[%s0 + $0x5c8] sm:$0xff]
  %v210 = vld [vmem:[%s0 + $0x5d0] sm:$0xff]
  %v211 = vld [vmem:[%s0 + $0x5d8] sm:$0xff]
  %v212 = vld [vmem:[%s0 + $0x5e0] sm:$0xff]
  %v213 = vld [vmem:[%s0 + $0x5e8] sm:$0xff]
  %v214 = vld [vmem:[%s0 + $0x5f0] sm:$0xff]
  %v215 = vld [vmem:[%s0 + $0x5f8] sm:$0xff]
  %v216 = vld [vmem:[%s0 + $0x600] sm:$0xff]
  %v217 = vld [vmem:[%s0 + $0x608] sm:$0xff]
  %v218 = vld [vmem:[%s0 + $0x610] sm:$0xff]
  %v219 = vld [vmem:[%s0 + $0x618] sm:$0xff]
  %v220 = vld [vmem:[%s0 + $0x620] sm:$0xff]
  %v221 = vld [vmem:[%s0 + $0x628] sm:$0xff]
  %v222 = vld [vmem:[%s0 + $0x630] sm:$0xff]
  %v223 = vld [vmem:[%s0 + $0x638] sm:$0xff]
  %v224 = vld [vmem:[%s0 + $0x640] sm:$0xff]
  %v225 = vld [vmem:[%s0 + $0x648] sm:$0xff]
  %v226 = vld [vmem:[%s0 + $0x650] sm:$0xff]
  %v227 = vld [vmem:[%s0 + $0x658] sm:$0xff]
  %v228 = vld [vmem:[%s0 + $0x660] sm:$0xff]
  %v229 = vld [vmem:[%s0 + $0x668] sm:$0xff]
  %v230 = vld [vmem:[%s0 + $0x670] sm:$0xff]
  %v231 = vld [vmem:[%s0 + $0x678] sm:$0xff]
  %v232 = vld [vmem:[%s0 + $0x680] sm:$0xff]
  %v233 = vld [vmem:[%s0 + $0x688] sm:$0xff]
  %v234 = vld [vmem:[%s0 + $0x690] sm:$0xff]
  %v235 = vld [vmem:[%s0 + $0x698] sm:$0xff]
  %v236 = vld [vmem:[%s0 + $0x6a0] sm:$0xff]
  %v237 = vld [vmem:[%s0 + $0x6a8] sm:$0xff]
  %v238 = vld [vmem:[%s0 + $0x6b0] sm:$0xff]
  %v239 = vld [vmem:[%s0 + $0x6b8] sm:$0xff]
  %v240 = vld [vmem:[%s0 + $0x6c0] sm:$0xff]
  %v241 = vld [vmem:[%s0 + $0x6c8] sm:$0xff]
  %v242 = vld [vmem:[%s0 + $0x6d0] sm:$0xff]
  %v243 = vld [vmem:[%s0 + $0x6d8] sm:$0xff]
  %v244 = vld [vmem:[%s0 + $0x6e0] sm:$0xff]
  %v245 = vld [vmem:[%s0 + $0x6e8] sm:$0xff]
  %v246 = vld [vmem:[%s0 + $0x6f0] sm:$0xff]
  %v247 = vld [vmem:[%s0 + $0x6f8] sm:$0xff]
  %v248 = vld [vmem:[%s0 + $0x700] sm:$0xff]
  %v249 = vld [vmem:[%s0 + $0x708] sm:$0xff]
  %v250 = vld [vmem:[%s0 + $0x710] sm:$0xff]
  %v251 = vld [vmem:[%s0 + $0x718] sm:$0xff]
  %v252 = vld [vmem:[%s0 + $0x720] sm:$0xff]
  %v253 = vld [vmem:[%s0 + $0x728] sm:$0xff]
  %v254 = vld [vmem:[%s0 + $0x730] sm:$0xff]
  %v255 = vld [vmem:[%s0 + $0x738] sm:$0xff]
  %v256 = vld [vmem:[%s0 + $0x740] sm:$0xff]
  %v257 = vld [vmem:[%s0 + $0x748] sm:$0xff]
  %v258 = vld [vmem:[%s0 + $0x750] sm:$0xff]
  %v259 = vld [vmem:[%s0 + $0x758] sm:$0xff]
  %v260 = vld [vmem:[%s0 + $0x760] sm:$0xff]
  %v261 = vld [vmem:[%s0 + $0x768] sm:$0xff]
  %v262 = vld [vmem:[%s0 + $0x770] sm:$0xff]
  %v263 = vld [vmem:[%s0 + $0x778] sm:$0xff]
  %v264 = vld [vmem:[%s0 + $0x780] sm:$0xff]
  %v265 = vld [vmem:[%s0 + $0x788] sm:$0xff]
  %v266 = vld [vmem:[%s0 + $0x790] sm:$0xff]
  %v267 = vld [vmem:[%s0 + $0x798] sm:$0xff]
  %v268 = vld [vmem:[%s0 + $0x7a0] sm:$0xff]
  %v269 = vld [vmem:[%s0 + $0x7a8] sm:$0xff]
  %v270 = vld [vmem:[%s0 + $0x7b0] sm:$0xff]
  %v271 = vld [vmem:[%s0 + $0x7b8] sm:$0xff]
  %v272 = vld [vmem:[%s0 + $0x7c0] sm:$0xff]
  %v273 = vld [vmem:[%s0 + $0x7c8] sm:$0xff]
  %v274 = vld [vmem:[%s0 + $0x7d0] sm:$0xff]
  %v275 = vld [vmem:[%s0 + $0x7d8] sm:$0xff]
  %v276 = vld [vmem:[%s0 + $0x7e0] sm:$0xff]
  %v277 = vld [vmem:[%s0 + $0x7e8] sm:$0xff]
  %v278 = vld [vmem:[%s0 + $0x7f0] sm:$0xff]
  %v279 = vld [vmem:[%s0 + $0x7f8] sm:$0xff]
  %v280 = vld [vmem:[%s0 + $0x800] sm:$0xff]
  %v281 = vld [vmem:[%s0 + $0x808] sm:$0xff]
  %v282 = vld [vmem:[%s0 + $0x810] sm:$0xff]
  %v283 = vld [vmem:[%s0 + $0x818] sm:$0xff]
  %v284 = vld [vmem:[%s0 + $0x820] sm:$0xff]
  %v285 = vld [vmem:[%s0 + $0x828] sm:$0xff]
  %v286 = vld [vmem:[%s0 + $0x830] sm:$0xff]
  %v287 = vld [vmem:[%s0 + $0x838] sm:$0xff]
  %v288 = vld [vmem:[%s0 + $0x840] sm:$0xff]
  %v289 = vld [vmem:[%s0 + $0x848] sm:$0xff]
  %v290 = vld [vmem:[%s0 + $0x850] sm:$0xff]
  %v291 = vld [vmem:[%s0 + $0x858] sm:$0xff]
  %v292 = vld [vmem:[%s0 + $0x860] sm:$0xff]
  %v293 = vld [vmem:[%s0 + $0x868] sm:$0xff]
  %v294 = vld [vmem:[%s0 + $0x870] sm:$0xff]
  %v295 = vld [vmem:[%s0 + $0x878] sm:$0xff]
  %v296 = vld [vmem:[%s0 + $0x880] sm:$0xff]
  %v297 = vld [vmem:[%s0 + $0x888] sm:$0xff]
  %v298 = vld [vmem:[%s0 + $0x890] sm:$0xff]
  %v299 = vld [vmem:[%s0 + $0x898] sm:$0xff]
  %v300 = vld [vmem:[%s0 + $0x8a0] sm:$0xff]
  %v301 = vld [vmem:[%s0 + $0x8a8] sm:$0xff]
  %v302 = vld [vmem:[%s0 + $0x8b0] sm:$0xff]
  %v303 = vld [vmem:[%s0 + $0x8b8] sm:$0xff]
  %v304 = vld [vmem:[%s0 + $0x8c0] sm:$0xff]
  %v305 = vld [vmem:[%s0 + $0x8c8] sm:$0xff]
  %v306 = vld [vmem:[%s0 + $0x8d0] sm:$0xff]
  %v307 = vld [vmem:[%s0 + $0x8d8] sm:$0xff]
  %v308 = vld [vmem:[%s0 + $0x8e0] sm:$0xff]
  %v309 = vld [vmem:[%s0 + $0x8e8] sm:$0xff]
  %v310 = vld [vmem:[%s0 + $0x8f0] sm:$0xff]
  %v311 = vld [vmem:[%s0 + $0x8f8] sm:$0xff]
  %v312 = vld [vmem:[%s0 + $0x900] sm:$0xff]
  %v313 = vld [vmem:[%s0 + $0x908] sm:$0xff]
  %v314 = vld [vmem:[%s0 + $0x910] sm:$0xff]
  %v315 = vld [vmem:[%s0 + $0x918] sm:$0xff]
  %v316 = vld [vmem:[%s0 + $0x920] sm:$0xff]
  %v317 = vld [vmem:[%s0 + $0x928] sm:$0xff]
  %v318 = vld [vmem:[%s0 + $0x930] sm:$0xff]
  %v319 = vld [vmem:[%s0 + $0x938] sm:$0xff]
  %v320 = vld [vmem:[%s0 + $0x940] sm:$0xff]
  %v321 = vld [vmem:[%s0 + $0x948] sm:$0xff]
  %v322 = vld [vmem:[%s0 + $0x950] sm:$0xff]
  %v323 = vld [vmem:[%s0 + $0x958] sm:$0xff]
  %v324 = vld [vmem:[%s0 + $0x960] sm:$0xff]
  %v325 = vld [vmem:[%s0 + $0x968] sm:$0xff]
  %v326 = vld [vmem:[%s0 + $0x970] sm:$0xff]
  %v327 = vld [vmem:[%s0 + $0x978] sm:$0xff]
  %v328 = vld [vmem:[%s0 + $0x980] sm:$0xff]
  %v329 = vld [vmem:[%s0 + $0x988] sm:$0xff]
  %v330 = vld [vmem:[%s0 + $0x990] sm:$0xff]
  %v331 = vld [vmem:[%s0 + $0x998] sm:$0xff]
  %v332 = vld [vmem:[%s0 + $0x9a0] sm:$0xff]
  %v333 = vld [vmem:[%s0 + $0x9a8] sm:$0xff]
  %v334 = vld [vmem:[%s0 + $0x9b0] sm:$0xff]
  %v335 = vld [vmem:[%s0 + $0x9b8] sm:$0xff]
  %v336 = vld [vmem:[%s0 + $0x9c0] sm:$0xff]
  %v337 = vld [vmem:[%s0 + $0x9c8] sm:$0xff]
  %v338 = vld [vmem:[%s0 + $0x9d0] sm:$0xff]
  %v339 = vld [vmem:[%s0 + $0x9d8] sm:$0xff]
  %v340 = vld [vmem:[%s0 + $0x9e0] sm:$0xff]
  %v341 = vld [vmem:[%s0 + $0x9e8] sm:$0xff]
  %v342 = vld [vmem:[%s0 + $0x9f0] sm:$0xff]
  %v343 = vld [vmem:[%s0 + $0x9f8] sm:$0xff]
  %v344 = vld [vmem:[%s0 + $0xa00] sm:$0xff]
  %v345 = vld [vmem:[%s0 + $0xa08] sm:$0xff]
  %v346 = vld [vmem:[%s0 + $0xa10] sm:$0xff]
  %v347 = vld [vmem:[%s0 + $0xa18] sm:$0xff]
  %v348 = vld [vmem:[%s0 + $0xa20] sm:$0xff]
  %v349 = vld [vmem:[%s0 + $0xa28] sm:$0xff]
  %v350 = vld [vmem:[%s0 + $0xa30] sm:$0xff]
  %v351 = vld [vmem:[%s0 + $0xa38] sm:$0xff]
  %v352 = vld [vmem:[%s0 + $0xa40] sm:$0xff]
  %v353 = vld [vmem:[%s0 + $0xa48] sm:$0xff]
  %v354 = vld [vmem:[%s0 + $0xa50] sm:$0xff]
  %v355 = vld [vmem:[%s0 + $0xa58] sm:$0xff]
  %v356 = vld [vmem:[%s0 + $0xa60] sm:$0xff]
  %v357 = vld [vmem:[%s0 + $0xa68] sm:$0xff]
  %v358 = vld [vmem:[%s0 + $0xa70] sm:$0xff]
  %v359 = vld [vmem:[%s0 + $0xa78] sm:$0xff]
  %v360 = vld [vmem:[%s0 + $0xa80] sm:$0xff]
  %v361 = vld [vmem:[%s0 + $0xa88] sm:$0xff]
  %v362 = vld [vmem:[%s0 + $0xa90] sm:$0xff]
  %v363 = vld [vmem:[%s0 + $0xa98] sm:$0xff]
  %v364 = vld [vmem:[%s0 + $0xaa0] sm:$0xff]
  %v365 = vld [vmem:[%s0 + $0xaa8] sm:$0xff]
  %v366 = vld [vmem:[%s0 + $0xab0] sm:$0xff]
  %v367 = vld [vmem:[%s0 + $0xab8] sm:$0xff]
  %v368 = vld [vmem:[%s0 + $0xac0] sm:$0xff]
  %v369 = vld [vmem:[%s0 + $0xac8] sm:$0xff]
  %v370 = vld [vmem:[%s0 + $0xad0] sm:$0xff]
  %v371 = vld [vmem:[%s0 + $0xad8] sm:$0xff]
  %v372 = vld [vmem:[%s0 + $0xae0] sm:$0xff]
  %v373 = vld [vmem:[%s0 + $0xae8] sm:$0xff]
  %v374 = vld [vmem:[%s0 + $0xaf0] sm:$0xff]
  %v375 = vld [vmem:[%s0 + $0xaf8] sm:$0xff]
  %v376 = vld [vmem:[%s0 + $0xb00] sm:$0xff]
  %v377 = vld [vmem:[%s0 + $0xb08] sm:$0xff]
  %v378 = vld [vmem:[%s0 + $0xb10] sm:$0xff]
  %v379 = vld [vmem:[%s0 + $0xb18] sm:$0xff]
  %v380 = vld [vmem:[%s0 + $0xb20] sm:$0xff]
  %v381 = vld [vmem:[%s0 + $0xb28] sm:$0xff]
  %v382 = vld [vmem:[%s0 + $0xb30] sm:$0xff]
  %v383 = vld [vmem:[%s0 + $0xb38] sm:$0xff]
  %v384 = vld [vmem:[%s0 + $0xb40] sm:$0xff]
  %v385 = vld [vmem:[%s0 + $0xb48] sm:$0xff]
  %v386 = vld [vmem:[%s0 + $0xb50] sm:$0xff]
  %v387 = vld [vmem:[%s0 + $0xb58] sm:$0xff]
  %v388 = vld [vmem:[%s0 + $0xb60] sm:$0xff]
  %v389 = vld [vmem:[%s0 + $0xb68] sm:$0xff]
  %v390 = vld [vmem:[%s0 + $0xb70] sm:$0xff]
  %v391 = vld [vmem:[%s0 + $0xb78] sm:$0xff]
  %v392 = vld [vmem:[%s0 + $0xb80] sm:$0xff]
  %v393 = vld [vmem:[%s0 + $0xb88] sm:$0xff]
  %v394 = vld [vmem:[%s0 + $0xb90] sm:$0xff]
  %v395 = vld [vmem:[%s0 + $0xb98] sm:$0xff]
  %v396 = vld [vmem:[%s0 + $0xba0] sm:$0xff]
  %v397 = vld [vmem:[%s0 + $0xba8] sm:$0xff]
  %v398 = vld [vmem:[%s0 + $0xbb0] sm:$0xff]
  %v399 = vld [vmem:[%s0 + $0xbb8] sm:$0xff]
  %v400 = vld [vmem:[%s0 + $0xbc0] sm:$0xff]
  %v401 = vld [vmem:[%s0 + $0xbc8] sm:$0xff]
  %v402 = vld [vmem:[%s0 + $0xbd0] sm:$0xff]
  %v403 = vld [vmem:[%s0 + $0xbd8] sm:$0xff]
  %v404 = vld [vmem:[%s0 + $0xbe0] sm:$0xff]
  %v405 = vld [vmem:[%s0 + $0xbe8] sm:$0xff]
  %v406 = vld [vmem:[%s0 + $0xbf0] sm:$0xff]
  %v407 = vld [vmem:[%s0 + $0xbf8] sm:$0xff]
  %v408 = vld [vmem:[%s0 + $0xc00] sm:$0xff]
  %v409 = vld [vmem:[%s0 + $0xc08] sm:$0xff]
  %v410 = vld [vmem:[%s0 + $0xc10] sm:$0xff]
  %v411 = vld [vmem:[%s0 + $0xc18] sm:$0xff]
  %v412 = vld [vmem:[%s0 + $0xc20] sm:$0xff]
  %v413 = vld [vmem:[%s0 + $0xc28] sm:$0xff]
  %v414 = vld [vmem:[%s0 + $0xc30] sm:$0xff]
  %v415 = vld [vmem:[%s0 + $0xc38] sm:$0xff]
  %v416 = vld [vmem:[%s0 + $0xc40] sm:$0xff]
  %v417 = vld [vmem:[%s0 + $0xc48] sm:$0xff]
  %v418 = vld [vmem:[%s0 + $0xc50] sm:$0xff]
  %v419 = vld [vmem:[%s0 + $0xc58] sm:$0xff]
  %v420 = vld [vmem:[%s0 + $0xc60] sm:$0xff]
  %v421 = vld [vmem:[%s0 + $0xc68] sm:$0xff]
  %v422 = vld [vmem:[%s0 + $0xc70] sm:$0xff]
  %v423 = vld [vmem:[%s0 + $0xc78] sm:$0xff]
  %v424 = vld [vmem:[%s0 + $0xc80] sm:$0xff]
  %v425 = vld [vmem:[%s0 + $0xc88] sm:$0xff]
  %v426 = vld [vmem:[%s0 + $0xc90] sm:$0xff]
  %v427 = vld [vmem:[%s0 + $0xc98] sm:$0xff]
  %v428 = vld [vmem:[%s0 + $0xca0] sm:$0xff]
  %v429 = vld [vmem:[%s0 + $0xca8] sm:$0xff]
  %v430 = vld [vmem:[%s0 + $0xcb0] sm:$0xff]
  %v431 = vld [vmem:[%s0 + $0xcb8] sm:$0xff]
  %v432 = vld [vmem:[%s0 + $0xcc0] sm:$0xff]
  %v433 = vld [vmem:[%s0 + $0xcc8] sm:$0xff]
  %v434 = vld [vmem:[%s0 + $0xcd0] sm:$0xff]
  %v435 = vld [vmem:[%s0 + $0xcd8] sm:$0xff]
  %v436 = vld [vmem:[%s0 + $0xce0] sm:$0xff]
  %v437 = vld [vmem:[%s0 + $0xce8] sm:$0xff]
  %v438 = vld [vmem:[%s0 + $0xcf0] sm:$0xff]
  %v439 = vld [vmem:[%s0 + $0xcf8] sm:$0xff]
  %v440 = vld [vmem:[%s0 + $0xd00] sm:$0xff]
  %v441 = vld [vmem:[%s0 + $0xd08] sm:$0xff]
  %v442 = vld [vmem:[%s0 + $0xd10] sm:$0xff]
  %v443 = vld [vmem:[%s0 + $0xd18] sm:$0xff]
  %v444 = vld [vmem:[%s0 + $0xd20] sm:$0xff]
  %v445 = vld [vmem:[%s0 + $0xd28] sm:$0xff]
  %v446 = vld [vmem:[%s0 + $0xd30] sm:$0xff]
  %v447 = vld [vmem:[%s0 + $0xd38] sm:$0xff]
  %v448 = vld [vmem:[%s0 + $0xd40] sm:$0xff]
  %v449 = vld [vmem:[%s0 + $0xd48] sm:$0xff]
  %v450 = vld [vmem:[%s0 + $0xd50] sm:$0xff]
  %v451 = vld [vmem:[%s0 + $0xd58] sm:$0xff]
  %v452 = vld [vmem:[%s0 + $0xd60] sm:$0xff]
  %v453 = vld [vmem:[%s0 + $0xd68] sm:$0xff]
  %v454 = vld [vmem:[%s0 + $0xd70] sm:$0xff]
  %v455 = vld [vmem:[%s0 + $0xd78] sm:$0xff]
  %v456 = vld [vmem:[%s0 + $0xd80] sm:$0xff]
  %v457 = vld [vmem:[%s0 + $0xd88] sm:$0xff]
  %v458 = vld [vmem:[%s0 + $0xd90] sm:$0xff]
  %v459 = vld [vmem:[%s0 + $0xd98] sm:$0xff]
  %v460 = vld [vmem:[%s0 + $0xda0] sm:$0xff]
  %v461 = vld [vmem:[%s0 + $0xda8] sm:$0xff]
  %v462 = vld [vmem:[%s0 + $0xdb0] sm:$0xff]
  %v463 = vld [vmem:[%s0 + $0xdb8] sm:$0xff]
  %v464 = vld [vmem:[%s0 + $0xdc0] sm:$0xff]
  %v465 = vld [vmem:[%s0 + $0xdc8] sm:$0xff]
  %v466 = vld [vmem:[%s0 + $0xdd0] sm:$0xff]
  %v467 = vld [vmem:[%s0 + $0xdd8] sm:$0xff]
  %v468 = vld [vmem:[%s0 + $0xde0] sm:$0xff]
  %v469 = vld [vmem:[%s0 + $0xde8] sm:$0xff]
  %v470 = vld [vmem:[%s0 + $0xdf0] sm:$0xff]
  %v471 = vld [vmem:[%s0 + $0xdf8] sm:$0xff]
  %v472 = vld [vmem:[%s0 + $0xe00] sm:$0xff]
  %v473 = vld [vmem:[%s0 + $0xe08] sm:$0xff]
  %v474 = vld [vmem:[%s0 + $0xe10] sm:$0xff]
  %v475 = vld [vmem:[%s0 + $0xe18] sm:$0xff]
  %v476 = vld [vmem:[%s0 + $0xe20] sm:$0xff]
  %v477 = vld [vmem:[%s0 + $0xe28] sm:$0xff]
  %v478 = vld [vmem:[%s0 + $0xe30] sm:$0xff]
  %v479 = vld [vmem:[%s0 + $0xe38] sm:$0xff]
  %v480 = vld [vmem:[%s0 + $0xe40] sm:$0xff]
  %v481 = vld [vmem:[%s0 + $0xe48] sm:$0xff]
  %v482 = vld [vmem:[%s0 + $0xe50] sm:$0xff]
  %v483 = vld [vmem:[%s0 + $0xe58] sm:$0xff]
  %v484 = vld [vmem:[%s0 + $0xe60] sm:$0xff]
  %v485 = vld [vmem:[%s0 + $0xe68] sm:$0xff]
  %v486 = vld [vmem:[%s0 + $0xe70] sm:$0xff]
  %v487 = vld [vmem:[%s0 + $0xe78] sm:$0xff]
  %v488 = vld [vmem:[%s0 + $0xe80] sm:$0xff]
  %v489 = vld [vmem:[%s0 + $0xe88] sm:$0xff]
  %v490 = vld [vmem:[%s0 + $0xe90] sm:$0xff]
  %v491 = vld [vmem:[%s0 + $0xe98] sm:$0xff]
  %v492 = vld [vmem:[%s0 + $0xea0] sm:$0xff]
  %v493 = vld [vmem:[%s0 + $0xea8] sm:$0xff]
  %v494 = vld [vmem:[%s0 + $0xeb0] sm:$0xff]
  %v495 = vld [vmem:[%s0 + $0xeb8] sm:$0xff]
  %v496 = vld [vmem:[%s0 + $0xec0] sm:$0xff]
  %v497 = vld [vmem:[%s0 + $0xec8] sm:$0xff]
  %v498 = vld [vmem:[%s0 + $0xed0] sm:$0xff]
  %v499 = vld [vmem:[%s0 + $0xed8] sm:$0xff]
  %v500 = vld [vmem:[%s0 + $0xee0] sm:$0xff]
  %v501 = vld [vmem:[%s0 + $0xee8] sm:$0xff]
  %v502 = vld [vmem:[%s0 + $0xef0] sm:$0xff]
  %v503 = vld [vmem:[%s0 + $0xef8] sm:$0xff]
  %v504 = vld [vmem:[%s0 + $0xf00] sm:$0xff]
  %v505 = vld [vmem:[%s0 + $0xf08] sm:$0xff]
  %v506 = vld [vmem:[%s0 + $0xf10] sm:$0xff]
  %v507 = vld [vmem:[%s0 + $0xf18] sm:$0xff]
  %v508 = vld [vmem:[%s0 + $0xf20] sm:$0xff]
  %v509 = vld [vmem:[%s0 + $0xf28] sm:$0xff]
  %v510 = vld [vmem:[%s0 + $0xf30] sm:$0xff]
  %v511 = vld [vmem:[%s0 + $0xf38] sm:$0xff]
  %v512 = vld [vmem:[%s0 + $0xf40] sm:$0xff]
  %v513 = vld [vmem:[%s0 + $0xf48] sm:$0xff]
  %v514 = vld [vmem:[%s0 + $0xf50] sm:$0xff]
  %v515 = vld [vmem:[%s0 + $0xf58] sm:$0xff]
  %v516 = vld [vmem:[%s0 + $0xf60] sm:$0xff]
  %v517 = vld [vmem:[%s0 + $0xf68] sm:$0xff]
  %v518 = vld [vmem:[%s0 + $0xf70] sm:$0xff]
  %v519 = vld [vmem:[%s0 + $0xf78] sm:$0xff]
  %v520 = vld [vmem:[%s0 + $0xf80] sm:$0xff]
  %v521 = vld [vmem:[%s0 + $0xf88] sm:$0xff]
  %v522 = vld [vmem:[%s0 + $0xf90] sm:$0xff]
  %v523 = vld [vmem:[%s0 + $0xf98] sm:$0xff]
  %v524 = vld [vmem:[%s0 + $0xfa0] sm:$0xff]
  %v525 = vld [vmem:[%s0 + $0xfa8] sm:$0xff]
  %v526 = vld [vmem:[%s0 + $0xfb0] sm:$0xff]
  %v527 = vld [vmem:[%s0 + $0xfb8] sm:$0xff]
  %v528 = vld [vmem:[%s0 + $0xfc0] sm:$0xff]
  %v529 = vld [vmem:[%s0 + $0xfc8] sm:$0xff]
  %v530 = vld [vmem:[%s0 + $0xfd0] sm:$0xff]
  %v531 = vld [vmem:[%s0 + $0xfd8] sm:$0xff]
  %v532 = vld [vmem:[%s0 + $0xfe0] sm:$0xff]
  %v533 = vld [vmem:[%s0 + $0xfe8] sm:$0xff]
  %v534 = vld [vmem:[%s0 + $0xff0] sm:$0xff]
  %v535 = vld [vmem:[%s0 + $0xff8] sm:$0xff]
  %v536 = vld [vmem:[%s0 + $0x1000] sm:$0xff]
  %v537 = vld [vmem:[%s0 + $0x1008] sm:$0xff]
  %v538 = vld [vmem:[%s0 + $0x1010] sm:$0xff]
  %v539 = vld [vmem:[%s0 + $0x1018] sm:$0xff]
  %v540 = vld [vmem:[%s0 + $0x1020] sm:$0xff]
  %v541 = vld [vmem:[%s0 + $0x1028] sm:$0xff]
  %v542 = vld [vmem:[%s0 + $0x1030] sm:$0xff]
  %v543 = vld [vmem:[%s0 + $0x1038] sm:$0xff]
  %v544 = vld [vmem:[%s0 + $0x1040] sm:$0xff]
  %v545 = vld [vmem:[%s0 + $0x1048] sm:$0xff]
  %v546 = vld [vmem:[%s0 + $0x1050] sm:$0xff]
  %v547 = vld [vmem:[%s0 + $0x1058] sm:$0xff]
  %v548 = vld [vmem:[%s0 + $0x1060] sm:$0xff]
  %v549 = vld [vmem:[%s0 + $0x1068] sm:$0xff]
  %v550 = vld [vmem:[%s0 + $0x1070] sm:$0xff]
  %v551 = vld [vmem:[%s0 + $0x1078] sm:$0xff]
  %v552 = vld [vmem:[%s0 + $0x1080] sm:$0xff]
  %v553 = vld [vmem:[%s0 + $0x1088] sm:$0xff]
  %v554 = vld [vmem:[%s0 + $0x1090] sm:$0xff]
  %v555 = vld [vmem:[%s0 + $0x1098] sm:$0xff]
  %v556 = vld [vmem:[%s0 + $0x10a0] sm:$0xff]
  %v557 = vld [vmem:[%s0 + $0x10a8] sm:$0xff]
  %v558 = vld [vmem:[%s0 + $0x10b0] sm:$0xff]
  %v559 = vld [vmem:[%s0 + $0x10b8] sm:$0xff]
  %v560 = vld [vmem:[%s0 + $0x10c0] sm:$0xff]
  %v561 = vld [vmem:[%s0 + $0x10c8] sm:$0xff]
  %v562 = vld [vmem:[%s0 + $0x10d0] sm:$0xff]
  %v563 = vld [vmem:[%s0 + $0x10d8] sm:$0xff]
  %v564 = vld [vmem:[%s0 + $0x10e0] sm:$0xff]
  %v565 = vld [vmem:[%s0 + $0x10e8] sm:$0xff]
  %v566 = vld [vmem:[%s0 + $0x10f0] sm:$0xff]
  %v567 = vld [vmem:[%s0 + $0x10f8] sm:$0xff]
  %v568 = vld [vmem:[%s0 + $0x1100] sm:$0xff]
  %v569 = vld [vmem:[%s0 + $0x1108] sm:$0xff]
  %v570 = vld [vmem:[%s0 + $0x1110] sm:$0xff]
  %v571 = vld [vmem:[%s0 + $0x1118] sm:$0xff]
  %v572 = vld [vmem:[%s0 + $0x1120] sm:$0xff]
  %v573 = vld [vmem:[%s0 + $0x1128] sm:$0xff]
  %v574 = vld [vmem:[%s0 + $0x1130] sm:$0xff]
  %v575 = vld [vmem:[%s0 + $0x1138] sm:$0xff]
  %v576 = vld [vmem:[%s0 + $0x1140] sm:$0xff]
  %v577 = vld [vmem:[%s0 + $0x1148] sm:$0xff]
  %v578 = vld [vmem:[%s0 + $0x1150] sm:$0xff]
  %v579 = vld [vmem:[%s0 + $0x1158] sm:$0xff]
  %v580 = vld [vmem:[%s0 + $0x1160] sm:$0xff]
  %v581 = vld [vmem:[%s0 + $0x1168] sm:$0xff]
  %v582 = vld [vmem:[%s0 + $0x1170] sm:$0xff]
  %v583 = vld [vmem:[%s0 + $0x1178] sm:$0xff]
  %v584 = vld [vmem:[%s0 + $0x1180] sm:$0xff]
  %v585 = vld [vmem:[%s0 + $0x1188] sm:$0xff]
  %v586 = vld [vmem:[%s0 + $0x1190] sm:$0xff]
  %v587 = vld [vmem:[%s0 + $0x1198] sm:$0xff]
  %v588 = vld [vmem:[%s0 + $0x11a0] sm:$0xff]
  %v589 = vld [vmem:[%s0 + $0x11a8] sm:$0xff]
  %v590 = vld [vmem:[%s0 + $0x11b0] sm:$0xff]
  %v591 = vld [vmem:[%s0 + $0x11b8] sm:$0xff]
  %v592 = vld [vmem:[%s0 + $0x11c0] sm:$0xff]
  %v593 = vld [vmem:[%s0 + $0x11c8] sm:$0xff]
  %v594 = vld [vmem:[%s0 + $0x11d0] sm:$0xff]
  %v595 = vld [vmem:[%s0 + $0x11d8] sm:$0xff]
  %v596 = vld [vmem:[%s0 + $0x11e0] sm:$0xff]
  %v597 = vld [vmem:[%s0 + $0x11e8] sm:$0xff]
  %v598 = vld [vmem:[%s0 + $0x11f0] sm:$0xff]
  %v599 = vld [vmem:[%s0 + $0x11f8] sm:$0xff]
  %v600 = vld [vmem:[%s0 + $0x1200] sm:$0xff]
  %v601 = vld [vmem:[%s0 + $0x1208] sm:$0xff]
  %v602 = vld [vmem:[%s0 + $0x1210] sm:$0xff]
  %v603 = vld [vmem:[%s0 + $0x1218] sm:$0xff]
  %v604 = vld [vmem:[%s0 + $0x1220] sm:$0xff]
  %v605 = vld [vmem:[%s0 + $0x1228] sm:$0xff]
  %v606 = vld [vmem:[%s0 + $0x1230] sm:$0xff]
  %v607 = vld [vmem:[%s0 + $0x1238] sm:$0xff]
  %v608 = vld [vmem:[%s0 + $0x1240] sm:$0xff]
  %v609 = vld [vmem:[%s0 + $0x1248] sm:$0xff]
  %v610 = vld [vmem:[%s0 + $0x1250] sm:$0xff]
  %v611 = vld [vmem:[%s0 + $0x1258] sm:$0xff]
  %v612 = vld [vmem:[%s0 + $0x1260] sm:$0xff]
  %v613 = vld [vmem:[%s0 + $0x1268] sm:$0xff]
  %v614 = vld [vmem:[%s0 + $0x1270] sm:$0xff]
  %v615 = vld [vmem:[%s0 + $0x1278] sm:$0xff]
  %v616 = vld [vmem:[%s0 + $0x1280] sm:$0xff]
  %v617 = vld [vmem:[%s0 + $0x1288] sm:$0xff]
  %v618 = vld [vmem:[%s0 + $0x1290] sm:$0xff]
  %v619 = vld [vmem:[%s0 + $0x1298] sm:$0xff]
  %v620 = vld [vmem:[%s0 + $0x12a0] sm:$0xff]
  %v621 = vld [vmem:[%s0 + $0x12a8] sm:$0xff]
  %v622 = vld [vmem:[%s0 + $0x12b0] sm:$0xff]
  %v623 = vld [vmem:[%s0 + $0x12b8] sm:$0xff]
  %v624 = vld [vmem:[%s0 + $0x12c0] sm:$0xff]
  %v625 = vld [vmem:[%s0 + $0x12c8] sm:$0xff]
  %v626 = vld [vmem:[%s0 + $0x12d0] sm:$0xff]
  %v627 = vld [vmem:[%s0 + $0x12d8] sm:$0xff]
  %v628 = vld [vmem:[%s0 + $0x12e0] sm:$0xff]
  %v629 = vld [vmem:[%s0 + $0x12e8] sm:$0xff]
  %v630 = vld [vmem:[%s0 + $0x12f0] sm:$0xff]
  %v631 = vld [vmem:[%s0 + $0x12f8] sm:$0xff]
  %v632 = vld [vmem:[%s0 + $0x1300] sm:$0xff]
  %v633 = vld [vmem:[%s0 + $0x1308] sm:$0xff]
  %v634 = vld [vmem:[%s0 + $0x1310] sm:$0xff]
  %v635 = vld [vmem:[%s0 + $0x1318] sm:$0xff]
  %v636 = vld [vmem:[%s0 + $0x1320] sm:$0xff]
  %v637 = vld [vmem:[%s0 + $0x1328] sm:$0xff]
  %v638 = vld [vmem:[%s0 + $0x1330] sm:$0xff]
  %v639 = vld [vmem:[%s0 + $0x1338] sm:$0xff]
  %v640 = vld [vmem:[%s0 + $0x1340] sm:$0xff]
  %v641 = vld [vmem:[%s0 + $0x1348] sm:$0xff]
  %v642 = vld [vmem:[%s0 + $0x1350] sm:$0xff]
  %v643 = vld [vmem:[%s0 + $0x1358] sm:$0xff]
  %v644 = vld [vmem:[%s0 + $0x1360] sm:$0xff]
  %v645 = vld [vmem:[%s0 + $0x1368] sm:$0xff]
  %v646 = vld [vmem:[%s0 + $0x1370] sm:$0xff]
  %v647 = vld [vmem:[%s0 + $0x1378] sm:$0xff]
  %v648 = vld [vmem:[%s0 + $0x1380] sm:$0xff]
  %v649 = vld [vmem:[%s0 + $0x1388] sm:$0xff]
  %v650 = vld [vmem:[%s0 + $0x1390] sm:$0xff]
  %v651 = vld [vmem:[%s0 + $0x1398] sm:$0xff]
  %v652 = vld [vmem:[%s0 + $0x13a0] sm:$0xff]
  %v653 = vld [vmem:[%s0 + $0x13a8] sm:$0xff]
  %v654 = vadd.f32 %v24, %v25
  %v655 = vadd.f32 %v654, %v26
  %v656 = vadd.f32 %v655, %v27
  %v657 = vadd.f32 %v656, %v28
  %v658 = vadd.f32 %v657, %v29
  %vm659 = vcmask 130048
  %v660 = vsel %vm659, %v30, 0.0
  %v661 = vadd.f32 %v658, %v660
  %662 = vadd.xlane.f32.xlu0 %v661
  %v663 = vpop.xlane.xlu0 %662
  %v664 = vadd.f32 %v31, %v32
  %v665 = vadd.f32 %v664, %v33
  %v666 = vadd.f32 %v665, %v34
  %v667 = vadd.f32 %v666, %v35
  %v668 = vadd.f32 %v667, %v36
  %v669 = vsel %vm659, %v37, 0.0
  %v670 = vadd.f32 %v668, %v669
  %671 = vadd.xlane.f32.xlu0 %v670
  %v672 = vpop.xlane.xlu0 %671
  %v673 = vadd.f32 %v38, %v39
  %v674 = vadd.f32 %v673, %v40
  %v675 = vadd.f32 %v674, %v41
  %v676 = vadd.f32 %v675, %v42
  %v677 = vadd.f32 %v676, %v43
  %v678 = vsel %vm659, %v44, 0.0
  %v679 = vadd.f32 %v677, %v678
  %680 = vadd.xlane.f32.xlu0 %v679
  %v681 = vpop.xlane.xlu0 %680
  %v682 = vadd.f32 %v45, %v46
  %v683 = vadd.f32 %v682, %v47
  %v684 = vadd.f32 %v683, %v48
  %v685 = vadd.f32 %v684, %v49
  %v686 = vadd.f32 %v685, %v50
  %v687 = vsel %vm659, %v51, 0.0
  %v688 = vadd.f32 %v686, %v687
  %689 = vadd.xlane.f32.xlu0 %v688
  %v690 = vpop.xlane.xlu0 %689
  %v691 = vadd.f32 %v52, %v53
  %v692 = vadd.f32 %v691, %v54
  %v693 = vadd.f32 %v692, %v55
  %v694 = vadd.f32 %v693, %v56
  %v695 = vadd.f32 %v694, %v57
  %v696 = vsel %vm659, %v58, 0.0
  %v697 = vadd.f32 %v695, %v696
  %698 = vadd.xlane.f32.xlu0 %v697
  %v699 = vpop.xlane.xlu0 %698
  %v700 = vadd.f32 %v59, %v60
  %v701 = vadd.f32 %v700, %v61
  %v702 = vadd.f32 %v701, %v62
  %v703 = vadd.f32 %v702, %v63
  %v704 = vadd.f32 %v703, %v64
  %v705 = vsel %vm659, %v65, 0.0
  %v706 = vadd.f32 %v704, %v705
  %707 = vadd.xlane.f32.xlu0 %v706
  %v708 = vpop.xlane.xlu0 %707
  %v709 = vadd.f32 %v66, %v67
  %v710 = vadd.f32 %v709, %v68
  %v711 = vadd.f32 %v710, %v69
  %v712 = vadd.f32 %v711, %v70
  %v713 = vadd.f32 %v712, %v71
  %v714 = vsel %vm659, %v72, 0.0
  %v715 = vadd.f32 %v713, %v714
  %716 = vadd.xlane.f32.xlu0 %v715
  %v717 = vpop.xlane.xlu0 %716
  %v718 = vadd.f32 %v73, %v74
  %v719 = vadd.f32 %v718, %v75
  %v720 = vadd.f32 %v719, %v76
  %v721 = vadd.f32 %v720, %v77
  %v722 = vadd.f32 %v721, %v78
  %v723 = vsel %vm659, %v79, 0.0
  %v724 = vadd.f32 %v722, %v723
  %725 = vadd.xlane.f32.xlu0 %v724
  %v726 = vpop.xlane.xlu0 %725
  %v727 = vadd.f32 %v80, %v81
  %v728 = vadd.f32 %v727, %v82
  %v729 = vadd.f32 %v728, %v83
  %v730 = vadd.f32 %v729, %v84
  %v731 = vadd.f32 %v730, %v85
  %v732 = vsel %vm659, %v86, 0.0
  %v733 = vadd.f32 %v731, %v732
  %734 = vadd.xlane.f32.xlu0 %v733
  %v735 = vpop.xlane.xlu0 %734
  %v736 = vadd.f32 %v87, %v88
  %v737 = vadd.f32 %v736, %v89
  %v738 = vadd.f32 %v737, %v90
  %v739 = vadd.f32 %v738, %v91
  %v740 = vadd.f32 %v739, %v92
  %v741 = vsel %vm659, %v93, 0.0
  %v742 = vadd.f32 %v740, %v741
  %743 = vadd.xlane.f32.xlu0 %v742
  %v744 = vpop.xlane.xlu0 %743
  %v745 = vadd.f32 %v94, %v95
  %v746 = vadd.f32 %v745, %v96
  %v747 = vadd.f32 %v746, %v97
  %v748 = vadd.f32 %v747, %v98
  %v749 = vadd.f32 %v748, %v99
  %v750 = vsel %vm659, %v100, 0.0
  %v751 = vadd.f32 %v749, %v750
  %752 = vadd.xlane.f32.xlu0 %v751
  %v753 = vpop.xlane.xlu0 %752
  %v754 = vadd.f32 %v101, %v102
  %v755 = vadd.f32 %v754, %v103
  %v756 = vadd.f32 %v755, %v104
  %v757 = vadd.f32 %v756, %v105
  %v758 = vadd.f32 %v757, %v106
  %v759 = vsel %vm659, %v107, 0.0
  %v760 = vadd.f32 %v758, %v759
  %761 = vadd.xlane.f32.xlu0 %v760
  %v762 = vpop.xlane.xlu0 %761
  %v763 = vadd.f32 %v108, %v109
  %v764 = vadd.f32 %v763, %v110
  %v765 = vadd.f32 %v764, %v111
  %v766 = vadd.f32 %v765, %v112
  %v767 = vadd.f32 %v766, %v113
  %v768 = vsel %vm659, %v114, 0.0
  %v769 = vadd.f32 %v767, %v768
  %770 = vadd.xlane.f32.xlu0 %v769
  %v771 = vpop.xlane.xlu0 %770
  %v772 = vadd.f32 %v115, %v116
  %v773 = vadd.f32 %v772, %v117
  %v774 = vadd.f32 %v773, %v118
  %v775 = vadd.f32 %v774, %v119
  %v776 = vadd.f32 %v775, %v120
  %v777 = vsel %vm659, %v121, 0.0
  %v778 = vadd.f32 %v776, %v777
  %779 = vadd.xlane.f32.xlu0 %v778
  %v780 = vpop.xlane.xlu0 %779
  %v781 = vadd.f32 %v122, %v123
  %v782 = vadd.f32 %v781, %v124
  %v783 = vadd.f32 %v782, %v125
  %v784 = vadd.f32 %v783, %v126
  %v785 = vadd.f32 %v784, %v127
  %v786 = vsel %vm659, %v128, 0.0
  %v787 = vadd.f32 %v785, %v786
  %788 = vadd.xlane.f32.xlu0 %v787
  %v789 = vpop.xlane.xlu0 %788
  %v790 = vadd.f32 %v129, %v130
  %v791 = vadd.f32 %v790, %v131
  %v792 = vadd.f32 %v791, %v132
  %v793 = vadd.f32 %v792, %v133
  %v794 = vadd.f32 %v793, %v134
  %v795 = vsel %vm659, %v135, 0.0
  %v796 = vadd.f32 %v794, %v795
  %797 = vadd.xlane.f32.xlu0 %v796
  %v798 = vpop.xlane.xlu0 %797
  %v799 = vadd.f32 %v136, %v137
  %v800 = vadd.f32 %v799, %v138
  %v801 = vadd.f32 %v800, %v139
  %v802 = vadd.f32 %v801, %v140
  %v803 = vadd.f32 %v802, %v141
  %v804 = vsel %vm659, %v142, 0.0
  %v805 = vadd.f32 %v803, %v804
  %806 = vadd.xlane.f32.xlu0 %v805
  %v807 = vpop.xlane.xlu0 %806
  %v808 = vadd.f32 %v143, %v144
  %v809 = vadd.f32 %v808, %v145
  %v810 = vadd.f32 %v809, %v146
  %v811 = vadd.f32 %v810, %v147
  %v812 = vadd.f32 %v811, %v148
  %v813 = vsel %vm659, %v149, 0.0
  %v814 = vadd.f32 %v812, %v813
  %815 = vadd.xlane.f32.xlu0 %v814
  %v816 = vpop.xlane.xlu0 %815
  %v817 = vadd.f32 %v150, %v151
  %v818 = vadd.f32 %v817, %v152
  %v819 = vadd.f32 %v818, %v153
  %v820 = vadd.f32 %v819, %v154
  %v821 = vadd.f32 %v820, %v155
  %v822 = vsel %vm659, %v156, 0.0
  %v823 = vadd.f32 %v821, %v822
  %824 = vadd.xlane.f32.xlu0 %v823
  %v825 = vpop.xlane.xlu0 %824
  %v826 = vadd.f32 %v157, %v158
  %v827 = vadd.f32 %v826, %v159
  %v828 = vadd.f32 %v827, %v160
  %v829 = vadd.f32 %v828, %v161
  %v830 = vadd.f32 %v829, %v162
  %v831 = vsel %vm659, %v163, 0.0
  %v832 = vadd.f32 %v830, %v831
  %833 = vadd.xlane.f32.xlu0 %v832
  %v834 = vpop.xlane.xlu0 %833
  %v835 = vadd.f32 %v164, %v165
  %v836 = vadd.f32 %v835, %v166
  %v837 = vadd.f32 %v836, %v167
  %v838 = vadd.f32 %v837, %v168
  %v839 = vadd.f32 %v838, %v169
  %v840 = vsel %vm659, %v170, 0.0
  %v841 = vadd.f32 %v839, %v840
  %842 = vadd.xlane.f32.xlu0 %v841
  %v843 = vpop.xlane.xlu0 %842
  %v844 = vadd.f32 %v171, %v172
  %v845 = vadd.f32 %v844, %v173
  %v846 = vadd.f32 %v845, %v174
  %v847 = vadd.f32 %v846, %v175
  %v848 = vadd.f32 %v847, %v176
  %v849 = vsel %vm659, %v177, 0.0
  %v850 = vadd.f32 %v848, %v849
  %851 = vadd.xlane.f32.xlu0 %v850
  %v852 = vpop.xlane.xlu0 %851
  %v853 = vadd.f32 %v178, %v179
  %v854 = vadd.f32 %v853, %v180
  %v855 = vadd.f32 %v854, %v181
  %v856 = vadd.f32 %v855, %v182
  %v857 = vadd.f32 %v856, %v183
  %v858 = vsel %vm659, %v184, 0.0
  %v859 = vadd.f32 %v857, %v858
  %860 = vadd.xlane.f32.xlu0 %v859
  %v861 = vpop.xlane.xlu0 %860
  %v862 = vadd.f32 %v185, %v186
  %v863 = vadd.f32 %v862, %v187
  %v864 = vadd.f32 %v863, %v188
  %v865 = vadd.f32 %v864, %v189
  %v866 = vadd.f32 %v865, %v190
  %v867 = vsel %vm659, %v191, 0.0
  %v868 = vadd.f32 %v866, %v867
  %869 = vadd.xlane.f32.xlu0 %v868
  %v870 = vpop.xlane.xlu0 %869
  %v871 = vadd.f32 %v192, %v193
  %v872 = vadd.f32 %v871, %v194
  %v873 = vadd.f32 %v872, %v195
  %v874 = vadd.f32 %v873, %v196
  %v875 = vadd.f32 %v874, %v197
  %v876 = vsel %vm659, %v198, 0.0
  %v877 = vadd.f32 %v875, %v876
  %878 = vadd.xlane.f32.xlu0 %v877
  %v879 = vpop.xlane.xlu0 %878
  %v880 = vadd.f32 %v199, %v200
  %v881 = vadd.f32 %v880, %v201
  %v882 = vadd.f32 %v881, %v202
  %v883 = vadd.f32 %v882, %v203
  %v884 = vadd.f32 %v883, %v204
  %v885 = vsel %vm659, %v205, 0.0
  %v886 = vadd.f32 %v884, %v885
  %887 = vadd.xlane.f32.xlu0 %v886
  %v888 = vpop.xlane.xlu0 %887
  %v889 = vadd.f32 %v206, %v207
  %v890 = vadd.f32 %v889, %v208
  %v891 = vadd.f32 %v890, %v209
  %v892 = vadd.f32 %v891, %v210
  %v893 = vadd.f32 %v892, %v211
  %v894 = vsel %vm659, %v212, 0.0
  %v895 = vadd.f32 %v893, %v894
  %896 = vadd.xlane.f32.xlu0 %v895
  %v897 = vpop.xlane.xlu0 %896
  %v898 = vadd.f32 %v213, %v214
  %v899 = vadd.f32 %v898, %v215
  %v900 = vadd.f32 %v899, %v216
  %v901 = vadd.f32 %v900, %v217
  %v902 = vadd.f32 %v901, %v218
  %v903 = vsel %vm659, %v219, 0.0
  %v904 = vadd.f32 %v902, %v903
  %905 = vadd.xlane.f32.xlu0 %v904
  %v906 = vpop.xlane.xlu0 %905
  %v907 = vadd.f32 %v220, %v221
  %v908 = vadd.f32 %v907, %v222
  %v909 = vadd.f32 %v908, %v223
  %v910 = vadd.f32 %v909, %v224
  %v911 = vadd.f32 %v910, %v225
  %v912 = vsel %vm659, %v226, 0.0
  %v913 = vadd.f32 %v911, %v912
  %914 = vadd.xlane.f32.xlu0 %v913
  %v915 = vpop.xlane.xlu0 %914
  %v916 = vadd.f32 %v227, %v228
  %v917 = vadd.f32 %v916, %v229
  %v918 = vadd.f32 %v917, %v230
  %v919 = vadd.f32 %v918, %v231
  %v920 = vadd.f32 %v919, %v232
  %v921 = vsel %vm659, %v233, 0.0
  %v922 = vadd.f32 %v920, %v921
  %923 = vadd.xlane.f32.xlu0 %v922
  %v924 = vpop.xlane.xlu0 %923
  %v925 = vadd.f32 %v234, %v235
  %v926 = vadd.f32 %v925, %v236
  %v927 = vadd.f32 %v926, %v237
  %v928 = vadd.f32 %v927, %v238
  %v929 = vadd.f32 %v928, %v239
  %v930 = vsel %vm659, %v240, 0.0
  %v931 = vadd.f32 %v929, %v930
  %932 = vadd.xlane.f32.xlu0 %v931
  %v933 = vpop.xlane.xlu0 %932
  %v934 = vadd.f32 %v241, %v242
  %v935 = vadd.f32 %v934, %v243
  %v936 = vadd.f32 %v935, %v244
  %v937 = vadd.f32 %v936, %v245
  %v938 = vadd.f32 %v937, %v246
  %v939 = vsel %vm659, %v247, 0.0
  %v940 = vadd.f32 %v938, %v939
  %941 = vadd.xlane.f32.xlu0 %v940
  %v942 = vpop.xlane.xlu0 %941
  %v943 = vadd.f32 %v248, %v249
  %v944 = vadd.f32 %v943, %v250
  %v945 = vadd.f32 %v944, %v251
  %v946 = vadd.f32 %v945, %v252
  %v947 = vadd.f32 %v946, %v253
  %v948 = vsel %vm659, %v254, 0.0
  %v949 = vadd.f32 %v947, %v948
  %950 = vadd.xlane.f32.xlu0 %v949
  %v951 = vpop.xlane.xlu0 %950
  %v952 = vadd.f32 %v255, %v256
  %v953 = vadd.f32 %v952, %v257
  %v954 = vadd.f32 %v953, %v258
  %v955 = vadd.f32 %v954, %v259
  %v956 = vadd.f32 %v955, %v260
  %v957 = vsel %vm659, %v261, 0.0
  %v958 = vadd.f32 %v956, %v957
  %959 = vadd.xlane.f32.xlu0 %v958
  %v960 = vpop.xlane.xlu0 %959
  %v961 = vadd.f32 %v262, %v263
  %v962 = vadd.f32 %v961, %v264
  %v963 = vadd.f32 %v962, %v265
  %v964 = vadd.f32 %v963, %v266
  %v965 = vadd.f32 %v964, %v267
  %v966 = vsel %vm659, %v268, 0.0
  %v967 = vadd.f32 %v965, %v966
  %968 = vadd.xlane.f32.xlu0 %v967
  %v969 = vpop.xlane.xlu0 %968
  %v970 = vadd.f32 %v269, %v270
  %v971 = vadd.f32 %v970, %v271
  %v972 = vadd.f32 %v971, %v272
  %v973 = vadd.f32 %v972, %v273
  %v974 = vadd.f32 %v973, %v274
  %v975 = vsel %vm659, %v275, 0.0
  %v976 = vadd.f32 %v974, %v975
  %977 = vadd.xlane.f32.xlu0 %v976
  %v978 = vpop.xlane.xlu0 %977
  %v979 = vadd.f32 %v276, %v277
  %v980 = vadd.f32 %v979, %v278
  %v981 = vadd.f32 %v980, %v279
  %v982 = vadd.f32 %v981, %v280
  %v983 = vadd.f32 %v982, %v281
  %v984 = vsel %vm659, %v282, 0.0
  %v985 = vadd.f32 %v983, %v984
  %986 = vadd.xlane.f32.xlu0 %v985
  %v987 = vpop.xlane.xlu0 %986
  %v988 = vadd.f32 %v283, %v284
  %v989 = vadd.f32 %v988, %v285
  %v990 = vadd.f32 %v989, %v286
  %v991 = vadd.f32 %v990, %v287
  %v992 = vadd.f32 %v991, %v288
  %v993 = vsel %vm659, %v289, 0.0
  %v994 = vadd.f32 %v992, %v993
  %995 = vadd.xlane.f32.xlu0 %v994
  %v996 = vpop.xlane.xlu0 %995
  %v997 = vadd.f32 %v290, %v291
  %v998 = vadd.f32 %v997, %v292
  %v999 = vadd.f32 %v998, %v293
  %v1000 = vadd.f32 %v999, %v294
  %v1001 = vadd.f32 %v1000, %v295
  %v1002 = vsel %vm659, %v296, 0.0
  %v1003 = vadd.f32 %v1001, %v1002
  %1004 = vadd.xlane.f32.xlu0 %v1003
  %v1005 = vpop.xlane.xlu0 %1004
  %v1006 = vadd.f32 %v297, %v298
  %v1007 = vadd.f32 %v1006, %v299
  %v1008 = vadd.f32 %v1007, %v300
  %v1009 = vadd.f32 %v1008, %v301
  %v1010 = vadd.f32 %v1009, %v302
  %v1011 = vsel %vm659, %v303, 0.0
  %v1012 = vadd.f32 %v1010, %v1011
  %1013 = vadd.xlane.f32.xlu0 %v1012
  %v1014 = vpop.xlane.xlu0 %1013
  %v1015 = vadd.f32 %v304, %v305
  %v1016 = vadd.f32 %v1015, %v306
  %v1017 = vadd.f32 %v1016, %v307
  %v1018 = vadd.f32 %v1017, %v308
  %v1019 = vadd.f32 %v1018, %v309
  %v1020 = vsel %vm659, %v310, 0.0
  %v1021 = vadd.f32 %v1019, %v1020
  %1022 = vadd.xlane.f32.xlu0 %v1021
  %v1023 = vpop.xlane.xlu0 %1022
  %v1024 = vadd.f32 %v311, %v312
  %v1025 = vadd.f32 %v1024, %v313
  %v1026 = vadd.f32 %v1025, %v314
  %v1027 = vadd.f32 %v1026, %v315
  %v1028 = vadd.f32 %v1027, %v316
  %v1029 = vsel %vm659, %v317, 0.0
  %v1030 = vadd.f32 %v1028, %v1029
  %1031 = vadd.xlane.f32.xlu0 %v1030
  %v1032 = vpop.xlane.xlu0 %1031
  %v1033 = vadd.f32 %v318, %v319
  %v1034 = vadd.f32 %v1033, %v320
  %v1035 = vadd.f32 %v1034, %v321
  %v1036 = vadd.f32 %v1035, %v322
  %v1037 = vadd.f32 %v1036, %v323
  %v1038 = vsel %vm659, %v324, 0.0
  %v1039 = vadd.f32 %v1037, %v1038
  %1040 = vadd.xlane.f32.xlu0 %v1039
  %v1041 = vpop.xlane.xlu0 %1040
  %v1042 = vadd.f32 %v325, %v326
  %v1043 = vadd.f32 %v1042, %v327
  %v1044 = vadd.f32 %v1043, %v328
  %v1045 = vadd.f32 %v1044, %v329
  %v1046 = vadd.f32 %v1045, %v330
  %v1047 = vsel %vm659, %v331, 0.0
  %v1048 = vadd.f32 %v1046, %v1047
  %1049 = vadd.xlane.f32.xlu0 %v1048
  %v1050 = vpop.xlane.xlu0 %1049
  %v1051 = vadd.f32 %v332, %v333
  %v1052 = vadd.f32 %v1051, %v334
  %v1053 = vadd.f32 %v1052, %v335
  %v1054 = vadd.f32 %v1053, %v336
  %v1055 = vadd.f32 %v1054, %v337
  %v1056 = vsel %vm659, %v338, 0.0
  %v1057 = vadd.f32 %v1055, %v1056
  %1058 = vadd.xlane.f32.xlu0 %v1057
  %v1059 = vpop.xlane.xlu0 %1058
  %v1060 = vadd.f32 %v339, %v340
  %v1061 = vadd.f32 %v1060, %v341
  %v1062 = vadd.f32 %v1061, %v342
  %v1063 = vadd.f32 %v1062, %v343
  %v1064 = vadd.f32 %v1063, %v344
  %v1065 = vsel %vm659, %v345, 0.0
  %v1066 = vadd.f32 %v1064, %v1065
  %1067 = vadd.xlane.f32.xlu0 %v1066
  %v1068 = vpop.xlane.xlu0 %1067
  %v1069 = vadd.f32 %v346, %v347
  %v1070 = vadd.f32 %v1069, %v348
  %v1071 = vadd.f32 %v1070, %v349
  %v1072 = vadd.f32 %v1071, %v350
  %v1073 = vadd.f32 %v1072, %v351
  %v1074 = vsel %vm659, %v352, 0.0
  %v1075 = vadd.f32 %v1073, %v1074
  %1076 = vadd.xlane.f32.xlu0 %v1075
  %v1077 = vpop.xlane.xlu0 %1076
  %v1078 = vadd.f32 %v353, %v354
  %v1079 = vadd.f32 %v1078, %v355
  %v1080 = vadd.f32 %v1079, %v356
  %v1081 = vadd.f32 %v1080, %v357
  %v1082 = vadd.f32 %v1081, %v358
  %v1083 = vsel %vm659, %v359, 0.0
  %v1084 = vadd.f32 %v1082, %v1083
  %1085 = vadd.xlane.f32.xlu0 %v1084
  %v1086 = vpop.xlane.xlu0 %1085
  %v1087 = vadd.f32 %v360, %v361
  %v1088 = vadd.f32 %v1087, %v362
  %v1089 = vadd.f32 %v1088, %v363
  %v1090 = vadd.f32 %v1089, %v364
  %v1091 = vadd.f32 %v1090, %v365
  %v1092 = vsel %vm659, %v366, 0.0
  %v1093 = vadd.f32 %v1091, %v1092
  %1094 = vadd.xlane.f32.xlu0 %v1093
  %v1095 = vpop.xlane.xlu0 %1094
  %v1096 = vadd.f32 %v367, %v368
  %v1097 = vadd.f32 %v1096, %v369
  %v1098 = vadd.f32 %v1097, %v370
  %v1099 = vadd.f32 %v1098, %v371
  %v1100 = vadd.f32 %v1099, %v372
  %v1101 = vsel %vm659, %v373, 0.0
  %v1102 = vadd.f32 %v1100, %v1101
  %1103 = vadd.xlane.f32.xlu0 %v1102
  %v1104 = vpop.xlane.xlu0 %1103
  %v1105 = vadd.f32 %v374, %v375
  %v1106 = vadd.f32 %v1105, %v376
  %v1107 = vadd.f32 %v1106, %v377
  %v1108 = vadd.f32 %v1107, %v378
  %v1109 = vadd.f32 %v1108, %v379
  %v1110 = vsel %vm659, %v380, 0.0
  %v1111 = vadd.f32 %v1109, %v1110
  %1112 = vadd.xlane.f32.xlu0 %v1111
  %v1113 = vpop.xlane.xlu0 %1112
  %v1114 = vadd.f32 %v381, %v382
  %v1115 = vadd.f32 %v1114, %v383
  %v1116 = vadd.f32 %v1115, %v384
  %v1117 = vadd.f32 %v1116, %v385
  %v1118 = vadd.f32 %v1117, %v386
  %v1119 = vsel %vm659, %v387, 0.0
  %v1120 = vadd.f32 %v1118, %v1119
  %1121 = vadd.xlane.f32.xlu0 %v1120
  %v1122 = vpop.xlane.xlu0 %1121
  %v1123 = vadd.f32 %v388, %v389
  %v1124 = vadd.f32 %v1123, %v390
  %v1125 = vadd.f32 %v1124, %v391
  %v1126 = vadd.f32 %v1125, %v392
  %v1127 = vadd.f32 %v1126, %v393
  %v1128 = vsel %vm659, %v394, 0.0
  %v1129 = vadd.f32 %v1127, %v1128
  %1130 = vadd.xlane.f32.xlu0 %v1129
  %v1131 = vpop.xlane.xlu0 %1130
  %v1132 = vadd.f32 %v395, %v396
  %v1133 = vadd.f32 %v1132, %v397
  %v1134 = vadd.f32 %v1133, %v398
  %v1135 = vadd.f32 %v1134, %v399
  %v1136 = vadd.f32 %v1135, %v400
  %v1137 = vsel %vm659, %v401, 0.0
  %v1138 = vadd.f32 %v1136, %v1137
  %1139 = vadd.xlane.f32.xlu0 %v1138
  %v1140 = vpop.xlane.xlu0 %1139
  %v1141 = vadd.f32 %v402, %v403
  %v1142 = vadd.f32 %v1141, %v404
  %v1143 = vadd.f32 %v1142, %v405
  %v1144 = vadd.f32 %v1143, %v406
  %v1145 = vadd.f32 %v1144, %v407
  %v1146 = vsel %vm659, %v408, 0.0
  %v1147 = vadd.f32 %v1145, %v1146
  %1148 = vadd.xlane.f32.xlu0 %v1147
  %v1149 = vpop.xlane.xlu0 %1148
  %v1150 = vadd.f32 %v409, %v410
  %v1151 = vadd.f32 %v1150, %v411
  %v1152 = vadd.f32 %v1151, %v412
  %v1153 = vadd.f32 %v1152, %v413
  %v1154 = vadd.f32 %v1153, %v414
  %v1155 = vsel %vm659, %v415, 0.0
  %v1156 = vadd.f32 %v1154, %v1155
  %1157 = vadd.xlane.f32.xlu0 %v1156
  %v1158 = vpop.xlane.xlu0 %1157
  %v1159 = vadd.f32 %v416, %v417
  %v1160 = vadd.f32 %v1159, %v418
  %v1161 = vadd.f32 %v1160, %v419
  %v1162 = vadd.f32 %v1161, %v420
  %v1163 = vadd.f32 %v1162, %v421
  %v1164 = vsel %vm659, %v422, 0.0
  %v1165 = vadd.f32 %v1163, %v1164
  %1166 = vadd.xlane.f32.xlu0 %v1165
  %v1167 = vpop.xlane.xlu0 %1166
  %v1168 = vadd.f32 %v423, %v424
  %v1169 = vadd.f32 %v1168, %v425
  %v1170 = vadd.f32 %v1169, %v426
  %v1171 = vadd.f32 %v1170, %v427
  %v1172 = vadd.f32 %v1171, %v428
  %v1173 = vsel %vm659, %v429, 0.0
  %v1174 = vadd.f32 %v1172, %v1173
  %1175 = vadd.xlane.f32.xlu0 %v1174
  %v1176 = vpop.xlane.xlu0 %1175
  %v1177 = vadd.f32 %v430, %v431
  %v1178 = vadd.f32 %v1177, %v432
  %v1179 = vadd.f32 %v1178, %v433
  %v1180 = vadd.f32 %v1179, %v434
  %v1181 = vadd.f32 %v1180, %v435
  %v1182 = vsel %vm659, %v436, 0.0
  %v1183 = vadd.f32 %v1181, %v1182
  %1184 = vadd.xlane.f32.xlu0 %v1183
  %v1185 = vpop.xlane.xlu0 %1184
  %v1186 = vadd.f32 %v437, %v438
  %v1187 = vadd.f32 %v1186, %v439
  %v1188 = vadd.f32 %v1187, %v440
  %v1189 = vadd.f32 %v1188, %v441
  %v1190 = vadd.f32 %v1189, %v442
  %v1191 = vsel %vm659, %v443, 0.0
  %v1192 = vadd.f32 %v1190, %v1191
  %1193 = vadd.xlane.f32.xlu0 %v1192
  %v1194 = vpop.xlane.xlu0 %1193
  %v1195 = vadd.f32 %v444, %v445
  %v1196 = vadd.f32 %v1195, %v446
  %v1197 = vadd.f32 %v1196, %v447
  %v1198 = vadd.f32 %v1197, %v448
  %v1199 = vadd.f32 %v1198, %v449
  %v1200 = vsel %vm659, %v450, 0.0
  %v1201 = vadd.f32 %v1199, %v1200
  %1202 = vadd.xlane.f32.xlu0 %v1201
  %v1203 = vpop.xlane.xlu0 %1202
  %v1204 = vadd.f32 %v451, %v452
  %v1205 = vadd.f32 %v1204, %v453
  %v1206 = vadd.f32 %v1205, %v454
  %v1207 = vadd.f32 %v1206, %v455
  %v1208 = vadd.f32 %v1207, %v456
  %v1209 = vsel %vm659, %v457, 0.0
  %v1210 = vadd.f32 %v1208, %v1209
  %1211 = vadd.xlane.f32.xlu0 %v1210
  %v1212 = vpop.xlane.xlu0 %1211
  %v1213 = vadd.f32 %v458, %v459
  %v1214 = vadd.f32 %v1213, %v460
  %v1215 = vadd.f32 %v1214, %v461
  %v1216 = vadd.f32 %v1215, %v462
  %v1217 = vadd.f32 %v1216, %v463
  %v1218 = vsel %vm659, %v464, 0.0
  %v1219 = vadd.f32 %v1217, %v1218
  %1220 = vadd.xlane.f32.xlu0 %v1219
  %v1221 = vpop.xlane.xlu0 %1220
  %v1222 = vadd.f32 %v465, %v466
  %v1223 = vadd.f32 %v1222, %v467
  %v1224 = vadd.f32 %v1223, %v468
  %v1225 = vadd.f32 %v1224, %v469
  %v1226 = vadd.f32 %v1225, %v470
  %v1227 = vsel %vm659, %v471, 0.0
  %v1228 = vadd.f32 %v1226, %v1227
  %1229 = vadd.xlane.f32.xlu0 %v1228
  %v1230 = vpop.xlane.xlu0 %1229
  %v1231 = vadd.f32 %v472, %v473
  %v1232 = vadd.f32 %v1231, %v474
  %v1233 = vadd.f32 %v1232, %v475
  %v1234 = vadd.f32 %v1233, %v476
  %v1235 = vadd.f32 %v1234, %v477
  %v1236 = vsel %vm659, %v478, 0.0
  %v1237 = vadd.f32 %v1235, %v1236
  %1238 = vadd.xlane.f32.xlu0 %v1237
  %v1239 = vpop.xlane.xlu0 %1238
  %v1240 = vadd.f32 %v479, %v480
  %v1241 = vadd.f32 %v1240, %v481
  %v1242 = vadd.f32 %v1241, %v482
  %v1243 = vadd.f32 %v1242, %v483
  %v1244 = vadd.f32 %v1243, %v484
  %v1245 = vsel %vm659, %v485, 0.0
  %v1246 = vadd.f32 %v1244, %v1245
  %1247 = vadd.xlane.f32.xlu0 %v1246
  %v1248 = vpop.xlane.xlu0 %1247
  %v1249 = vadd.f32 %v486, %v487
  %v1250 = vadd.f32 %v1249, %v488
  %v1251 = vadd.f32 %v1250, %v489
  %v1252 = vadd.f32 %v1251, %v490
  %v1253 = vadd.f32 %v1252, %v491
  %v1254 = vsel %vm659, %v492, 0.0
  %v1255 = vadd.f32 %v1253, %v1254
  %1256 = vadd.xlane.f32.xlu0 %v1255
  %v1257 = vpop.xlane.xlu0 %1256
  %v1258 = vadd.f32 %v493, %v494
  %v1259 = vadd.f32 %v1258, %v495
  %v1260 = vadd.f32 %v1259, %v496
  %v1261 = vadd.f32 %v1260, %v497
  %v1262 = vadd.f32 %v1261, %v498
  %v1263 = vsel %vm659, %v499, 0.0
  %v1264 = vadd.f32 %v1262, %v1263
  %1265 = vadd.xlane.f32.xlu0 %v1264
  %v1266 = vpop.xlane.xlu0 %1265
  %v1267 = vadd.f32 %v500, %v501
  %v1268 = vadd.f32 %v1267, %v502
  %v1269 = vadd.f32 %v1268, %v503
  %v1270 = vadd.f32 %v1269, %v504
  %v1271 = vadd.f32 %v1270, %v505
  %v1272 = vsel %vm659, %v506, 0.0
  %v1273 = vadd.f32 %v1271, %v1272
  %1274 = vadd.xlane.f32.xlu0 %v1273
  %v1275 = vpop.xlane.xlu0 %1274
  %v1276 = vadd.f32 %v507, %v508
  %v1277 = vadd.f32 %v1276, %v509
  %v1278 = vadd.f32 %v1277, %v510
  %v1279 = vadd.f32 %v1278, %v511
  %v1280 = vadd.f32 %v1279, %v512
  %v1281 = vsel %vm659, %v513, 0.0
  %v1282 = vadd.f32 %v1280, %v1281
  %1283 = vadd.xlane.f32.xlu0 %v1282
  %v1284 = vpop.xlane.xlu0 %1283
  %v1285 = vadd.f32 %v514, %v515
  %v1286 = vadd.f32 %v1285, %v516
  %v1287 = vadd.f32 %v1286, %v517
  %v1288 = vadd.f32 %v1287, %v518
  %v1289 = vadd.f32 %v1288, %v519
  %v1290 = vsel %vm659, %v520, 0.0
  %v1291 = vadd.f32 %v1289, %v1290
  %1292 = vadd.xlane.f32.xlu0 %v1291
  %v1293 = vpop.xlane.xlu0 %1292
  %v1294 = vadd.f32 %v521, %v522
  %v1295 = vadd.f32 %v1294, %v523
  %v1296 = vadd.f32 %v1295, %v524
  %v1297 = vadd.f32 %v1296, %v525
  %v1298 = vadd.f32 %v1297, %v526
  %v1299 = vsel %vm659, %v527, 0.0
  %v1300 = vadd.f32 %v1298, %v1299
  %1301 = vadd.xlane.f32.xlu0 %v1300
  %v1302 = vpop.xlane.xlu0 %1301
  %v1303 = vadd.f32 %v528, %v529
  %v1304 = vadd.f32 %v1303, %v530
  %v1305 = vadd.f32 %v1304, %v531
  %v1306 = vadd.f32 %v1305, %v532
  %v1307 = vadd.f32 %v1306, %v533
  %v1308 = vsel %vm659, %v534, 0.0
  %v1309 = vadd.f32 %v1307, %v1308
  %1310 = vadd.xlane.f32.xlu0 %v1309
  %v1311 = vpop.xlane.xlu0 %1310
  %v1312 = vadd.f32 %v535, %v536
  %v1313 = vadd.f32 %v1312, %v537
  %v1314 = vadd.f32 %v1313, %v538
  %v1315 = vadd.f32 %v1314, %v539
  %v1316 = vadd.f32 %v1315, %v540
  %v1317 = vsel %vm659, %v541, 0.0
  %v1318 = vadd.f32 %v1316, %v1317
  %1319 = vadd.xlane.f32.xlu0 %v1318
  %v1320 = vpop.xlane.xlu0 %1319
  %v1321 = vadd.f32 %v542, %v543
  %v1322 = vadd.f32 %v1321, %v544
  %v1323 = vadd.f32 %v1322, %v545
  %v1324 = vadd.f32 %v1323, %v546
  %v1325 = vadd.f32 %v1324, %v547
  %v1326 = vsel %vm659, %v548, 0.0
  %v1327 = vadd.f32 %v1325, %v1326
  %1328 = vadd.xlane.f32.xlu0 %v1327
  %v1329 = vpop.xlane.xlu0 %1328
  %v1330 = vadd.f32 %v549, %v550
  %v1331 = vadd.f32 %v1330, %v551
  %v1332 = vadd.f32 %v1331, %v552
  %v1333 = vadd.f32 %v1332, %v553
  %v1334 = vadd.f32 %v1333, %v554
  %v1335 = vsel %vm659, %v555, 0.0
  %v1336 = vadd.f32 %v1334, %v1335
  %1337 = vadd.xlane.f32.xlu0 %v1336
  %v1338 = vpop.xlane.xlu0 %1337
  %v1339 = vadd.f32 %v556, %v557
  %v1340 = vadd.f32 %v1339, %v558
  %v1341 = vadd.f32 %v1340, %v559
  %v1342 = vadd.f32 %v1341, %v560
  %v1343 = vadd.f32 %v1342, %v561
  %v1344 = vsel %vm659, %v562, 0.0
  %v1345 = vadd.f32 %v1343, %v1344
  %1346 = vadd.xlane.f32.xlu0 %v1345
  %v1347 = vpop.xlane.xlu0 %1346
  %v1348 = vadd.f32 %v563, %v564
  %v1349 = vadd.f32 %v1348, %v565
  %v1350 = vadd.f32 %v1349, %v566
  %v1351 = vadd.f32 %v1350, %v567
  %v1352 = vadd.f32 %v1351, %v568
  %v1353 = vsel %vm659, %v569, 0.0
  %v1354 = vadd.f32 %v1352, %v1353
  %1355 = vadd.xlane.f32.xlu0 %v1354
  %v1356 = vpop.xlane.xlu0 %1355
  %v1357 = vadd.f32 %v570, %v571
  %v1358 = vadd.f32 %v1357, %v572
  %v1359 = vadd.f32 %v1358, %v573
  %v1360 = vadd.f32 %v1359, %v574
  %v1361 = vadd.f32 %v1360, %v575
  %v1362 = vsel %vm659, %v576, 0.0
  %v1363 = vadd.f32 %v1361, %v1362
  %1364 = vadd.xlane.f32.xlu0 %v1363
  %v1365 = vpop.xlane.xlu0 %1364
  %v1366 = vadd.f32 %v577, %v578
  %v1367 = vadd.f32 %v1366, %v579
  %v1368 = vadd.f32 %v1367, %v580
  %v1369 = vadd.f32 %v1368, %v581
  %v1370 = vadd.f32 %v1369, %v582
  %v1371 = vsel %vm659, %v583, 0.0
  %v1372 = vadd.f32 %v1370, %v1371
  %1373 = vadd.xlane.f32.xlu0 %v1372
  %v1374 = vpop.xlane.xlu0 %1373
  %v1375 = vadd.f32 %v584, %v585
  %v1376 = vadd.f32 %v1375, %v586
  %v1377 = vadd.f32 %v1376, %v587
  %v1378 = vadd.f32 %v1377, %v588
  %v1379 = vadd.f32 %v1378, %v589
  %v1380 = vsel %vm659, %v590, 0.0
  %v1381 = vadd.f32 %v1379, %v1380
  %1382 = vadd.xlane.f32.xlu0 %v1381
  %v1383 = vpop.xlane.xlu0 %1382
  %v1384 = vadd.f32 %v591, %v592
  %v1385 = vadd.f32 %v1384, %v593
  %v1386 = vadd.f32 %v1385, %v594
  %v1387 = vadd.f32 %v1386, %v595
  %v1388 = vadd.f32 %v1387, %v596
  %v1389 = vsel %vm659, %v597, 0.0
  %v1390 = vadd.f32 %v1388, %v1389
  %1391 = vadd.xlane.f32.xlu0 %v1390
  %v1392 = vpop.xlane.xlu0 %1391
  %v1393 = vadd.f32 %v598, %v599
  %v1394 = vadd.f32 %v1393, %v600
  %v1395 = vadd.f32 %v1394, %v601
  %v1396 = vadd.f32 %v1395, %v602
  %v1397 = vadd.f32 %v1396, %v603
  %v1398 = vsel %vm659, %v604, 0.0
  %v1399 = vadd.f32 %v1397, %v1398
  %1400 = vadd.xlane.f32.xlu0 %v1399
  %v1401 = vpop.xlane.xlu0 %1400
  %v1402 = vadd.f32 %v605, %v606
  %v1403 = vadd.f32 %v1402, %v607
  %v1404 = vadd.f32 %v1403, %v608
  %v1405 = vadd.f32 %v1404, %v609
  %v1406 = vadd.f32 %v1405, %v610
  %v1407 = vsel %vm659, %v611, 0.0
  %v1408 = vadd.f32 %v1406, %v1407
  %1409 = vadd.xlane.f32.xlu0 %v1408
  %v1410 = vpop.xlane.xlu0 %1409
  %v1411 = vadd.f32 %v612, %v613
  %v1412 = vadd.f32 %v1411, %v614
  %v1413 = vadd.f32 %v1412, %v615
  %v1414 = vadd.f32 %v1413, %v616
  %v1415 = vadd.f32 %v1414, %v617
  %v1416 = vsel %vm659, %v618, 0.0
  %v1417 = vadd.f32 %v1415, %v1416
  %1418 = vadd.xlane.f32.xlu0 %v1417
  %v1419 = vpop.xlane.xlu0 %1418
  %v1420 = vadd.f32 %v619, %v620
  %v1421 = vadd.f32 %v1420, %v621
  %v1422 = vadd.f32 %v1421, %v622
  %v1423 = vadd.f32 %v1422, %v623
  %v1424 = vadd.f32 %v1423, %v624
  %v1425 = vsel %vm659, %v625, 0.0
  %v1426 = vadd.f32 %v1424, %v1425
  %1427 = vadd.xlane.f32.xlu0 %v1426
  %v1428 = vpop.xlane.xlu0 %1427
  %v1429 = vadd.f32 %v626, %v627
  %v1430 = vadd.f32 %v1429, %v628
  %v1431 = vadd.f32 %v1430, %v629
  %v1432 = vadd.f32 %v1431, %v630
  %v1433 = vadd.f32 %v1432, %v631
  %v1434 = vsel %vm659, %v632, 0.0
  %v1435 = vadd.f32 %v1433, %v1434
  %1436 = vadd.xlane.f32.xlu0 %v1435
  %v1437 = vpop.xlane.xlu0 %1436
  %v1438 = vadd.f32 %v633, %v634
  %v1439 = vadd.f32 %v1438, %v635
  %v1440 = vadd.f32 %v1439, %v636
  %v1441 = vadd.f32 %v1440, %v637
  %v1442 = vadd.f32 %v1441, %v638
  %v1443 = vsel %vm659, %v639, 0.0
  %v1444 = vadd.f32 %v1442, %v1443
  %1445 = vadd.xlane.f32.xlu0 %v1444
  %v1446 = vpop.xlane.xlu0 %1445
  %v1447 = vadd.f32 %v640, %v641
  %v1448 = vadd.f32 %v1447, %v642
  %v1449 = vadd.f32 %v1448, %v643
  %v1450 = vadd.f32 %v1449, %v644
  %v1451 = vadd.f32 %v1450, %v645
  %v1452 = vsel %vm659, %v646, 0.0
  %v1453 = vadd.f32 %v1451, %v1452
  %1454 = vadd.xlane.f32.xlu0 %v1453
  %v1455 = vpop.xlane.xlu0 %1454
  %v1456 = vadd.f32 %v647, %v648
  %v1457 = vadd.f32 %v1456, %v649
  %v1458 = vadd.f32 %v1457, %v650
  %v1459 = vadd.f32 %v1458, %v651
  %v1460 = vadd.f32 %v1459, %v652
  %v1461 = vsel %vm659, %v653, 0.0
  %v1462 = vadd.f32 %v1460, %v1461
  %1463 = vadd.xlane.f32.xlu0 %v1462
  %v1464 = vpop.xlane.xlu0 %1463
  %v1465 = vmul.f32 %v24, %v24
  %v1466 = vmul.f32 %v25, %v25
  %v1467 = vmul.f32 %v26, %v26
  %v1468 = vmul.f32 %v27, %v27
  %v1469 = vmul.f32 %v28, %v28
  %v1470 = vmul.f32 %v29, %v29
  %v1471 = vmul.f32 %v30, %v30
  %v1472 = vmul.f32 %v31, %v31
  %v1473 = vmul.f32 %v32, %v32
  %v1474 = vmul.f32 %v33, %v33
  %v1475 = vmul.f32 %v34, %v34
  %v1476 = vmul.f32 %v35, %v35
  %v1477 = vmul.f32 %v36, %v36
  %v1478 = vmul.f32 %v37, %v37
  %v1479 = vmul.f32 %v38, %v38
  %v1480 = vmul.f32 %v39, %v39
  %v1481 = vmul.f32 %v40, %v40
  %v1482 = vmul.f32 %v41, %v41
  %v1483 = vmul.f32 %v42, %v42
  %v1484 = vmul.f32 %v43, %v43
  %v1485 = vmul.f32 %v44, %v44
  %v1486 = vmul.f32 %v45, %v45
  %v1487 = vmul.f32 %v46, %v46
  %v1488 = vmul.f32 %v47, %v47
  %v1489 = vmul.f32 %v48, %v48
  %v1490 = vmul.f32 %v49, %v49
  %v1491 = vmul.f32 %v50, %v50
  %v1492 = vmul.f32 %v51, %v51
  %v1493 = vmul.f32 %v52, %v52
  %v1494 = vmul.f32 %v53, %v53
  %v1495 = vmul.f32 %v54, %v54
  %v1496 = vmul.f32 %v55, %v55
  %v1497 = vmul.f32 %v56, %v56
  %v1498 = vmul.f32 %v57, %v57
  %v1499 = vmul.f32 %v58, %v58
  %v1500 = vmul.f32 %v59, %v59
  %v1501 = vmul.f32 %v60, %v60
  %v1502 = vmul.f32 %v61, %v61
  %v1503 = vmul.f32 %v62, %v62
  %v1504 = vmul.f32 %v63, %v63
  %v1505 = vmul.f32 %v64, %v64
  %v1506 = vmul.f32 %v65, %v65
  %v1507 = vmul.f32 %v66, %v66
  %v1508 = vmul.f32 %v67, %v67
  %v1509 = vmul.f32 %v68, %v68
  %v1510 = vmul.f32 %v69, %v69
  %v1511 = vmul.f32 %v70, %v70
  %v1512 = vmul.f32 %v71, %v71
  %v1513 = vmul.f32 %v72, %v72
  %v1514 = vmul.f32 %v73, %v73
  %v1515 = vmul.f32 %v74, %v74
  %v1516 = vmul.f32 %v75, %v75
  %v1517 = vmul.f32 %v76, %v76
  %v1518 = vmul.f32 %v77, %v77
  %v1519 = vmul.f32 %v78, %v78
  %v1520 = vmul.f32 %v79, %v79
  %v1521 = vmul.f32 %v80, %v80
  %v1522 = vmul.f32 %v81, %v81
  %v1523 = vmul.f32 %v82, %v82
  %v1524 = vmul.f32 %v83, %v83
  %v1525 = vmul.f32 %v84, %v84
  %v1526 = vmul.f32 %v85, %v85
  %v1527 = vmul.f32 %v86, %v86
  %v1528 = vmul.f32 %v87, %v87
  %v1529 = vmul.f32 %v88, %v88
  %v1530 = vmul.f32 %v89, %v89
  %v1531 = vmul.f32 %v90, %v90
  %v1532 = vmul.f32 %v91, %v91
  %v1533 = vmul.f32 %v92, %v92
  %v1534 = vmul.f32 %v93, %v93
  %v1535 = vmul.f32 %v94, %v94
  %v1536 = vmul.f32 %v95, %v95
  %v1537 = vmul.f32 %v96, %v96
  %v1538 = vmul.f32 %v97, %v97
  %v1539 = vmul.f32 %v98, %v98
  %v1540 = vmul.f32 %v99, %v99
  %v1541 = vmul.f32 %v100, %v100
  %v1542 = vmul.f32 %v101, %v101
  %v1543 = vmul.f32 %v102, %v102
  %v1544 = vmul.f32 %v103, %v103
  %v1545 = vmul.f32 %v104, %v104
  %v1546 = vmul.f32 %v105, %v105
  %v1547 = vmul.f32 %v106, %v106
  %v1548 = vmul.f32 %v107, %v107
  %v1549 = vmul.f32 %v108, %v108
  %v1550 = vmul.f32 %v109, %v109
  %v1551 = vmul.f32 %v110, %v110
  %v1552 = vmul.f32 %v111, %v111
  %v1553 = vmul.f32 %v112, %v112
  %v1554 = vmul.f32 %v113, %v113
  %v1555 = vmul.f32 %v114, %v114
  %v1556 = vmul.f32 %v115, %v115
  %v1557 = vmul.f32 %v116, %v116
  %v1558 = vmul.f32 %v117, %v117
  %v1559 = vmul.f32 %v118, %v118
  %v1560 = vmul.f32 %v119, %v119
  %v1561 = vmul.f32 %v120, %v120
  %v1562 = vmul.f32 %v121, %v121
  %v1563 = vmul.f32 %v122, %v122
  %v1564 = vmul.f32 %v123, %v123
  %v1565 = vmul.f32 %v124, %v124
  %v1566 = vmul.f32 %v125, %v125
  %v1567 = vmul.f32 %v126, %v126
  %v1568 = vmul.f32 %v127, %v127
  %v1569 = vmul.f32 %v128, %v128
  %v1570 = vmul.f32 %v129, %v129
  %v1571 = vmul.f32 %v130, %v130
  %v1572 = vmul.f32 %v131, %v131
  %v1573 = vmul.f32 %v132, %v132
  %v1574 = vmul.f32 %v133, %v133
  %v1575 = vmul.f32 %v134, %v134
  %v1576 = vmul.f32 %v135, %v135
  %v1577 = vmul.f32 %v136, %v136
  %v1578 = vmul.f32 %v137, %v137
  %v1579 = vmul.f32 %v138, %v138
  %v1580 = vmul.f32 %v139, %v139
  %v1581 = vmul.f32 %v140, %v140
  %v1582 = vmul.f32 %v141, %v141
  %v1583 = vmul.f32 %v142, %v142
  %v1584 = vmul.f32 %v143, %v143
  %v1585 = vmul.f32 %v144, %v144
  %v1586 = vmul.f32 %v145, %v145
  %v1587 = vmul.f32 %v146, %v146
  %v1588 = vmul.f32 %v147, %v147
  %v1589 = vmul.f32 %v148, %v148
  %v1590 = vmul.f32 %v149, %v149
  %v1591 = vmul.f32 %v150, %v150
  %v1592 = vmul.f32 %v151, %v151
  %v1593 = vmul.f32 %v152, %v152
  %v1594 = vmul.f32 %v153, %v153
  %v1595 = vmul.f32 %v154, %v154
  %v1596 = vmul.f32 %v155, %v155
  %v1597 = vmul.f32 %v156, %v156
  %v1598 = vmul.f32 %v157, %v157
  %v1599 = vmul.f32 %v158, %v158
  %v1600 = vmul.f32 %v159, %v159
  %v1601 = vmul.f32 %v160, %v160
  %v1602 = vmul.f32 %v161, %v161
  %v1603 = vmul.f32 %v162, %v162
  %v1604 = vmul.f32 %v163, %v163
  %v1605 = vmul.f32 %v164, %v164
  %v1606 = vmul.f32 %v165, %v165
  %v1607 = vmul.f32 %v166, %v166
  %v1608 = vmul.f32 %v167, %v167
  %v1609 = vmul.f32 %v168, %v168
  %v1610 = vmul.f32 %v169, %v169
  %v1611 = vmul.f32 %v170, %v170
  %v1612 = vmul.f32 %v171, %v171
  %v1613 = vmul.f32 %v172, %v172
  %v1614 = vmul.f32 %v173, %v173
  %v1615 = vmul.f32 %v174, %v174
  %v1616 = vmul.f32 %v175, %v175
  %v1617 = vmul.f32 %v176, %v176
  %v1618 = vmul.f32 %v177, %v177
  %v1619 = vmul.f32 %v178, %v178
  %v1620 = vmul.f32 %v179, %v179
  %v1621 = vmul.f32 %v180, %v180
  %v1622 = vmul.f32 %v181, %v181
  %v1623 = vmul.f32 %v182, %v182
  %v1624 = vmul.f32 %v183, %v183
  %v1625 = vmul.f32 %v184, %v184
  %v1626 = vmul.f32 %v185, %v185
  %v1627 = vmul.f32 %v186, %v186
  %v1628 = vmul.f32 %v187, %v187
  %v1629 = vmul.f32 %v188, %v188
  %v1630 = vmul.f32 %v189, %v189
  %v1631 = vmul.f32 %v190, %v190
  %v1632 = vmul.f32 %v191, %v191
  %v1633 = vmul.f32 %v192, %v192
  %v1634 = vmul.f32 %v193, %v193
  %v1635 = vmul.f32 %v194, %v194
  %v1636 = vmul.f32 %v195, %v195
  %v1637 = vmul.f32 %v196, %v196
  %v1638 = vmul.f32 %v197, %v197
  %v1639 = vmul.f32 %v198, %v198
  %v1640 = vmul.f32 %v199, %v199
  %v1641 = vmul.f32 %v200, %v200
  %v1642 = vmul.f32 %v201, %v201
  %v1643 = vmul.f32 %v202, %v202
  %v1644 = vmul.f32 %v203, %v203
  %v1645 = vmul.f32 %v204, %v204
  %v1646 = vmul.f32 %v205, %v205
  %v1647 = vmul.f32 %v206, %v206
  %v1648 = vmul.f32 %v207, %v207
  %v1649 = vmul.f32 %v208, %v208
  %v1650 = vmul.f32 %v209, %v209
  %v1651 = vmul.f32 %v210, %v210
  %v1652 = vmul.f32 %v211, %v211
  %v1653 = vmul.f32 %v212, %v212
  %v1654 = vmul.f32 %v213, %v213
  %v1655 = vmul.f32 %v214, %v214
  %v1656 = vmul.f32 %v215, %v215
  %v1657 = vmul.f32 %v216, %v216
  %v1658 = vmul.f32 %v217, %v217
  %v1659 = vmul.f32 %v218, %v218
  %v1660 = vmul.f32 %v219, %v219
  %v1661 = vmul.f32 %v220, %v220
  %v1662 = vmul.f32 %v221, %v221
  %v1663 = vmul.f32 %v222, %v222
  %v1664 = vmul.f32 %v223, %v223
  %v1665 = vmul.f32 %v224, %v224
  %v1666 = vmul.f32 %v225, %v225
  %v1667 = vmul.f32 %v226, %v226
  %v1668 = vmul.f32 %v227, %v227
  %v1669 = vmul.f32 %v228, %v228
  %v1670 = vmul.f32 %v229, %v229
  %v1671 = vmul.f32 %v230, %v230
  %v1672 = vmul.f32 %v231, %v231
  %v1673 = vmul.f32 %v232, %v232
  %v1674 = vmul.f32 %v233, %v233
  %v1675 = vmul.f32 %v234, %v234
  %v1676 = vmul.f32 %v235, %v235
  %v1677 = vmul.f32 %v236, %v236
  %v1678 = vmul.f32 %v237, %v237
  %v1679 = vmul.f32 %v238, %v238
  %v1680 = vmul.f32 %v239, %v239
  %v1681 = vmul.f32 %v240, %v240
  %v1682 = vmul.f32 %v241, %v241
  %v1683 = vmul.f32 %v242, %v242
  %v1684 = vmul.f32 %v243, %v243
  %v1685 = vmul.f32 %v244, %v244
  %v1686 = vmul.f32 %v245, %v245
  %v1687 = vmul.f32 %v246, %v246
  %v1688 = vmul.f32 %v247, %v247
  %v1689 = vmul.f32 %v248, %v248
  %v1690 = vmul.f32 %v249, %v249
  %v1691 = vmul.f32 %v250, %v250
  %v1692 = vmul.f32 %v251, %v251
  %v1693 = vmul.f32 %v252, %v252
  %v1694 = vmul.f32 %v253, %v253
  %v1695 = vmul.f32 %v254, %v254
  %v1696 = vmul.f32 %v255, %v255
  %v1697 = vmul.f32 %v256, %v256
  %v1698 = vmul.f32 %v257, %v257
  %v1699 = vmul.f32 %v258, %v258
  %v1700 = vmul.f32 %v259, %v259
  %v1701 = vmul.f32 %v260, %v260
  %v1702 = vmul.f32 %v261, %v261
  %v1703 = vmul.f32 %v262, %v262
  %v1704 = vmul.f32 %v263, %v263
  %v1705 = vmul.f32 %v264, %v264
  %v1706 = vmul.f32 %v265, %v265
  %v1707 = vmul.f32 %v266, %v266
  %v1708 = vmul.f32 %v267, %v267
  %v1709 = vmul.f32 %v268, %v268
  %v1710 = vmul.f32 %v269, %v269
  %v1711 = vmul.f32 %v270, %v270
  %v1712 = vmul.f32 %v271, %v271
  %v1713 = vmul.f32 %v272, %v272
  %v1714 = vmul.f32 %v273, %v273
  %v1715 = vmul.f32 %v274, %v274
  %v1716 = vmul.f32 %v275, %v275
  %v1717 = vmul.f32 %v276, %v276
  %v1718 = vmul.f32 %v277, %v277
  %v1719 = vmul.f32 %v278, %v278
  %v1720 = vmul.f32 %v279, %v279
  %v1721 = vmul.f32 %v280, %v280
  %v1722 = vmul.f32 %v281, %v281
  %v1723 = vmul.f32 %v282, %v282
  %v1724 = vmul.f32 %v283, %v283
  %v1725 = vmul.f32 %v284, %v284
  %v1726 = vmul.f32 %v285, %v285
  %v1727 = vmul.f32 %v286, %v286
  %v1728 = vmul.f32 %v287, %v287
  %v1729 = vmul.f32 %v288, %v288
  %v1730 = vmul.f32 %v289, %v289
  %v1731 = vmul.f32 %v290, %v290
  %v1732 = vmul.f32 %v291, %v291
  %v1733 = vmul.f32 %v292, %v292
  %v1734 = vmul.f32 %v293, %v293
  %v1735 = vmul.f32 %v294, %v294
  %v1736 = vmul.f32 %v295, %v295
  %v1737 = vmul.f32 %v296, %v296
  %v1738 = vmul.f32 %v297, %v297
  %v1739 = vmul.f32 %v298, %v298
  %v1740 = vmul.f32 %v299, %v299
  %v1741 = vmul.f32 %v300, %v300
  %v1742 = vmul.f32 %v301, %v301
  %v1743 = vmul.f32 %v302, %v302
  %v1744 = vmul.f32 %v303, %v303
  %v1745 = vmul.f32 %v304, %v304
  %v1746 = vmul.f32 %v305, %v305
  %v1747 = vmul.f32 %v306, %v306
  %v1748 = vmul.f32 %v307, %v307
  %v1749 = vmul.f32 %v308, %v308
  %v1750 = vmul.f32 %v309, %v309
  %v1751 = vmul.f32 %v310, %v310
  %v1752 = vmul.f32 %v311, %v311
  %v1753 = vmul.f32 %v312, %v312
  %v1754 = vmul.f32 %v313, %v313
  %v1755 = vmul.f32 %v314, %v314
  %v1756 = vmul.f32 %v315, %v315
  %v1757 = vmul.f32 %v316, %v316
  %v1758 = vmul.f32 %v317, %v317
  %v1759 = vmul.f32 %v318, %v318
  %v1760 = vmul.f32 %v319, %v319
  %v1761 = vmul.f32 %v320, %v320
  %v1762 = vmul.f32 %v321, %v321
  %v1763 = vmul.f32 %v322, %v322
  %v1764 = vmul.f32 %v323, %v323
  %v1765 = vmul.f32 %v324, %v324
  %v1766 = vmul.f32 %v325, %v325
  %v1767 = vmul.f32 %v326, %v326
  %v1768 = vmul.f32 %v327, %v327
  %v1769 = vmul.f32 %v328, %v328
  %v1770 = vmul.f32 %v329, %v329
  %v1771 = vmul.f32 %v330, %v330
  %v1772 = vmul.f32 %v331, %v331
  %v1773 = vmul.f32 %v332, %v332
  %v1774 = vmul.f32 %v333, %v333
  %v1775 = vmul.f32 %v334, %v334
  %v1776 = vmul.f32 %v335, %v335
  %v1777 = vmul.f32 %v336, %v336
  %v1778 = vmul.f32 %v337, %v337
  %v1779 = vmul.f32 %v338, %v338
  %v1780 = vmul.f32 %v339, %v339
  %v1781 = vmul.f32 %v340, %v340
  %v1782 = vmul.f32 %v341, %v341
  %v1783 = vmul.f32 %v342, %v342
  %v1784 = vmul.f32 %v343, %v343
  %v1785 = vmul.f32 %v344, %v344
  %v1786 = vmul.f32 %v345, %v345
  %v1787 = vmul.f32 %v346, %v346
  %v1788 = vmul.f32 %v347, %v347
  %v1789 = vmul.f32 %v348, %v348
  %v1790 = vmul.f32 %v349, %v349
  %v1791 = vmul.f32 %v350, %v350
  %v1792 = vmul.f32 %v351, %v351
  %v1793 = vmul.f32 %v352, %v352
  %v1794 = vmul.f32 %v353, %v353
  %v1795 = vmul.f32 %v354, %v354
  %v1796 = vmul.f32 %v355, %v355
  %v1797 = vmul.f32 %v356, %v356
  %v1798 = vmul.f32 %v357, %v357
  %v1799 = vmul.f32 %v358, %v358
  %v1800 = vmul.f32 %v359, %v359
  %v1801 = vmul.f32 %v360, %v360
  %v1802 = vmul.f32 %v361, %v361
  %v1803 = vmul.f32 %v362, %v362
  %v1804 = vmul.f32 %v363, %v363
  %v1805 = vmul.f32 %v364, %v364
  %v1806 = vmul.f32 %v365, %v365
  %v1807 = vmul.f32 %v366, %v366
  %v1808 = vmul.f32 %v367, %v367
  %v1809 = vmul.f32 %v368, %v368
  %v1810 = vmul.f32 %v369, %v369
  %v1811 = vmul.f32 %v370, %v370
  %v1812 = vmul.f32 %v371, %v371
  %v1813 = vmul.f32 %v372, %v372
  %v1814 = vmul.f32 %v373, %v373
  %v1815 = vmul.f32 %v374, %v374
  %v1816 = vmul.f32 %v375, %v375
  %v1817 = vmul.f32 %v376, %v376
  %v1818 = vmul.f32 %v377, %v377
  %v1819 = vmul.f32 %v378, %v378
  %v1820 = vmul.f32 %v379, %v379
  %v1821 = vmul.f32 %v380, %v380
  %v1822 = vmul.f32 %v381, %v381
  %v1823 = vmul.f32 %v382, %v382
  %v1824 = vmul.f32 %v383, %v383
  %v1825 = vmul.f32 %v384, %v384
  %v1826 = vmul.f32 %v385, %v385
  %v1827 = vmul.f32 %v386, %v386
  %v1828 = vmul.f32 %v387, %v387
  %v1829 = vmul.f32 %v388, %v388
  %v1830 = vmul.f32 %v389, %v389
  %v1831 = vmul.f32 %v390, %v390
  %v1832 = vmul.f32 %v391, %v391
  %v1833 = vmul.f32 %v392, %v392
  %v1834 = vmul.f32 %v393, %v393
  %v1835 = vmul.f32 %v394, %v394
  %v1836 = vmul.f32 %v395, %v395
  %v1837 = vmul.f32 %v396, %v396
  %v1838 = vmul.f32 %v397, %v397
  %v1839 = vmul.f32 %v398, %v398
  %v1840 = vmul.f32 %v399, %v399
  %v1841 = vmul.f32 %v400, %v400
  %v1842 = vmul.f32 %v401, %v401
  %v1843 = vmul.f32 %v402, %v402
  %v1844 = vmul.f32 %v403, %v403
  %v1845 = vmul.f32 %v404, %v404
  %v1846 = vmul.f32 %v405, %v405
  %v1847 = vmul.f32 %v406, %v406
  %v1848 = vmul.f32 %v407, %v407
  %v1849 = vmul.f32 %v408, %v408
  %v1850 = vmul.f32 %v409, %v409
  %v1851 = vmul.f32 %v410, %v410
  %v1852 = vmul.f32 %v411, %v411
  %v1853 = vmul.f32 %v412, %v412
  %v1854 = vmul.f32 %v413, %v413
  %v1855 = vmul.f32 %v414, %v414
  %v1856 = vmul.f32 %v415, %v415
  %v1857 = vmul.f32 %v416, %v416
  %v1858 = vmul.f32 %v417, %v417
  %v1859 = vmul.f32 %v418, %v418
  %v1860 = vmul.f32 %v419, %v419
  %v1861 = vmul.f32 %v420, %v420
  %v1862 = vmul.f32 %v421, %v421
  %v1863 = vmul.f32 %v422, %v422
  %v1864 = vmul.f32 %v423, %v423
  %v1865 = vmul.f32 %v424, %v424
  %v1866 = vmul.f32 %v425, %v425
  %v1867 = vmul.f32 %v426, %v426
  %v1868 = vmul.f32 %v427, %v427
  %v1869 = vmul.f32 %v428, %v428
  %v1870 = vmul.f32 %v429, %v429
  %v1871 = vmul.f32 %v430, %v430
  %v1872 = vmul.f32 %v431, %v431
  %v1873 = vmul.f32 %v432, %v432
  %v1874 = vmul.f32 %v433, %v433
  %v1875 = vmul.f32 %v434, %v434
  %v1876 = vmul.f32 %v435, %v435
  %v1877 = vmul.f32 %v436, %v436
  %v1878 = vmul.f32 %v437, %v437
  %v1879 = vmul.f32 %v438, %v438
  %v1880 = vmul.f32 %v439, %v439
  %v1881 = vmul.f32 %v440, %v440
  %v1882 = vmul.f32 %v441, %v441
  %v1883 = vmul.f32 %v442, %v442
  %v1884 = vmul.f32 %v443, %v443
  %v1885 = vmul.f32 %v444, %v444
  %v1886 = vmul.f32 %v445, %v445
  %v1887 = vmul.f32 %v446, %v446
  %v1888 = vmul.f32 %v447, %v447
  %v1889 = vmul.f32 %v448, %v448
  %v1890 = vmul.f32 %v449, %v449
  %v1891 = vmul.f32 %v450, %v450
  %v1892 = vmul.f32 %v451, %v451
  %v1893 = vmul.f32 %v452, %v452
  %v1894 = vmul.f32 %v453, %v453
  %v1895 = vmul.f32 %v454, %v454
  %v1896 = vmul.f32 %v455, %v455
  %v1897 = vmul.f32 %v456, %v456
  %v1898 = vmul.f32 %v457, %v457
  %v1899 = vmul.f32 %v458, %v458
  %v1900 = vmul.f32 %v459, %v459
  %v1901 = vmul.f32 %v460, %v460
  %v1902 = vmul.f32 %v461, %v461
  %v1903 = vmul.f32 %v462, %v462
  %v1904 = vmul.f32 %v463, %v463
  %v1905 = vmul.f32 %v464, %v464
  %v1906 = vmul.f32 %v465, %v465
  %v1907 = vmul.f32 %v466, %v466
  %v1908 = vmul.f32 %v467, %v467
  %v1909 = vmul.f32 %v468, %v468
  %v1910 = vmul.f32 %v469, %v469
  %v1911 = vmul.f32 %v470, %v470
  %v1912 = vmul.f32 %v471, %v471
  %v1913 = vmul.f32 %v472, %v472
  %v1914 = vmul.f32 %v473, %v473
  %v1915 = vmul.f32 %v474, %v474
  %v1916 = vmul.f32 %v475, %v475
  %v1917 = vmul.f32 %v476, %v476
  %v1918 = vmul.f32 %v477, %v477
  %v1919 = vmul.f32 %v478, %v478
  %v1920 = vmul.f32 %v479, %v479
  %v1921 = vmul.f32 %v480, %v480
  %v1922 = vmul.f32 %v481, %v481
  %v1923 = vmul.f32 %v482, %v482
  %v1924 = vmul.f32 %v483, %v483
  %v1925 = vmul.f32 %v484, %v484
  %v1926 = vmul.f32 %v485, %v485
  %v1927 = vmul.f32 %v486, %v486
  %v1928 = vmul.f32 %v487, %v487
  %v1929 = vmul.f32 %v488, %v488
  %v1930 = vmul.f32 %v489, %v489
  %v1931 = vmul.f32 %v490, %v490
  %v1932 = vmul.f32 %v491, %v491
  %v1933 = vmul.f32 %v492, %v492
  %v1934 = vmul.f32 %v493, %v493
  %v1935 = vmul.f32 %v494, %v494
  %v1936 = vmul.f32 %v495, %v495
  %v1937 = vmul.f32 %v496, %v496
  %v1938 = vmul.f32 %v497, %v497
  %v1939 = vmul.f32 %v498, %v498
  %v1940 = vmul.f32 %v499, %v499
  %v1941 = vmul.f32 %v500, %v500
  %v1942 = vmul.f32 %v501, %v501
  %v1943 = vmul.f32 %v502, %v502
  %v1944 = vmul.f32 %v503, %v503
  %v1945 = vmul.f32 %v504, %v504
  %v1946 = vmul.f32 %v505, %v505
  %v1947 = vmul.f32 %v506, %v506
  %v1948 = vmul.f32 %v507, %v507
  %v1949 = vmul.f32 %v508, %v508
  %v1950 = vmul.f32 %v509, %v509
  %v1951 = vmul.f32 %v510, %v510
  %v1952 = vmul.f32 %v511, %v511
  %v1953 = vmul.f32 %v512, %v512
  %v1954 = vmul.f32 %v513, %v513
  %v1955 = vmul.f32 %v514, %v514
  %v1956 = vmul.f32 %v515, %v515
  %v1957 = vmul.f32 %v516, %v516
  %v1958 = vmul.f32 %v517, %v517
  %v1959 = vmul.f32 %v518, %v518
  %v1960 = vmul.f32 %v519, %v519
  %v1961 = vmul.f32 %v520, %v520
  %v1962 = vmul.f32 %v521, %v521
  %v1963 = vmul.f32 %v522, %v522
  %v1964 = vmul.f32 %v523, %v523
  %v1965 = vmul.f32 %v524, %v524
  %v1966 = vmul.f32 %v525, %v525
  %v1967 = vmul.f32 %v526, %v526
  %v1968 = vmul.f32 %v527, %v527
  %v1969 = vmul.f32 %v528, %v528
  %v1970 = vmul.f32 %v529, %v529
  %v1971 = vmul.f32 %v530, %v530
  %v1972 = vmul.f32 %v531, %v531
  %v1973 = vmul.f32 %v532, %v532
  %v1974 = vmul.f32 %v533, %v533
  %v1975 = vmul.f32 %v534, %v534
  %v1976 = vmul.f32 %v535, %v535
  %v1977 = vmul.f32 %v536, %v536
  %v1978 = vmul.f32 %v537, %v537
  %v1979 = vmul.f32 %v538, %v538
  %v1980 = vmul.f32 %v539, %v539
  %v1981 = vmul.f32 %v540, %v540
  %v1982 = vmul.f32 %v541, %v541
  %v1983 = vmul.f32 %v542, %v542
  %v1984 = vmul.f32 %v543, %v543
  %v1985 = vmul.f32 %v544, %v544
  %v1986 = vmul.f32 %v545, %v545
  %v1987 = vmul.f32 %v546, %v546
  %v1988 = vmul.f32 %v547, %v547
  %v1989 = vmul.f32 %v548, %v548
  %v1990 = vmul.f32 %v549, %v549
  %v1991 = vmul.f32 %v550, %v550
  %v1992 = vmul.f32 %v551, %v551
  %v1993 = vmul.f32 %v552, %v552
  %v1994 = vmul.f32 %v553, %v553
  %v1995 = vmul.f32 %v554, %v554
  %v1996 = vmul.f32 %v555, %v555
  %v1997 = vmul.f32 %v556, %v556
  %v1998 = vmul.f32 %v557, %v557
  %v1999 = vmul.f32 %v558, %v558
  %v2000 = vmul.f32 %v559, %v559
  %v2001 = vmul.f32 %v560, %v560
  %v2002 = vmul.f32 %v561, %v561
  %v2003 = vmul.f32 %v562, %v562
  %v2004 = vmul.f32 %v563, %v563
  %v2005 = vmul.f32 %v564, %v564
  %v2006 = vmul.f32 %v565, %v565
  %v2007 = vmul.f32 %v566, %v566
  %v2008 = vmul.f32 %v567, %v567
  %v2009 = vmul.f32 %v568, %v568
  %v2010 = vmul.f32 %v569, %v569
  %v2011 = vmul.f32 %v570, %v570
  %v2012 = vmul.f32 %v571, %v571
  %v2013 = vmul.f32 %v572, %v572
  %v2014 = vmul.f32 %v573, %v573
  %v2015 = vmul.f32 %v574, %v574
  %v2016 = vmul.f32 %v575, %v575
  %v2017 = vmul.f32 %v576, %v576
  %v2018 = vmul.f32 %v577, %v577
  %v2019 = vmul.f32 %v578, %v578
  %v2020 = vmul.f32 %v579, %v579
  %v2021 = vmul.f32 %v580, %v580
  %v2022 = vmul.f32 %v581, %v581
  %v2023 = vmul.f32 %v582, %v582
  %v2024 = vmul.f32 %v583, %v583
  %v2025 = vmul.f32 %v584, %v584
  %v2026 = vmul.f32 %v585, %v585
  %v2027 = vmul.f32 %v586, %v586
  %v2028 = vmul.f32 %v587, %v587
  %v2029 = vmul.f32 %v588, %v588
  %v2030 = vmul.f32 %v589, %v589
  %v2031 = vmul.f32 %v590, %v590
  %v2032 = vmul.f32 %v591, %v591
  %v2033 = vmul.f32 %v592, %v592
  %v2034 = vmul.f32 %v593, %v593
  %v2035 = vmul.f32 %v594, %v594
  %v2036 = vmul.f32 %v595, %v595
  %v2037 = vmul.f32 %v596, %v596
  %v2038 = vmul.f32 %v597, %v597
  %v2039 = vmul.f32 %v598, %v598
  %v2040 = vmul.f32 %v599, %v599
  %v2041 = vmul.f32 %v600, %v600
  %v2042 = vmul.f32 %v601, %v601
  %v2043 = vmul.f32 %v602, %v602
  %v2044 = vmul.f32 %v603, %v603
  %v2045 = vmul.f32 %v604, %v604
  %v2046 = vmul.f32 %v605, %v605
  %v2047 = vmul.f32 %v606, %v606
  %v2048 = vmul.f32 %v607, %v607
  %v2049 = vmul.f32 %v608, %v608
  %v2050 = vmul.f32 %v609, %v609
  %v2051 = vmul.f32 %v610, %v610
  %v2052 = vmul.f32 %v611, %v611
  %v2053 = vmul.f32 %v612, %v612
  %v2054 = vmul.f32 %v613, %v613
  %v2055 = vmul.f32 %v614, %v614
  %v2056 = vmul.f32 %v615, %v615
  %v2057 = vmul.f32 %v616, %v616
  %v2058 = vmul.f32 %v617, %v617
  %v2059 = vmul.f32 %v618, %v618
  %v2060 = vmul.f32 %v619, %v619
  %v2061 = vmul.f32 %v620, %v620
  %v2062 = vmul.f32 %v621, %v621
  %v2063 = vmul.f32 %v622, %v622
  %v2064 = vmul.f32 %v623, %v623
  %v2065 = vmul.f32 %v624, %v624
  %v2066 = vmul.f32 %v625, %v625
  %v2067 = vmul.f32 %v626, %v626
  %v2068 = vmul.f32 %v627, %v627
  %v2069 = vmul.f32 %v628, %v628
  %v2070 = vmul.f32 %v629, %v629
  %v2071 = vmul.f32 %v630, %v630
  %v2072 = vmul.f32 %v631, %v631
  %v2073 = vmul.f32 %v632, %v632
  %v2074 = vmul.f32 %v633, %v633
  %v2075 = vmul.f32 %v634, %v634
  %v2076 = vmul.f32 %v635, %v635
  %v2077 = vmul.f32 %v636, %v636
  %v2078 = vmul.f32 %v637, %v637
  %v2079 = vmul.f32 %v638, %v638
  %v2080 = vmul.f32 %v639, %v639
  %v2081 = vmul.f32 %v640, %v640
  %v2082 = vmul.f32 %v641, %v641
  %v2083 = vmul.f32 %v642, %v642
  %v2084 = vmul.f32 %v643, %v643
  %v2085 = vmul.f32 %v644, %v644
  %v2086 = vmul.f32 %v645, %v645
  %v2087 = vmul.f32 %v646, %v646
  %v2088 = vmul.f32 %v647, %v647
  %v2089 = vmul.f32 %v648, %v648
  %v2090 = vmul.f32 %v649, %v649
  %v2091 = vmul.f32 %v650, %v650
  %v2092 = vmul.f32 %v651, %v651
  %v2093 = vmul.f32 %v652, %v652
  %v2094 = vmul.f32 %v653, %v653
  %v2095 = vadd.f32 %v1465, %v1466
  %v2096 = vadd.f32 %v2095, %v1467
  %v2097 = vadd.f32 %v2096, %v1468
  %v2098 = vadd.f32 %v2097, %v1469
  %v2099 = vadd.f32 %v2098, %v1470
  %v2100 = vsel %vm659, %v1471, 0.0
  %v2101 = vadd.f32 %v2099, %v2100
  %2102 = vadd.xlane.f32.xlu0 %v2101
  %v2103 = vpop.xlane.xlu0 %2102
  %v2104 = vadd.f32 %v1472, %v1473
  %v2105 = vadd.f32 %v2104, %v1474
  %v2106 = vadd.f32 %v2105, %v1475
  %v2107 = vadd.f32 %v2106, %v1476
  %v2108 = vadd.f32 %v2107, %v1477
  %v2109 = vsel %vm659, %v1478, 0.0
  %v2110 = vadd.f32 %v2108, %v2109
  %2111 = vadd.xlane.f32.xlu0 %v2110
  %v2112 = vpop.xlane.xlu0 %2111
  %v2113 = vadd.f32 %v1479, %v1480
  %v2114 = vadd.f32 %v2113, %v1481
  %v2115 = vadd.f32 %v2114, %v1482
  %v2116 = vadd.f32 %v2115, %v1483
  %v2117 = vadd.f32 %v2116, %v1484
  %v2118 = vsel %vm659, %v1485, 0.0
  %v2119 = vadd.f32 %v2117, %v2118
  %2120 = vadd.xlane.f32.xlu0 %v2119
  %v2121 = vpop.xlane.xlu0 %2120
  %v2122 = vadd.f32 %v1486, %v1487
  %v2123 = vadd.f32 %v2122, %v1488
  %v2124 = vadd.f32 %v2123, %v1489
  %v2125 = vadd.f32 %v2124, %v1490
  %v2126 = vadd.f32 %v2125, %v1491
  %v2127 = vsel %vm659, %v1492, 0.0
  %v2128 = vadd.f32 %v2126, %v2127
  %2129 = vadd.xlane.f32.xlu0 %v2128
  %v2130 = vpop.xlane.xlu0 %2129
  %v2131 = vadd.f32 %v1493, %v1494
  %v2132 = vadd.f32 %v2131, %v1495
  %v2133 = vadd.f32 %v2132, %v1496
  %v2134 = vadd.f32 %v2133, %v1497
  %v2135 = vadd.f32 %v2134, %v1498
  %v2136 = vsel %vm659, %v1499, 0.0
  %v2137 = vadd.f32 %v2135, %v2136
  %2138 = vadd.xlane.f32.xlu0 %v2137
  %v2139 = vpop.xlane.xlu0 %2138
  %v2140 = vadd.f32 %v1500, %v1501
  %v2141 = vadd.f32 %v2140, %v1502
  %v2142 = vadd.f32 %v2141, %v1503
  %v2143 = vadd.f32 %v2142, %v1504
  %v2144 = vadd.f32 %v2143, %v1505
  %v2145 = vsel %vm659, %v1506, 0.0
  %v2146 = vadd.f32 %v2144, %v2145
  %2147 = vadd.xlane.f32.xlu0 %v2146
  %v2148 = vpop.xlane.xlu0 %2147
  %v2149 = vadd.f32 %v1507, %v1508
  %v2150 = vadd.f32 %v2149, %v1509
  %v2151 = vadd.f32 %v2150, %v1510
  %v2152 = vadd.f32 %v2151, %v1511
  %v2153 = vadd.f32 %v2152, %v1512
  %v2154 = vsel %vm659, %v1513, 0.0
  %v2155 = vadd.f32 %v2153, %v2154
  %2156 = vadd.xlane.f32.xlu0 %v2155
  %v2157 = vpop.xlane.xlu0 %2156
  %v2158 = vadd.f32 %v1514, %v1515
  %v2159 = vadd.f32 %v2158, %v1516
  %v2160 = vadd.f32 %v2159, %v1517
  %v2161 = vadd.f32 %v2160, %v1518
  %v2162 = vadd.f32 %v2161, %v1519
  %v2163 = vsel %vm659, %v1520, 0.0
  %v2164 = vadd.f32 %v2162, %v2163
  %2165 = vadd.xlane.f32.xlu0 %v2164
  %v2166 = vpop.xlane.xlu0 %2165
  %v2167 = vadd.f32 %v1521, %v1522
  %v2168 = vadd.f32 %v2167, %v1523
  %v2169 = vadd.f32 %v2168, %v1524
  %v2170 = vadd.f32 %v2169, %v1525
  %v2171 = vadd.f32 %v2170, %v1526
  %v2172 = vsel %vm659, %v1527, 0.0
  %v2173 = vadd.f32 %v2171, %v2172
  %2174 = vadd.xlane.f32.xlu0 %v2173
  %v2175 = vpop.xlane.xlu0 %2174
  %v2176 = vadd.f32 %v1528, %v1529
  %v2177 = vadd.f32 %v2176, %v1530
  %v2178 = vadd.f32 %v2177, %v1531
  %v2179 = vadd.f32 %v2178, %v1532
  %v2180 = vadd.f32 %v2179, %v1533
  %v2181 = vsel %vm659, %v1534, 0.0
  %v2182 = vadd.f32 %v2180, %v2181
  %2183 = vadd.xlane.f32.xlu0 %v2182
  %v2184 = vpop.xlane.xlu0 %2183
  %v2185 = vadd.f32 %v1535, %v1536
  %v2186 = vadd.f32 %v2185, %v1537
  %v2187 = vadd.f32 %v2186, %v1538
  %v2188 = vadd.f32 %v2187, %v1539
  %v2189 = vadd.f32 %v2188, %v1540
  %v2190 = vsel %vm659, %v1541, 0.0
  %v2191 = vadd.f32 %v2189, %v2190
  %2192 = vadd.xlane.f32.xlu0 %v2191
  %v2193 = vpop.xlane.xlu0 %2192
  %v2194 = vadd.f32 %v1542, %v1543
  %v2195 = vadd.f32 %v2194, %v1544
  %v2196 = vadd.f32 %v2195, %v1545
  %v2197 = vadd.f32 %v2196, %v1546
  %v2198 = vadd.f32 %v2197, %v1547
  %v2199 = vsel %vm659, %v1548, 0.0
  %v2200 = vadd.f32 %v2198, %v2199
  %2201 = vadd.xlane.f32.xlu0 %v2200
  %v2202 = vpop.xlane.xlu0 %2201
  %v2203 = vadd.f32 %v1549, %v1550
  %v2204 = vadd.f32 %v2203, %v1551
  %v2205 = vadd.f32 %v2204, %v1552
  %v2206 = vadd.f32 %v2205, %v1553
  %v2207 = vadd.f32 %v2206, %v1554
  %v2208 = vsel %vm659, %v1555, 0.0
  %v2209 = vadd.f32 %v2207, %v2208
  %2210 = vadd.xlane.f32.xlu0 %v2209
  %v2211 = vpop.xlane.xlu0 %2210
  %v2212 = vadd.f32 %v1556, %v1557
  %v2213 = vadd.f32 %v2212, %v1558
  %v2214 = vadd.f32 %v2213, %v1559
  %v2215 = vadd.f32 %v2214, %v1560
  %v2216 = vadd.f32 %v2215, %v1561
  %v2217 = vsel %vm659, %v1562, 0.0
  %v2218 = vadd.f32 %v2216, %v2217
  %2219 = vadd.xlane.f32.xlu0 %v2218
  %v2220 = vpop.xlane.xlu0 %2219
  %v2221 = vadd.f32 %v1563, %v1564
  %v2222 = vadd.f32 %v2221, %v1565
  %v2223 = vadd.f32 %v2222, %v1566
  %v2224 = vadd.f32 %v2223, %v1567
  %v2225 = vadd.f32 %v2224, %v1568
  %v2226 = vsel %vm659, %v1569, 0.0
  %v2227 = vadd.f32 %v2225, %v2226
  %2228 = vadd.xlane.f32.xlu0 %v2227
  %v2229 = vpop.xlane.xlu0 %2228
  %v2230 = vadd.f32 %v1570, %v1571
  %v2231 = vadd.f32 %v2230, %v1572
  %v2232 = vadd.f32 %v2231, %v1573
  %v2233 = vadd.f32 %v2232, %v1574
  %v2234 = vadd.f32 %v2233, %v1575
  %v2235 = vsel %vm659, %v1576, 0.0
  %v2236 = vadd.f32 %v2234, %v2235
  %2237 = vadd.xlane.f32.xlu0 %v2236
  %v2238 = vpop.xlane.xlu0 %2237
  %v2239 = vadd.f32 %v1577, %v1578
  %v2240 = vadd.f32 %v2239, %v1579
  %v2241 = vadd.f32 %v2240, %v1580
  %v2242 = vadd.f32 %v2241, %v1581
  %v2243 = vadd.f32 %v2242, %v1582
  %v2244 = vsel %vm659, %v1583, 0.0
  %v2245 = vadd.f32 %v2243, %v2244
  %2246 = vadd.xlane.f32.xlu0 %v2245
  %v2247 = vpop.xlane.xlu0 %2246
  %v2248 = vadd.f32 %v1584, %v1585
  %v2249 = vadd.f32 %v2248, %v1586
  %v2250 = vadd.f32 %v2249, %v1587
  %v2251 = vadd.f32 %v2250, %v1588
  %v2252 = vadd.f32 %v2251, %v1589
  %v2253 = vsel %vm659, %v1590, 0.0
  %v2254 = vadd.f32 %v2252, %v2253
  %2255 = vadd.xlane.f32.xlu0 %v2254
  %v2256 = vpop.xlane.xlu0 %2255
  %v2257 = vadd.f32 %v1591, %v1592
  %v2258 = vadd.f32 %v2257, %v1593
  %v2259 = vadd.f32 %v2258, %v1594
  %v2260 = vadd.f32 %v2259, %v1595
  %v2261 = vadd.f32 %v2260, %v1596
  %v2262 = vsel %vm659, %v1597, 0.0
  %v2263 = vadd.f32 %v2261, %v2262
  %2264 = vadd.xlane.f32.xlu0 %v2263
  %v2265 = vpop.xlane.xlu0 %2264
  %v2266 = vadd.f32 %v1598, %v1599
  %v2267 = vadd.f32 %v2266, %v1600
  %v2268 = vadd.f32 %v2267, %v1601
  %v2269 = vadd.f32 %v2268, %v1602
  %v2270 = vadd.f32 %v2269, %v1603
  %v2271 = vsel %vm659, %v1604, 0.0
  %v2272 = vadd.f32 %v2270, %v2271
  %2273 = vadd.xlane.f32.xlu0 %v2272
  %v2274 = vpop.xlane.xlu0 %2273
  %v2275 = vadd.f32 %v1605, %v1606
  %v2276 = vadd.f32 %v2275, %v1607
  %v2277 = vadd.f32 %v2276, %v1608
  %v2278 = vadd.f32 %v2277, %v1609
  %v2279 = vadd.f32 %v2278, %v1610
  %v2280 = vsel %vm659, %v1611, 0.0
  %v2281 = vadd.f32 %v2279, %v2280
  %2282 = vadd.xlane.f32.xlu0 %v2281
  %v2283 = vpop.xlane.xlu0 %2282
  %v2284 = vadd.f32 %v1612, %v1613
  %v2285 = vadd.f32 %v2284, %v1614
  %v2286 = vadd.f32 %v2285, %v1615
  %v2287 = vadd.f32 %v2286, %v1616
  %v2288 = vadd.f32 %v2287, %v1617
  %v2289 = vsel %vm659, %v1618, 0.0
  %v2290 = vadd.f32 %v2288, %v2289
  %2291 = vadd.xlane.f32.xlu0 %v2290
  %v2292 = vpop.xlane.xlu0 %2291
  %v2293 = vadd.f32 %v1619, %v1620
  %v2294 = vadd.f32 %v2293, %v1621
  %v2295 = vadd.f32 %v2294, %v1622
  %v2296 = vadd.f32 %v2295, %v1623
  %v2297 = vadd.f32 %v2296, %v1624
  %v2298 = vsel %vm659, %v1625, 0.0
  %v2299 = vadd.f32 %v2297, %v2298
  %2300 = vadd.xlane.f32.xlu0 %v2299
  %v2301 = vpop.xlane.xlu0 %2300
  %v2302 = vadd.f32 %v1626, %v1627
  %v2303 = vadd.f32 %v2302, %v1628
  %v2304 = vadd.f32 %v2303, %v1629
  %v2305 = vadd.f32 %v2304, %v1630
  %v2306 = vadd.f32 %v2305, %v1631
  %v2307 = vsel %vm659, %v1632, 0.0
  %v2308 = vadd.f32 %v2306, %v2307
  %2309 = vadd.xlane.f32.xlu0 %v2308
  %v2310 = vpop.xlane.xlu0 %2309
  %v2311 = vadd.f32 %v1633, %v1634
  %v2312 = vadd.f32 %v2311, %v1635
  %v2313 = vadd.f32 %v2312, %v1636
  %v2314 = vadd.f32 %v2313, %v1637
  %v2315 = vadd.f32 %v2314, %v1638
  %v2316 = vsel %vm659, %v1639, 0.0
  %v2317 = vadd.f32 %v2315, %v2316
  %2318 = vadd.xlane.f32.xlu0 %v2317
  %v2319 = vpop.xlane.xlu0 %2318
  %v2320 = vadd.f32 %v1640, %v1641
  %v2321 = vadd.f32 %v2320, %v1642
  %v2322 = vadd.f32 %v2321, %v1643
  %v2323 = vadd.f32 %v2322, %v1644
  %v2324 = vadd.f32 %v2323, %v1645
  %v2325 = vsel %vm659, %v1646, 0.0
  %v2326 = vadd.f32 %v2324, %v2325
  %2327 = vadd.xlane.f32.xlu0 %v2326
  %v2328 = vpop.xlane.xlu0 %2327
  %v2329 = vadd.f32 %v1647, %v1648
  %v2330 = vadd.f32 %v2329, %v1649
  %v2331 = vadd.f32 %v2330, %v1650
  %v2332 = vadd.f32 %v2331, %v1651
  %v2333 = vadd.f32 %v2332, %v1652
  %v2334 = vsel %vm659, %v1653, 0.0
  %v2335 = vadd.f32 %v2333, %v2334
  %2336 = vadd.xlane.f32.xlu0 %v2335
  %v2337 = vpop.xlane.xlu0 %2336
  %v2338 = vadd.f32 %v1654, %v1655
  %v2339 = vadd.f32 %v2338, %v1656
  %v2340 = vadd.f32 %v2339, %v1657
  %v2341 = vadd.f32 %v2340, %v1658
  %v2342 = vadd.f32 %v2341, %v1659
  %v2343 = vsel %vm659, %v1660, 0.0
  %v2344 = vadd.f32 %v2342, %v2343
  %2345 = vadd.xlane.f32.xlu0 %v2344
  %v2346 = vpop.xlane.xlu0 %2345
  %v2347 = vadd.f32 %v1661, %v1662
  %v2348 = vadd.f32 %v2347, %v1663
  %v2349 = vadd.f32 %v2348, %v1664
  %v2350 = vadd.f32 %v2349, %v1665
  %v2351 = vadd.f32 %v2350, %v1666
  %v2352 = vsel %vm659, %v1667, 0.0
  %v2353 = vadd.f32 %v2351, %v2352
  %2354 = vadd.xlane.f32.xlu0 %v2353
  %v2355 = vpop.xlane.xlu0 %2354
  %v2356 = vadd.f32 %v1668, %v1669
  %v2357 = vadd.f32 %v2356, %v1670
  %v2358 = vadd.f32 %v2357, %v1671
  %v2359 = vadd.f32 %v2358, %v1672
  %v2360 = vadd.f32 %v2359, %v1673
  %v2361 = vsel %vm659, %v1674, 0.0
  %v2362 = vadd.f32 %v2360, %v2361
  %2363 = vadd.xlane.f32.xlu0 %v2362
  %v2364 = vpop.xlane.xlu0 %2363
  %v2365 = vadd.f32 %v1675, %v1676
  %v2366 = vadd.f32 %v2365, %v1677
  %v2367 = vadd.f32 %v2366, %v1678
  %v2368 = vadd.f32 %v2367, %v1679
  %v2369 = vadd.f32 %v2368, %v1680
  %v2370 = vsel %vm659, %v1681, 0.0
  %v2371 = vadd.f32 %v2369, %v2370
  %2372 = vadd.xlane.f32.xlu0 %v2371
  %v2373 = vpop.xlane.xlu0 %2372
  %v2374 = vadd.f32 %v1682, %v1683
  %v2375 = vadd.f32 %v2374, %v1684
  %v2376 = vadd.f32 %v2375, %v1685
  %v2377 = vadd.f32 %v2376, %v1686
  %v2378 = vadd.f32 %v2377, %v1687
  %v2379 = vsel %vm659, %v1688, 0.0
  %v2380 = vadd.f32 %v2378, %v2379
  %2381 = vadd.xlane.f32.xlu0 %v2380
  %v2382 = vpop.xlane.xlu0 %2381
  %v2383 = vadd.f32 %v1689, %v1690
  %v2384 = vadd.f32 %v2383, %v1691
  %v2385 = vadd.f32 %v2384, %v1692
  %v2386 = vadd.f32 %v2385, %v1693
  %v2387 = vadd.f32 %v2386, %v1694
  %v2388 = vsel %vm659, %v1695, 0.0
  %v2389 = vadd.f32 %v2387, %v2388
  %2390 = vadd.xlane.f32.xlu0 %v2389
  %v2391 = vpop.xlane.xlu0 %2390
  %v2392 = vadd.f32 %v1696, %v1697
  %v2393 = vadd.f32 %v2392, %v1698
  %v2394 = vadd.f32 %v2393, %v1699
  %v2395 = vadd.f32 %v2394, %v1700
  %v2396 = vadd.f32 %v2395, %v1701
  %v2397 = vsel %vm659, %v1702, 0.0
  %v2398 = vadd.f32 %v2396, %v2397
  %2399 = vadd.xlane.f32.xlu0 %v2398
  %v2400 = vpop.xlane.xlu0 %2399
  %v2401 = vadd.f32 %v1703, %v1704
  %v2402 = vadd.f32 %v2401, %v1705
  %v2403 = vadd.f32 %v2402, %v1706
  %v2404 = vadd.f32 %v2403, %v1707
  %v2405 = vadd.f32 %v2404, %v1708
  %v2406 = vsel %vm659, %v1709, 0.0
  %v2407 = vadd.f32 %v2405, %v2406
  %2408 = vadd.xlane.f32.xlu0 %v2407
  %v2409 = vpop.xlane.xlu0 %2408
  %v2410 = vadd.f32 %v1710, %v1711
  %v2411 = vadd.f32 %v2410, %v1712
  %v2412 = vadd.f32 %v2411, %v1713
  %v2413 = vadd.f32 %v2412, %v1714
  %v2414 = vadd.f32 %v2413, %v1715
  %v2415 = vsel %vm659, %v1716, 0.0
  %v2416 = vadd.f32 %v2414, %v2415
  %2417 = vadd.xlane.f32.xlu0 %v2416
  %v2418 = vpop.xlane.xlu0 %2417
  %v2419 = vadd.f32 %v1717, %v1718
  %v2420 = vadd.f32 %v2419, %v1719
  %v2421 = vadd.f32 %v2420, %v1720
  %v2422 = vadd.f32 %v2421, %v1721
  %v2423 = vadd.f32 %v2422, %v1722
  %v2424 = vsel %vm659, %v1723, 0.0
  %v2425 = vadd.f32 %v2423, %v2424
  %2426 = vadd.xlane.f32.xlu0 %v2425
  %v2427 = vpop.xlane.xlu0 %2426
  %v2428 = vadd.f32 %v1724, %v1725
  %v2429 = vadd.f32 %v2428, %v1726
  %v2430 = vadd.f32 %v2429, %v1727
  %v2431 = vadd.f32 %v2430, %v1728
  %v2432 = vadd.f32 %v2431, %v1729
  %v2433 = vsel %vm659, %v1730, 0.0
  %v2434 = vadd.f32 %v2432, %v2433
  %2435 = vadd.xlane.f32.xlu0 %v2434
  %v2436 = vpop.xlane.xlu0 %2435
  %v2437 = vadd.f32 %v1731, %v1732
  %v2438 = vadd.f32 %v2437, %v1733
  %v2439 = vadd.f32 %v2438, %v1734
  %v2440 = vadd.f32 %v2439, %v1735
  %v2441 = vadd.f32 %v2440, %v1736
  %v2442 = vsel %vm659, %v1737, 0.0
  %v2443 = vadd.f32 %v2441, %v2442
  %2444 = vadd.xlane.f32.xlu0 %v2443
  %v2445 = vpop.xlane.xlu0 %2444
  %v2446 = vadd.f32 %v1738, %v1739
  %v2447 = vadd.f32 %v2446, %v1740
  %v2448 = vadd.f32 %v2447, %v1741
  %v2449 = vadd.f32 %v2448, %v1742
  %v2450 = vadd.f32 %v2449, %v1743
  %v2451 = vsel %vm659, %v1744, 0.0
  %v2452 = vadd.f32 %v2450, %v2451
  %2453 = vadd.xlane.f32.xlu0 %v2452
  %v2454 = vpop.xlane.xlu0 %2453
  %v2455 = vadd.f32 %v1745, %v1746
  %v2456 = vadd.f32 %v2455, %v1747
  %v2457 = vadd.f32 %v2456, %v1748
  %v2458 = vadd.f32 %v2457, %v1749
  %v2459 = vadd.f32 %v2458, %v1750
  %v2460 = vsel %vm659, %v1751, 0.0
  %v2461 = vadd.f32 %v2459, %v2460
  %2462 = vadd.xlane.f32.xlu0 %v2461
  %v2463 = vpop.xlane.xlu0 %2462
  %v2464 = vadd.f32 %v1752, %v1753
  %v2465 = vadd.f32 %v2464, %v1754
  %v2466 = vadd.f32 %v2465, %v1755
  %v2467 = vadd.f32 %v2466, %v1756
  %v2468 = vadd.f32 %v2467, %v1757
  %v2469 = vsel %vm659, %v1758, 0.0
  %v2470 = vadd.f32 %v2468, %v2469
  %2471 = vadd.xlane.f32.xlu0 %v2470
  %v2472 = vpop.xlane.xlu0 %2471
  %v2473 = vadd.f32 %v1759, %v1760
  %v2474 = vadd.f32 %v2473, %v1761
  %v2475 = vadd.f32 %v2474, %v1762
  %v2476 = vadd.f32 %v2475, %v1763
  %v2477 = vadd.f32 %v2476, %v1764
  %v2478 = vsel %vm659, %v1765, 0.0
  %v2479 = vadd.f32 %v2477, %v2478
  %2480 = vadd.xlane.f32.xlu0 %v2479
  %v2481 = vpop.xlane.xlu0 %2480
  %v2482 = vadd.f32 %v1766, %v1767
  %v2483 = vadd.f32 %v2482, %v1768
  %v2484 = vadd.f32 %v2483, %v1769
  %v2485 = vadd.f32 %v2484, %v1770
  %v2486 = vadd.f32 %v2485, %v1771
  %v2487 = vsel %vm659, %v1772, 0.0
  %v2488 = vadd.f32 %v2486, %v2487
  %2489 = vadd.xlane.f32.xlu0 %v2488
  %v2490 = vpop.xlane.xlu0 %2489
  %v2491 = vadd.f32 %v1773, %v1774
  %v2492 = vadd.f32 %v2491, %v1775
  %v2493 = vadd.f32 %v2492, %v1776
  %v2494 = vadd.f32 %v2493, %v1777
  %v2495 = vadd.f32 %v2494, %v1778
  %v2496 = vsel %vm659, %v1779, 0.0
  %v2497 = vadd.f32 %v2495, %v2496
  %2498 = vadd.xlane.f32.xlu0 %v2497
  %v2499 = vpop.xlane.xlu0 %2498
  %v2500 = vadd.f32 %v1780, %v1781
  %v2501 = vadd.f32 %v2500, %v1782
  %v2502 = vadd.f32 %v2501, %v1783
  %v2503 = vadd.f32 %v2502, %v1784
  %v2504 = vadd.f32 %v2503, %v1785
  %v2505 = vsel %vm659, %v1786, 0.0
  %v2506 = vadd.f32 %v2504, %v2505
  %2507 = vadd.xlane.f32.xlu0 %v2506
  %v2508 = vpop.xlane.xlu0 %2507
  %v2509 = vadd.f32 %v1787, %v1788
  %v2510 = vadd.f32 %v2509, %v1789
  %v2511 = vadd.f32 %v2510, %v1790
  %v2512 = vadd.f32 %v2511, %v1791
  %v2513 = vadd.f32 %v2512, %v1792
  %v2514 = vsel %vm659, %v1793, 0.0
  %v2515 = vadd.f32 %v2513, %v2514
  %2516 = vadd.xlane.f32.xlu0 %v2515
  %v2517 = vpop.xlane.xlu0 %2516
  %v2518 = vadd.f32 %v1794, %v1795
  %v2519 = vadd.f32 %v2518, %v1796
  %v2520 = vadd.f32 %v2519, %v1797
  %v2521 = vadd.f32 %v2520, %v1798
  %v2522 = vadd.f32 %v2521, %v1799
  %v2523 = vsel %vm659, %v1800, 0.0
  %v2524 = vadd.f32 %v2522, %v2523
  %2525 = vadd.xlane.f32.xlu0 %v2524
  %v2526 = vpop.xlane.xlu0 %2525
  %v2527 = vadd.f32 %v1801, %v1802
  %v2528 = vadd.f32 %v2527, %v1803
  %v2529 = vadd.f32 %v2528, %v1804
  %v2530 = vadd.f32 %v2529, %v1805
  %v2531 = vadd.f32 %v2530, %v1806
  %v2532 = vsel %vm659, %v1807, 0.0
  %v2533 = vadd.f32 %v2531, %v2532
  %2534 = vadd.xlane.f32.xlu0 %v2533
  %v2535 = vpop.xlane.xlu0 %2534
  %v2536 = vadd.f32 %v1808, %v1809
  %v2537 = vadd.f32 %v2536, %v1810
  %v2538 = vadd.f32 %v2537, %v1811
  %v2539 = vadd.f32 %v2538, %v1812
  %v2540 = vadd.f32 %v2539, %v1813
  %v2541 = vsel %vm659, %v1814, 0.0
  %v2542 = vadd.f32 %v2540, %v2541
  %2543 = vadd.xlane.f32.xlu0 %v2542
  %v2544 = vpop.xlane.xlu0 %2543
  %v2545 = vadd.f32 %v1815, %v1816
  %v2546 = vadd.f32 %v2545, %v1817
  %v2547 = vadd.f32 %v2546, %v1818
  %v2548 = vadd.f32 %v2547, %v1819
  %v2549 = vadd.f32 %v2548, %v1820
  %v2550 = vsel %vm659, %v1821, 0.0
  %v2551 = vadd.f32 %v2549, %v2550
  %2552 = vadd.xlane.f32.xlu0 %v2551
  %v2553 = vpop.xlane.xlu0 %2552
  %v2554 = vadd.f32 %v1822, %v1823
  %v2555 = vadd.f32 %v2554, %v1824
  %v2556 = vadd.f32 %v2555, %v1825
  %v2557 = vadd.f32 %v2556, %v1826
  %v2558 = vadd.f32 %v2557, %v1827
  %v2559 = vsel %vm659, %v1828, 0.0
  %v2560 = vadd.f32 %v2558, %v2559
  %2561 = vadd.xlane.f32.xlu0 %v2560
  %v2562 = vpop.xlane.xlu0 %2561
  %v2563 = vadd.f32 %v1829, %v1830
  %v2564 = vadd.f32 %v2563, %v1831
  %v2565 = vadd.f32 %v2564, %v1832
  %v2566 = vadd.f32 %v2565, %v1833
  %v2567 = vadd.f32 %v2566, %v1834
  %v2568 = vsel %vm659, %v1835, 0.0
  %v2569 = vadd.f32 %v2567, %v2568
  %2570 = vadd.xlane.f32.xlu0 %v2569
  %v2571 = vpop.xlane.xlu0 %2570
  %v2572 = vadd.f32 %v1836, %v1837
  %v2573 = vadd.f32 %v2572, %v1838
  %v2574 = vadd.f32 %v2573, %v1839
  %v2575 = vadd.f32 %v2574, %v1840
  %v2576 = vadd.f32 %v2575, %v1841
  %v2577 = vsel %vm659, %v1842, 0.0
  %v2578 = vadd.f32 %v2576, %v2577
  %2579 = vadd.xlane.f32.xlu0 %v2578
  %v2580 = vpop.xlane.xlu0 %2579
  %v2581 = vadd.f32 %v1843, %v1844
  %v2582 = vadd.f32 %v2581, %v1845
  %v2583 = vadd.f32 %v2582, %v1846
  %v2584 = vadd.f32 %v2583, %v1847
  %v2585 = vadd.f32 %v2584, %v1848
  %v2586 = vsel %vm659, %v1849, 0.0
  %v2587 = vadd.f32 %v2585, %v2586
  %2588 = vadd.xlane.f32.xlu0 %v2587
  %v2589 = vpop.xlane.xlu0 %2588
  %v2590 = vadd.f32 %v1850, %v1851
  %v2591 = vadd.f32 %v2590, %v1852
  %v2592 = vadd.f32 %v2591, %v1853
  %v2593 = vadd.f32 %v2592, %v1854
  %v2594 = vadd.f32 %v2593, %v1855
  %v2595 = vsel %vm659, %v1856, 0.0
  %v2596 = vadd.f32 %v2594, %v2595
  %2597 = vadd.xlane.f32.xlu0 %v2596
  %v2598 = vpop.xlane.xlu0 %2597
  %v2599 = vadd.f32 %v1857, %v1858
  %v2600 = vadd.f32 %v2599, %v1859
  %v2601 = vadd.f32 %v2600, %v1860
  %v2602 = vadd.f32 %v2601, %v1861
  %v2603 = vadd.f32 %v2602, %v1862
  %v2604 = vsel %vm659, %v1863, 0.0
  %v2605 = vadd.f32 %v2603, %v2604
  %2606 = vadd.xlane.f32.xlu0 %v2605
  %v2607 = vpop.xlane.xlu0 %2606
  %v2608 = vadd.f32 %v1864, %v1865
  %v2609 = vadd.f32 %v2608, %v1866
  %v2610 = vadd.f32 %v2609, %v1867
  %v2611 = vadd.f32 %v2610, %v1868
  %v2612 = vadd.f32 %v2611, %v1869
  %v2613 = vsel %vm659, %v1870, 0.0
  %v2614 = vadd.f32 %v2612, %v2613
  %2615 = vadd.xlane.f32.xlu0 %v2614
  %v2616 = vpop.xlane.xlu0 %2615
  %v2617 = vadd.f32 %v1871, %v1872
  %v2618 = vadd.f32 %v2617, %v1873
  %v2619 = vadd.f32 %v2618, %v1874
  %v2620 = vadd.f32 %v2619, %v1875
  %v2621 = vadd.f32 %v2620, %v1876
  %v2622 = vsel %vm659, %v1877, 0.0
  %v2623 = vadd.f32 %v2621, %v2622
  %2624 = vadd.xlane.f32.xlu0 %v2623
  %v2625 = vpop.xlane.xlu0 %2624
  %v2626 = vadd.f32 %v1878, %v1879
  %v2627 = vadd.f32 %v2626, %v1880
  %v2628 = vadd.f32 %v2627, %v1881
  %v2629 = vadd.f32 %v2628, %v1882
  %v2630 = vadd.f32 %v2629, %v1883
  %v2631 = vsel %vm659, %v1884, 0.0
  %v2632 = vadd.f32 %v2630, %v2631
  %2633 = vadd.xlane.f32.xlu0 %v2632
  %v2634 = vpop.xlane.xlu0 %2633
  %v2635 = vadd.f32 %v1885, %v1886
  %v2636 = vadd.f32 %v2635, %v1887
  %v2637 = vadd.f32 %v2636, %v1888
  %v2638 = vadd.f32 %v2637, %v1889
  %v2639 = vadd.f32 %v2638, %v1890
  %v2640 = vsel %vm659, %v1891, 0.0
  %v2641 = vadd.f32 %v2639, %v2640
  %2642 = vadd.xlane.f32.xlu0 %v2641
  %v2643 = vpop.xlane.xlu0 %2642
  %v2644 = vadd.f32 %v1892, %v1893
  %v2645 = vadd.f32 %v2644, %v1894
  %v2646 = vadd.f32 %v2645, %v1895
  %v2647 = vadd.f32 %v2646, %v1896
  %v2648 = vadd.f32 %v2647, %v1897
  %v2649 = vsel %vm659, %v1898, 0.0
  %v2650 = vadd.f32 %v2648, %v2649
  %2651 = vadd.xlane.f32.xlu0 %v2650
  %v2652 = vpop.xlane.xlu0 %2651
  %v2653 = vadd.f32 %v1899, %v1900
  %v2654 = vadd.f32 %v2653, %v1901
  %v2655 = vadd.f32 %v2654, %v1902
  %v2656 = vadd.f32 %v2655, %v1903
  %v2657 = vadd.f32 %v2656, %v1904
  %v2658 = vsel %vm659, %v1905, 0.0
  %v2659 = vadd.f32 %v2657, %v2658
  %2660 = vadd.xlane.f32.xlu0 %v2659
  %v2661 = vpop.xlane.xlu0 %2660
  %v2662 = vadd.f32 %v1906, %v1907
  %v2663 = vadd.f32 %v2662, %v1908
  %v2664 = vadd.f32 %v2663, %v1909
  %v2665 = vadd.f32 %v2664, %v1910
  %v2666 = vadd.f32 %v2665, %v1911
  %v2667 = vsel %vm659, %v1912, 0.0
  %v2668 = vadd.f32 %v2666, %v2667
  %2669 = vadd.xlane.f32.xlu0 %v2668
  %v2670 = vpop.xlane.xlu0 %2669
  %v2671 = vadd.f32 %v1913, %v1914
  %v2672 = vadd.f32 %v2671, %v1915
  %v2673 = vadd.f32 %v2672, %v1916
  %v2674 = vadd.f32 %v2673, %v1917
  %v2675 = vadd.f32 %v2674, %v1918
  %v2676 = vsel %vm659, %v1919, 0.0
  %v2677 = vadd.f32 %v2675, %v2676
  %2678 = vadd.xlane.f32.xlu0 %v2677
  %v2679 = vpop.xlane.xlu0 %2678
  %v2680 = vadd.f32 %v1920, %v1921
  %v2681 = vadd.f32 %v2680, %v1922
  %v2682 = vadd.f32 %v2681, %v1923
  %v2683 = vadd.f32 %v2682, %v1924
  %v2684 = vadd.f32 %v2683, %v1925
  %v2685 = vsel %vm659, %v1926, 0.0
  %v2686 = vadd.f32 %v2684, %v2685
  %2687 = vadd.xlane.f32.xlu0 %v2686
  %v2688 = vpop.xlane.xlu0 %2687
  %v2689 = vadd.f32 %v1927, %v1928
  %v2690 = vadd.f32 %v2689, %v1929
  %v2691 = vadd.f32 %v2690, %v1930
  %v2692 = vadd.f32 %v2691, %v1931
  %v2693 = vadd.f32 %v2692, %v1932
  %v2694 = vsel %vm659, %v1933, 0.0
  %v2695 = vadd.f32 %v2693, %v2694
  %2696 = vadd.xlane.f32.xlu0 %v2695
  %v2697 = vpop.xlane.xlu0 %2696
  %v2698 = vadd.f32 %v1934, %v1935
  %v2699 = vadd.f32 %v2698, %v1936
  %v2700 = vadd.f32 %v2699, %v1937
  %v2701 = vadd.f32 %v2700, %v1938
  %v2702 = vadd.f32 %v2701, %v1939
  %v2703 = vsel %vm659, %v1940, 0.0
  %v2704 = vadd.f32 %v2702, %v2703
  %2705 = vadd.xlane.f32.xlu0 %v2704
  %v2706 = vpop.xlane.xlu0 %2705
  %v2707 = vadd.f32 %v1941, %v1942
  %v2708 = vadd.f32 %v2707, %v1943
  %v2709 = vadd.f32 %v2708, %v1944
  %v2710 = vadd.f32 %v2709, %v1945
  %v2711 = vadd.f32 %v2710, %v1946
  %v2712 = vsel %vm659, %v1947, 0.0
  %v2713 = vadd.f32 %v2711, %v2712
  %2714 = vadd.xlane.f32.xlu0 %v2713
  %v2715 = vpop.xlane.xlu0 %2714
  %v2716 = vadd.f32 %v1948, %v1949
  %v2717 = vadd.f32 %v2716, %v1950
  %v2718 = vadd.f32 %v2717, %v1951
  %v2719 = vadd.f32 %v2718, %v1952
  %v2720 = vadd.f32 %v2719, %v1953
  %v2721 = vsel %vm659, %v1954, 0.0
  %v2722 = vadd.f32 %v2720, %v2721
  %2723 = vadd.xlane.f32.xlu0 %v2722
  %v2724 = vpop.xlane.xlu0 %2723
  %v2725 = vadd.f32 %v1955, %v1956
  %v2726 = vadd.f32 %v2725, %v1957
  %v2727 = vadd.f32 %v2726, %v1958
  %v2728 = vadd.f32 %v2727, %v1959
  %v2729 = vadd.f32 %v2728, %v1960
  %v2730 = vsel %vm659, %v1961, 0.0
  %v2731 = vadd.f32 %v2729, %v2730
  %2732 = vadd.xlane.f32.xlu0 %v2731
  %v2733 = vpop.xlane.xlu0 %2732
  %v2734 = vadd.f32 %v1962, %v1963
  %v2735 = vadd.f32 %v2734, %v1964
  %v2736 = vadd.f32 %v2735, %v1965
  %v2737 = vadd.f32 %v2736, %v1966
  %v2738 = vadd.f32 %v2737, %v1967
  %v2739 = vsel %vm659, %v1968, 0.0
  %v2740 = vadd.f32 %v2738, %v2739
  %2741 = vadd.xlane.f32.xlu0 %v2740
  %v2742 = vpop.xlane.xlu0 %2741
  %v2743 = vadd.f32 %v1969, %v1970
  %v2744 = vadd.f32 %v2743, %v1971
  %v2745 = vadd.f32 %v2744, %v1972
  %v2746 = vadd.f32 %v2745, %v1973
  %v2747 = vadd.f32 %v2746, %v1974
  %v2748 = vsel %vm659, %v1975, 0.0
  %v2749 = vadd.f32 %v2747, %v2748
  %2750 = vadd.xlane.f32.xlu0 %v2749
  %v2751 = vpop.xlane.xlu0 %2750
  %v2752 = vadd.f32 %v1976, %v1977
  %v2753 = vadd.f32 %v2752, %v1978
  %v2754 = vadd.f32 %v2753, %v1979
  %v2755 = vadd.f32 %v2754, %v1980
  %v2756 = vadd.f32 %v2755, %v1981
  %v2757 = vsel %vm659, %v1982, 0.0
  %v2758 = vadd.f32 %v2756, %v2757
  %2759 = vadd.xlane.f32.xlu0 %v2758
  %v2760 = vpop.xlane.xlu0 %2759
  %v2761 = vadd.f32 %v1983, %v1984
  %v2762 = vadd.f32 %v2761, %v1985
  %v2763 = vadd.f32 %v2762, %v1986
  %v2764 = vadd.f32 %v2763, %v1987
  %v2765 = vadd.f32 %v2764, %v1988
  %v2766 = vsel %vm659, %v1989, 0.0
  %v2767 = vadd.f32 %v2765, %v2766
  %2768 = vadd.xlane.f32.xlu0 %v2767
  %v2769 = vpop.xlane.xlu0 %2768
  %v2770 = vadd.f32 %v1990, %v1991
  %v2771 = vadd.f32 %v2770, %v1992
  %v2772 = vadd.f32 %v2771, %v1993
  %v2773 = vadd.f32 %v2772, %v1994
  %v2774 = vadd.f32 %v2773, %v1995
  %v2775 = vsel %vm659, %v1996, 0.0
  %v2776 = vadd.f32 %v2774, %v2775
  %2777 = vadd.xlane.f32.xlu0 %v2776
  %v2778 = vpop.xlane.xlu0 %2777
  %v2779 = vadd.f32 %v1997, %v1998
  %v2780 = vadd.f32 %v2779, %v1999
  %v2781 = vadd.f32 %v2780, %v2000
  %v2782 = vadd.f32 %v2781, %v2001
  %v2783 = vadd.f32 %v2782, %v2002
  %v2784 = vsel %vm659, %v2003, 0.0
  %v2785 = vadd.f32 %v2783, %v2784
  %2786 = vadd.xlane.f32.xlu0 %v2785
  %v2787 = vpop.xlane.xlu0 %2786
  %v2788 = vadd.f32 %v2004, %v2005
  %v2789 = vadd.f32 %v2788, %v2006
  %v2790 = vadd.f32 %v2789, %v2007
  %v2791 = vadd.f32 %v2790, %v2008
  %v2792 = vadd.f32 %v2791, %v2009
  %v2793 = vsel %vm659, %v2010, 0.0
  %v2794 = vadd.f32 %v2792, %v2793
  %2795 = vadd.xlane.f32.xlu0 %v2794
  %v2796 = vpop.xlane.xlu0 %2795
  %v2797 = vadd.f32 %v2011, %v2012
  %v2798 = vadd.f32 %v2797, %v2013
  %v2799 = vadd.f32 %v2798, %v2014
  %v2800 = vadd.f32 %v2799, %v2015
  %v2801 = vadd.f32 %v2800, %v2016
  %v2802 = vsel %vm659, %v2017, 0.0
  %v2803 = vadd.f32 %v2801, %v2802
  %2804 = vadd.xlane.f32.xlu0 %v2803
  %v2805 = vpop.xlane.xlu0 %2804
  %v2806 = vadd.f32 %v2018, %v2019
  %v2807 = vadd.f32 %v2806, %v2020
  %v2808 = vadd.f32 %v2807, %v2021
  %v2809 = vadd.f32 %v2808, %v2022
  %v2810 = vadd.f32 %v2809, %v2023
  %v2811 = vsel %vm659, %v2024, 0.0
  %v2812 = vadd.f32 %v2810, %v2811
  %2813 = vadd.xlane.f32.xlu0 %v2812
  %v2814 = vpop.xlane.xlu0 %2813
  %v2815 = vadd.f32 %v2025, %v2026
  %v2816 = vadd.f32 %v2815, %v2027
  %v2817 = vadd.f32 %v2816, %v2028
  %v2818 = vadd.f32 %v2817, %v2029
  %v2819 = vadd.f32 %v2818, %v2030
  %v2820 = vsel %vm659, %v2031, 0.0
  %v2821 = vadd.f32 %v2819, %v2820
  %2822 = vadd.xlane.f32.xlu0 %v2821
  %v2823 = vpop.xlane.xlu0 %2822
  %v2824 = vadd.f32 %v2032, %v2033
  %v2825 = vadd.f32 %v2824, %v2034
  %v2826 = vadd.f32 %v2825, %v2035
  %v2827 = vadd.f32 %v2826, %v2036
  %v2828 = vadd.f32 %v2827, %v2037
  %v2829 = vsel %vm659, %v2038, 0.0
  %v2830 = vadd.f32 %v2828, %v2829
  %2831 = vadd.xlane.f32.xlu0 %v2830
  %v2832 = vpop.xlane.xlu0 %2831
  %v2833 = vadd.f32 %v2039, %v2040
  %v2834 = vadd.f32 %v2833, %v2041
  %v2835 = vadd.f32 %v2834, %v2042
  %v2836 = vadd.f32 %v2835, %v2043
  %v2837 = vadd.f32 %v2836, %v2044
  %v2838 = vsel %vm659, %v2045, 0.0
  %v2839 = vadd.f32 %v2837, %v2838
  %2840 = vadd.xlane.f32.xlu0 %v2839
  %v2841 = vpop.xlane.xlu0 %2840
  %v2842 = vadd.f32 %v2046, %v2047
  %v2843 = vadd.f32 %v2842, %v2048
  %v2844 = vadd.f32 %v2843, %v2049
  %v2845 = vadd.f32 %v2844, %v2050
  %v2846 = vadd.f32 %v2845, %v2051
  %v2847 = vsel %vm659, %v2052, 0.0
  %v2848 = vadd.f32 %v2846, %v2847
  %2849 = vadd.xlane.f32.xlu0 %v2848
  %v2850 = vpop.xlane.xlu0 %2849
  %v2851 = vadd.f32 %v2053, %v2054
  %v2852 = vadd.f32 %v2851, %v2055
  %v2853 = vadd.f32 %v2852, %v2056
  %v2854 = vadd.f32 %v2853, %v2057
  %v2855 = vadd.f32 %v2854, %v2058
  %v2856 = vsel %vm659, %v2059, 0.0
  %v2857 = vadd.f32 %v2855, %v2856
  %2858 = vadd.xlane.f32.xlu0 %v2857
  %v2859 = vpop.xlane.xlu0 %2858
  %v2860 = vadd.f32 %v2060, %v2061
  %v2861 = vadd.f32 %v2860, %v2062
  %v2862 = vadd.f32 %v2861, %v2063
  %v2863 = vadd.f32 %v2862, %v2064
  %v2864 = vadd.f32 %v2863, %v2065
  %v2865 = vsel %vm659, %v2066, 0.0
  %v2866 = vadd.f32 %v2864, %v2865
  %2867 = vadd.xlane.f32.xlu0 %v2866
  %v2868 = vpop.xlane.xlu0 %2867
  %v2869 = vadd.f32 %v2067, %v2068
  %v2870 = vadd.f32 %v2869, %v2069
  %v2871 = vadd.f32 %v2870, %v2070
  %v2872 = vadd.f32 %v2871, %v2071
  %v2873 = vadd.f32 %v2872, %v2072
  %v2874 = vsel %vm659, %v2073, 0.0
  %v2875 = vadd.f32 %v2873, %v2874
  %2876 = vadd.xlane.f32.xlu0 %v2875
  %v2877 = vpop.xlane.xlu0 %2876
  %v2878 = vadd.f32 %v2074, %v2075
  %v2879 = vadd.f32 %v2878, %v2076
  %v2880 = vadd.f32 %v2879, %v2077
  %v2881 = vadd.f32 %v2880, %v2078
  %v2882 = vadd.f32 %v2881, %v2079
  %v2883 = vsel %vm659, %v2080, 0.0
  %v2884 = vadd.f32 %v2882, %v2883
  %2885 = vadd.xlane.f32.xlu0 %v2884
  %v2886 = vpop.xlane.xlu0 %2885
  %v2887 = vadd.f32 %v2081, %v2082
  %v2888 = vadd.f32 %v2887, %v2083
  %v2889 = vadd.f32 %v2888, %v2084
  %v2890 = vadd.f32 %v2889, %v2085
  %v2891 = vadd.f32 %v2890, %v2086
  %v2892 = vsel %vm659, %v2087, 0.0
  %v2893 = vadd.f32 %v2891, %v2892
  %2894 = vadd.xlane.f32.xlu0 %v2893
  %v2895 = vpop.xlane.xlu0 %2894
  %v2896 = vadd.f32 %v2088, %v2089
  %v2897 = vadd.f32 %v2896, %v2090
  %v2898 = vadd.f32 %v2897, %v2091
  %v2899 = vadd.f32 %v2898, %v2092
  %v2900 = vadd.f32 %v2899, %v2093
  %v2901 = vsel %vm659, %v2094, 0.0
  %v2902 = vadd.f32 %v2900, %v2901
  %2903 = vadd.xlane.f32.xlu0 %v2902
  %v2904 = vpop.xlane.xlu0 %2903
  %v2905 = vmul.f32 %v663, 0.0012755102
  %v2906 = vmul.f32 %v672, 0.0012755102
  %v2907 = vmul.f32 %v681, 0.0012755102
  %v2908 = vmul.f32 %v690, 0.0012755102
  %v2909 = vmul.f32 %v699, 0.0012755102
  %v2910 = vmul.f32 %v708, 0.0012755102
  %v2911 = vmul.f32 %v717, 0.0012755102
  %v2912 = vmul.f32 %v726, 0.0012755102
  %v2913 = vmul.f32 %v735, 0.0012755102
  %v2914 = vmul.f32 %v744, 0.0012755102
  %v2915 = vmul.f32 %v753, 0.0012755102
  %v2916 = vmul.f32 %v762, 0.0012755102
  %v2917 = vmul.f32 %v771, 0.0012755102
  %v2918 = vmul.f32 %v780, 0.0012755102
  %v2919 = vmul.f32 %v789, 0.0012755102
  %v2920 = vmul.f32 %v798, 0.0012755102
  %v2921 = vmul.f32 %v807, 0.0012755102
  %v2922 = vmul.f32 %v816, 0.0012755102
  %v2923 = vmul.f32 %v825, 0.0012755102
  %v2924 = vmul.f32 %v834, 0.0012755102
  %v2925 = vmul.f32 %v843, 0.0012755102
  %v2926 = vmul.f32 %v852, 0.0012755102
  %v2927 = vmul.f32 %v861, 0.0012755102
  %v2928 = vmul.f32 %v870, 0.0012755102
  %v2929 = vmul.f32 %v879, 0.0012755102
  %v2930 = vmul.f32 %v888, 0.0012755102
  %v2931 = vmul.f32 %v897, 0.0012755102
  %v2932 = vmul.f32 %v906, 0.0012755102
  %v2933 = vmul.f32 %v915, 0.0012755102
  %v2934 = vmul.f32 %v924, 0.0012755102
  %v2935 = vmul.f32 %v933, 0.0012755102
  %v2936 = vmul.f32 %v942, 0.0012755102
  %v2937 = vmul.f32 %v951, 0.0012755102
  %v2938 = vmul.f32 %v960, 0.0012755102
  %v2939 = vmul.f32 %v969, 0.0012755102
  %v2940 = vmul.f32 %v978, 0.0012755102
  %v2941 = vmul.f32 %v987, 0.0012755102
  %v2942 = vmul.f32 %v996, 0.0012755102
  %v2943 = vmul.f32 %v1005, 0.0012755102
  %v2944 = vmul.f32 %v1014, 0.0012755102
  %v2945 = vmul.f32 %v1023, 0.0012755102
  %v2946 = vmul.f32 %v1032, 0.0012755102
  %v2947 = vmul.f32 %v1041, 0.0012755102
  %v2948 = vmul.f32 %v1050, 0.0012755102
  %v2949 = vmul.f32 %v1059, 0.0012755102
  %v2950 = vmul.f32 %v1068, 0.0012755102
  %v2951 = vmul.f32 %v1077, 0.0012755102
  %v2952 = vmul.f32 %v1086, 0.0012755102
  %v2953 = vmul.f32 %v1095, 0.0012755102
  %v2954 = vmul.f32 %v1104, 0.0012755102
  %v2955 = vmul.f32 %v1113, 0.0012755102
  %v2956 = vmul.f32 %v1122, 0.0012755102
  %v2957 = vmul.f32 %v1131, 0.0012755102
  %v2958 = vmul.f32 %v1140, 0.0012755102
  %v2959 = vmul.f32 %v1149, 0.0012755102
  %v2960 = vmul.f32 %v1158, 0.0012755102
  %v2961 = vmul.f32 %v1167, 0.0012755102
  %v2962 = vmul.f32 %v1176, 0.0012755102
  %v2963 = vmul.f32 %v1185, 0.0012755102
  %v2964 = vmul.f32 %v1194, 0.0012755102
  %v2965 = vmul.f32 %v1203, 0.0012755102
  %v2966 = vmul.f32 %v1212, 0.0012755102
  %v2967 = vmul.f32 %v1221, 0.0012755102
  %v2968 = vmul.f32 %v1230, 0.0012755102
  %v2969 = vmul.f32 %v1239, 0.0012755102
  %v2970 = vmul.f32 %v1248, 0.0012755102
  %v2971 = vmul.f32 %v1257, 0.0012755102
  %v2972 = vmul.f32 %v1266, 0.0012755102
  %v2973 = vmul.f32 %v1275, 0.0012755102
  %v2974 = vmul.f32 %v1284, 0.0012755102
  %v2975 = vmul.f32 %v1293, 0.0012755102
  %v2976 = vmul.f32 %v1302, 0.0012755102
  %v2977 = vmul.f32 %v1311, 0.0012755102
  %v2978 = vmul.f32 %v1320, 0.0012755102
  %v2979 = vmul.f32 %v1329, 0.0012755102
  %v2980 = vmul.f32 %v1338, 0.0012755102
  %v2981 = vmul.f32 %v1347, 0.0012755102
  %v2982 = vmul.f32 %v1356, 0.0012755102
  %v2983 = vmul.f32 %v1365, 0.0012755102
  %v2984 = vmul.f32 %v1374, 0.0012755102
  %v2985 = vmul.f32 %v1383, 0.0012755102
  %v2986 = vmul.f32 %v1392, 0.0012755102
  %v2987 = vmul.f32 %v1401, 0.0012755102
  %v2988 = vmul.f32 %v1410, 0.0012755102
  %v2989 = vmul.f32 %v1419, 0.0012755102
  %v2990 = vmul.f32 %v1428, 0.0012755102
  %v2991 = vmul.f32 %v1437, 0.0012755102
  %v2992 = vmul.f32 %v1446, 0.0012755102
  %v2993 = vmul.f32 %v1455, 0.0012755102
  %v2994 = vmul.f32 %v1464, 0.0012755102
  %v2995 = vmul.f32 %v2103, 0.0012755102
  %v2996 = vmul.f32 %v2112, 0.0012755102
  %v2997 = vmul.f32 %v2121, 0.0012755102
  %v2998 = vmul.f32 %v2130, 0.0012755102
  %v2999 = vmul.f32 %v2139, 0.0012755102
  %v3000 = vmul.f32 %v2148, 0.0012755102
  %v3001 = vmul.f32 %v2157, 0.0012755102
  %v3002 = vmul.f32 %v2166, 0.0012755102
  %v3003 = vmul.f32 %v2175, 0.0012755102
  %v3004 = vmul.f32 %v2184, 0.0012755102
  %v3005 = vmul.f32 %v2193, 0.0012755102
  %v3006 = vmul.f32 %v2202, 0.0012755102
  %v3007 = vmul.f32 %v2211, 0.0012755102
  %v3008 = vmul.f32 %v2220, 0.0012755102
  %v3009 = vmul.f32 %v2229, 0.0012755102
  %v3010 = vmul.f32 %v2238, 0.0012755102
  %v3011 = vmul.f32 %v2247, 0.0012755102
  %v3012 = vmul.f32 %v2256, 0.0012755102
  %v3013 = vmul.f32 %v2265, 0.0012755102
  %v3014 = vmul.f32 %v2274, 0.0012755102
  %v3015 = vmul.f32 %v2283, 0.0012755102
  %v3016 = vmul.f32 %v2292, 0.0012755102
  %v3017 = vmul.f32 %v2301, 0.0012755102
  %v3018 = vmul.f32 %v2310, 0.0012755102
  %v3019 = vmul.f32 %v2319, 0.0012755102
  %v3020 = vmul.f32 %v2328, 0.0012755102
  %v3021 = vmul.f32 %v2337, 0.0012755102
  %v3022 = vmul.f32 %v2346, 0.0012755102
  %v3023 = vmul.f32 %v2355, 0.0012755102
  %v3024 = vmul.f32 %v2364, 0.0012755102
  %v3025 = vmul.f32 %v2373, 0.0012755102
  %v3026 = vmul.f32 %v2382, 0.0012755102
  %v3027 = vmul.f32 %v2391, 0.0012755102
  %v3028 = vmul.f32 %v2400, 0.0012755102
  %v3029 = vmul.f32 %v2409, 0.0012755102
  %v3030 = vmul.f32 %v2418, 0.0012755102
  %v3031 = vmul.f32 %v2427, 0.0012755102
  %v3032 = vmul.f32 %v2436, 0.0012755102
  %v3033 = vmul.f32 %v2445, 0.0012755102
  %v3034 = vmul.f32 %v2454, 0.0012755102
  %v3035 = vmul.f32 %v2463, 0.0012755102
  %v3036 = vmul.f32 %v2472, 0.0012755102
  %v3037 = vmul.f32 %v2481, 0.0012755102
  %v3038 = vmul.f32 %v2490, 0.0012755102
  %v3039 = vmul.f32 %v2499, 0.0012755102
  %v3040 = vmul.f32 %v2508, 0.0012755102
  %v3041 = vmul.f32 %v2517, 0.0012755102
  %v3042 = vmul.f32 %v2526, 0.0012755102
  %v3043 = vmul.f32 %v2535, 0.0012755102
  %v3044 = vmul.f32 %v2544, 0.0012755102
  %v3045 = vmul.f32 %v2553, 0.0012755102
  %v3046 = vmul.f32 %v2562, 0.0012755102
  %v3047 = vmul.f32 %v2571, 0.0012755102
  %v3048 = vmul.f32 %v2580, 0.0012755102
  %v3049 = vmul.f32 %v2589, 0.0012755102
  %v3050 = vmul.f32 %v2598, 0.0012755102
  %v3051 = vmul.f32 %v2607, 0.0012755102
  %v3052 = vmul.f32 %v2616, 0.0012755102
  %v3053 = vmul.f32 %v2625, 0.0012755102
  %v3054 = vmul.f32 %v2634, 0.0012755102
  %v3055 = vmul.f32 %v2643, 0.0012755102
  %v3056 = vmul.f32 %v2652, 0.0012755102
  %v3057 = vmul.f32 %v2661, 0.0012755102
  %v3058 = vmul.f32 %v2670, 0.0012755102
  %v3059 = vmul.f32 %v2679, 0.0012755102
  %v3060 = vmul.f32 %v2688, 0.0012755102
  %v3061 = vmul.f32 %v2697, 0.0012755102
  %v3062 = vmul.f32 %v2706, 0.0012755102
  %v3063 = vmul.f32 %v2715, 0.0012755102
  %v3064 = vmul.f32 %v2724, 0.0012755102
  %v3065 = vmul.f32 %v2733, 0.0012755102
  %v3066 = vmul.f32 %v2742, 0.0012755102
  %v3067 = vmul.f32 %v2751, 0.0012755102
  %v3068 = vmul.f32 %v2760, 0.0012755102
  %v3069 = vmul.f32 %v2769, 0.0012755102
  %v3070 = vmul.f32 %v2778, 0.0012755102
  %v3071 = vmul.f32 %v2787, 0.0012755102
  %v3072 = vmul.f32 %v2796, 0.0012755102
  %v3073 = vmul.f32 %v2805, 0.0012755102
  %v3074 = vmul.f32 %v2814, 0.0012755102
  %v3075 = vmul.f32 %v2823, 0.0012755102
  %v3076 = vmul.f32 %v2832, 0.0012755102
  %v3077 = vmul.f32 %v2841, 0.0012755102
  %v3078 = vmul.f32 %v2850, 0.0012755102
  %v3079 = vmul.f32 %v2859, 0.0012755102
  %v3080 = vmul.f32 %v2868, 0.0012755102
  %v3081 = vmul.f32 %v2877, 0.0012755102
  %v3082 = vmul.f32 %v2886, 0.0012755102
  %v3083 = vmul.f32 %v2895, 0.0012755102
  %v3084 = vmul.f32 %v2904, 0.0012755102
  %v3085 = vmul.f32 %v2905, %v2905
  %v3086 = vmul.f32 %v2906, %v2906
  %v3087 = vmul.f32 %v2907, %v2907
  %v3088 = vmul.f32 %v2908, %v2908
  %v3089 = vmul.f32 %v2909, %v2909
  %v3090 = vmul.f32 %v2910, %v2910
  %v3091 = vmul.f32 %v2911, %v2911
  %v3092 = vmul.f32 %v2912, %v2912
  %v3093 = vmul.f32 %v2913, %v2913
  %v3094 = vmul.f32 %v2914, %v2914
  %v3095 = vmul.f32 %v2915, %v2915
  %v3096 = vmul.f32 %v2916, %v2916
  %v3097 = vmul.f32 %v2917, %v2917
  %v3098 = vmul.f32 %v2918, %v2918
  %v3099 = vmul.f32 %v2919, %v2919
  %v3100 = vmul.f32 %v2920, %v2920
  %v3101 = vmul.f32 %v2921, %v2921
  %v3102 = vmul.f32 %v2922, %v2922
  %v3103 = vmul.f32 %v2923, %v2923
  %v3104 = vmul.f32 %v2924, %v2924
  %v3105 = vmul.f32 %v2925, %v2925
  %v3106 = vmul.f32 %v2926, %v2926
  %v3107 = vmul.f32 %v2927, %v2927
  %v3108 = vmul.f32 %v2928, %v2928
  %v3109 = vmul.f32 %v2929, %v2929
  %v3110 = vmul.f32 %v2930, %v2930
  %v3111 = vmul.f32 %v2931, %v2931
  %v3112 = vmul.f32 %v2932, %v2932
  %v3113 = vmul.f32 %v2933, %v2933
  %v3114 = vmul.f32 %v2934, %v2934
  %v3115 = vmul.f32 %v2935, %v2935
  %v3116 = vmul.f32 %v2936, %v2936
  %v3117 = vmul.f32 %v2937, %v2937
  %v3118 = vmul.f32 %v2938, %v2938
  %v3119 = vmul.f32 %v2939, %v2939
  %v3120 = vmul.f32 %v2940, %v2940
  %v3121 = vmul.f32 %v2941, %v2941
  %v3122 = vmul.f32 %v2942, %v2942
  %v3123 = vmul.f32 %v2943, %v2943
  %v3124 = vmul.f32 %v2944, %v2944
  %v3125 = vmul.f32 %v2945, %v2945
  %v3126 = vmul.f32 %v2946, %v2946
  %v3127 = vmul.f32 %v2947, %v2947
  %v3128 = vmul.f32 %v2948, %v2948
  %v3129 = vmul.f32 %v2949, %v2949
  %v3130 = vmul.f32 %v2950, %v2950
  %v3131 = vmul.f32 %v2951, %v2951
  %v3132 = vmul.f32 %v2952, %v2952
  %v3133 = vmul.f32 %v2953, %v2953
  %v3134 = vmul.f32 %v2954, %v2954
  %v3135 = vmul.f32 %v2955, %v2955
  %v3136 = vmul.f32 %v2956, %v2956
  %v3137 = vmul.f32 %v2957, %v2957
  %v3138 = vmul.f32 %v2958, %v2958
  %v3139 = vmul.f32 %v2959, %v2959
  %v3140 = vmul.f32 %v2960, %v2960
  %v3141 = vmul.f32 %v2961, %v2961
  %v3142 = vmul.f32 %v2962, %v2962
  %v3143 = vmul.f32 %v2963, %v2963
  %v3144 = vmul.f32 %v2964, %v2964
  %v3145 = vmul.f32 %v2965, %v2965
  %v3146 = vmul.f32 %v2966, %v2966
  %v3147 = vmul.f32 %v2967, %v2967
  %v3148 = vmul.f32 %v2968, %v2968
  %v3149 = vmul.f32 %v2969, %v2969
  %v3150 = vmul.f32 %v2970, %v2970
  %v3151 = vmul.f32 %v2971, %v2971
  %v3152 = vmul.f32 %v2972, %v2972
  %v3153 = vmul.f32 %v2973, %v2973
  %v3154 = vmul.f32 %v2974, %v2974
  %v3155 = vmul.f32 %v2975, %v2975
  %v3156 = vmul.f32 %v2976, %v2976
  %v3157 = vmul.f32 %v2977, %v2977
  %v3158 = vmul.f32 %v2978, %v2978
  %v3159 = vmul.f32 %v2979, %v2979
  %v3160 = vmul.f32 %v2980, %v2980
  %v3161 = vmul.f32 %v2981, %v2981
  %v3162 = vmul.f32 %v2982, %v2982
  %v3163 = vmul.f32 %v2983, %v2983
  %v3164 = vmul.f32 %v2984, %v2984
  %v3165 = vmul.f32 %v2985, %v2985
  %v3166 = vmul.f32 %v2986, %v2986
  %v3167 = vmul.f32 %v2987, %v2987
  %v3168 = vmul.f32 %v2988, %v2988
  %v3169 = vmul.f32 %v2989, %v2989
  %v3170 = vmul.f32 %v2990, %v2990
  %v3171 = vmul.f32 %v2991, %v2991
  %v3172 = vmul.f32 %v2992, %v2992
  %v3173 = vmul.f32 %v2993, %v2993
  %v3174 = vmul.f32 %v2994, %v2994
  %v3175 = vsub.f32 %v2995, %v3085
  %v3176 = vsub.f32 %v2996, %v3086
  %v3177 = vsub.f32 %v2997, %v3087
  %v3178 = vsub.f32 %v2998, %v3088
  %v3179 = vsub.f32 %v2999, %v3089
  %v3180 = vsub.f32 %v3000, %v3090
  %v3181 = vsub.f32 %v3001, %v3091
  %v3182 = vsub.f32 %v3002, %v3092
  %v3183 = vsub.f32 %v3003, %v3093
  %v3184 = vsub.f32 %v3004, %v3094
  %v3185 = vsub.f32 %v3005, %v3095
  %v3186 = vsub.f32 %v3006, %v3096
  %v3187 = vsub.f32 %v3007, %v3097
  %v3188 = vsub.f32 %v3008, %v3098
  %v3189 = vsub.f32 %v3009, %v3099
  %v3190 = vsub.f32 %v3010, %v3100
  %v3191 = vsub.f32 %v3011, %v3101
  %v3192 = vsub.f32 %v3012, %v3102
  %v3193 = vsub.f32 %v3013, %v3103
  %v3194 = vsub.f32 %v3014, %v3104
  %v3195 = vsub.f32 %v3015, %v3105
  %v3196 = vsub.f32 %v3016, %v3106
  %v3197 = vsub.f32 %v3017, %v3107
  %v3198 = vsub.f32 %v3018, %v3108
  %v3199 = vsub.f32 %v3019, %v3109
  %v3200 = vsub.f32 %v3020, %v3110
  %v3201 = vsub.f32 %v3021, %v3111
  %v3202 = vsub.f32 %v3022, %v3112
  %v3203 = vsub.f32 %v3023, %v3113
  %v3204 = vsub.f32 %v3024, %v3114
  %v3205 = vsub.f32 %v3025, %v3115
  %v3206 = vsub.f32 %v3026, %v3116
  %v3207 = vsub.f32 %v3027, %v3117
  %v3208 = vsub.f32 %v3028, %v3118
  %v3209 = vsub.f32 %v3029, %v3119
  %v3210 = vsub.f32 %v3030, %v3120
  %v3211 = vsub.f32 %v3031, %v3121
  %v3212 = vsub.f32 %v3032, %v3122
  %v3213 = vsub.f32 %v3033, %v3123
  %v3214 = vsub.f32 %v3034, %v3124
  %v3215 = vsub.f32 %v3035, %v3125
  %v3216 = vsub.f32 %v3036, %v3126
  %v3217 = vsub.f32 %v3037, %v3127
  %v3218 = vsub.f32 %v3038, %v3128
  %v3219 = vsub.f32 %v3039, %v3129
  %v3220 = vsub.f32 %v3040, %v3130
  %v3221 = vsub.f32 %v3041, %v3131
  %v3222 = vsub.f32 %v3042, %v3132
  %v3223 = vsub.f32 %v3043, %v3133
  %v3224 = vsub.f32 %v3044, %v3134
  %v3225 = vsub.f32 %v3045, %v3135
  %v3226 = vsub.f32 %v3046, %v3136
  %v3227 = vsub.f32 %v3047, %v3137
  %v3228 = vsub.f32 %v3048, %v3138
  %v3229 = vsub.f32 %v3049, %v3139
  %v3230 = vsub.f32 %v3050, %v3140
  %v3231 = vsub.f32 %v3051, %v3141
  %v3232 = vsub.f32 %v3052, %v3142
  %v3233 = vsub.f32 %v3053, %v3143
  %v3234 = vsub.f32 %v3054, %v3144
  %v3235 = vsub.f32 %v3055, %v3145
  %v3236 = vsub.f32 %v3056, %v3146
  %v3237 = vsub.f32 %v3057, %v3147
  %v3238 = vsub.f32 %v3058, %v3148
  %v3239 = vsub.f32 %v3059, %v3149
  %v3240 = vsub.f32 %v3060, %v3150
  %v3241 = vsub.f32 %v3061, %v3151
  %v3242 = vsub.f32 %v3062, %v3152
  %v3243 = vsub.f32 %v3063, %v3153
  %v3244 = vsub.f32 %v3064, %v3154
  %v3245 = vsub.f32 %v3065, %v3155
  %v3246 = vsub.f32 %v3066, %v3156
  %v3247 = vsub.f32 %v3067, %v3157
  %v3248 = vsub.f32 %v3068, %v3158
  %v3249 = vsub.f32 %v3069, %v3159
  %v3250 = vsub.f32 %v3070, %v3160
  %v3251 = vsub.f32 %v3071, %v3161
  %v3252 = vsub.f32 %v3072, %v3162
  %v3253 = vsub.f32 %v3073, %v3163
  %v3254 = vsub.f32 %v3074, %v3164
  %v3255 = vsub.f32 %v3075, %v3165
  %v3256 = vsub.f32 %v3076, %v3166
  %v3257 = vsub.f32 %v3077, %v3167
  %v3258 = vsub.f32 %v3078, %v3168
  %v3259 = vsub.f32 %v3079, %v3169
  %v3260 = vsub.f32 %v3080, %v3170
  %v3261 = vsub.f32 %v3081, %v3171
  %v3262 = vsub.f32 %v3082, %v3172
  %v3263 = vsub.f32 %v3083, %v3173
  %v3264 = vsub.f32 %v3084, %v3174
  %v3265 = vadd.f32 %v3175, 1e-05
  %v3266 = vadd.f32 %v3176, 1e-05
  %v3267 = vadd.f32 %v3177, 1e-05
  %v3268 = vadd.f32 %v3178, 1e-05
  %v3269 = vadd.f32 %v3179, 1e-05
  %v3270 = vadd.f32 %v3180, 1e-05
  %v3271 = vadd.f32 %v3181, 1e-05
  %v3272 = vadd.f32 %v3182, 1e-05
  %v3273 = vadd.f32 %v3183, 1e-05
  %v3274 = vadd.f32 %v3184, 1e-05
  %v3275 = vadd.f32 %v3185, 1e-05
  %v3276 = vadd.f32 %v3186, 1e-05
  %v3277 = vadd.f32 %v3187, 1e-05
  %v3278 = vadd.f32 %v3188, 1e-05
  %v3279 = vadd.f32 %v3189, 1e-05
  %v3280 = vadd.f32 %v3190, 1e-05
  %v3281 = vadd.f32 %v3191, 1e-05
  %v3282 = vadd.f32 %v3192, 1e-05
  %v3283 = vadd.f32 %v3193, 1e-05
  %v3284 = vadd.f32 %v3194, 1e-05
  %v3285 = vadd.f32 %v3195, 1e-05
  %v3286 = vadd.f32 %v3196, 1e-05
  %v3287 = vadd.f32 %v3197, 1e-05
  %v3288 = vadd.f32 %v3198, 1e-05
  %v3289 = vadd.f32 %v3199, 1e-05
  %v3290 = vadd.f32 %v3200, 1e-05
  %v3291 = vadd.f32 %v3201, 1e-05
  %v3292 = vadd.f32 %v3202, 1e-05
  %v3293 = vadd.f32 %v3203, 1e-05
  %v3294 = vadd.f32 %v3204, 1e-05
  %v3295 = vadd.f32 %v3205, 1e-05
  %v3296 = vadd.f32 %v3206, 1e-05
  %v3297 = vadd.f32 %v3207, 1e-05
  %v3298 = vadd.f32 %v3208, 1e-05
  %v3299 = vadd.f32 %v3209, 1e-05
  %v3300 = vadd.f32 %v3210, 1e-05
  %v3301 = vadd.f32 %v3211, 1e-05
  %v3302 = vadd.f32 %v3212, 1e-05
  %v3303 = vadd.f32 %v3213, 1e-05
  %v3304 = vadd.f32 %v3214, 1e-05
  %v3305 = vadd.f32 %v3215, 1e-05
  %v3306 = vadd.f32 %v3216, 1e-05
  %v3307 = vadd.f32 %v3217, 1e-05
  %v3308 = vadd.f32 %v3218, 1e-05
  %v3309 = vadd.f32 %v3219, 1e-05
  %v3310 = vadd.f32 %v3220, 1e-05
  %v3311 = vadd.f32 %v3221, 1e-05
  %v3312 = vadd.f32 %v3222, 1e-05
  %v3313 = vadd.f32 %v3223, 1e-05
  %v3314 = vadd.f32 %v3224, 1e-05
  %v3315 = vadd.f32 %v3225, 1e-05
  %v3316 = vadd.f32 %v3226, 1e-05
  %v3317 = vadd.f32 %v3227, 1e-05
  %v3318 = vadd.f32 %v3228, 1e-05
  %v3319 = vadd.f32 %v3229, 1e-05
  %v3320 = vadd.f32 %v3230, 1e-05
  %v3321 = vadd.f32 %v3231, 1e-05
  %v3322 = vadd.f32 %v3232, 1e-05
  %v3323 = vadd.f32 %v3233, 1e-05
  %v3324 = vadd.f32 %v3234, 1e-05
  %v3325 = vadd.f32 %v3235, 1e-05
  %v3326 = vadd.f32 %v3236, 1e-05
  %v3327 = vadd.f32 %v3237, 1e-05
  %v3328 = vadd.f32 %v3238, 1e-05
  %v3329 = vadd.f32 %v3239, 1e-05
  %v3330 = vadd.f32 %v3240, 1e-05
  %v3331 = vadd.f32 %v3241, 1e-05
  %v3332 = vadd.f32 %v3242, 1e-05
  %v3333 = vadd.f32 %v3243, 1e-05
  %v3334 = vadd.f32 %v3244, 1e-05
  %v3335 = vadd.f32 %v3245, 1e-05
  %v3336 = vadd.f32 %v3246, 1e-05
  %v3337 = vadd.f32 %v3247, 1e-05
  %v3338 = vadd.f32 %v3248, 1e-05
  %v3339 = vadd.f32 %v3249, 1e-05
  %v3340 = vadd.f32 %v3250, 1e-05
  %v3341 = vadd.f32 %v3251, 1e-05
  %v3342 = vadd.f32 %v3252, 1e-05
  %v3343 = vadd.f32 %v3253, 1e-05
  %v3344 = vadd.f32 %v3254, 1e-05
  %v3345 = vadd.f32 %v3255, 1e-05
  %v3346 = vadd.f32 %v3256, 1e-05
  %v3347 = vadd.f32 %v3257, 1e-05
  %v3348 = vadd.f32 %v3258, 1e-05
  %v3349 = vadd.f32 %v3259, 1e-05
  %v3350 = vadd.f32 %v3260, 1e-05
  %v3351 = vadd.f32 %v3261, 1e-05
  %v3352 = vadd.f32 %v3262, 1e-05
  %v3353 = vadd.f32 %v3263, 1e-05
  %v3354 = vadd.f32 %v3264, 1e-05
  %v3355 = vrsqrt.pop %v3265
  %v3356 = vrsqrt.pop %v3266
  %v3357 = vrsqrt.pop %v3267
  %v3358 = vrsqrt.pop %v3268
  %v3359 = vrsqrt.pop %v3269
  %v3360 = vrsqrt.pop %v3270
  %v3361 = vrsqrt.pop %v3271
  %v3362 = vrsqrt.pop %v3272
  %v3363 = vrsqrt.pop %v3273
  %v3364 = vrsqrt.pop %v3274
  %v3365 = vrsqrt.pop %v3275
  %v3366 = vrsqrt.pop %v3276
  %v3367 = vrsqrt.pop %v3277
  %v3368 = vrsqrt.pop %v3278
  %v3369 = vrsqrt.pop %v3279
  %v3370 = vrsqrt.pop %v3280
  %v3371 = vrsqrt.pop %v3281
  %v3372 = vrsqrt.pop %v3282
  %v3373 = vrsqrt.pop %v3283
  %v3374 = vrsqrt.pop %v3284
  %v3375 = vrsqrt.pop %v3285
  %v3376 = vrsqrt.pop %v3286
  %v3377 = vrsqrt.pop %v3287
  %v3378 = vrsqrt.pop %v3288
  %v3379 = vrsqrt.pop %v3289
  %v3380 = vrsqrt.pop %v3290
  %v3381 = vrsqrt.pop %v3291
  %v3382 = vrsqrt.pop %v3292
  %v3383 = vrsqrt.pop %v3293
  %v3384 = vrsqrt.pop %v3294
  %v3385 = vrsqrt.pop %v3295
  %v3386 = vrsqrt.pop %v3296
  %v3387 = vrsqrt.pop %v3297
  %v3388 = vrsqrt.pop %v3298
  %v3389 = vrsqrt.pop %v3299
  %v3390 = vrsqrt.pop %v3300
  %v3391 = vrsqrt.pop %v3301
  %v3392 = vrsqrt.pop %v3302
  %v3393 = vrsqrt.pop %v3303
  %v3394 = vrsqrt.pop %v3304
  %v3395 = vrsqrt.pop %v3305
  %v3396 = vrsqrt.pop %v3306
  %v3397 = vrsqrt.pop %v3307
  %v3398 = vrsqrt.pop %v3308
  %v3399 = vrsqrt.pop %v3309
  %v3400 = vrsqrt.pop %v3310
  %v3401 = vrsqrt.pop %v3311
  %v3402 = vrsqrt.pop %v3312
  %v3403 = vrsqrt.pop %v3313
  %v3404 = vrsqrt.pop %v3314
  %v3405 = vrsqrt.pop %v3315
  %v3406 = vrsqrt.pop %v3316
  %v3407 = vrsqrt.pop %v3317
  %v3408 = vrsqrt.pop %v3318
  %v3409 = vrsqrt.pop %v3319
  %v3410 = vrsqrt.pop %v3320
  %v3411 = vrsqrt.pop %v3321
  %v3412 = vrsqrt.pop %v3322
  %v3413 = vrsqrt.pop %v3323
  %v3414 = vrsqrt.pop %v3324
  %v3415 = vrsqrt.pop %v3325
  %v3416 = vrsqrt.pop %v3326
  %v3417 = vrsqrt.pop %v3327
  %v3418 = vrsqrt.pop %v3328
  %v3419 = vrsqrt.pop %v3329
  %v3420 = vrsqrt.pop %v3330
  %v3421 = vrsqrt.pop %v3331
  %v3422 = vrsqrt.pop %v3332
  %v3423 = vrsqrt.pop %v3333
  %v3424 = vrsqrt.pop %v3334
  %v3425 = vrsqrt.pop %v3335
  %v3426 = vrsqrt.pop %v3336
  %v3427 = vrsqrt.pop %v3337
  %v3428 = vrsqrt.pop %v3338
  %v3429 = vrsqrt.pop %v3339
  %v3430 = vrsqrt.pop %v3340
  %v3431 = vrsqrt.pop %v3341
  %v3432 = vrsqrt.pop %v3342
  %v3433 = vrsqrt.pop %v3343
  %v3434 = vrsqrt.pop %v3344
  %v3435 = vrsqrt.pop %v3345
  %v3436 = vrsqrt.pop %v3346
  %v3437 = vrsqrt.pop %v3347
  %v3438 = vrsqrt.pop %v3348
  %v3439 = vrsqrt.pop %v3349
  %v3440 = vrsqrt.pop %v3350
  %v3441 = vrsqrt.pop %v3351
  %v3442 = vrsqrt.pop %v3352
  %v3443 = vrsqrt.pop %v3353
  %v3444 = vrsqrt.pop %v3354
  %v3445 = vld [vmem:[%s2] sm:$0xff]
  %v3446 = vld [vmem:[%s2 + $0x8] sm:$0xff]
  %v3447 = vld [vmem:[%s2 + $0x10] sm:$0xff]
  %v3448 = vld [vmem:[%s2 + $0x18] sm:$0xff]
  %v3449 = vld [vmem:[%s2 + $0x20] sm:$0xff]
  %v3450 = vld [vmem:[%s2 + $0x28] sm:$0xff]
  %v3451 = vld [vmem:[%s2 + $0x30] sm:$0xff]
  %v3452 = vld [vmem:[%s2 + $0x38] sm:$0xff]
  %v3453 = vld [vmem:[%s2 + $0x40] sm:$0xff]
  %v3454 = vld [vmem:[%s2 + $0x48] sm:$0xff]
  %v3455 = vld [vmem:[%s2 + $0x50] sm:$0xff]
  %v3456 = vld [vmem:[%s2 + $0x58] sm:$0xff]
  %v3457 = vld [vmem:[%s2 + $0x60] sm:$0xff]
  %v3458 = vld [vmem:[%s2 + $0x68] sm:$0xff]
  %v3459 = vld [vmem:[%s2 + $0x70] sm:$0xff]
  %v3460 = vld [vmem:[%s2 + $0x78] sm:$0xff]
  %v3461 = vld [vmem:[%s2 + $0x80] sm:$0xff]
  %v3462 = vld [vmem:[%s2 + $0x88] sm:$0xff]
  %v3463 = vld [vmem:[%s2 + $0x90] sm:$0xff]
  %v3464 = vld [vmem:[%s2 + $0x98] sm:$0xff]
  %v3465 = vld [vmem:[%s2 + $0xa0] sm:$0xff]
  %v3466 = vld [vmem:[%s2 + $0xa8] sm:$0xff]
  %v3467 = vld [vmem:[%s2 + $0xb0] sm:$0xff]
  %v3468 = vld [vmem:[%s2 + $0xb8] sm:$0xff]
  %v3469 = vld [vmem:[%s2 + $0xc0] sm:$0xff]
  %v3470 = vld [vmem:[%s2 + $0xc8] sm:$0xff]
  %v3471 = vld [vmem:[%s2 + $0xd0] sm:$0xff]
  %v3472 = vld [vmem:[%s2 + $0xd8] sm:$0xff]
  %v3473 = vld [vmem:[%s2 + $0xe0] sm:$0xff]
  %v3474 = vld [vmem:[%s2 + $0xe8] sm:$0xff]
  %v3475 = vld [vmem:[%s2 + $0xf0] sm:$0xff]
  %v3476 = vld [vmem:[%s2 + $0xf8] sm:$0xff]
  %v3477 = vld [vmem:[%s2 + $0x100] sm:$0xff]
  %v3478 = vld [vmem:[%s2 + $0x108] sm:$0xff]
  %v3479 = vld [vmem:[%s2 + $0x110] sm:$0xff]
  %v3480 = vld [vmem:[%s2 + $0x118] sm:$0xff]
  %v3481 = vld [vmem:[%s2 + $0x120] sm:$0xff]
  %v3482 = vld [vmem:[%s2 + $0x128] sm:$0xff]
  %v3483 = vld [vmem:[%s2 + $0x130] sm:$0xff]
  %v3484 = vld [vmem:[%s2 + $0x138] sm:$0xff]
  %v3485 = vld [vmem:[%s2 + $0x140] sm:$0xff]
  %v3486 = vld [vmem:[%s2 + $0x148] sm:$0xff]
  %v3487 = vld [vmem:[%s2 + $0x150] sm:$0xff]
  %v3488 = vld [vmem:[%s2 + $0x158] sm:$0xff]
  %v3489 = vld [vmem:[%s2 + $0x160] sm:$0xff]
  %v3490 = vld [vmem:[%s2 + $0x168] sm:$0xff]
  %v3491 = vld [vmem:[%s2 + $0x170] sm:$0xff]
  %v3492 = vld [vmem:[%s2 + $0x178] sm:$0xff]
  %v3493 = vld [vmem:[%s2 + $0x180] sm:$0xff]
  %v3494 = vld [vmem:[%s2 + $0x188] sm:$0xff]
  %v3495 = vld [vmem:[%s2 + $0x190] sm:$0xff]
  %v3496 = vld [vmem:[%s2 + $0x198] sm:$0xff]
  %v3497 = vld [vmem:[%s2 + $0x1a0] sm:$0xff]
  %v3498 = vld [vmem:[%s2 + $0x1a8] sm:$0xff]
  %v3499 = vld [vmem:[%s2 + $0x1b0] sm:$0xff]
  %v3500 = vld [vmem:[%s2 + $0x1b8] sm:$0xff]
  %v3501 = vld [vmem:[%s2 + $0x1c0] sm:$0xff]
  %v3502 = vld [vmem:[%s2 + $0x1c8] sm:$0xff]
  %v3503 = vld [vmem:[%s2 + $0x1d0] sm:$0xff]
  %v3504 = vld [vmem:[%s2 + $0x1d8] sm:$0xff]
  %v3505 = vld [vmem:[%s2 + $0x1e0] sm:$0xff]
  %v3506 = vld [vmem:[%s2 + $0x1e8] sm:$0xff]
  %v3507 = vld [vmem:[%s2 + $0x1f0] sm:$0xff]
  %v3508 = vld [vmem:[%s2 + $0x1f8] sm:$0xff]
  %v3509 = vld [vmem:[%s2 + $0x200] sm:$0xff]
  %v3510 = vld [vmem:[%s2 + $0x208] sm:$0xff]
  %v3511 = vld [vmem:[%s2 + $0x210] sm:$0xff]
  %v3512 = vld [vmem:[%s2 + $0x218] sm:$0xff]
  %v3513 = vld [vmem:[%s2 + $0x220] sm:$0xff]
  %v3514 = vld [vmem:[%s2 + $0x228] sm:$0xff]
  %v3515 = vld [vmem:[%s2 + $0x230] sm:$0xff]
  %v3516 = vld [vmem:[%s2 + $0x238] sm:$0xff]
  %v3517 = vld [vmem:[%s2 + $0x240] sm:$0xff]
  %v3518 = vld [vmem:[%s2 + $0x248] sm:$0xff]
  %v3519 = vld [vmem:[%s2 + $0x250] sm:$0xff]
  %v3520 = vld [vmem:[%s2 + $0x258] sm:$0xff]
  %v3521 = vld [vmem:[%s2 + $0x260] sm:$0xff]
  %v3522 = vld [vmem:[%s2 + $0x268] sm:$0xff]
  %v3523 = vld [vmem:[%s2 + $0x270] sm:$0xff]
  %v3524 = vld [vmem:[%s2 + $0x278] sm:$0xff]
  %v3525 = vld [vmem:[%s2 + $0x280] sm:$0xff]
  %v3526 = vld [vmem:[%s2 + $0x288] sm:$0xff]
  %v3527 = vld [vmem:[%s2 + $0x290] sm:$0xff]
  %v3528 = vld [vmem:[%s2 + $0x298] sm:$0xff]
  %v3529 = vld [vmem:[%s2 + $0x2a0] sm:$0xff]
  %v3530 = vld [vmem:[%s2 + $0x2a8] sm:$0xff]
  %v3531 = vld [vmem:[%s2 + $0x2b0] sm:$0xff]
  %v3532 = vld [vmem:[%s2 + $0x2b8] sm:$0xff]
  %v3533 = vld [vmem:[%s2 + $0x2c0] sm:$0xff]
  %v3534 = vld [vmem:[%s2 + $0x2c8] sm:$0xff]
  %v3535 = vmul.f32 %v3355, %v3445
  %v3536 = vmul.f32 %v3356, %v3446
  %v3537 = vmul.f32 %v3357, %v3447
  %v3538 = vmul.f32 %v3358, %v3448
  %v3539 = vmul.f32 %v3359, %v3449
  %v3540 = vmul.f32 %v3360, %v3450
  %v3541 = vmul.f32 %v3361, %v3451
  %v3542 = vmul.f32 %v3362, %v3452
  %v3543 = vmul.f32 %v3363, %v3453
  %v3544 = vmul.f32 %v3364, %v3454
  %v3545 = vmul.f32 %v3365, %v3455
  %v3546 = vmul.f32 %v3366, %v3456
  %v3547 = vmul.f32 %v3367, %v3457
  %v3548 = vmul.f32 %v3368, %v3458
  %v3549 = vmul.f32 %v3369, %v3459
  %v3550 = vmul.f32 %v3370, %v3460
  %v3551 = vmul.f32 %v3371, %v3461
  %v3552 = vmul.f32 %v3372, %v3462
  %v3553 = vmul.f32 %v3373, %v3463
  %v3554 = vmul.f32 %v3374, %v3464
  %v3555 = vmul.f32 %v3375, %v3465
  %v3556 = vmul.f32 %v3376, %v3466
  %v3557 = vmul.f32 %v3377, %v3467
  %v3558 = vmul.f32 %v3378, %v3468
  %v3559 = vmul.f32 %v3379, %v3469
  %v3560 = vmul.f32 %v3380, %v3470
  %v3561 = vmul.f32 %v3381, %v3471
  %v3562 = vmul.f32 %v3382, %v3472
  %v3563 = vmul.f32 %v3383, %v3473
  %v3564 = vmul.f32 %v3384, %v3474
  %v3565 = vmul.f32 %v3385, %v3475
  %v3566 = vmul.f32 %v3386, %v3476
  %v3567 = vmul.f32 %v3387, %v3477
  %v3568 = vmul.f32 %v3388, %v3478
  %v3569 = vmul.f32 %v3389, %v3479
  %v3570 = vmul.f32 %v3390, %v3480
  %v3571 = vmul.f32 %v3391, %v3481
  %v3572 = vmul.f32 %v3392, %v3482
  %v3573 = vmul.f32 %v3393, %v3483
  %v3574 = vmul.f32 %v3394, %v3484
  %v3575 = vmul.f32 %v3395, %v3485
  %v3576 = vmul.f32 %v3396, %v3486
  %v3577 = vmul.f32 %v3397, %v3487
  %v3578 = vmul.f32 %v3398, %v3488
  %v3579 = vmul.f32 %v3399, %v3489
  %v3580 = vmul.f32 %v3400, %v3490
  %v3581 = vmul.f32 %v3401, %v3491
  %v3582 = vmul.f32 %v3402, %v3492
  %v3583 = vmul.f32 %v3403, %v3493
  %v3584 = vmul.f32 %v3404, %v3494
  %v3585 = vmul.f32 %v3405, %v3495
  %v3586 = vmul.f32 %v3406, %v3496
  %v3587 = vmul.f32 %v3407, %v3497
  %v3588 = vmul.f32 %v3408, %v3498
  %v3589 = vmul.f32 %v3409, %v3499
  %v3590 = vmul.f32 %v3410, %v3500
  %v3591 = vmul.f32 %v3411, %v3501
  %v3592 = vmul.f32 %v3412, %v3502
  %v3593 = vmul.f32 %v3413, %v3503
  %v3594 = vmul.f32 %v3414, %v3504
  %v3595 = vmul.f32 %v3415, %v3505
  %v3596 = vmul.f32 %v3416, %v3506
  %v3597 = vmul.f32 %v3417, %v3507
  %v3598 = vmul.f32 %v3418, %v3508
  %v3599 = vmul.f32 %v3419, %v3509
  %v3600 = vmul.f32 %v3420, %v3510
  %v3601 = vmul.f32 %v3421, %v3511
  %v3602 = vmul.f32 %v3422, %v3512
  %v3603 = vmul.f32 %v3423, %v3513
  %v3604 = vmul.f32 %v3424, %v3514
  %v3605 = vmul.f32 %v3425, %v3515
  %v3606 = vmul.f32 %v3426, %v3516
  %v3607 = vmul.f32 %v3427, %v3517
  %v3608 = vmul.f32 %v3428, %v3518
  %v3609 = vmul.f32 %v3429, %v3519
  %v3610 = vmul.f32 %v3430, %v3520
  %v3611 = vmul.f32 %v3431, %v3521
  %v3612 = vmul.f32 %v3432, %v3522
  %v3613 = vmul.f32 %v3433, %v3523
  %v3614 = vmul.f32 %v3434, %v3524
  %v3615 = vmul.f32 %v3435, %v3525
  %v3616 = vmul.f32 %v3436, %v3526
  %v3617 = vmul.f32 %v3437, %v3527
  %v3618 = vmul.f32 %v3438, %v3528
  %v3619 = vmul.f32 %v3439, %v3529
  %v3620 = vmul.f32 %v3440, %v3530
  %v3621 = vmul.f32 %v3441, %v3531
  %v3622 = vmul.f32 %v3442, %v3532
  %v3623 = vmul.f32 %v3443, %v3533
  %v3624 = vmul.f32 %v3444, %v3534
  %v3625 = vld [vmem:[%s3] sm:$0xff]
  %v3626 = vld [vmem:[%s3 + $0x8] sm:$0xff]
  %v3627 = vld [vmem:[%s3 + $0x10] sm:$0xff]
  %v3628 = vld [vmem:[%s3 + $0x18] sm:$0xff]
  %v3629 = vld [vmem:[%s3 + $0x20] sm:$0xff]
  %v3630 = vld [vmem:[%s3 + $0x28] sm:$0xff]
  %v3631 = vld [vmem:[%s3 + $0x30] sm:$0xff]
  %v3632 = vld [vmem:[%s3 + $0x38] sm:$0xff]
  %v3633 = vld [vmem:[%s3 + $0x40] sm:$0xff]
  %v3634 = vld [vmem:[%s3 + $0x48] sm:$0xff]
  %v3635 = vld [vmem:[%s3 + $0x50] sm:$0xff]
  %v3636 = vld [vmem:[%s3 + $0x58] sm:$0xff]
  %v3637 = vld [vmem:[%s3 + $0x60] sm:$0xff]
  %v3638 = vld [vmem:[%s3 + $0x68] sm:$0xff]
  %v3639 = vld [vmem:[%s3 + $0x70] sm:$0xff]
  %v3640 = vld [vmem:[%s3 + $0x78] sm:$0xff]
  %v3641 = vld [vmem:[%s3 + $0x80] sm:$0xff]
  %v3642 = vld [vmem:[%s3 + $0x88] sm:$0xff]
  %v3643 = vld [vmem:[%s3 + $0x90] sm:$0xff]
  %v3644 = vld [vmem:[%s3 + $0x98] sm:$0xff]
  %v3645 = vld [vmem:[%s3 + $0xa0] sm:$0xff]
  %v3646 = vld [vmem:[%s3 + $0xa8] sm:$0xff]
  %v3647 = vld [vmem:[%s3 + $0xb0] sm:$0xff]
  %v3648 = vld [vmem:[%s3 + $0xb8] sm:$0xff]
  %v3649 = vld [vmem:[%s3 + $0xc0] sm:$0xff]
  %v3650 = vld [vmem:[%s3 + $0xc8] sm:$0xff]
  %v3651 = vld [vmem:[%s3 + $0xd0] sm:$0xff]
  %v3652 = vld [vmem:[%s3 + $0xd8] sm:$0xff]
  %v3653 = vld [vmem:[%s3 + $0xe0] sm:$0xff]
  %v3654 = vld [vmem:[%s3 + $0xe8] sm:$0xff]
  %v3655 = vld [vmem:[%s3 + $0xf0] sm:$0xff]
  %v3656 = vld [vmem:[%s3 + $0xf8] sm:$0xff]
  %v3657 = vld [vmem:[%s3 + $0x100] sm:$0xff]
  %v3658 = vld [vmem:[%s3 + $0x108] sm:$0xff]
  %v3659 = vld [vmem:[%s3 + $0x110] sm:$0xff]
  %v3660 = vld [vmem:[%s3 + $0x118] sm:$0xff]
  %v3661 = vld [vmem:[%s3 + $0x120] sm:$0xff]
  %v3662 = vld [vmem:[%s3 + $0x128] sm:$0xff]
  %v3663 = vld [vmem:[%s3 + $0x130] sm:$0xff]
  %v3664 = vld [vmem:[%s3 + $0x138] sm:$0xff]
  %v3665 = vld [vmem:[%s3 + $0x140] sm:$0xff]
  %v3666 = vld [vmem:[%s3 + $0x148] sm:$0xff]
  %v3667 = vld [vmem:[%s3 + $0x150] sm:$0xff]
  %v3668 = vld [vmem:[%s3 + $0x158] sm:$0xff]
  %v3669 = vld [vmem:[%s3 + $0x160] sm:$0xff]
  %v3670 = vld [vmem:[%s3 + $0x168] sm:$0xff]
  %v3671 = vld [vmem:[%s3 + $0x170] sm:$0xff]
  %v3672 = vld [vmem:[%s3 + $0x178] sm:$0xff]
  %v3673 = vld [vmem:[%s3 + $0x180] sm:$0xff]
  %v3674 = vld [vmem:[%s3 + $0x188] sm:$0xff]
  %v3675 = vld [vmem:[%s3 + $0x190] sm:$0xff]
  %v3676 = vld [vmem:[%s3 + $0x198] sm:$0xff]
  %v3677 = vld [vmem:[%s3 + $0x1a0] sm:$0xff]
  %v3678 = vld [vmem:[%s3 + $0x1a8] sm:$0xff]
  %v3679 = vld [vmem:[%s3 + $0x1b0] sm:$0xff]
  %v3680 = vld [vmem:[%s3 + $0x1b8] sm:$0xff]
  %v3681 = vld [vmem:[%s3 + $0x1c0] sm:$0xff]
  %v3682 = vld [vmem:[%s3 + $0x1c8] sm:$0xff]
  %v3683 = vld [vmem:[%s3 + $0x1d0] sm:$0xff]
  %v3684 = vld [vmem:[%s3 + $0x1d8] sm:$0xff]
  %v3685 = vld [vmem:[%s3 + $0x1e0] sm:$0xff]
  %v3686 = vld [vmem:[%s3 + $0x1e8] sm:$0xff]
  %v3687 = vld [vmem:[%s3 + $0x1f0] sm:$0xff]
  %v3688 = vld [vmem:[%s3 + $0x1f8] sm:$0xff]
  %v3689 = vld [vmem:[%s3 + $0x200] sm:$0xff]
  %v3690 = vld [vmem:[%s3 + $0x208] sm:$0xff]
  %v3691 = vld [vmem:[%s3 + $0x210] sm:$0xff]
  %v3692 = vld [vmem:[%s3 + $0x218] sm:$0xff]
  %v3693 = vld [vmem:[%s3 + $0x220] sm:$0xff]
  %v3694 = vld [vmem:[%s3 + $0x228] sm:$0xff]
  %v3695 = vld [vmem:[%s3 + $0x230] sm:$0xff]
  %v3696 = vld [vmem:[%s3 + $0x238] sm:$0xff]
  %v3697 = vld [vmem:[%s3 + $0x240] sm:$0xff]
  %v3698 = vld [vmem:[%s3 + $0x248] sm:$0xff]
  %v3699 = vld [vmem:[%s3 + $0x250] sm:$0xff]
  %v3700 = vld [vmem:[%s3 + $0x258] sm:$0xff]
  %v3701 = vld [vmem:[%s3 + $0x260] sm:$0xff]
  %v3702 = vld [vmem:[%s3 + $0x268] sm:$0xff]
  %v3703 = vld [vmem:[%s3 + $0x270] sm:$0xff]
  %v3704 = vld [vmem:[%s3 + $0x278] sm:$0xff]
  %v3705 = vld [vmem:[%s3 + $0x280] sm:$0xff]
  %v3706 = vld [vmem:[%s3 + $0x288] sm:$0xff]
  %v3707 = vld [vmem:[%s3 + $0x290] sm:$0xff]
  %v3708 = vld [vmem:[%s3 + $0x298] sm:$0xff]
  %v3709 = vld [vmem:[%s3 + $0x2a0] sm:$0xff]
  %v3710 = vld [vmem:[%s3 + $0x2a8] sm:$0xff]
  %v3711 = vld [vmem:[%s3 + $0x2b0] sm:$0xff]
  %v3712 = vld [vmem:[%s3 + $0x2b8] sm:$0xff]
  %v3713 = vld [vmem:[%s3 + $0x2c0] sm:$0xff]
  %v3714 = vld [vmem:[%s3 + $0x2c8] sm:$0xff]
  %v3715 = vmul.f32 %v2905, %v3535
  %v3716 = vmul.f32 %v2906, %v3536
  %v3717 = vmul.f32 %v2907, %v3537
  %v3718 = vmul.f32 %v2908, %v3538
  %v3719 = vmul.f32 %v2909, %v3539
  %v3720 = vmul.f32 %v2910, %v3540
  %v3721 = vmul.f32 %v2911, %v3541
  %v3722 = vmul.f32 %v2912, %v3542
  %v3723 = vmul.f32 %v2913, %v3543
  %v3724 = vmul.f32 %v2914, %v3544
  %v3725 = vmul.f32 %v2915, %v3545
  %v3726 = vmul.f32 %v2916, %v3546
  %v3727 = vmul.f32 %v2917, %v3547
  %v3728 = vmul.f32 %v2918, %v3548
  %v3729 = vmul.f32 %v2919, %v3549
  %v3730 = vmul.f32 %v2920, %v3550
  %v3731 = vmul.f32 %v2921, %v3551
  %v3732 = vmul.f32 %v2922, %v3552
  %v3733 = vmul.f32 %v2923, %v3553
  %v3734 = vmul.f32 %v2924, %v3554
  %v3735 = vmul.f32 %v2925, %v3555
  %v3736 = vmul.f32 %v2926, %v3556
  %v3737 = vmul.f32 %v2927, %v3557
  %v3738 = vmul.f32 %v2928, %v3558
  %v3739 = vmul.f32 %v2929, %v3559
  %v3740 = vmul.f32 %v2930, %v3560
  %v3741 = vmul.f32 %v2931, %v3561
  %v3742 = vmul.f32 %v2932, %v3562
  %v3743 = vmul.f32 %v2933, %v3563
  %v3744 = vmul.f32 %v2934, %v3564
  %v3745 = vmul.f32 %v2935, %v3565
  %v3746 = vmul.f32 %v2936, %v3566
  %v3747 = vmul.f32 %v2937, %v3567
  %v3748 = vmul.f32 %v2938, %v3568
  %v3749 = vmul.f32 %v2939, %v3569
  %v3750 = vmul.f32 %v2940, %v3570
  %v3751 = vmul.f32 %v2941, %v3571
  %v3752 = vmul.f32 %v2942, %v3572
  %v3753 = vmul.f32 %v2943, %v3573
  %v3754 = vmul.f32 %v2944, %v3574
  %v3755 = vmul.f32 %v2945, %v3575
  %v3756 = vmul.f32 %v2946, %v3576
  %v3757 = vmul.f32 %v2947, %v3577
  %v3758 = vmul.f32 %v2948, %v3578
  %v3759 = vmul.f32 %v2949, %v3579
  %v3760 = vmul.f32 %v2950, %v3580
  %v3761 = vmul.f32 %v2951, %v3581
  %v3762 = vmul.f32 %v2952, %v3582
  %v3763 = vmul.f32 %v2953, %v3583
  %v3764 = vmul.f32 %v2954, %v3584
  %v3765 = vmul.f32 %v2955, %v3585
  %v3766 = vmul.f32 %v2956, %v3586
  %v3767 = vmul.f32 %v2957, %v3587
  %v3768 = vmul.f32 %v2958, %v3588
  %v3769 = vmul.f32 %v2959, %v3589
  %v3770 = vmul.f32 %v2960, %v3590
  %v3771 = vmul.f32 %v2961, %v3591
  %v3772 = vmul.f32 %v2962, %v3592
  %v3773 = vmul.f32 %v2963, %v3593
  %v3774 = vmul.f32 %v2964, %v3594
  %v3775 = vmul.f32 %v2965, %v3595
  %v3776 = vmul.f32 %v2966, %v3596
  %v3777 = vmul.f32 %v2967, %v3597
  %v3778 = vmul.f32 %v2968, %v3598
  %v3779 = vmul.f32 %v2969, %v3599
  %v3780 = vmul.f32 %v2970, %v3600
  %v3781 = vmul.f32 %v2971, %v3601
  %v3782 = vmul.f32 %v2972, %v3602
  %v3783 = vmul.f32 %v2973, %v3603
  %v3784 = vmul.f32 %v2974, %v3604
  %v3785 = vmul.f32 %v2975, %v3605
  %v3786 = vmul.f32 %v2976, %v3606
  %v3787 = vmul.f32 %v2977, %v3607
  %v3788 = vmul.f32 %v2978, %v3608
  %v3789 = vmul.f32 %v2979, %v3609
  %v3790 = vmul.f32 %v2980, %v3610
  %v3791 = vmul.f32 %v2981, %v3611
  %v3792 = vmul.f32 %v2982, %v3612
  %v3793 = vmul.f32 %v2983, %v3613
  %v3794 = vmul.f32 %v2984, %v3614
  %v3795 = vmul.f32 %v2985, %v3615
  %v3796 = vmul.f32 %v2986, %v3616
  %v3797 = vmul.f32 %v2987, %v3617
  %v3798 = vmul.f32 %v2988, %v3618
  %v3799 = vmul.f32 %v2989, %v3619
  %v3800 = vmul.f32 %v2990, %v3620
  %v3801 = vmul.f32 %v2991, %v3621
  %v3802 = vmul.f32 %v2992, %v3622
  %v3803 = vmul.f32 %v2993, %v3623
  %v3804 = vmul.f32 %v2994, %v3624
  %v3805 = vsub.f32 %v3625, %v3715
  %v3806 = vsub.f32 %v3626, %v3716
  %v3807 = vsub.f32 %v3627, %v3717
  %v3808 = vsub.f32 %v3628, %v3718
  %v3809 = vsub.f32 %v3629, %v3719
  %v3810 = vsub.f32 %v3630, %v3720
  %v3811 = vsub.f32 %v3631, %v3721
  %v3812 = vsub.f32 %v3632, %v3722
  %v3813 = vsub.f32 %v3633, %v3723
  %v3814 = vsub.f32 %v3634, %v3724
  %v3815 = vsub.f32 %v3635, %v3725
  %v3816 = vsub.f32 %v3636, %v3726
  %v3817 = vsub.f32 %v3637, %v3727
  %v3818 = vsub.f32 %v3638, %v3728
  %v3819 = vsub.f32 %v3639, %v3729
  %v3820 = vsub.f32 %v3640, %v3730
  %v3821 = vsub.f32 %v3641, %v3731
  %v3822 = vsub.f32 %v3642, %v3732
  %v3823 = vsub.f32 %v3643, %v3733
  %v3824 = vsub.f32 %v3644, %v3734
  %v3825 = vsub.f32 %v3645, %v3735
  %v3826 = vsub.f32 %v3646, %v3736
  %v3827 = vsub.f32 %v3647, %v3737
  %v3828 = vsub.f32 %v3648, %v3738
  %v3829 = vsub.f32 %v3649, %v3739
  %v3830 = vsub.f32 %v3650, %v3740
  %v3831 = vsub.f32 %v3651, %v3741
  %v3832 = vsub.f32 %v3652, %v3742
  %v3833 = vsub.f32 %v3653, %v3743
  %v3834 = vsub.f32 %v3654, %v3744
  %v3835 = vsub.f32 %v3655, %v3745
  %v3836 = vsub.f32 %v3656, %v3746
  %v3837 = vsub.f32 %v3657, %v3747
  %v3838 = vsub.f32 %v3658, %v3748
  %v3839 = vsub.f32 %v3659, %v3749
  %v3840 = vsub.f32 %v3660, %v3750
  %v3841 = vsub.f32 %v3661, %v3751
  %v3842 = vsub.f32 %v3662, %v3752
  %v3843 = vsub.f32 %v3663, %v3753
  %v3844 = vsub.f32 %v3664, %v3754
  %v3845 = vsub.f32 %v3665, %v3755
  %v3846 = vsub.f32 %v3666, %v3756
  %v3847 = vsub.f32 %v3667, %v3757
  %v3848 = vsub.f32 %v3668, %v3758
  %v3849 = vsub.f32 %v3669, %v3759
  %v3850 = vsub.f32 %v3670, %v3760
  %v3851 = vsub.f32 %v3671, %v3761
  %v3852 = vsub.f32 %v3672, %v3762
  %v3853 = vsub.f32 %v3673, %v3763
  %v3854 = vsub.f32 %v3674, %v3764
  %v3855 = vsub.f32 %v3675, %v3765
  %v3856 = vsub.f32 %v3676, %v3766
  %v3857 = vsub.f32 %v3677, %v3767
  %v3858 = vsub.f32 %v3678, %v3768
  %v3859 = vsub.f32 %v3679, %v3769
  %v3860 = vsub.f32 %v3680, %v3770
  %v3861 = vsub.f32 %v3681, %v3771
  %v3862 = vsub.f32 %v3682, %v3772
  %v3863 = vsub.f32 %v3683, %v3773
  %v3864 = vsub.f32 %v3684, %v3774
  %v3865 = vsub.f32 %v3685, %v3775
  %v3866 = vsub.f32 %v3686, %v3776
  %v3867 = vsub.f32 %v3687, %v3777
  %v3868 = vsub.f32 %v3688, %v3778
  %v3869 = vsub.f32 %v3689, %v3779
  %v3870 = vsub.f32 %v3690, %v3780
  %v3871 = vsub.f32 %v3691, %v3781
  %v3872 = vsub.f32 %v3692, %v3782
  %v3873 = vsub.f32 %v3693, %v3783
  %v3874 = vsub.f32 %v3694, %v3784
  %v3875 = vsub.f32 %v3695, %v3785
  %v3876 = vsub.f32 %v3696, %v3786
  %v3877 = vsub.f32 %v3697, %v3787
  %v3878 = vsub.f32 %v3698, %v3788
  %v3879 = vsub.f32 %v3699, %v3789
  %v3880 = vsub.f32 %v3700, %v3790
  %v3881 = vsub.f32 %v3701, %v3791
  %v3882 = vsub.f32 %v3702, %v3792
  %v3883 = vsub.f32 %v3703, %v3793
  %v3884 = vsub.f32 %v3704, %v3794
  %v3885 = vsub.f32 %v3705, %v3795
  %v3886 = vsub.f32 %v3706, %v3796
  %v3887 = vsub.f32 %v3707, %v3797
  %v3888 = vsub.f32 %v3708, %v3798
  %v3889 = vsub.f32 %v3709, %v3799
  %v3890 = vsub.f32 %v3710, %v3800
  %v3891 = vsub.f32 %v3711, %v3801
  %v3892 = vsub.f32 %v3712, %v3802
  %v3893 = vsub.f32 %v3713, %v3803
  %v3894 = vsub.f32 %v3714, %v3804
  %3896 = vset.pattern.permute.xlu0 0
  %3897 = vperm.xlu0 %3896, %v3535
  %v3898 = vpop.permute.xlu0 %3897
  %3901 = vset.pattern.permute.xlu0 0
  %3902 = vperm.xlu0 %3901, %v3536
  %v3903 = vpop.permute.xlu0 %3902
  %3906 = vset.pattern.permute.xlu0 0
  %3907 = vperm.xlu0 %3906, %v3537
  %v3908 = vpop.permute.xlu0 %3907
  %3911 = vset.pattern.permute.xlu0 0
  %3912 = vperm.xlu0 %3911, %v3538
  %v3913 = vpop.permute.xlu0 %3912
  %3916 = vset.pattern.permute.xlu0 0
  %3917 = vperm.xlu0 %3916, %v3539
  %v3918 = vpop.permute.xlu0 %3917
  %3921 = vset.pattern.permute.xlu0 0
  %3922 = vperm.xlu0 %3921, %v3540
  %v3923 = vpop.permute.xlu0 %3922
  %3926 = vset.pattern.permute.xlu0 0
  %3927 = vperm.xlu0 %3926, %v3541
  %v3928 = vpop.permute.xlu0 %3927
  %3931 = vset.pattern.permute.xlu0 0
  %3932 = vperm.xlu0 %3931, %v3542
  %v3933 = vpop.permute.xlu0 %3932
  %3936 = vset.pattern.permute.xlu0 0
  %3937 = vperm.xlu0 %3936, %v3543
  %v3938 = vpop.permute.xlu0 %3937
  %3941 = vset.pattern.permute.xlu0 0
  %3942 = vperm.xlu0 %3941, %v3544
  %v3943 = vpop.permute.xlu0 %3942
  %3946 = vset.pattern.permute.xlu0 0
  %3947 = vperm.xlu0 %3946, %v3545
  %v3948 = vpop.permute.xlu0 %3947
  %3951 = vset.pattern.permute.xlu0 0
  %3952 = vperm.xlu0 %3951, %v3546
  %v3953 = vpop.permute.xlu0 %3952
  %3956 = vset.pattern.permute.xlu0 0
  %3957 = vperm.xlu0 %3956, %v3547
  %v3958 = vpop.permute.xlu0 %3957
  %3961 = vset.pattern.permute.xlu0 0
  %3962 = vperm.xlu0 %3961, %v3548
  %v3963 = vpop.permute.xlu0 %3962
  %3966 = vset.pattern.permute.xlu0 0
  %3967 = vperm.xlu0 %3966, %v3549
  %v3968 = vpop.permute.xlu0 %3967
  %3971 = vset.pattern.permute.xlu0 0
  %3972 = vperm.xlu0 %3971, %v3550
  %v3973 = vpop.permute.xlu0 %3972
  %3976 = vset.pattern.permute.xlu0 0
  %3977 = vperm.xlu0 %3976, %v3551
  %v3978 = vpop.permute.xlu0 %3977
  %3981 = vset.pattern.permute.xlu0 0
  %3982 = vperm.xlu0 %3981, %v3552
  %v3983 = vpop.permute.xlu0 %3982
  %3986 = vset.pattern.permute.xlu0 0
  %3987 = vperm.xlu0 %3986, %v3553
  %v3988 = vpop.permute.xlu0 %3987
  %3991 = vset.pattern.permute.xlu0 0
  %3992 = vperm.xlu0 %3991, %v3554
  %v3993 = vpop.permute.xlu0 %3992
  %3996 = vset.pattern.permute.xlu0 0
  %3997 = vperm.xlu0 %3996, %v3555
  %v3998 = vpop.permute.xlu0 %3997
  %4001 = vset.pattern.permute.xlu0 0
  %4002 = vperm.xlu0 %4001, %v3556
  %v4003 = vpop.permute.xlu0 %4002
  %4006 = vset.pattern.permute.xlu0 0
  %4007 = vperm.xlu0 %4006, %v3557
  %v4008 = vpop.permute.xlu0 %4007
  %4011 = vset.pattern.permute.xlu0 0
  %4012 = vperm.xlu0 %4011, %v3558
  %v4013 = vpop.permute.xlu0 %4012
  %4016 = vset.pattern.permute.xlu0 0
  %4017 = vperm.xlu0 %4016, %v3559
  %v4018 = vpop.permute.xlu0 %4017
  %4021 = vset.pattern.permute.xlu0 0
  %4022 = vperm.xlu0 %4021, %v3560
  %v4023 = vpop.permute.xlu0 %4022
  %4026 = vset.pattern.permute.xlu0 0
  %4027 = vperm.xlu0 %4026, %v3561
  %v4028 = vpop.permute.xlu0 %4027
  %4031 = vset.pattern.permute.xlu0 0
  %4032 = vperm.xlu0 %4031, %v3562
  %v4033 = vpop.permute.xlu0 %4032
  %4036 = vset.pattern.permute.xlu0 0
  %4037 = vperm.xlu0 %4036, %v3563
  %v4038 = vpop.permute.xlu0 %4037
  %4041 = vset.pattern.permute.xlu0 0
  %4042 = vperm.xlu0 %4041, %v3564
  %v4043 = vpop.permute.xlu0 %4042
  %4046 = vset.pattern.permute.xlu0 0
  %4047 = vperm.xlu0 %4046, %v3565
  %v4048 = vpop.permute.xlu0 %4047
  %4051 = vset.pattern.permute.xlu0 0
  %4052 = vperm.xlu0 %4051, %v3566
  %v4053 = vpop.permute.xlu0 %4052
  %4056 = vset.pattern.permute.xlu0 0
  %4057 = vperm.xlu0 %4056, %v3567
  %v4058 = vpop.permute.xlu0 %4057
  %4061 = vset.pattern.permute.xlu0 0
  %4062 = vperm.xlu0 %4061, %v3568
  %v4063 = vpop.permute.xlu0 %4062
  %4066 = vset.pattern.permute.xlu0 0
  %4067 = vperm.xlu0 %4066, %v3569
  %v4068 = vpop.permute.xlu0 %4067
  %4071 = vset.pattern.permute.xlu0 0
  %4072 = vperm.xlu0 %4071, %v3570
  %v4073 = vpop.permute.xlu0 %4072
  %4076 = vset.pattern.permute.xlu0 0
  %4077 = vperm.xlu0 %4076, %v3571
  %v4078 = vpop.permute.xlu0 %4077
  %4081 = vset.pattern.permute.xlu0 0
  %4082 = vperm.xlu0 %4081, %v3572
  %v4083 = vpop.permute.xlu0 %4082
  %4086 = vset.pattern.permute.xlu0 0
  %4087 = vperm.xlu0 %4086, %v3573
  %v4088 = vpop.permute.xlu0 %4087
  %4091 = vset.pattern.permute.xlu0 0
  %4092 = vperm.xlu0 %4091, %v3574
  %v4093 = vpop.permute.xlu0 %4092
  %4096 = vset.pattern.permute.xlu0 0
  %4097 = vperm.xlu0 %4096, %v3575
  %v4098 = vpop.permute.xlu0 %4097
  %4101 = vset.pattern.permute.xlu0 0
  %4102 = vperm.xlu0 %4101, %v3576
  %v4103 = vpop.permute.xlu0 %4102
  %4106 = vset.pattern.permute.xlu0 0
  %4107 = vperm.xlu0 %4106, %v3577
  %v4108 = vpop.permute.xlu0 %4107
  %4111 = vset.pattern.permute.xlu0 0
  %4112 = vperm.xlu0 %4111, %v3578
  %v4113 = vpop.permute.xlu0 %4112
  %4116 = vset.pattern.permute.xlu0 0
  %4117 = vperm.xlu0 %4116, %v3579
  %v4118 = vpop.permute.xlu0 %4117
  %4121 = vset.pattern.permute.xlu0 0
  %4122 = vperm.xlu0 %4121, %v3580
  %v4123 = vpop.permute.xlu0 %4122
  %4126 = vset.pattern.permute.xlu0 0
  %4127 = vperm.xlu0 %4126, %v3581
  %v4128 = vpop.permute.xlu0 %4127
  %4131 = vset.pattern.permute.xlu0 0
  %4132 = vperm.xlu0 %4131, %v3582
  %v4133 = vpop.permute.xlu0 %4132
  %4136 = vset.pattern.permute.xlu0 0
  %4137 = vperm.xlu0 %4136, %v3583
  %v4138 = vpop.permute.xlu0 %4137
  %4141 = vset.pattern.permute.xlu0 0
  %4142 = vperm.xlu0 %4141, %v3584
  %v4143 = vpop.permute.xlu0 %4142
  %4146 = vset.pattern.permute.xlu0 0
  %4147 = vperm.xlu0 %4146, %v3585
  %v4148 = vpop.permute.xlu0 %4147
  %4151 = vset.pattern.permute.xlu0 0
  %4152 = vperm.xlu0 %4151, %v3586
  %v4153 = vpop.permute.xlu0 %4152
  %4156 = vset.pattern.permute.xlu0 0
  %4157 = vperm.xlu0 %4156, %v3587
  %v4158 = vpop.permute.xlu0 %4157
  %4161 = vset.pattern.permute.xlu0 0
  %4162 = vperm.xlu0 %4161, %v3588
  %v4163 = vpop.permute.xlu0 %4162
  %4166 = vset.pattern.permute.xlu0 0
  %4167 = vperm.xlu0 %4166, %v3589
  %v4168 = vpop.permute.xlu0 %4167
  %4171 = vset.pattern.permute.xlu0 0
  %4172 = vperm.xlu0 %4171, %v3590
  %v4173 = vpop.permute.xlu0 %4172
  %4176 = vset.pattern.permute.xlu0 0
  %4177 = vperm.xlu0 %4176, %v3591
  %v4178 = vpop.permute.xlu0 %4177
  %4181 = vset.pattern.permute.xlu0 0
  %4182 = vperm.xlu0 %4181, %v3592
  %v4183 = vpop.permute.xlu0 %4182
  %4186 = vset.pattern.permute.xlu0 0
  %4187 = vperm.xlu0 %4186, %v3593
  %v4188 = vpop.permute.xlu0 %4187
  %4191 = vset.pattern.permute.xlu0 0
  %4192 = vperm.xlu0 %4191, %v3594
  %v4193 = vpop.permute.xlu0 %4192
  %4196 = vset.pattern.permute.xlu0 0
  %4197 = vperm.xlu0 %4196, %v3595
  %v4198 = vpop.permute.xlu0 %4197
  %4201 = vset.pattern.permute.xlu0 0
  %4202 = vperm.xlu0 %4201, %v3596
  %v4203 = vpop.permute.xlu0 %4202
  %4206 = vset.pattern.permute.xlu0 0
  %4207 = vperm.xlu0 %4206, %v3597
  %v4208 = vpop.permute.xlu0 %4207
  %4211 = vset.pattern.permute.xlu0 0
  %4212 = vperm.xlu0 %4211, %v3598
  %v4213 = vpop.permute.xlu0 %4212
  %4216 = vset.pattern.permute.xlu0 0
  %4217 = vperm.xlu0 %4216, %v3599
  %v4218 = vpop.permute.xlu0 %4217
  %4221 = vset.pattern.permute.xlu0 0
  %4222 = vperm.xlu0 %4221, %v3600
  %v4223 = vpop.permute.xlu0 %4222
  %4226 = vset.pattern.permute.xlu0 0
  %4227 = vperm.xlu0 %4226, %v3601
  %v4228 = vpop.permute.xlu0 %4227
  %4231 = vset.pattern.permute.xlu0 0
  %4232 = vperm.xlu0 %4231, %v3602
  %v4233 = vpop.permute.xlu0 %4232
  %4236 = vset.pattern.permute.xlu0 0
  %4237 = vperm.xlu0 %4236, %v3603
  %v4238 = vpop.permute.xlu0 %4237
  %4241 = vset.pattern.permute.xlu0 0
  %4242 = vperm.xlu0 %4241, %v3604
  %v4243 = vpop.permute.xlu0 %4242
  %4246 = vset.pattern.permute.xlu0 0
  %4247 = vperm.xlu0 %4246, %v3605
  %v4248 = vpop.permute.xlu0 %4247
  %4251 = vset.pattern.permute.xlu0 0
  %4252 = vperm.xlu0 %4251, %v3606
  %v4253 = vpop.permute.xlu0 %4252
  %4256 = vset.pattern.permute.xlu0 0
  %4257 = vperm.xlu0 %4256, %v3607
  %v4258 = vpop.permute.xlu0 %4257
  %4261 = vset.pattern.permute.xlu0 0
  %4262 = vperm.xlu0 %4261, %v3608
  %v4263 = vpop.permute.xlu0 %4262
  %4266 = vset.pattern.permute.xlu0 0
  %4267 = vperm.xlu0 %4266, %v3609
  %v4268 = vpop.permute.xlu0 %4267
  %4271 = vset.pattern.permute.xlu0 0
  %4272 = vperm.xlu0 %4271, %v3610
  %v4273 = vpop.permute.xlu0 %4272
  %4276 = vset.pattern.permute.xlu0 0
  %4277 = vperm.xlu0 %4276, %v3611
  %v4278 = vpop.permute.xlu0 %4277
  %4281 = vset.pattern.permute.xlu0 0
  %4282 = vperm.xlu0 %4281, %v3612
  %v4283 = vpop.permute.xlu0 %4282
  %4286 = vset.pattern.permute.xlu0 0
  %4287 = vperm.xlu0 %4286, %v3613
  %v4288 = vpop.permute.xlu0 %4287
  %4291 = vset.pattern.permute.xlu0 0
  %4292 = vperm.xlu0 %4291, %v3614
  %v4293 = vpop.permute.xlu0 %4292
  %4296 = vset.pattern.permute.xlu0 0
  %4297 = vperm.xlu0 %4296, %v3615
  %v4298 = vpop.permute.xlu0 %4297
  %4301 = vset.pattern.permute.xlu0 0
  %4302 = vperm.xlu0 %4301, %v3616
  %v4303 = vpop.permute.xlu0 %4302
  %4306 = vset.pattern.permute.xlu0 0
  %4307 = vperm.xlu0 %4306, %v3617
  %v4308 = vpop.permute.xlu0 %4307
  %4311 = vset.pattern.permute.xlu0 0
  %4312 = vperm.xlu0 %4311, %v3618
  %v4313 = vpop.permute.xlu0 %4312
  %4316 = vset.pattern.permute.xlu0 0
  %4317 = vperm.xlu0 %4316, %v3619
  %v4318 = vpop.permute.xlu0 %4317
  %4321 = vset.pattern.permute.xlu0 0
  %4322 = vperm.xlu0 %4321, %v3620
  %v4323 = vpop.permute.xlu0 %4322
  %4326 = vset.pattern.permute.xlu0 0
  %4327 = vperm.xlu0 %4326, %v3621
  %v4328 = vpop.permute.xlu0 %4327
  %4331 = vset.pattern.permute.xlu0 0
  %4332 = vperm.xlu0 %4331, %v3622
  %v4333 = vpop.permute.xlu0 %4332
  %4336 = vset.pattern.permute.xlu0 0
  %4337 = vperm.xlu0 %4336, %v3623
  %v4338 = vpop.permute.xlu0 %4337
  %4341 = vset.pattern.permute.xlu0 0
  %4342 = vperm.xlu0 %4341, %v3624
  %v4343 = vpop.permute.xlu0 %4342
  %v4345 = vmul.f32 %v24, %v3898
  %v4346 = vmul.f32 %v25, %v3898
  %v4347 = vmul.f32 %v26, %v3898
  %v4348 = vmul.f32 %v27, %v3898
  %v4349 = vmul.f32 %v28, %v3898
  %v4350 = vmul.f32 %v29, %v3898
  %v4351 = vmul.f32 %v30, %v3898
  %v4352 = vmul.f32 %v31, %v3903
  %v4353 = vmul.f32 %v32, %v3903
  %v4354 = vmul.f32 %v33, %v3903
  %v4355 = vmul.f32 %v34, %v3903
  %v4356 = vmul.f32 %v35, %v3903
  %v4357 = vmul.f32 %v36, %v3903
  %v4358 = vmul.f32 %v37, %v3903
  %v4359 = vmul.f32 %v38, %v3908
  %v4360 = vmul.f32 %v39, %v3908
  %v4361 = vmul.f32 %v40, %v3908
  %v4362 = vmul.f32 %v41, %v3908
  %v4363 = vmul.f32 %v42, %v3908
  %v4364 = vmul.f32 %v43, %v3908
  %v4365 = vmul.f32 %v44, %v3908
  %v4366 = vmul.f32 %v45, %v3913
  %v4367 = vmul.f32 %v46, %v3913
  %v4368 = vmul.f32 %v47, %v3913
  %v4369 = vmul.f32 %v48, %v3913
  %v4370 = vmul.f32 %v49, %v3913
  %v4371 = vmul.f32 %v50, %v3913
  %v4372 = vmul.f32 %v51, %v3913
  %v4373 = vmul.f32 %v52, %v3918
  %v4374 = vmul.f32 %v53, %v3918
  %v4375 = vmul.f32 %v54, %v3918
  %v4376 = vmul.f32 %v55, %v3918
  %v4377 = vmul.f32 %v56, %v3918
  %v4378 = vmul.f32 %v57, %v3918
  %v4379 = vmul.f32 %v58, %v3918
  %v4380 = vmul.f32 %v59, %v3923
  %v4381 = vmul.f32 %v60, %v3923
  %v4382 = vmul.f32 %v61, %v3923
  %v4383 = vmul.f32 %v62, %v3923
  %v4384 = vmul.f32 %v63, %v3923
  %v4385 = vmul.f32 %v64, %v3923
  %v4386 = vmul.f32 %v65, %v3923
  %v4387 = vmul.f32 %v66, %v3928
  %v4388 = vmul.f32 %v67, %v3928
  %v4389 = vmul.f32 %v68, %v3928
  %v4390 = vmul.f32 %v69, %v3928
  %v4391 = vmul.f32 %v70, %v3928
  %v4392 = vmul.f32 %v71, %v3928
  %v4393 = vmul.f32 %v72, %v3928
  %v4394 = vmul.f32 %v73, %v3933
  %v4395 = vmul.f32 %v74, %v3933
  %v4396 = vmul.f32 %v75, %v3933
  %v4397 = vmul.f32 %v76, %v3933
  %v4398 = vmul.f32 %v77, %v3933
  %v4399 = vmul.f32 %v78, %v3933
  %v4400 = vmul.f32 %v79, %v3933
  %v4401 = vmul.f32 %v80, %v3938
  %v4402 = vmul.f32 %v81, %v3938
  %v4403 = vmul.f32 %v82, %v3938
  %v4404 = vmul.f32 %v83, %v3938
  %v4405 = vmul.f32 %v84, %v3938
  %v4406 = vmul.f32 %v85, %v3938
  %v4407 = vmul.f32 %v86, %v3938
  %v4408 = vmul.f32 %v87, %v3943
  %v4409 = vmul.f32 %v88, %v3943
  %v4410 = vmul.f32 %v89, %v3943
  %v4411 = vmul.f32 %v90, %v3943
  %v4412 = vmul.f32 %v91, %v3943
  %v4413 = vmul.f32 %v92, %v3943
  %v4414 = vmul.f32 %v93, %v3943
  %v4415 = vmul.f32 %v94, %v3948
  %v4416 = vmul.f32 %v95, %v3948
  %v4417 = vmul.f32 %v96, %v3948
  %v4418 = vmul.f32 %v97, %v3948
  %v4419 = vmul.f32 %v98, %v3948
  %v4420 = vmul.f32 %v99, %v3948
  %v4421 = vmul.f32 %v100, %v3948
  %v4422 = vmul.f32 %v101, %v3953
  %v4423 = vmul.f32 %v102, %v3953
  %v4424 = vmul.f32 %v103, %v3953
  %v4425 = vmul.f32 %v104, %v3953
  %v4426 = vmul.f32 %v105, %v3953
  %v4427 = vmul.f32 %v106, %v3953
  %v4428 = vmul.f32 %v107, %v3953
  %v4429 = vmul.f32 %v108, %v3958
  %v4430 = vmul.f32 %v109, %v3958
  %v4431 = vmul.f32 %v110, %v3958
  %v4432 = vmul.f32 %v111, %v3958
  %v4433 = vmul.f32 %v112, %v3958
  %v4434 = vmul.f32 %v113, %v3958
  %v4435 = vmul.f32 %v114, %v3958
  %v4436 = vmul.f32 %v115, %v3963
  %v4437 = vmul.f32 %v116, %v3963
  %v4438 = vmul.f32 %v117, %v3963
  %v4439 = vmul.f32 %v118, %v3963
  %v4440 = vmul.f32 %v119, %v3963
  %v4441 = vmul.f32 %v120, %v3963
  %v4442 = vmul.f32 %v121, %v3963
  %v4443 = vmul.f32 %v122, %v3968
  %v4444 = vmul.f32 %v123, %v3968
  %v4445 = vmul.f32 %v124, %v3968
  %v4446 = vmul.f32 %v125, %v3968
  %v4447 = vmul.f32 %v126, %v3968
  %v4448 = vmul.f32 %v127, %v3968
  %v4449 = vmul.f32 %v128, %v3968
  %v4450 = vmul.f32 %v129, %v3973
  %v4451 = vmul.f32 %v130, %v3973
  %v4452 = vmul.f32 %v131, %v3973
  %v4453 = vmul.f32 %v132, %v3973
  %v4454 = vmul.f32 %v133, %v3973
  %v4455 = vmul.f32 %v134, %v3973
  %v4456 = vmul.f32 %v135, %v3973
  %v4457 = vmul.f32 %v136, %v3978
  %v4458 = vmul.f32 %v137, %v3978
  %v4459 = vmul.f32 %v138, %v3978
  %v4460 = vmul.f32 %v139, %v3978
  %v4461 = vmul.f32 %v140, %v3978
  %v4462 = vmul.f32 %v141, %v3978
  %v4463 = vmul.f32 %v142, %v3978
  %v4464 = vmul.f32 %v143, %v3983
  %v4465 = vmul.f32 %v144, %v3983
  %v4466 = vmul.f32 %v145, %v3983
  %v4467 = vmul.f32 %v146, %v3983
  %v4468 = vmul.f32 %v147, %v3983
  %v4469 = vmul.f32 %v148, %v3983
  %v4470 = vmul.f32 %v149, %v3983
  %v4471 = vmul.f32 %v150, %v3988
  %v4472 = vmul.f32 %v151, %v3988
  %v4473 = vmul.f32 %v152, %v3988
  %v4474 = vmul.f32 %v153, %v3988
  %v4475 = vmul.f32 %v154, %v3988
  %v4476 = vmul.f32 %v155, %v3988
  %v4477 = vmul.f32 %v156, %v3988
  %v4478 = vmul.f32 %v157, %v3993
  %v4479 = vmul.f32 %v158, %v3993
  %v4480 = vmul.f32 %v159, %v3993
  %v4481 = vmul.f32 %v160, %v3993
  %v4482 = vmul.f32 %v161, %v3993
  %v4483 = vmul.f32 %v162, %v3993
  %v4484 = vmul.f32 %v163, %v3993
  %v4485 = vmul.f32 %v164, %v3998
  %v4486 = vmul.f32 %v165, %v3998
  %v4487 = vmul.f32 %v166, %v3998
  %v4488 = vmul.f32 %v167, %v3998
  %v4489 = vmul.f32 %v168, %v3998
  %v4490 = vmul.f32 %v169, %v3998
  %v4491 = vmul.f32 %v170, %v3998
  %v4492 = vmul.f32 %v171, %v4003
  %v4493 = vmul.f32 %v172, %v4003
  %v4494 = vmul.f32 %v173, %v4003
  %v4495 = vmul.f32 %v174, %v4003
  %v4496 = vmul.f32 %v175, %v4003
  %v4497 = vmul.f32 %v176, %v4003
  %v4498 = vmul.f32 %v177, %v4003
  %v4499 = vmul.f32 %v178, %v4008
  %v4500 = vmul.f32 %v179, %v4008
  %v4501 = vmul.f32 %v180, %v4008
  %v4502 = vmul.f32 %v181, %v4008
  %v4503 = vmul.f32 %v182, %v4008
  %v4504 = vmul.f32 %v183, %v4008
  %v4505 = vmul.f32 %v184, %v4008
  %v4506 = vmul.f32 %v185, %v4013
  %v4507 = vmul.f32 %v186, %v4013
  %v4508 = vmul.f32 %v187, %v4013
  %v4509 = vmul.f32 %v188, %v4013
  %v4510 = vmul.f32 %v189, %v4013
  %v4511 = vmul.f32 %v190, %v4013
  %v4512 = vmul.f32 %v191, %v4013
  %v4513 = vmul.f32 %v192, %v4018
  %v4514 = vmul.f32 %v193, %v4018
  %v4515 = vmul.f32 %v194, %v4018
  %v4516 = vmul.f32 %v195, %v4018
  %v4517 = vmul.f32 %v196, %v4018
  %v4518 = vmul.f32 %v197, %v4018
  %v4519 = vmul.f32 %v198, %v4018
  %v4520 = vmul.f32 %v199, %v4023
  %v4521 = vmul.f32 %v200, %v4023
  %v4522 = vmul.f32 %v201, %v4023
  %v4523 = vmul.f32 %v202, %v4023
  %v4524 = vmul.f32 %v203, %v4023
  %v4525 = vmul.f32 %v204, %v4023
  %v4526 = vmul.f32 %v205, %v4023
  %v4527 = vmul.f32 %v206, %v4028
  %v4528 = vmul.f32 %v207, %v4028
  %v4529 = vmul.f32 %v208, %v4028
  %v4530 = vmul.f32 %v209, %v4028
  %v4531 = vmul.f32 %v210, %v4028
  %v4532 = vmul.f32 %v211, %v4028
  %v4533 = vmul.f32 %v212, %v4028
  %v4534 = vmul.f32 %v213, %v4033
  %v4535 = vmul.f32 %v214, %v4033
  %v4536 = vmul.f32 %v215, %v4033
  %v4537 = vmul.f32 %v216, %v4033
  %v4538 = vmul.f32 %v217, %v4033
  %v4539 = vmul.f32 %v218, %v4033
  %v4540 = vmul.f32 %v219, %v4033
  %v4541 = vmul.f32 %v220, %v4038
  %v4542 = vmul.f32 %v221, %v4038
  %v4543 = vmul.f32 %v222, %v4038
  %v4544 = vmul.f32 %v223, %v4038
  %v4545 = vmul.f32 %v224, %v4038
  %v4546 = vmul.f32 %v225, %v4038
  %v4547 = vmul.f32 %v226, %v4038
  %v4548 = vmul.f32 %v227, %v4043
  %v4549 = vmul.f32 %v228, %v4043
  %v4550 = vmul.f32 %v229, %v4043
  %v4551 = vmul.f32 %v230, %v4043
  %v4552 = vmul.f32 %v231, %v4043
  %v4553 = vmul.f32 %v232, %v4043
  %v4554 = vmul.f32 %v233, %v4043
  %v4555 = vmul.f32 %v234, %v4048
  %v4556 = vmul.f32 %v235, %v4048
  %v4557 = vmul.f32 %v236, %v4048
  %v4558 = vmul.f32 %v237, %v4048
  %v4559 = vmul.f32 %v238, %v4048
  %v4560 = vmul.f32 %v239, %v4048
  %v4561 = vmul.f32 %v240, %v4048
  %v4562 = vmul.f32 %v241, %v4053
  %v4563 = vmul.f32 %v242, %v4053
  %v4564 = vmul.f32 %v243, %v4053
  %v4565 = vmul.f32 %v244, %v4053
  %v4566 = vmul.f32 %v245, %v4053
  %v4567 = vmul.f32 %v246, %v4053
  %v4568 = vmul.f32 %v247, %v4053
  %v4569 = vmul.f32 %v248, %v4058
  %v4570 = vmul.f32 %v249, %v4058
  %v4571 = vmul.f32 %v250, %v4058
  %v4572 = vmul.f32 %v251, %v4058
  %v4573 = vmul.f32 %v252, %v4058
  %v4574 = vmul.f32 %v253, %v4058
  %v4575 = vmul.f32 %v254, %v4058
  %v4576 = vmul.f32 %v255, %v4063
  %v4577 = vmul.f32 %v256, %v4063
  %v4578 = vmul.f32 %v257, %v4063
  %v4579 = vmul.f32 %v258, %v4063
  %v4580 = vmul.f32 %v259, %v4063
  %v4581 = vmul.f32 %v260, %v4063
  %v4582 = vmul.f32 %v261, %v4063
  %v4583 = vmul.f32 %v262, %v4068
  %v4584 = vmul.f32 %v263, %v4068
  %v4585 = vmul.f32 %v264, %v4068
  %v4586 = vmul.f32 %v265, %v4068
  %v4587 = vmul.f32 %v266, %v4068
  %v4588 = vmul.f32 %v267, %v4068
  %v4589 = vmul.f32 %v268, %v4068
  %v4590 = vmul.f32 %v269, %v4073
  %v4591 = vmul.f32 %v270, %v4073
  %v4592 = vmul.f32 %v271, %v4073
  %v4593 = vmul.f32 %v272, %v4073
  %v4594 = vmul.f32 %v273, %v4073
  %v4595 = vmul.f32 %v274, %v4073
  %v4596 = vmul.f32 %v275, %v4073
  %v4597 = vmul.f32 %v276, %v4078
  %v4598 = vmul.f32 %v277, %v4078
  %v4599 = vmul.f32 %v278, %v4078
  %v4600 = vmul.f32 %v279, %v4078
  %v4601 = vmul.f32 %v280, %v4078
  %v4602 = vmul.f32 %v281, %v4078
  %v4603 = vmul.f32 %v282, %v4078
  %v4604 = vmul.f32 %v283, %v4083
  %v4605 = vmul.f32 %v284, %v4083
  %v4606 = vmul.f32 %v285, %v4083
  %v4607 = vmul.f32 %v286, %v4083
  %v4608 = vmul.f32 %v287, %v4083
  %v4609 = vmul.f32 %v288, %v4083
  %v4610 = vmul.f32 %v289, %v4083
  %v4611 = vmul.f32 %v290, %v4088
  %v4612 = vmul.f32 %v291, %v4088
  %v4613 = vmul.f32 %v292, %v4088
  %v4614 = vmul.f32 %v293, %v4088
  %v4615 = vmul.f32 %v294, %v4088
  %v4616 = vmul.f32 %v295, %v4088
  %v4617 = vmul.f32 %v296, %v4088
  %v4618 = vmul.f32 %v297, %v4093
  %v4619 = vmul.f32 %v298, %v4093
  %v4620 = vmul.f32 %v299, %v4093
  %v4621 = vmul.f32 %v300, %v4093
  %v4622 = vmul.f32 %v301, %v4093
  %v4623 = vmul.f32 %v302, %v4093
  %v4624 = vmul.f32 %v303, %v4093
  %v4625 = vmul.f32 %v304, %v4098
  %v4626 = vmul.f32 %v305, %v4098
  %v4627 = vmul.f32 %v306, %v4098
  %v4628 = vmul.f32 %v307, %v4098
  %v4629 = vmul.f32 %v308, %v4098
  %v4630 = vmul.f32 %v309, %v4098
  %v4631 = vmul.f32 %v310, %v4098
  %v4632 = vmul.f32 %v311, %v4103
  %v4633 = vmul.f32 %v312, %v4103
  %v4634 = vmul.f32 %v313, %v4103
  %v4635 = vmul.f32 %v314, %v4103
  %v4636 = vmul.f32 %v315, %v4103
  %v4637 = vmul.f32 %v316, %v4103
  %v4638 = vmul.f32 %v317, %v4103
  %v4639 = vmul.f32 %v318, %v4108
  %v4640 = vmul.f32 %v319, %v4108
  %v4641 = vmul.f32 %v320, %v4108
  %v4642 = vmul.f32 %v321, %v4108
  %v4643 = vmul.f32 %v322, %v4108
  %v4644 = vmul.f32 %v323, %v4108
  %v4645 = vmul.f32 %v324, %v4108
  %v4646 = vmul.f32 %v325, %v4113
  %v4647 = vmul.f32 %v326, %v4113
  %v4648 = vmul.f32 %v327, %v4113
  %v4649 = vmul.f32 %v328, %v4113
  %v4650 = vmul.f32 %v329, %v4113
  %v4651 = vmul.f32 %v330, %v4113
  %v4652 = vmul.f32 %v331, %v4113
  %v4653 = vmul.f32 %v332, %v4118
  %v4654 = vmul.f32 %v333, %v4118
  %v4655 = vmul.f32 %v334, %v4118
  %v4656 = vmul.f32 %v335, %v4118
  %v4657 = vmul.f32 %v336, %v4118
  %v4658 = vmul.f32 %v337, %v4118
  %v4659 = vmul.f32 %v338, %v4118
  %v4660 = vmul.f32 %v339, %v4123
  %v4661 = vmul.f32 %v340, %v4123
  %v4662 = vmul.f32 %v341, %v4123
  %v4663 = vmul.f32 %v342, %v4123
  %v4664 = vmul.f32 %v343, %v4123
  %v4665 = vmul.f32 %v344, %v4123
  %v4666 = vmul.f32 %v345, %v4123
  %v4667 = vmul.f32 %v346, %v4128
  %v4668 = vmul.f32 %v347, %v4128
  %v4669 = vmul.f32 %v348, %v4128
  %v4670 = vmul.f32 %v349, %v4128
  %v4671 = vmul.f32 %v350, %v4128
  %v4672 = vmul.f32 %v351, %v4128
  %v4673 = vmul.f32 %v352, %v4128
  %v4674 = vmul.f32 %v353, %v4133
  %v4675 = vmul.f32 %v354, %v4133
  %v4676 = vmul.f32 %v355, %v4133
  %v4677 = vmul.f32 %v356, %v4133
  %v4678 = vmul.f32 %v357, %v4133
  %v4679 = vmul.f32 %v358, %v4133
  %v4680 = vmul.f32 %v359, %v4133
  %v4681 = vmul.f32 %v360, %v4138
  %v4682 = vmul.f32 %v361, %v4138
  %v4683 = vmul.f32 %v362, %v4138
  %v4684 = vmul.f32 %v363, %v4138
  %v4685 = vmul.f32 %v364, %v4138
  %v4686 = vmul.f32 %v365, %v4138
  %v4687 = vmul.f32 %v366, %v4138
  %v4688 = vmul.f32 %v367, %v4143
  %v4689 = vmul.f32 %v368, %v4143
  %v4690 = vmul.f32 %v369, %v4143
  %v4691 = vmul.f32 %v370, %v4143
  %v4692 = vmul.f32 %v371, %v4143
  %v4693 = vmul.f32 %v372, %v4143
  %v4694 = vmul.f32 %v373, %v4143
  %v4695 = vmul.f32 %v374, %v4148
  %v4696 = vmul.f32 %v375, %v4148
  %v4697 = vmul.f32 %v376, %v4148
  %v4698 = vmul.f32 %v377, %v4148
  %v4699 = vmul.f32 %v378, %v4148
  %v4700 = vmul.f32 %v379, %v4148
  %v4701 = vmul.f32 %v380, %v4148
  %v4702 = vmul.f32 %v381, %v4153
  %v4703 = vmul.f32 %v382, %v4153
  %v4704 = vmul.f32 %v383, %v4153
  %v4705 = vmul.f32 %v384, %v4153
  %v4706 = vmul.f32 %v385, %v4153
  %v4707 = vmul.f32 %v386, %v4153
  %v4708 = vmul.f32 %v387, %v4153
  %v4709 = vmul.f32 %v388, %v4158
  %v4710 = vmul.f32 %v389, %v4158
  %v4711 = vmul.f32 %v390, %v4158
  %v4712 = vmul.f32 %v391, %v4158
  %v4713 = vmul.f32 %v392, %v4158
  %v4714 = vmul.f32 %v393, %v4158
  %v4715 = vmul.f32 %v394, %v4158
  %v4716 = vmul.f32 %v395, %v4163
  %v4717 = vmul.f32 %v396, %v4163
  %v4718 = vmul.f32 %v397, %v4163
  %v4719 = vmul.f32 %v398, %v4163
  %v4720 = vmul.f32 %v399, %v4163
  %v4721 = vmul.f32 %v400, %v4163
  %v4722 = vmul.f32 %v401, %v4163
  %v4723 = vmul.f32 %v402, %v4168
  %v4724 = vmul.f32 %v403, %v4168
  %v4725 = vmul.f32 %v404, %v4168
  %v4726 = vmul.f32 %v405, %v4168
  %v4727 = vmul.f32 %v406, %v4168
  %v4728 = vmul.f32 %v407, %v4168
  %v4729 = vmul.f32 %v408, %v4168
  %v4730 = vmul.f32 %v409, %v4173
  %v4731 = vmul.f32 %v410, %v4173
  %v4732 = vmul.f32 %v411, %v4173
  %v4733 = vmul.f32 %v412, %v4173
  %v4734 = vmul.f32 %v413, %v4173
  %v4735 = vmul.f32 %v414, %v4173
  %v4736 = vmul.f32 %v415, %v4173
  %v4737 = vmul.f32 %v416, %v4178
  %v4738 = vmul.f32 %v417, %v4178
  %v4739 = vmul.f32 %v418, %v4178
  %v4740 = vmul.f32 %v419, %v4178
  %v4741 = vmul.f32 %v420, %v4178
  %v4742 = vmul.f32 %v421, %v4178
  %v4743 = vmul.f32 %v422, %v4178
  %v4744 = vmul.f32 %v423, %v4183
  %v4745 = vmul.f32 %v424, %v4183
  %v4746 = vmul.f32 %v425, %v4183
  %v4747 = vmul.f32 %v426, %v4183
  %v4748 = vmul.f32 %v427, %v4183
  %v4749 = vmul.f32 %v428, %v4183
  %v4750 = vmul.f32 %v429, %v4183
  %v4751 = vmul.f32 %v430, %v4188
  %v4752 = vmul.f32 %v431, %v4188
  %v4753 = vmul.f32 %v432, %v4188
  %v4754 = vmul.f32 %v433, %v4188
  %v4755 = vmul.f32 %v434, %v4188
  %v4756 = vmul.f32 %v435, %v4188
  %v4757 = vmul.f32 %v436, %v4188
  %v4758 = vmul.f32 %v437, %v4193
  %v4759 = vmul.f32 %v438, %v4193
  %v4760 = vmul.f32 %v439, %v4193
  %v4761 = vmul.f32 %v440, %v4193
  %v4762 = vmul.f32 %v441, %v4193
  %v4763 = vmul.f32 %v442, %v4193
  %v4764 = vmul.f32 %v443, %v4193
  %v4765 = vmul.f32 %v444, %v4198
  %v4766 = vmul.f32 %v445, %v4198
  %v4767 = vmul.f32 %v446, %v4198
  %v4768 = vmul.f32 %v447, %v4198
  %v4769 = vmul.f32 %v448, %v4198
  %v4770 = vmul.f32 %v449, %v4198
  %v4771 = vmul.f32 %v450, %v4198
  %v4772 = vmul.f32 %v451, %v4203
  %v4773 = vmul.f32 %v452, %v4203
  %v4774 = vmul.f32 %v453, %v4203
  %v4775 = vmul.f32 %v454, %v4203
  %v4776 = vmul.f32 %v455, %v4203
  %v4777 = vmul.f32 %v456, %v4203
  %v4778 = vmul.f32 %v457, %v4203
  %v4779 = vmul.f32 %v458, %v4208
  %v4780 = vmul.f32 %v459, %v4208
  %v4781 = vmul.f32 %v460, %v4208
  %v4782 = vmul.f32 %v461, %v4208
  %v4783 = vmul.f32 %v462, %v4208
  %v4784 = vmul.f32 %v463, %v4208
  %v4785 = vmul.f32 %v464, %v4208
  %v4786 = vmul.f32 %v465, %v4213
  %v4787 = vmul.f32 %v466, %v4213
  %v4788 = vmul.f32 %v467, %v4213
  %v4789 = vmul.f32 %v468, %v4213
  %v4790 = vmul.f32 %v469, %v4213
  %v4791 = vmul.f32 %v470, %v4213
  %v4792 = vmul.f32 %v471, %v4213
  %v4793 = vmul.f32 %v472, %v4218
  %v4794 = vmul.f32 %v473, %v4218
  %v4795 = vmul.f32 %v474, %v4218
  %v4796 = vmul.f32 %v475, %v4218
  %v4797 = vmul.f32 %v476, %v4218
  %v4798 = vmul.f32 %v477, %v4218
  %v4799 = vmul.f32 %v478, %v4218
  %v4800 = vmul.f32 %v479, %v4223
  %v4801 = vmul.f32 %v480, %v4223
  %v4802 = vmul.f32 %v481, %v4223
  %v4803 = vmul.f32 %v482, %v4223
  %v4804 = vmul.f32 %v483, %v4223
  %v4805 = vmul.f32 %v484, %v4223
  %v4806 = vmul.f32 %v485, %v4223
  %v4807 = vmul.f32 %v486, %v4228
  %v4808 = vmul.f32 %v487, %v4228
  %v4809 = vmul.f32 %v488, %v4228
  %v4810 = vmul.f32 %v489, %v4228
  %v4811 = vmul.f32 %v490, %v4228
  %v4812 = vmul.f32 %v491, %v4228
  %v4813 = vmul.f32 %v492, %v4228
  %v4814 = vmul.f32 %v493, %v4233
  %v4815 = vmul.f32 %v494, %v4233
  %v4816 = vmul.f32 %v495, %v4233
  %v4817 = vmul.f32 %v496, %v4233
  %v4818 = vmul.f32 %v497, %v4233
  %v4819 = vmul.f32 %v498, %v4233
  %v4820 = vmul.f32 %v499, %v4233
  %v4821 = vmul.f32 %v500, %v4238
  %v4822 = vmul.f32 %v501, %v4238
  %v4823 = vmul.f32 %v502, %v4238
  %v4824 = vmul.f32 %v503, %v4238
  %v4825 = vmul.f32 %v504, %v4238
  %v4826 = vmul.f32 %v505, %v4238
  %v4827 = vmul.f32 %v506, %v4238
  %v4828 = vmul.f32 %v507, %v4243
  %v4829 = vmul.f32 %v508, %v4243
  %v4830 = vmul.f32 %v509, %v4243
  %v4831 = vmul.f32 %v510, %v4243
  %v4832 = vmul.f32 %v511, %v4243
  %v4833 = vmul.f32 %v512, %v4243
  %v4834 = vmul.f32 %v513, %v4243
  %v4835 = vmul.f32 %v514, %v4248
  %v4836 = vmul.f32 %v515, %v4248
  %v4837 = vmul.f32 %v516, %v4248
  %v4838 = vmul.f32 %v517, %v4248
  %v4839 = vmul.f32 %v518, %v4248
  %v4840 = vmul.f32 %v519, %v4248
  %v4841 = vmul.f32 %v520, %v4248
  %v4842 = vmul.f32 %v521, %v4253
  %v4843 = vmul.f32 %v522, %v4253
  %v4844 = vmul.f32 %v523, %v4253
  %v4845 = vmul.f32 %v524, %v4253
  %v4846 = vmul.f32 %v525, %v4253
  %v4847 = vmul.f32 %v526, %v4253
  %v4848 = vmul.f32 %v527, %v4253
  %v4849 = vmul.f32 %v528, %v4258
  %v4850 = vmul.f32 %v529, %v4258
  %v4851 = vmul.f32 %v530, %v4258
  %v4852 = vmul.f32 %v531, %v4258
  %v4853 = vmul.f32 %v532, %v4258
  %v4854 = vmul.f32 %v533, %v4258
  %v4855 = vmul.f32 %v534, %v4258
  %v4856 = vmul.f32 %v535, %v4263
  %v4857 = vmul.f32 %v536, %v4263
  %v4858 = vmul.f32 %v537, %v4263
  %v4859 = vmul.f32 %v538, %v4263
  %v4860 = vmul.f32 %v539, %v4263
  %v4861 = vmul.f32 %v540, %v4263
  %v4862 = vmul.f32 %v541, %v4263
  %v4863 = vmul.f32 %v542, %v4268
  %v4864 = vmul.f32 %v543, %v4268
  %v4865 = vmul.f32 %v544, %v4268
  %v4866 = vmul.f32 %v545, %v4268
  %v4867 = vmul.f32 %v546, %v4268
  %v4868 = vmul.f32 %v547, %v4268
  %v4869 = vmul.f32 %v548, %v4268
  %v4870 = vmul.f32 %v549, %v4273
  %v4871 = vmul.f32 %v550, %v4273
  %v4872 = vmul.f32 %v551, %v4273
  %v4873 = vmul.f32 %v552, %v4273
  %v4874 = vmul.f32 %v553, %v4273
  %v4875 = vmul.f32 %v554, %v4273
  %v4876 = vmul.f32 %v555, %v4273
  %v4877 = vmul.f32 %v556, %v4278
  %v4878 = vmul.f32 %v557, %v4278
  %v4879 = vmul.f32 %v558, %v4278
  %v4880 = vmul.f32 %v559, %v4278
  %v4881 = vmul.f32 %v560, %v4278
  %v4882 = vmul.f32 %v561, %v4278
  %v4883 = vmul.f32 %v562, %v4278
  %v4884 = vmul.f32 %v563, %v4283
  %v4885 = vmul.f32 %v564, %v4283
  %v4886 = vmul.f32 %v565, %v4283
  %v4887 = vmul.f32 %v566, %v4283
  %v4888 = vmul.f32 %v567, %v4283
  %v4889 = vmul.f32 %v568, %v4283
  %v4890 = vmul.f32 %v569, %v4283
  %v4891 = vmul.f32 %v570, %v4288
  %v4892 = vmul.f32 %v571, %v4288
  %v4893 = vmul.f32 %v572, %v4288
  %v4894 = vmul.f32 %v573, %v4288
  %v4895 = vmul.f32 %v574, %v4288
  %v4896 = vmul.f32 %v575, %v4288
  %v4897 = vmul.f32 %v576, %v4288
  %v4898 = vmul.f32 %v577, %v4293
  %v4899 = vmul.f32 %v578, %v4293
  %v4900 = vmul.f32 %v579, %v4293
  %v4901 = vmul.f32 %v580, %v4293
  %v4902 = vmul.f32 %v581, %v4293
  %v4903 = vmul.f32 %v582, %v4293
  %v4904 = vmul.f32 %v583, %v4293
  %v4905 = vmul.f32 %v584, %v4298
  %v4906 = vmul.f32 %v585, %v4298
  %v4907 = vmul.f32 %v586, %v4298
  %v4908 = vmul.f32 %v587, %v4298
  %v4909 = vmul.f32 %v588, %v4298
  %v4910 = vmul.f32 %v589, %v4298
  %v4911 = vmul.f32 %v590, %v4298
  %v4912 = vmul.f32 %v591, %v4303
  %v4913 = vmul.f32 %v592, %v4303
  %v4914 = vmul.f32 %v593, %v4303
  %v4915 = vmul.f32 %v594, %v4303
  %v4916 = vmul.f32 %v595, %v4303
  %v4917 = vmul.f32 %v596, %v4303
  %v4918 = vmul.f32 %v597, %v4303
  %v4919 = vmul.f32 %v598, %v4308
  %v4920 = vmul.f32 %v599, %v4308
  %v4921 = vmul.f32 %v600, %v4308
  %v4922 = vmul.f32 %v601, %v4308
  %v4923 = vmul.f32 %v602, %v4308
  %v4924 = vmul.f32 %v603, %v4308
  %v4925 = vmul.f32 %v604, %v4308
  %v4926 = vmul.f32 %v605, %v4313
  %v4927 = vmul.f32 %v606, %v4313
  %v4928 = vmul.f32 %v607, %v4313
  %v4929 = vmul.f32 %v608, %v4313
  %v4930 = vmul.f32 %v609, %v4313
  %v4931 = vmul.f32 %v610, %v4313
  %v4932 = vmul.f32 %v611, %v4313
  %v4933 = vmul.f32 %v612, %v4318
  %v4934 = vmul.f32 %v613, %v4318
  %v4935 = vmul.f32 %v614, %v4318
  %v4936 = vmul.f32 %v615, %v4318
  %v4937 = vmul.f32 %v616, %v4318
  %v4938 = vmul.f32 %v617, %v4318
  %v4939 = vmul.f32 %v618, %v4318
  %v4940 = vmul.f32 %v619, %v4323
  %v4941 = vmul.f32 %v620, %v4323
  %v4942 = vmul.f32 %v621, %v4323
  %v4943 = vmul.f32 %v622, %v4323
  %v4944 = vmul.f32 %v623, %v4323
  %v4945 = vmul.f32 %v624, %v4323
  %v4946 = vmul.f32 %v625, %v4323
  %v4947 = vmul.f32 %v626, %v4328
  %v4948 = vmul.f32 %v627, %v4328
  %v4949 = vmul.f32 %v628, %v4328
  %v4950 = vmul.f32 %v629, %v4328
  %v4951 = vmul.f32 %v630, %v4328
  %v4952 = vmul.f32 %v631, %v4328
  %v4953 = vmul.f32 %v632, %v4328
  %v4954 = vmul.f32 %v633, %v4333
  %v4955 = vmul.f32 %v634, %v4333
  %v4956 = vmul.f32 %v635, %v4333
  %v4957 = vmul.f32 %v636, %v4333
  %v4958 = vmul.f32 %v637, %v4333
  %v4959 = vmul.f32 %v638, %v4333
  %v4960 = vmul.f32 %v639, %v4333
  %v4961 = vmul.f32 %v640, %v4338
  %v4962 = vmul.f32 %v641, %v4338
  %v4963 = vmul.f32 %v642, %v4338
  %v4964 = vmul.f32 %v643, %v4338
  %v4965 = vmul.f32 %v644, %v4338
  %v4966 = vmul.f32 %v645, %v4338
  %v4967 = vmul.f32 %v646, %v4338
  %v4968 = vmul.f32 %v647, %v4343
  %v4969 = vmul.f32 %v648, %v4343
  %v4970 = vmul.f32 %v649, %v4343
  %v4971 = vmul.f32 %v650, %v4343
  %v4972 = vmul.f32 %v651, %v4343
  %v4973 = vmul.f32 %v652, %v4343
  %v4974 = vmul.f32 %v653, %v4343
  %4976 = vset.pattern.permute.xlu0 0
  %4977 = vperm.xlu0 %4976, %v3805
  %v4978 = vpop.permute.xlu0 %4977
  %4981 = vset.pattern.permute.xlu0 0
  %4982 = vperm.xlu0 %4981, %v3806
  %v4983 = vpop.permute.xlu0 %4982
  %4986 = vset.pattern.permute.xlu0 0
  %4987 = vperm.xlu0 %4986, %v3807
  %v4988 = vpop.permute.xlu0 %4987
  %4991 = vset.pattern.permute.xlu0 0
  %4992 = vperm.xlu0 %4991, %v3808
  %v4993 = vpop.permute.xlu0 %4992
  %4996 = vset.pattern.permute.xlu0 0
  %4997 = vperm.xlu0 %4996, %v3809
  %v4998 = vpop.permute.xlu0 %4997
  %5001 = vset.pattern.permute.xlu0 0
  %5002 = vperm.xlu0 %5001, %v3810
  %v5003 = vpop.permute.xlu0 %5002
  %5006 = vset.pattern.permute.xlu0 0
  %5007 = vperm.xlu0 %5006, %v3811
  %v5008 = vpop.permute.xlu0 %5007
  %5011 = vset.pattern.permute.xlu0 0
  %5012 = vperm.xlu0 %5011, %v3812
  %v5013 = vpop.permute.xlu0 %5012
  %5016 = vset.pattern.permute.xlu0 0
  %5017 = vperm.xlu0 %5016, %v3813
  %v5018 = vpop.permute.xlu0 %5017
  %5021 = vset.pattern.permute.xlu0 0
  %5022 = vperm.xlu0 %5021, %v3814
  %v5023 = vpop.permute.xlu0 %5022
  %5026 = vset.pattern.permute.xlu0 0
  %5027 = vperm.xlu0 %5026, %v3815
  %v5028 = vpop.permute.xlu0 %5027
  %5031 = vset.pattern.permute.xlu0 0
  %5032 = vperm.xlu0 %5031, %v3816
  %v5033 = vpop.permute.xlu0 %5032
  %5036 = vset.pattern.permute.xlu0 0
  %5037 = vperm.xlu0 %5036, %v3817
  %v5038 = vpop.permute.xlu0 %5037
  %5041 = vset.pattern.permute.xlu0 0
  %5042 = vperm.xlu0 %5041, %v3818
  %v5043 = vpop.permute.xlu0 %5042
  %5046 = vset.pattern.permute.xlu0 0
  %5047 = vperm.xlu0 %5046, %v3819
  %v5048 = vpop.permute.xlu0 %5047
  %5051 = vset.pattern.permute.xlu0 0
  %5052 = vperm.xlu0 %5051, %v3820
  %v5053 = vpop.permute.xlu0 %5052
  %5056 = vset.pattern.permute.xlu0 0
  %5057 = vperm.xlu0 %5056, %v3821
  %v5058 = vpop.permute.xlu0 %5057
  %5061 = vset.pattern.permute.xlu0 0
  %5062 = vperm.xlu0 %5061, %v3822
  %v5063 = vpop.permute.xlu0 %5062
  %5066 = vset.pattern.permute.xlu0 0
  %5067 = vperm.xlu0 %5066, %v3823
  %v5068 = vpop.permute.xlu0 %5067
  %5071 = vset.pattern.permute.xlu0 0
  %5072 = vperm.xlu0 %5071, %v3824
  %v5073 = vpop.permute.xlu0 %5072
  %5076 = vset.pattern.permute.xlu0 0
  %5077 = vperm.xlu0 %5076, %v3825
  %v5078 = vpop.permute.xlu0 %5077
  %5081 = vset.pattern.permute.xlu0 0
  %5082 = vperm.xlu0 %5081, %v3826
  %v5083 = vpop.permute.xlu0 %5082
  %5086 = vset.pattern.permute.xlu0 0
  %5087 = vperm.xlu0 %5086, %v3827
  %v5088 = vpop.permute.xlu0 %5087
  %5091 = vset.pattern.permute.xlu0 0
  %5092 = vperm.xlu0 %5091, %v3828
  %v5093 = vpop.permute.xlu0 %5092
  %5096 = vset.pattern.permute.xlu0 0
  %5097 = vperm.xlu0 %5096, %v3829
  %v5098 = vpop.permute.xlu0 %5097
  %5101 = vset.pattern.permute.xlu0 0
  %5102 = vperm.xlu0 %5101, %v3830
  %v5103 = vpop.permute.xlu0 %5102
  %5106 = vset.pattern.permute.xlu0 0
  %5107 = vperm.xlu0 %5106, %v3831
  %v5108 = vpop.permute.xlu0 %5107
  %5111 = vset.pattern.permute.xlu0 0
  %5112 = vperm.xlu0 %5111, %v3832
  %v5113 = vpop.permute.xlu0 %5112
  %5116 = vset.pattern.permute.xlu0 0
  %5117 = vperm.xlu0 %5116, %v3833
  %v5118 = vpop.permute.xlu0 %5117
  %5121 = vset.pattern.permute.xlu0 0
  %5122 = vperm.xlu0 %5121, %v3834
  %v5123 = vpop.permute.xlu0 %5122
  %5126 = vset.pattern.permute.xlu0 0
  %5127 = vperm.xlu0 %5126, %v3835
  %v5128 = vpop.permute.xlu0 %5127
  %5131 = vset.pattern.permute.xlu0 0
  %5132 = vperm.xlu0 %5131, %v3836
  %v5133 = vpop.permute.xlu0 %5132
  %5136 = vset.pattern.permute.xlu0 0
  %5137 = vperm.xlu0 %5136, %v3837
  %v5138 = vpop.permute.xlu0 %5137
  %5141 = vset.pattern.permute.xlu0 0
  %5142 = vperm.xlu0 %5141, %v3838
  %v5143 = vpop.permute.xlu0 %5142
  %5146 = vset.pattern.permute.xlu0 0
  %5147 = vperm.xlu0 %5146, %v3839
  %v5148 = vpop.permute.xlu0 %5147
  %5151 = vset.pattern.permute.xlu0 0
  %5152 = vperm.xlu0 %5151, %v3840
  %v5153 = vpop.permute.xlu0 %5152
  %5156 = vset.pattern.permute.xlu0 0
  %5157 = vperm.xlu0 %5156, %v3841
  %v5158 = vpop.permute.xlu0 %5157
  %5161 = vset.pattern.permute.xlu0 0
  %5162 = vperm.xlu0 %5161, %v3842
  %v5163 = vpop.permute.xlu0 %5162
  %5166 = vset.pattern.permute.xlu0 0
  %5167 = vperm.xlu0 %5166, %v3843
  %v5168 = vpop.permute.xlu0 %5167
  %5171 = vset.pattern.permute.xlu0 0
  %5172 = vperm.xlu0 %5171, %v3844
  %v5173 = vpop.permute.xlu0 %5172
  %5176 = vset.pattern.permute.xlu0 0
  %5177 = vperm.xlu0 %5176, %v3845
  %v5178 = vpop.permute.xlu0 %5177
  %5181 = vset.pattern.permute.xlu0 0
  %5182 = vperm.xlu0 %5181, %v3846
  %v5183 = vpop.permute.xlu0 %5182
  %5186 = vset.pattern.permute.xlu0 0
  %5187 = vperm.xlu0 %5186, %v3847
  %v5188 = vpop.permute.xlu0 %5187
  %5191 = vset.pattern.permute.xlu0 0
  %5192 = vperm.xlu0 %5191, %v3848
  %v5193 = vpop.permute.xlu0 %5192
  %5196 = vset.pattern.permute.xlu0 0
  %5197 = vperm.xlu0 %5196, %v3849
  %v5198 = vpop.permute.xlu0 %5197
  %5201 = vset.pattern.permute.xlu0 0
  %5202 = vperm.xlu0 %5201, %v3850
  %v5203 = vpop.permute.xlu0 %5202
  %5206 = vset.pattern.permute.xlu0 0
  %5207 = vperm.xlu0 %5206, %v3851
  %v5208 = vpop.permute.xlu0 %5207
  %5211 = vset.pattern.permute.xlu0 0
  %5212 = vperm.xlu0 %5211, %v3852
  %v5213 = vpop.permute.xlu0 %5212
  %5216 = vset.pattern.permute.xlu0 0
  %5217 = vperm.xlu0 %5216, %v3853
  %v5218 = vpop.permute.xlu0 %5217
  %5221 = vset.pattern.permute.xlu0 0
  %5222 = vperm.xlu0 %5221, %v3854
  %v5223 = vpop.permute.xlu0 %5222
  %5226 = vset.pattern.permute.xlu0 0
  %5227 = vperm.xlu0 %5226, %v3855
  %v5228 = vpop.permute.xlu0 %5227
  %5231 = vset.pattern.permute.xlu0 0
  %5232 = vperm.xlu0 %5231, %v3856
  %v5233 = vpop.permute.xlu0 %5232
  %5236 = vset.pattern.permute.xlu0 0
  %5237 = vperm.xlu0 %5236, %v3857
  %v5238 = vpop.permute.xlu0 %5237
  %5241 = vset.pattern.permute.xlu0 0
  %5242 = vperm.xlu0 %5241, %v3858
  %v5243 = vpop.permute.xlu0 %5242
  %5246 = vset.pattern.permute.xlu0 0
  %5247 = vperm.xlu0 %5246, %v3859
  %v5248 = vpop.permute.xlu0 %5247
  %5251 = vset.pattern.permute.xlu0 0
  %5252 = vperm.xlu0 %5251, %v3860
  %v5253 = vpop.permute.xlu0 %5252
  %5256 = vset.pattern.permute.xlu0 0
  %5257 = vperm.xlu0 %5256, %v3861
  %v5258 = vpop.permute.xlu0 %5257
  %5261 = vset.pattern.permute.xlu0 0
  %5262 = vperm.xlu0 %5261, %v3862
  %v5263 = vpop.permute.xlu0 %5262
  %5266 = vset.pattern.permute.xlu0 0
  %5267 = vperm.xlu0 %5266, %v3863
  %v5268 = vpop.permute.xlu0 %5267
  %5271 = vset.pattern.permute.xlu0 0
  %5272 = vperm.xlu0 %5271, %v3864
  %v5273 = vpop.permute.xlu0 %5272
  %5276 = vset.pattern.permute.xlu0 0
  %5277 = vperm.xlu0 %5276, %v3865
  %v5278 = vpop.permute.xlu0 %5277
  %5281 = vset.pattern.permute.xlu0 0
  %5282 = vperm.xlu0 %5281, %v3866
  %v5283 = vpop.permute.xlu0 %5282
  %5286 = vset.pattern.permute.xlu0 0
  %5287 = vperm.xlu0 %5286, %v3867
  %v5288 = vpop.permute.xlu0 %5287
  %5291 = vset.pattern.permute.xlu0 0
  %5292 = vperm.xlu0 %5291, %v3868
  %v5293 = vpop.permute.xlu0 %5292
  %5296 = vset.pattern.permute.xlu0 0
  %5297 = vperm.xlu0 %5296, %v3869
  %v5298 = vpop.permute.xlu0 %5297
  %5301 = vset.pattern.permute.xlu0 0
  %5302 = vperm.xlu0 %5301, %v3870
  %v5303 = vpop.permute.xlu0 %5302
  %5306 = vset.pattern.permute.xlu0 0
  %5307 = vperm.xlu0 %5306, %v3871
  %v5308 = vpop.permute.xlu0 %5307
  %5311 = vset.pattern.permute.xlu0 0
  %5312 = vperm.xlu0 %5311, %v3872
  %v5313 = vpop.permute.xlu0 %5312
  %5316 = vset.pattern.permute.xlu0 0
  %5317 = vperm.xlu0 %5316, %v3873
  %v5318 = vpop.permute.xlu0 %5317
  %5321 = vset.pattern.permute.xlu0 0
  %5322 = vperm.xlu0 %5321, %v3874
  %v5323 = vpop.permute.xlu0 %5322
  %5326 = vset.pattern.permute.xlu0 0
  %5327 = vperm.xlu0 %5326, %v3875
  %v5328 = vpop.permute.xlu0 %5327
  %5331 = vset.pattern.permute.xlu0 0
  %5332 = vperm.xlu0 %5331, %v3876
  %v5333 = vpop.permute.xlu0 %5332
  %5336 = vset.pattern.permute.xlu0 0
  %5337 = vperm.xlu0 %5336, %v3877
  %v5338 = vpop.permute.xlu0 %5337
  %5341 = vset.pattern.permute.xlu0 0
  %5342 = vperm.xlu0 %5341, %v3878
  %v5343 = vpop.permute.xlu0 %5342
  %5346 = vset.pattern.permute.xlu0 0
  %5347 = vperm.xlu0 %5346, %v3879
  %v5348 = vpop.permute.xlu0 %5347
  %5351 = vset.pattern.permute.xlu0 0
  %5352 = vperm.xlu0 %5351, %v3880
  %v5353 = vpop.permute.xlu0 %5352
  %5356 = vset.pattern.permute.xlu0 0
  %5357 = vperm.xlu0 %5356, %v3881
  %v5358 = vpop.permute.xlu0 %5357
  %5361 = vset.pattern.permute.xlu0 0
  %5362 = vperm.xlu0 %5361, %v3882
  %v5363 = vpop.permute.xlu0 %5362
  %5366 = vset.pattern.permute.xlu0 0
  %5367 = vperm.xlu0 %5366, %v3883
  %v5368 = vpop.permute.xlu0 %5367
  %5371 = vset.pattern.permute.xlu0 0
  %5372 = vperm.xlu0 %5371, %v3884
  %v5373 = vpop.permute.xlu0 %5372
  %5376 = vset.pattern.permute.xlu0 0
  %5377 = vperm.xlu0 %5376, %v3885
  %v5378 = vpop.permute.xlu0 %5377
  %5381 = vset.pattern.permute.xlu0 0
  %5382 = vperm.xlu0 %5381, %v3886
  %v5383 = vpop.permute.xlu0 %5382
  %5386 = vset.pattern.permute.xlu0 0
  %5387 = vperm.xlu0 %5386, %v3887
  %v5388 = vpop.permute.xlu0 %5387
  %5391 = vset.pattern.permute.xlu0 0
  %5392 = vperm.xlu0 %5391, %v3888
  %v5393 = vpop.permute.xlu0 %5392
  %5396 = vset.pattern.permute.xlu0 0
  %5397 = vperm.xlu0 %5396, %v3889
  %v5398 = vpop.permute.xlu0 %5397
  %5401 = vset.pattern.permute.xlu0 0
  %5402 = vperm.xlu0 %5401, %v3890
  %v5403 = vpop.permute.xlu0 %5402
  %5406 = vset.pattern.permute.xlu0 0
  %5407 = vperm.xlu0 %5406, %v3891
  %v5408 = vpop.permute.xlu0 %5407
  %5411 = vset.pattern.permute.xlu0 0
  %5412 = vperm.xlu0 %5411, %v3892
  %v5413 = vpop.permute.xlu0 %5412
  %5416 = vset.pattern.permute.xlu0 0
  %5417 = vperm.xlu0 %5416, %v3893
  %v5418 = vpop.permute.xlu0 %5417
  %5421 = vset.pattern.permute.xlu0 0
  %5422 = vperm.xlu0 %5421, %v3894
  %v5423 = vpop.permute.xlu0 %5422
  %v5425 = vadd.f32 %v4345, %v4978
  %v5426 = vadd.f32 %v4346, %v4978
  %v5427 = vadd.f32 %v4347, %v4978
  %v5428 = vadd.f32 %v4348, %v4978
  %v5429 = vadd.f32 %v4349, %v4978
  %v5430 = vadd.f32 %v4350, %v4978
  %v5431 = vadd.f32 %v4351, %v4978
  %v5432 = vadd.f32 %v4352, %v4983
  %v5433 = vadd.f32 %v4353, %v4983
  %v5434 = vadd.f32 %v4354, %v4983
  %v5435 = vadd.f32 %v4355, %v4983
  %v5436 = vadd.f32 %v4356, %v4983
  %v5437 = vadd.f32 %v4357, %v4983
  %v5438 = vadd.f32 %v4358, %v4983
  %v5439 = vadd.f32 %v4359, %v4988
  %v5440 = vadd.f32 %v4360, %v4988
  %v5441 = vadd.f32 %v4361, %v4988
  %v5442 = vadd.f32 %v4362, %v4988
  %v5443 = vadd.f32 %v4363, %v4988
  %v5444 = vadd.f32 %v4364, %v4988
  %v5445 = vadd.f32 %v4365, %v4988
  %v5446 = vadd.f32 %v4366, %v4993
  %v5447 = vadd.f32 %v4367, %v4993
  %v5448 = vadd.f32 %v4368, %v4993
  %v5449 = vadd.f32 %v4369, %v4993
  %v5450 = vadd.f32 %v4370, %v4993
  %v5451 = vadd.f32 %v4371, %v4993
  %v5452 = vadd.f32 %v4372, %v4993
  %v5453 = vadd.f32 %v4373, %v4998
  %v5454 = vadd.f32 %v4374, %v4998
  %v5455 = vadd.f32 %v4375, %v4998
  %v5456 = vadd.f32 %v4376, %v4998
  %v5457 = vadd.f32 %v4377, %v4998
  %v5458 = vadd.f32 %v4378, %v4998
  %v5459 = vadd.f32 %v4379, %v4998
  %v5460 = vadd.f32 %v4380, %v5003
  %v5461 = vadd.f32 %v4381, %v5003
  %v5462 = vadd.f32 %v4382, %v5003
  %v5463 = vadd.f32 %v4383, %v5003
  %v5464 = vadd.f32 %v4384, %v5003
  %v5465 = vadd.f32 %v4385, %v5003
  %v5466 = vadd.f32 %v4386, %v5003
  %v5467 = vadd.f32 %v4387, %v5008
  %v5468 = vadd.f32 %v4388, %v5008
  %v5469 = vadd.f32 %v4389, %v5008
  %v5470 = vadd.f32 %v4390, %v5008
  %v5471 = vadd.f32 %v4391, %v5008
  %v5472 = vadd.f32 %v4392, %v5008
  %v5473 = vadd.f32 %v4393, %v5008
  %v5474 = vadd.f32 %v4394, %v5013
  %v5475 = vadd.f32 %v4395, %v5013
  %v5476 = vadd.f32 %v4396, %v5013
  %v5477 = vadd.f32 %v4397, %v5013
  %v5478 = vadd.f32 %v4398, %v5013
  %v5479 = vadd.f32 %v4399, %v5013
  %v5480 = vadd.f32 %v4400, %v5013
  %v5481 = vadd.f32 %v4401, %v5018
  %v5482 = vadd.f32 %v4402, %v5018
  %v5483 = vadd.f32 %v4403, %v5018
  %v5484 = vadd.f32 %v4404, %v5018
  %v5485 = vadd.f32 %v4405, %v5018
  %v5486 = vadd.f32 %v4406, %v5018
  %v5487 = vadd.f32 %v4407, %v5018
  %v5488 = vadd.f32 %v4408, %v5023
  %v5489 = vadd.f32 %v4409, %v5023
  %v5490 = vadd.f32 %v4410, %v5023
  %v5491 = vadd.f32 %v4411, %v5023
  %v5492 = vadd.f32 %v4412, %v5023
  %v5493 = vadd.f32 %v4413, %v5023
  %v5494 = vadd.f32 %v4414, %v5023
  %v5495 = vadd.f32 %v4415, %v5028
  %v5496 = vadd.f32 %v4416, %v5028
  %v5497 = vadd.f32 %v4417, %v5028
  %v5498 = vadd.f32 %v4418, %v5028
  %v5499 = vadd.f32 %v4419, %v5028
  %v5500 = vadd.f32 %v4420, %v5028
  %v5501 = vadd.f32 %v4421, %v5028
  %v5502 = vadd.f32 %v4422, %v5033
  %v5503 = vadd.f32 %v4423, %v5033
  %v5504 = vadd.f32 %v4424, %v5033
  %v5505 = vadd.f32 %v4425, %v5033
  %v5506 = vadd.f32 %v4426, %v5033
  %v5507 = vadd.f32 %v4427, %v5033
  %v5508 = vadd.f32 %v4428, %v5033
  %v5509 = vadd.f32 %v4429, %v5038
  %v5510 = vadd.f32 %v4430, %v5038
  %v5511 = vadd.f32 %v4431, %v5038
  %v5512 = vadd.f32 %v4432, %v5038
  %v5513 = vadd.f32 %v4433, %v5038
  %v5514 = vadd.f32 %v4434, %v5038
  %v5515 = vadd.f32 %v4435, %v5038
  %v5516 = vadd.f32 %v4436, %v5043
  %v5517 = vadd.f32 %v4437, %v5043
  %v5518 = vadd.f32 %v4438, %v5043
  %v5519 = vadd.f32 %v4439, %v5043
  %v5520 = vadd.f32 %v4440, %v5043
  %v5521 = vadd.f32 %v4441, %v5043
  %v5522 = vadd.f32 %v4442, %v5043
  %v5523 = vadd.f32 %v4443, %v5048
  %v5524 = vadd.f32 %v4444, %v5048
  %v5525 = vadd.f32 %v4445, %v5048
  %v5526 = vadd.f32 %v4446, %v5048
  %v5527 = vadd.f32 %v4447, %v5048
  %v5528 = vadd.f32 %v4448, %v5048
  %v5529 = vadd.f32 %v4449, %v5048
  %v5530 = vadd.f32 %v4450, %v5053
  %v5531 = vadd.f32 %v4451, %v5053
  %v5532 = vadd.f32 %v4452, %v5053
  %v5533 = vadd.f32 %v4453, %v5053
  %v5534 = vadd.f32 %v4454, %v5053
  %v5535 = vadd.f32 %v4455, %v5053
  %v5536 = vadd.f32 %v4456, %v5053
  %v5537 = vadd.f32 %v4457, %v5058
  %v5538 = vadd.f32 %v4458, %v5058
  %v5539 = vadd.f32 %v4459, %v5058
  %v5540 = vadd.f32 %v4460, %v5058
  %v5541 = vadd.f32 %v4461, %v5058
  %v5542 = vadd.f32 %v4462, %v5058
  %v5543 = vadd.f32 %v4463, %v5058
  %v5544 = vadd.f32 %v4464, %v5063
  %v5545 = vadd.f32 %v4465, %v5063
  %v5546 = vadd.f32 %v4466, %v5063
  %v5547 = vadd.f32 %v4467, %v5063
  %v5548 = vadd.f32 %v4468, %v5063
  %v5549 = vadd.f32 %v4469, %v5063
  %v5550 = vadd.f32 %v4470, %v5063
  %v5551 = vadd.f32 %v4471, %v5068
  %v5552 = vadd.f32 %v4472, %v5068
  %v5553 = vadd.f32 %v4473, %v5068
  %v5554 = vadd.f32 %v4474, %v5068
  %v5555 = vadd.f32 %v4475, %v5068
  %v5556 = vadd.f32 %v4476, %v5068
  %v5557 = vadd.f32 %v4477, %v5068
  %v5558 = vadd.f32 %v4478, %v5073
  %v5559 = vadd.f32 %v4479, %v5073
  %v5560 = vadd.f32 %v4480, %v5073
  %v5561 = vadd.f32 %v4481, %v5073
  %v5562 = vadd.f32 %v4482, %v5073
  %v5563 = vadd.f32 %v4483, %v5073
  %v5564 = vadd.f32 %v4484, %v5073
  %v5565 = vadd.f32 %v4485, %v5078
  %v5566 = vadd.f32 %v4486, %v5078
  %v5567 = vadd.f32 %v4487, %v5078
  %v5568 = vadd.f32 %v4488, %v5078
  %v5569 = vadd.f32 %v4489, %v5078
  %v5570 = vadd.f32 %v4490, %v5078
  %v5571 = vadd.f32 %v4491, %v5078
  %v5572 = vadd.f32 %v4492, %v5083
  %v5573 = vadd.f32 %v4493, %v5083
  %v5574 = vadd.f32 %v4494, %v5083
  %v5575 = vadd.f32 %v4495, %v5083
  %v5576 = vadd.f32 %v4496, %v5083
  %v5577 = vadd.f32 %v4497, %v5083
  %v5578 = vadd.f32 %v4498, %v5083
  %v5579 = vadd.f32 %v4499, %v5088
  %v5580 = vadd.f32 %v4500, %v5088
  %v5581 = vadd.f32 %v4501, %v5088
  %v5582 = vadd.f32 %v4502, %v5088
  %v5583 = vadd.f32 %v4503, %v5088
  %v5584 = vadd.f32 %v4504, %v5088
  %v5585 = vadd.f32 %v4505, %v5088
  %v5586 = vadd.f32 %v4506, %v5093
  %v5587 = vadd.f32 %v4507, %v5093
  %v5588 = vadd.f32 %v4508, %v5093
  %v5589 = vadd.f32 %v4509, %v5093
  %v5590 = vadd.f32 %v4510, %v5093
  %v5591 = vadd.f32 %v4511, %v5093
  %v5592 = vadd.f32 %v4512, %v5093
  %v5593 = vadd.f32 %v4513, %v5098
  %v5594 = vadd.f32 %v4514, %v5098
  %v5595 = vadd.f32 %v4515, %v5098
  %v5596 = vadd.f32 %v4516, %v5098
  %v5597 = vadd.f32 %v4517, %v5098
  %v5598 = vadd.f32 %v4518, %v5098
  %v5599 = vadd.f32 %v4519, %v5098
  %v5600 = vadd.f32 %v4520, %v5103
  %v5601 = vadd.f32 %v4521, %v5103
  %v5602 = vadd.f32 %v4522, %v5103
  %v5603 = vadd.f32 %v4523, %v5103
  %v5604 = vadd.f32 %v4524, %v5103
  %v5605 = vadd.f32 %v4525, %v5103
  %v5606 = vadd.f32 %v4526, %v5103
  %v5607 = vadd.f32 %v4527, %v5108
  %v5608 = vadd.f32 %v4528, %v5108
  %v5609 = vadd.f32 %v4529, %v5108
  %v5610 = vadd.f32 %v4530, %v5108
  %v5611 = vadd.f32 %v4531, %v5108
  %v5612 = vadd.f32 %v4532, %v5108
  %v5613 = vadd.f32 %v4533, %v5108
  %v5614 = vadd.f32 %v4534, %v5113
  %v5615 = vadd.f32 %v4535, %v5113
  %v5616 = vadd.f32 %v4536, %v5113
  %v5617 = vadd.f32 %v4537, %v5113
  %v5618 = vadd.f32 %v4538, %v5113
  %v5619 = vadd.f32 %v4539, %v5113
  %v5620 = vadd.f32 %v4540, %v5113
  %v5621 = vadd.f32 %v4541, %v5118
  %v5622 = vadd.f32 %v4542, %v5118
  %v5623 = vadd.f32 %v4543, %v5118
  %v5624 = vadd.f32 %v4544, %v5118
  %v5625 = vadd.f32 %v4545, %v5118
  %v5626 = vadd.f32 %v4546, %v5118
  %v5627 = vadd.f32 %v4547, %v5118
  %v5628 = vadd.f32 %v4548, %v5123
  %v5629 = vadd.f32 %v4549, %v5123
  %v5630 = vadd.f32 %v4550, %v5123
  %v5631 = vadd.f32 %v4551, %v5123
  %v5632 = vadd.f32 %v4552, %v5123
  %v5633 = vadd.f32 %v4553, %v5123
  %v5634 = vadd.f32 %v4554, %v5123
  %v5635 = vadd.f32 %v4555, %v5128
  %v5636 = vadd.f32 %v4556, %v5128
  %v5637 = vadd.f32 %v4557, %v5128
  %v5638 = vadd.f32 %v4558, %v5128
  %v5639 = vadd.f32 %v4559, %v5128
  %v5640 = vadd.f32 %v4560, %v5128
  %v5641 = vadd.f32 %v4561, %v5128
  %v5642 = vadd.f32 %v4562, %v5133
  %v5643 = vadd.f32 %v4563, %v5133
  %v5644 = vadd.f32 %v4564, %v5133
  %v5645 = vadd.f32 %v4565, %v5133
  %v5646 = vadd.f32 %v4566, %v5133
  %v5647 = vadd.f32 %v4567, %v5133
  %v5648 = vadd.f32 %v4568, %v5133
  %v5649 = vadd.f32 %v4569, %v5138
  %v5650 = vadd.f32 %v4570, %v5138
  %v5651 = vadd.f32 %v4571, %v5138
  %v5652 = vadd.f32 %v4572, %v5138
  %v5653 = vadd.f32 %v4573, %v5138
  %v5654 = vadd.f32 %v4574, %v5138
  %v5655 = vadd.f32 %v4575, %v5138
  %v5656 = vadd.f32 %v4576, %v5143
  %v5657 = vadd.f32 %v4577, %v5143
  %v5658 = vadd.f32 %v4578, %v5143
  %v5659 = vadd.f32 %v4579, %v5143
  %v5660 = vadd.f32 %v4580, %v5143
  %v5661 = vadd.f32 %v4581, %v5143
  %v5662 = vadd.f32 %v4582, %v5143
  %v5663 = vadd.f32 %v4583, %v5148
  %v5664 = vadd.f32 %v4584, %v5148
  %v5665 = vadd.f32 %v4585, %v5148
  %v5666 = vadd.f32 %v4586, %v5148
  %v5667 = vadd.f32 %v4587, %v5148
  %v5668 = vadd.f32 %v4588, %v5148
  %v5669 = vadd.f32 %v4589, %v5148
  %v5670 = vadd.f32 %v4590, %v5153
  %v5671 = vadd.f32 %v4591, %v5153
  %v5672 = vadd.f32 %v4592, %v5153
  %v5673 = vadd.f32 %v4593, %v5153
  %v5674 = vadd.f32 %v4594, %v5153
  %v5675 = vadd.f32 %v4595, %v5153
  %v5676 = vadd.f32 %v4596, %v5153
  %v5677 = vadd.f32 %v4597, %v5158
  %v5678 = vadd.f32 %v4598, %v5158
  %v5679 = vadd.f32 %v4599, %v5158
  %v5680 = vadd.f32 %v4600, %v5158
  %v5681 = vadd.f32 %v4601, %v5158
  %v5682 = vadd.f32 %v4602, %v5158
  %v5683 = vadd.f32 %v4603, %v5158
  %v5684 = vadd.f32 %v4604, %v5163
  %v5685 = vadd.f32 %v4605, %v5163
  %v5686 = vadd.f32 %v4606, %v5163
  %v5687 = vadd.f32 %v4607, %v5163
  %v5688 = vadd.f32 %v4608, %v5163
  %v5689 = vadd.f32 %v4609, %v5163
  %v5690 = vadd.f32 %v4610, %v5163
  %v5691 = vadd.f32 %v4611, %v5168
  %v5692 = vadd.f32 %v4612, %v5168
  %v5693 = vadd.f32 %v4613, %v5168
  %v5694 = vadd.f32 %v4614, %v5168
  %v5695 = vadd.f32 %v4615, %v5168
  %v5696 = vadd.f32 %v4616, %v5168
  %v5697 = vadd.f32 %v4617, %v5168
  %v5698 = vadd.f32 %v4618, %v5173
  %v5699 = vadd.f32 %v4619, %v5173
  %v5700 = vadd.f32 %v4620, %v5173
  %v5701 = vadd.f32 %v4621, %v5173
  %v5702 = vadd.f32 %v4622, %v5173
  %v5703 = vadd.f32 %v4623, %v5173
  %v5704 = vadd.f32 %v4624, %v5173
  %v5705 = vadd.f32 %v4625, %v5178
  %v5706 = vadd.f32 %v4626, %v5178
  %v5707 = vadd.f32 %v4627, %v5178
  %v5708 = vadd.f32 %v4628, %v5178
  %v5709 = vadd.f32 %v4629, %v5178
  %v5710 = vadd.f32 %v4630, %v5178
  %v5711 = vadd.f32 %v4631, %v5178
  %v5712 = vadd.f32 %v4632, %v5183
  %v5713 = vadd.f32 %v4633, %v5183
  %v5714 = vadd.f32 %v4634, %v5183
  %v5715 = vadd.f32 %v4635, %v5183
  %v5716 = vadd.f32 %v4636, %v5183
  %v5717 = vadd.f32 %v4637, %v5183
  %v5718 = vadd.f32 %v4638, %v5183
  %v5719 = vadd.f32 %v4639, %v5188
  %v5720 = vadd.f32 %v4640, %v5188
  %v5721 = vadd.f32 %v4641, %v5188
  %v5722 = vadd.f32 %v4642, %v5188
  %v5723 = vadd.f32 %v4643, %v5188
  %v5724 = vadd.f32 %v4644, %v5188
  %v5725 = vadd.f32 %v4645, %v5188
  %v5726 = vadd.f32 %v4646, %v5193
  %v5727 = vadd.f32 %v4647, %v5193
  %v5728 = vadd.f32 %v4648, %v5193
  %v5729 = vadd.f32 %v4649, %v5193
  %v5730 = vadd.f32 %v4650, %v5193
  %v5731 = vadd.f32 %v4651, %v5193
  %v5732 = vadd.f32 %v4652, %v5193
  %v5733 = vadd.f32 %v4653, %v5198
  %v5734 = vadd.f32 %v4654, %v5198
  %v5735 = vadd.f32 %v4655, %v5198
  %v5736 = vadd.f32 %v4656, %v5198
  %v5737 = vadd.f32 %v4657, %v5198
  %v5738 = vadd.f32 %v4658, %v5198
  %v5739 = vadd.f32 %v4659, %v5198
  %v5740 = vadd.f32 %v4660, %v5203
  %v5741 = vadd.f32 %v4661, %v5203
  %v5742 = vadd.f32 %v4662, %v5203
  %v5743 = vadd.f32 %v4663, %v5203
  %v5744 = vadd.f32 %v4664, %v5203
  %v5745 = vadd.f32 %v4665, %v5203
  %v5746 = vadd.f32 %v4666, %v5203
  %v5747 = vadd.f32 %v4667, %v5208
  %v5748 = vadd.f32 %v4668, %v5208
  %v5749 = vadd.f32 %v4669, %v5208
  %v5750 = vadd.f32 %v4670, %v5208
  %v5751 = vadd.f32 %v4671, %v5208
  %v5752 = vadd.f32 %v4672, %v5208
  %v5753 = vadd.f32 %v4673, %v5208
  %v5754 = vadd.f32 %v4674, %v5213
  %v5755 = vadd.f32 %v4675, %v5213
  %v5756 = vadd.f32 %v4676, %v5213
  %v5757 = vadd.f32 %v4677, %v5213
  %v5758 = vadd.f32 %v4678, %v5213
  %v5759 = vadd.f32 %v4679, %v5213
  %v5760 = vadd.f32 %v4680, %v5213
  %v5761 = vadd.f32 %v4681, %v5218
  %v5762 = vadd.f32 %v4682, %v5218
  %v5763 = vadd.f32 %v4683, %v5218
  %v5764 = vadd.f32 %v4684, %v5218
  %v5765 = vadd.f32 %v4685, %v5218
  %v5766 = vadd.f32 %v4686, %v5218
  %v5767 = vadd.f32 %v4687, %v5218
  %v5768 = vadd.f32 %v4688, %v5223
  %v5769 = vadd.f32 %v4689, %v5223
  %v5770 = vadd.f32 %v4690, %v5223
  %v5771 = vadd.f32 %v4691, %v5223
  %v5772 = vadd.f32 %v4692, %v5223
  %v5773 = vadd.f32 %v4693, %v5223
  %v5774 = vadd.f32 %v4694, %v5223
  %v5775 = vadd.f32 %v4695, %v5228
  %v5776 = vadd.f32 %v4696, %v5228
  %v5777 = vadd.f32 %v4697, %v5228
  %v5778 = vadd.f32 %v4698, %v5228
  %v5779 = vadd.f32 %v4699, %v5228
  %v5780 = vadd.f32 %v4700, %v5228
  %v5781 = vadd.f32 %v4701, %v5228
  %v5782 = vadd.f32 %v4702, %v5233
  %v5783 = vadd.f32 %v4703, %v5233
  %v5784 = vadd.f32 %v4704, %v5233
  %v5785 = vadd.f32 %v4705, %v5233
  %v5786 = vadd.f32 %v4706, %v5233
  %v5787 = vadd.f32 %v4707, %v5233
  %v5788 = vadd.f32 %v4708, %v5233
  %v5789 = vadd.f32 %v4709, %v5238
  %v5790 = vadd.f32 %v4710, %v5238
  %v5791 = vadd.f32 %v4711, %v5238
  %v5792 = vadd.f32 %v4712, %v5238
  %v5793 = vadd.f32 %v4713, %v5238
  %v5794 = vadd.f32 %v4714, %v5238
  %v5795 = vadd.f32 %v4715, %v5238
  %v5796 = vadd.f32 %v4716, %v5243
  %v5797 = vadd.f32 %v4717, %v5243
  %v5798 = vadd.f32 %v4718, %v5243
  %v5799 = vadd.f32 %v4719, %v5243
  %v5800 = vadd.f32 %v4720, %v5243
  %v5801 = vadd.f32 %v4721, %v5243
  %v5802 = vadd.f32 %v4722, %v5243
  %v5803 = vadd.f32 %v4723, %v5248
  %v5804 = vadd.f32 %v4724, %v5248
  %v5805 = vadd.f32 %v4725, %v5248
  %v5806 = vadd.f32 %v4726, %v5248
  %v5807 = vadd.f32 %v4727, %v5248
  %v5808 = vadd.f32 %v4728, %v5248
  %v5809 = vadd.f32 %v4729, %v5248
  %v5810 = vadd.f32 %v4730, %v5253
  %v5811 = vadd.f32 %v4731, %v5253
  %v5812 = vadd.f32 %v4732, %v5253
  %v5813 = vadd.f32 %v4733, %v5253
  %v5814 = vadd.f32 %v4734, %v5253
  %v5815 = vadd.f32 %v4735, %v5253
  %v5816 = vadd.f32 %v4736, %v5253
  %v5817 = vadd.f32 %v4737, %v5258
  %v5818 = vadd.f32 %v4738, %v5258
  %v5819 = vadd.f32 %v4739, %v5258
  %v5820 = vadd.f32 %v4740, %v5258
  %v5821 = vadd.f32 %v4741, %v5258
  %v5822 = vadd.f32 %v4742, %v5258
  %v5823 = vadd.f32 %v4743, %v5258
  %v5824 = vadd.f32 %v4744, %v5263
  %v5825 = vadd.f32 %v4745, %v5263
  %v5826 = vadd.f32 %v4746, %v5263
  %v5827 = vadd.f32 %v4747, %v5263
  %v5828 = vadd.f32 %v4748, %v5263
  %v5829 = vadd.f32 %v4749, %v5263
  %v5830 = vadd.f32 %v4750, %v5263
  %v5831 = vadd.f32 %v4751, %v5268
  %v5832 = vadd.f32 %v4752, %v5268
  %v5833 = vadd.f32 %v4753, %v5268
  %v5834 = vadd.f32 %v4754, %v5268
  %v5835 = vadd.f32 %v4755, %v5268
  %v5836 = vadd.f32 %v4756, %v5268
  %v5837 = vadd.f32 %v4757, %v5268
  %v5838 = vadd.f32 %v4758, %v5273
  %v5839 = vadd.f32 %v4759, %v5273
  %v5840 = vadd.f32 %v4760, %v5273
  %v5841 = vadd.f32 %v4761, %v5273
  %v5842 = vadd.f32 %v4762, %v5273
  %v5843 = vadd.f32 %v4763, %v5273
  %v5844 = vadd.f32 %v4764, %v5273
  %v5845 = vadd.f32 %v4765, %v5278
  %v5846 = vadd.f32 %v4766, %v5278
  %v5847 = vadd.f32 %v4767, %v5278
  %v5848 = vadd.f32 %v4768, %v5278
  %v5849 = vadd.f32 %v4769, %v5278
  %v5850 = vadd.f32 %v4770, %v5278
  %v5851 = vadd.f32 %v4771, %v5278
  %v5852 = vadd.f32 %v4772, %v5283
  %v5853 = vadd.f32 %v4773, %v5283
  %v5854 = vadd.f32 %v4774, %v5283
  %v5855 = vadd.f32 %v4775, %v5283
  %v5856 = vadd.f32 %v4776, %v5283
  %v5857 = vadd.f32 %v4777, %v5283
  %v5858 = vadd.f32 %v4778, %v5283
  %v5859 = vadd.f32 %v4779, %v5288
  %v5860 = vadd.f32 %v4780, %v5288
  %v5861 = vadd.f32 %v4781, %v5288
  %v5862 = vadd.f32 %v4782, %v5288
  %v5863 = vadd.f32 %v4783, %v5288
  %v5864 = vadd.f32 %v4784, %v5288
  %v5865 = vadd.f32 %v4785, %v5288
  %v5866 = vadd.f32 %v4786, %v5293
  %v5867 = vadd.f32 %v4787, %v5293
  %v5868 = vadd.f32 %v4788, %v5293
  %v5869 = vadd.f32 %v4789, %v5293
  %v5870 = vadd.f32 %v4790, %v5293
  %v5871 = vadd.f32 %v4791, %v5293
  %v5872 = vadd.f32 %v4792, %v5293
  %v5873 = vadd.f32 %v4793, %v5298
  %v5874 = vadd.f32 %v4794, %v5298
  %v5875 = vadd.f32 %v4795, %v5298
  %v5876 = vadd.f32 %v4796, %v5298
  %v5877 = vadd.f32 %v4797, %v5298
  %v5878 = vadd.f32 %v4798, %v5298
  %v5879 = vadd.f32 %v4799, %v5298
  %v5880 = vadd.f32 %v4800, %v5303
  %v5881 = vadd.f32 %v4801, %v5303
  %v5882 = vadd.f32 %v4802, %v5303
  %v5883 = vadd.f32 %v4803, %v5303
  %v5884 = vadd.f32 %v4804, %v5303
  %v5885 = vadd.f32 %v4805, %v5303
  %v5886 = vadd.f32 %v4806, %v5303
  %v5887 = vadd.f32 %v4807, %v5308
  %v5888 = vadd.f32 %v4808, %v5308
  %v5889 = vadd.f32 %v4809, %v5308
  %v5890 = vadd.f32 %v4810, %v5308
  %v5891 = vadd.f32 %v4811, %v5308
  %v5892 = vadd.f32 %v4812, %v5308
  %v5893 = vadd.f32 %v4813, %v5308
  %v5894 = vadd.f32 %v4814, %v5313
  %v5895 = vadd.f32 %v4815, %v5313
  %v5896 = vadd.f32 %v4816, %v5313
  %v5897 = vadd.f32 %v4817, %v5313
  %v5898 = vadd.f32 %v4818, %v5313
  %v5899 = vadd.f32 %v4819, %v5313
  %v5900 = vadd.f32 %v4820, %v5313
  %v5901 = vadd.f32 %v4821, %v5318
  %v5902 = vadd.f32 %v4822, %v5318
  %v5903 = vadd.f32 %v4823, %v5318
  %v5904 = vadd.f32 %v4824, %v5318
  %v5905 = vadd.f32 %v4825, %v5318
  %v5906 = vadd.f32 %v4826, %v5318
  %v5907 = vadd.f32 %v4827, %v5318
  %v5908 = vadd.f32 %v4828, %v5323
  %v5909 = vadd.f32 %v4829, %v5323
  %v5910 = vadd.f32 %v4830, %v5323
  %v5911 = vadd.f32 %v4831, %v5323
  %v5912 = vadd.f32 %v4832, %v5323
  %v5913 = vadd.f32 %v4833, %v5323
  %v5914 = vadd.f32 %v4834, %v5323
  %v5915 = vadd.f32 %v4835, %v5328
  %v5916 = vadd.f32 %v4836, %v5328
  %v5917 = vadd.f32 %v4837, %v5328
  %v5918 = vadd.f32 %v4838, %v5328
  %v5919 = vadd.f32 %v4839, %v5328
  %v5920 = vadd.f32 %v4840, %v5328
  %v5921 = vadd.f32 %v4841, %v5328
  %v5922 = vadd.f32 %v4842, %v5333
  %v5923 = vadd.f32 %v4843, %v5333
  %v5924 = vadd.f32 %v4844, %v5333
  %v5925 = vadd.f32 %v4845, %v5333
  %v5926 = vadd.f32 %v4846, %v5333
  %v5927 = vadd.f32 %v4847, %v5333
  %v5928 = vadd.f32 %v4848, %v5333
  %v5929 = vadd.f32 %v4849, %v5338
  %v5930 = vadd.f32 %v4850, %v5338
  %v5931 = vadd.f32 %v4851, %v5338
  %v5932 = vadd.f32 %v4852, %v5338
  %v5933 = vadd.f32 %v4853, %v5338
  %v5934 = vadd.f32 %v4854, %v5338
  %v5935 = vadd.f32 %v4855, %v5338
  %v5936 = vadd.f32 %v4856, %v5343
  %v5937 = vadd.f32 %v4857, %v5343
  %v5938 = vadd.f32 %v4858, %v5343
  %v5939 = vadd.f32 %v4859, %v5343
  %v5940 = vadd.f32 %v4860, %v5343
  %v5941 = vadd.f32 %v4861, %v5343
  %v5942 = vadd.f32 %v4862, %v5343
  %v5943 = vadd.f32 %v4863, %v5348
  %v5944 = vadd.f32 %v4864, %v5348
  %v5945 = vadd.f32 %v4865, %v5348
  %v5946 = vadd.f32 %v4866, %v5348
  %v5947 = vadd.f32 %v4867, %v5348
  %v5948 = vadd.f32 %v4868, %v5348
  %v5949 = vadd.f32 %v4869, %v5348
  %v5950 = vadd.f32 %v4870, %v5353
  %v5951 = vadd.f32 %v4871, %v5353
  %v5952 = vadd.f32 %v4872, %v5353
  %v5953 = vadd.f32 %v4873, %v5353
  %v5954 = vadd.f32 %v4874, %v5353
  %v5955 = vadd.f32 %v4875, %v5353
  %v5956 = vadd.f32 %v4876, %v5353
  %v5957 = vadd.f32 %v4877, %v5358
  %v5958 = vadd.f32 %v4878, %v5358
  %v5959 = vadd.f32 %v4879, %v5358
  %v5960 = vadd.f32 %v4880, %v5358
  %v5961 = vadd.f32 %v4881, %v5358
  %v5962 = vadd.f32 %v4882, %v5358
  %v5963 = vadd.f32 %v4883, %v5358
  %v5964 = vadd.f32 %v4884, %v5363
  %v5965 = vadd.f32 %v4885, %v5363
  %v5966 = vadd.f32 %v4886, %v5363
  %v5967 = vadd.f32 %v4887, %v5363
  %v5968 = vadd.f32 %v4888, %v5363
  %v5969 = vadd.f32 %v4889, %v5363
  %v5970 = vadd.f32 %v4890, %v5363
  %v5971 = vadd.f32 %v4891, %v5368
  %v5972 = vadd.f32 %v4892, %v5368
  %v5973 = vadd.f32 %v4893, %v5368
  %v5974 = vadd.f32 %v4894, %v5368
  %v5975 = vadd.f32 %v4895, %v5368
  %v5976 = vadd.f32 %v4896, %v5368
  %v5977 = vadd.f32 %v4897, %v5368
  %v5978 = vadd.f32 %v4898, %v5373
  %v5979 = vadd.f32 %v4899, %v5373
  %v5980 = vadd.f32 %v4900, %v5373
  %v5981 = vadd.f32 %v4901, %v5373
  %v5982 = vadd.f32 %v4902, %v5373
  %v5983 = vadd.f32 %v4903, %v5373
  %v5984 = vadd.f32 %v4904, %v5373
  %v5985 = vadd.f32 %v4905, %v5378
  %v5986 = vadd.f32 %v4906, %v5378
  %v5987 = vadd.f32 %v4907, %v5378
  %v5988 = vadd.f32 %v4908, %v5378
  %v5989 = vadd.f32 %v4909, %v5378
  %v5990 = vadd.f32 %v4910, %v5378
  %v5991 = vadd.f32 %v4911, %v5378
  %v5992 = vadd.f32 %v4912, %v5383
  %v5993 = vadd.f32 %v4913, %v5383
  %v5994 = vadd.f32 %v4914, %v5383
  %v5995 = vadd.f32 %v4915, %v5383
  %v5996 = vadd.f32 %v4916, %v5383
  %v5997 = vadd.f32 %v4917, %v5383
  %v5998 = vadd.f32 %v4918, %v5383
  %v5999 = vadd.f32 %v4919, %v5388
  %v6000 = vadd.f32 %v4920, %v5388
  %v6001 = vadd.f32 %v4921, %v5388
  %v6002 = vadd.f32 %v4922, %v5388
  %v6003 = vadd.f32 %v4923, %v5388
  %v6004 = vadd.f32 %v4924, %v5388
  %v6005 = vadd.f32 %v4925, %v5388
  %v6006 = vadd.f32 %v4926, %v5393
  %v6007 = vadd.f32 %v4927, %v5393
  %v6008 = vadd.f32 %v4928, %v5393
  %v6009 = vadd.f32 %v4929, %v5393
  %v6010 = vadd.f32 %v4930, %v5393
  %v6011 = vadd.f32 %v4931, %v5393
  %v6012 = vadd.f32 %v4932, %v5393
  %v6013 = vadd.f32 %v4933, %v5398
  %v6014 = vadd.f32 %v4934, %v5398
  %v6015 = vadd.f32 %v4935, %v5398
  %v6016 = vadd.f32 %v4936, %v5398
  %v6017 = vadd.f32 %v4937, %v5398
  %v6018 = vadd.f32 %v4938, %v5398
  %v6019 = vadd.f32 %v4939, %v5398
  %v6020 = vadd.f32 %v4940, %v5403
  %v6021 = vadd.f32 %v4941, %v5403
  %v6022 = vadd.f32 %v4942, %v5403
  %v6023 = vadd.f32 %v4943, %v5403
  %v6024 = vadd.f32 %v4944, %v5403
  %v6025 = vadd.f32 %v4945, %v5403
  %v6026 = vadd.f32 %v4946, %v5403
  %v6027 = vadd.f32 %v4947, %v5408
  %v6028 = vadd.f32 %v4948, %v5408
  %v6029 = vadd.f32 %v4949, %v5408
  %v6030 = vadd.f32 %v4950, %v5408
  %v6031 = vadd.f32 %v4951, %v5408
  %v6032 = vadd.f32 %v4952, %v5408
  %v6033 = vadd.f32 %v4953, %v5408
  %v6034 = vadd.f32 %v4954, %v5413
  %v6035 = vadd.f32 %v4955, %v5413
  %v6036 = vadd.f32 %v4956, %v5413
  %v6037 = vadd.f32 %v4957, %v5413
  %v6038 = vadd.f32 %v4958, %v5413
  %v6039 = vadd.f32 %v4959, %v5413
  %v6040 = vadd.f32 %v4960, %v5413
  %v6041 = vadd.f32 %v4961, %v5418
  %v6042 = vadd.f32 %v4962, %v5418
  %v6043 = vadd.f32 %v4963, %v5418
  %v6044 = vadd.f32 %v4964, %v5418
  %v6045 = vadd.f32 %v4965, %v5418
  %v6046 = vadd.f32 %v4966, %v5418
  %v6047 = vadd.f32 %v4967, %v5418
  %v6048 = vadd.f32 %v4968, %v5423
  %v6049 = vadd.f32 %v4969, %v5423
  %v6050 = vadd.f32 %v4970, %v5423
  %v6051 = vadd.f32 %v4971, %v5423
  %v6052 = vadd.f32 %v4972, %v5423
  %v6053 = vadd.f32 %v4973, %v5423
  %v6054 = vadd.f32 %v4974, %v5423
  %v6055 = vmax.f32 %v5425, 0.0
  %v6056 = vmax.f32 %v5426, 0.0
  %v6057 = vmax.f32 %v5427, 0.0
  %v6058 = vmax.f32 %v5428, 0.0
  %v6059 = vmax.f32 %v5429, 0.0
  %v6060 = vmax.f32 %v5430, 0.0
  %v6061 = vmax.f32 %v5431, 0.0
  %v6062 = vmax.f32 %v5432, 0.0
  %v6063 = vmax.f32 %v5433, 0.0
  %v6064 = vmax.f32 %v5434, 0.0
  %v6065 = vmax.f32 %v5435, 0.0
  %v6066 = vmax.f32 %v5436, 0.0
  %v6067 = vmax.f32 %v5437, 0.0
  %v6068 = vmax.f32 %v5438, 0.0
  %v6069 = vmax.f32 %v5439, 0.0
  %v6070 = vmax.f32 %v5440, 0.0
  %v6071 = vmax.f32 %v5441, 0.0
  %v6072 = vmax.f32 %v5442, 0.0
  %v6073 = vmax.f32 %v5443, 0.0
  %v6074 = vmax.f32 %v5444, 0.0
  %v6075 = vmax.f32 %v5445, 0.0
  %v6076 = vmax.f32 %v5446, 0.0
  %v6077 = vmax.f32 %v5447, 0.0
  %v6078 = vmax.f32 %v5448, 0.0
  %v6079 = vmax.f32 %v5449, 0.0
  %v6080 = vmax.f32 %v5450, 0.0
  %v6081 = vmax.f32 %v5451, 0.0
  %v6082 = vmax.f32 %v5452, 0.0
  %v6083 = vmax.f32 %v5453, 0.0
  %v6084 = vmax.f32 %v5454, 0.0
  %v6085 = vmax.f32 %v5455, 0.0
  %v6086 = vmax.f32 %v5456, 0.0
  %v6087 = vmax.f32 %v5457, 0.0
  %v6088 = vmax.f32 %v5458, 0.0
  %v6089 = vmax.f32 %v5459, 0.0
  %v6090 = vmax.f32 %v5460, 0.0
  %v6091 = vmax.f32 %v5461, 0.0
  %v6092 = vmax.f32 %v5462, 0.0
  %v6093 = vmax.f32 %v5463, 0.0
  %v6094 = vmax.f32 %v5464, 0.0
  %v6095 = vmax.f32 %v5465, 0.0
  %v6096 = vmax.f32 %v5466, 0.0
  %v6097 = vmax.f32 %v5467, 0.0
  %v6098 = vmax.f32 %v5468, 0.0
  %v6099 = vmax.f32 %v5469, 0.0
  %v6100 = vmax.f32 %v5470, 0.0
  %v6101 = vmax.f32 %v5471, 0.0
  %v6102 = vmax.f32 %v5472, 0.0
  %v6103 = vmax.f32 %v5473, 0.0
  %v6104 = vmax.f32 %v5474, 0.0
  %v6105 = vmax.f32 %v5475, 0.0
  %v6106 = vmax.f32 %v5476, 0.0
  %v6107 = vmax.f32 %v5477, 0.0
  %v6108 = vmax.f32 %v5478, 0.0
  %v6109 = vmax.f32 %v5479, 0.0
  %v6110 = vmax.f32 %v5480, 0.0
  %v6111 = vmax.f32 %v5481, 0.0
  %v6112 = vmax.f32 %v5482, 0.0
  %v6113 = vmax.f32 %v5483, 0.0
  %v6114 = vmax.f32 %v5484, 0.0
  %v6115 = vmax.f32 %v5485, 0.0
  %v6116 = vmax.f32 %v5486, 0.0
  %v6117 = vmax.f32 %v5487, 0.0
  %v6118 = vmax.f32 %v5488, 0.0
  %v6119 = vmax.f32 %v5489, 0.0
  %v6120 = vmax.f32 %v5490, 0.0
  %v6121 = vmax.f32 %v5491, 0.0
  %v6122 = vmax.f32 %v5492, 0.0
  %v6123 = vmax.f32 %v5493, 0.0
  %v6124 = vmax.f32 %v5494, 0.0
  %v6125 = vmax.f32 %v5495, 0.0
  %v6126 = vmax.f32 %v5496, 0.0
  %v6127 = vmax.f32 %v5497, 0.0
  %v6128 = vmax.f32 %v5498, 0.0
  %v6129 = vmax.f32 %v5499, 0.0
  %v6130 = vmax.f32 %v5500, 0.0
  %v6131 = vmax.f32 %v5501, 0.0
  %v6132 = vmax.f32 %v5502, 0.0
  %v6133 = vmax.f32 %v5503, 0.0
  %v6134 = vmax.f32 %v5504, 0.0
  %v6135 = vmax.f32 %v5505, 0.0
  %v6136 = vmax.f32 %v5506, 0.0
  %v6137 = vmax.f32 %v5507, 0.0
  %v6138 = vmax.f32 %v5508, 0.0
  %v6139 = vmax.f32 %v5509, 0.0
  %v6140 = vmax.f32 %v5510, 0.0
  %v6141 = vmax.f32 %v5511, 0.0
  %v6142 = vmax.f32 %v5512, 0.0
  %v6143 = vmax.f32 %v5513, 0.0
  %v6144 = vmax.f32 %v5514, 0.0
  %v6145 = vmax.f32 %v5515, 0.0
  %v6146 = vmax.f32 %v5516, 0.0
  %v6147 = vmax.f32 %v5517, 0.0
  %v6148 = vmax.f32 %v5518, 0.0
  %v6149 = vmax.f32 %v5519, 0.0
  %v6150 = vmax.f32 %v5520, 0.0
  %v6151 = vmax.f32 %v5521, 0.0
  %v6152 = vmax.f32 %v5522, 0.0
  %v6153 = vmax.f32 %v5523, 0.0
  %v6154 = vmax.f32 %v5524, 0.0
  %v6155 = vmax.f32 %v5525, 0.0
  %v6156 = vmax.f32 %v5526, 0.0
  %v6157 = vmax.f32 %v5527, 0.0
  %v6158 = vmax.f32 %v5528, 0.0
  %v6159 = vmax.f32 %v5529, 0.0
  %v6160 = vmax.f32 %v5530, 0.0
  %v6161 = vmax.f32 %v5531, 0.0
  %v6162 = vmax.f32 %v5532, 0.0
  %v6163 = vmax.f32 %v5533, 0.0
  %v6164 = vmax.f32 %v5534, 0.0
  %v6165 = vmax.f32 %v5535, 0.0
  %v6166 = vmax.f32 %v5536, 0.0
  %v6167 = vmax.f32 %v5537, 0.0
  %v6168 = vmax.f32 %v5538, 0.0
  %v6169 = vmax.f32 %v5539, 0.0
  %v6170 = vmax.f32 %v5540, 0.0
  %v6171 = vmax.f32 %v5541, 0.0
  %v6172 = vmax.f32 %v5542, 0.0
  %v6173 = vmax.f32 %v5543, 0.0
  %v6174 = vmax.f32 %v5544, 0.0
  %v6175 = vmax.f32 %v5545, 0.0
  %v6176 = vmax.f32 %v5546, 0.0
  %v6177 = vmax.f32 %v5547, 0.0
  %v6178 = vmax.f32 %v5548, 0.0
  %v6179 = vmax.f32 %v5549, 0.0
  %v6180 = vmax.f32 %v5550, 0.0
  %v6181 = vmax.f32 %v5551, 0.0
  %v6182 = vmax.f32 %v5552, 0.0
  %v6183 = vmax.f32 %v5553, 0.0
  %v6184 = vmax.f32 %v5554, 0.0
  %v6185 = vmax.f32 %v5555, 0.0
  %v6186 = vmax.f32 %v5556, 0.0
  %v6187 = vmax.f32 %v5557, 0.0
  %v6188 = vmax.f32 %v5558, 0.0
  %v6189 = vmax.f32 %v5559, 0.0
  %v6190 = vmax.f32 %v5560, 0.0
  %v6191 = vmax.f32 %v5561, 0.0
  %v6192 = vmax.f32 %v5562, 0.0
  %v6193 = vmax.f32 %v5563, 0.0
  %v6194 = vmax.f32 %v5564, 0.0
  %v6195 = vmax.f32 %v5565, 0.0
  %v6196 = vmax.f32 %v5566, 0.0
  %v6197 = vmax.f32 %v5567, 0.0
  %v6198 = vmax.f32 %v5568, 0.0
  %v6199 = vmax.f32 %v5569, 0.0
  %v6200 = vmax.f32 %v5570, 0.0
  %v6201 = vmax.f32 %v5571, 0.0
  %v6202 = vmax.f32 %v5572, 0.0
  %v6203 = vmax.f32 %v5573, 0.0
  %v6204 = vmax.f32 %v5574, 0.0
  %v6205 = vmax.f32 %v5575, 0.0
  %v6206 = vmax.f32 %v5576, 0.0
  %v6207 = vmax.f32 %v5577, 0.0
  %v6208 = vmax.f32 %v5578, 0.0
  %v6209 = vmax.f32 %v5579, 0.0
  %v6210 = vmax.f32 %v5580, 0.0
  %v6211 = vmax.f32 %v5581, 0.0
  %v6212 = vmax.f32 %v5582, 0.0
  %v6213 = vmax.f32 %v5583, 0.0
  %v6214 = vmax.f32 %v5584, 0.0
  %v6215 = vmax.f32 %v5585, 0.0
  %v6216 = vmax.f32 %v5586, 0.0
  %v6217 = vmax.f32 %v5587, 0.0
  %v6218 = vmax.f32 %v5588, 0.0
  %v6219 = vmax.f32 %v5589, 0.0
  %v6220 = vmax.f32 %v5590, 0.0
  %v6221 = vmax.f32 %v5591, 0.0
  %v6222 = vmax.f32 %v5592, 0.0
  %v6223 = vmax.f32 %v5593, 0.0
  %v6224 = vmax.f32 %v5594, 0.0
  %v6225 = vmax.f32 %v5595, 0.0
  %v6226 = vmax.f32 %v5596, 0.0
  %v6227 = vmax.f32 %v5597, 0.0
  %v6228 = vmax.f32 %v5598, 0.0
  %v6229 = vmax.f32 %v5599, 0.0
  %v6230 = vmax.f32 %v5600, 0.0
  %v6231 = vmax.f32 %v5601, 0.0
  %v6232 = vmax.f32 %v5602, 0.0
  %v6233 = vmax.f32 %v5603, 0.0
  %v6234 = vmax.f32 %v5604, 0.0
  %v6235 = vmax.f32 %v5605, 0.0
  %v6236 = vmax.f32 %v5606, 0.0
  %v6237 = vmax.f32 %v5607, 0.0
  %v6238 = vmax.f32 %v5608, 0.0
  %v6239 = vmax.f32 %v5609, 0.0
  %v6240 = vmax.f32 %v5610, 0.0
  %v6241 = vmax.f32 %v5611, 0.0
  %v6242 = vmax.f32 %v5612, 0.0
  %v6243 = vmax.f32 %v5613, 0.0
  %v6244 = vmax.f32 %v5614, 0.0
  %v6245 = vmax.f32 %v5615, 0.0
  %v6246 = vmax.f32 %v5616, 0.0
  %v6247 = vmax.f32 %v5617, 0.0
  %v6248 = vmax.f32 %v5618, 0.0
  %v6249 = vmax.f32 %v5619, 0.0
  %v6250 = vmax.f32 %v5620, 0.0
  %v6251 = vmax.f32 %v5621, 0.0
  %v6252 = vmax.f32 %v5622, 0.0
  %v6253 = vmax.f32 %v5623, 0.0
  %v6254 = vmax.f32 %v5624, 0.0
  %v6255 = vmax.f32 %v5625, 0.0
  %v6256 = vmax.f32 %v5626, 0.0
  %v6257 = vmax.f32 %v5627, 0.0
  %v6258 = vmax.f32 %v5628, 0.0
  %v6259 = vmax.f32 %v5629, 0.0
  %v6260 = vmax.f32 %v5630, 0.0
  %v6261 = vmax.f32 %v5631, 0.0
  %v6262 = vmax.f32 %v5632, 0.0
  %v6263 = vmax.f32 %v5633, 0.0
  %v6264 = vmax.f32 %v5634, 0.0
  %v6265 = vmax.f32 %v5635, 0.0
  %v6266 = vmax.f32 %v5636, 0.0
  %v6267 = vmax.f32 %v5637, 0.0
  %v6268 = vmax.f32 %v5638, 0.0
  %v6269 = vmax.f32 %v5639, 0.0
  %v6270 = vmax.f32 %v5640, 0.0
  %v6271 = vmax.f32 %v5641, 0.0
  %v6272 = vmax.f32 %v5642, 0.0
  %v6273 = vmax.f32 %v5643, 0.0
  %v6274 = vmax.f32 %v5644, 0.0
  %v6275 = vmax.f32 %v5645, 0.0
  %v6276 = vmax.f32 %v5646, 0.0
  %v6277 = vmax.f32 %v5647, 0.0
  %v6278 = vmax.f32 %v5648, 0.0
  %v6279 = vmax.f32 %v5649, 0.0
  %v6280 = vmax.f32 %v5650, 0.0
  %v6281 = vmax.f32 %v5651, 0.0
  %v6282 = vmax.f32 %v5652, 0.0
  %v6283 = vmax.f32 %v5653, 0.0
  %v6284 = vmax.f32 %v5654, 0.0
  %v6285 = vmax.f32 %v5655, 0.0
  %v6286 = vmax.f32 %v5656, 0.0
  %v6287 = vmax.f32 %v5657, 0.0
  %v6288 = vmax.f32 %v5658, 0.0
  %v6289 = vmax.f32 %v5659, 0.0
  %v6290 = vmax.f32 %v5660, 0.0
  %v6291 = vmax.f32 %v5661, 0.0
  %v6292 = vmax.f32 %v5662, 0.0
  %v6293 = vmax.f32 %v5663, 0.0
  %v6294 = vmax.f32 %v5664, 0.0
  %v6295 = vmax.f32 %v5665, 0.0
  %v6296 = vmax.f32 %v5666, 0.0
  %v6297 = vmax.f32 %v5667, 0.0
  %v6298 = vmax.f32 %v5668, 0.0
  %v6299 = vmax.f32 %v5669, 0.0
  %v6300 = vmax.f32 %v5670, 0.0
  %v6301 = vmax.f32 %v5671, 0.0
  %v6302 = vmax.f32 %v5672, 0.0
  %v6303 = vmax.f32 %v5673, 0.0
  %v6304 = vmax.f32 %v5674, 0.0
  %v6305 = vmax.f32 %v5675, 0.0
  %v6306 = vmax.f32 %v5676, 0.0
  %v6307 = vmax.f32 %v5677, 0.0
  %v6308 = vmax.f32 %v5678, 0.0
  %v6309 = vmax.f32 %v5679, 0.0
  %v6310 = vmax.f32 %v5680, 0.0
  %v6311 = vmax.f32 %v5681, 0.0
  %v6312 = vmax.f32 %v5682, 0.0
  %v6313 = vmax.f32 %v5683, 0.0
  %v6314 = vmax.f32 %v5684, 0.0
  %v6315 = vmax.f32 %v5685, 0.0
  %v6316 = vmax.f32 %v5686, 0.0
  %v6317 = vmax.f32 %v5687, 0.0
  %v6318 = vmax.f32 %v5688, 0.0
  %v6319 = vmax.f32 %v5689, 0.0
  %v6320 = vmax.f32 %v5690, 0.0
  %v6321 = vmax.f32 %v5691, 0.0
  %v6322 = vmax.f32 %v5692, 0.0
  %v6323 = vmax.f32 %v5693, 0.0
  %v6324 = vmax.f32 %v5694, 0.0
  %v6325 = vmax.f32 %v5695, 0.0
  %v6326 = vmax.f32 %v5696, 0.0
  %v6327 = vmax.f32 %v5697, 0.0
  %v6328 = vmax.f32 %v5698, 0.0
  %v6329 = vmax.f32 %v5699, 0.0
  %v6330 = vmax.f32 %v5700, 0.0
  %v6331 = vmax.f32 %v5701, 0.0
  %v6332 = vmax.f32 %v5702, 0.0
  %v6333 = vmax.f32 %v5703, 0.0
  %v6334 = vmax.f32 %v5704, 0.0
  %v6335 = vmax.f32 %v5705, 0.0
  %v6336 = vmax.f32 %v5706, 0.0
  %v6337 = vmax.f32 %v5707, 0.0
  %v6338 = vmax.f32 %v5708, 0.0
  %v6339 = vmax.f32 %v5709, 0.0
  %v6340 = vmax.f32 %v5710, 0.0
  %v6341 = vmax.f32 %v5711, 0.0
  %v6342 = vmax.f32 %v5712, 0.0
  %v6343 = vmax.f32 %v5713, 0.0
  %v6344 = vmax.f32 %v5714, 0.0
  %v6345 = vmax.f32 %v5715, 0.0
  %v6346 = vmax.f32 %v5716, 0.0
  %v6347 = vmax.f32 %v5717, 0.0
  %v6348 = vmax.f32 %v5718, 0.0
  %v6349 = vmax.f32 %v5719, 0.0
  %v6350 = vmax.f32 %v5720, 0.0
  %v6351 = vmax.f32 %v5721, 0.0
  %v6352 = vmax.f32 %v5722, 0.0
  %v6353 = vmax.f32 %v5723, 0.0
  %v6354 = vmax.f32 %v5724, 0.0
  %v6355 = vmax.f32 %v5725, 0.0
  %v6356 = vmax.f32 %v5726, 0.0
  %v6357 = vmax.f32 %v5727, 0.0
  %v6358 = vmax.f32 %v5728, 0.0
  %v6359 = vmax.f32 %v5729, 0.0
  %v6360 = vmax.f32 %v5730, 0.0
  %v6361 = vmax.f32 %v5731, 0.0
  %v6362 = vmax.f32 %v5732, 0.0
  %v6363 = vmax.f32 %v5733, 0.0
  %v6364 = vmax.f32 %v5734, 0.0
  %v6365 = vmax.f32 %v5735, 0.0
  %v6366 = vmax.f32 %v5736, 0.0
  %v6367 = vmax.f32 %v5737, 0.0
  %v6368 = vmax.f32 %v5738, 0.0
  %v6369 = vmax.f32 %v5739, 0.0
  %v6370 = vmax.f32 %v5740, 0.0
  %v6371 = vmax.f32 %v5741, 0.0
  %v6372 = vmax.f32 %v5742, 0.0
  %v6373 = vmax.f32 %v5743, 0.0
  %v6374 = vmax.f32 %v5744, 0.0
  %v6375 = vmax.f32 %v5745, 0.0
  %v6376 = vmax.f32 %v5746, 0.0
  %v6377 = vmax.f32 %v5747, 0.0
  %v6378 = vmax.f32 %v5748, 0.0
  %v6379 = vmax.f32 %v5749, 0.0
  %v6380 = vmax.f32 %v5750, 0.0
  %v6381 = vmax.f32 %v5751, 0.0
  %v6382 = vmax.f32 %v5752, 0.0
  %v6383 = vmax.f32 %v5753, 0.0
  %v6384 = vmax.f32 %v5754, 0.0
  %v6385 = vmax.f32 %v5755, 0.0
  %v6386 = vmax.f32 %v5756, 0.0
  %v6387 = vmax.f32 %v5757, 0.0
  %v6388 = vmax.f32 %v5758, 0.0
  %v6389 = vmax.f32 %v5759, 0.0
  %v6390 = vmax.f32 %v5760, 0.0
  %v6391 = vmax.f32 %v5761, 0.0
  %v6392 = vmax.f32 %v5762, 0.0
  %v6393 = vmax.f32 %v5763, 0.0
  %v6394 = vmax.f32 %v5764, 0.0
  %v6395 = vmax.f32 %v5765, 0.0
  %v6396 = vmax.f32 %v5766, 0.0
  %v6397 = vmax.f32 %v5767, 0.0
  %v6398 = vmax.f32 %v5768, 0.0
  %v6399 = vmax.f32 %v5769, 0.0
  %v6400 = vmax.f32 %v5770, 0.0
  %v6401 = vmax.f32 %v5771, 0.0
  %v6402 = vmax.f32 %v5772, 0.0
  %v6403 = vmax.f32 %v5773, 0.0
  %v6404 = vmax.f32 %v5774, 0.0
  %v6405 = vmax.f32 %v5775, 0.0
  %v6406 = vmax.f32 %v5776, 0.0
  %v6407 = vmax.f32 %v5777, 0.0
  %v6408 = vmax.f32 %v5778, 0.0
  %v6409 = vmax.f32 %v5779, 0.0
  %v6410 = vmax.f32 %v5780, 0.0
  %v6411 = vmax.f32 %v5781, 0.0
  %v6412 = vmax.f32 %v5782, 0.0
  %v6413 = vmax.f32 %v5783, 0.0
  %v6414 = vmax.f32 %v5784, 0.0
  %v6415 = vmax.f32 %v5785, 0.0
  %v6416 = vmax.f32 %v5786, 0.0
  %v6417 = vmax.f32 %v5787, 0.0
  %v6418 = vmax.f32 %v5788, 0.0
  %v6419 = vmax.f32 %v5789, 0.0
  %v6420 = vmax.f32 %v5790, 0.0
  %v6421 = vmax.f32 %v5791, 0.0
  %v6422 = vmax.f32 %v5792, 0.0
  %v6423 = vmax.f32 %v5793, 0.0
  %v6424 = vmax.f32 %v5794, 0.0
  %v6425 = vmax.f32 %v5795, 0.0
  %v6426 = vmax.f32 %v5796, 0.0
  %v6427 = vmax.f32 %v5797, 0.0
  %v6428 = vmax.f32 %v5798, 0.0
  %v6429 = vmax.f32 %v5799, 0.0
  %v6430 = vmax.f32 %v5800, 0.0
  %v6431 = vmax.f32 %v5801, 0.0
  %v6432 = vmax.f32 %v5802, 0.0
  %v6433 = vmax.f32 %v5803, 0.0
  %v6434 = vmax.f32 %v5804, 0.0
  %v6435 = vmax.f32 %v5805, 0.0
  %v6436 = vmax.f32 %v5806, 0.0
  %v6437 = vmax.f32 %v5807, 0.0
  %v6438 = vmax.f32 %v5808, 0.0
  %v6439 = vmax.f32 %v5809, 0.0
  %v6440 = vmax.f32 %v5810, 0.0
  %v6441 = vmax.f32 %v5811, 0.0
  %v6442 = vmax.f32 %v5812, 0.0
  %v6443 = vmax.f32 %v5813, 0.0
  %v6444 = vmax.f32 %v5814, 0.0
  %v6445 = vmax.f32 %v5815, 0.0
  %v6446 = vmax.f32 %v5816, 0.0
  %v6447 = vmax.f32 %v5817, 0.0
  %v6448 = vmax.f32 %v5818, 0.0
  %v6449 = vmax.f32 %v5819, 0.0
  %v6450 = vmax.f32 %v5820, 0.0
  %v6451 = vmax.f32 %v5821, 0.0
  %v6452 = vmax.f32 %v5822, 0.0
  %v6453 = vmax.f32 %v5823, 0.0
  %v6454 = vmax.f32 %v5824, 0.0
  %v6455 = vmax.f32 %v5825, 0.0
  %v6456 = vmax.f32 %v5826, 0.0
  %v6457 = vmax.f32 %v5827, 0.0
  %v6458 = vmax.f32 %v5828, 0.0
  %v6459 = vmax.f32 %v5829, 0.0
  %v6460 = vmax.f32 %v5830, 0.0
  %v6461 = vmax.f32 %v5831, 0.0
  %v6462 = vmax.f32 %v5832, 0.0
  %v6463 = vmax.f32 %v5833, 0.0
  %v6464 = vmax.f32 %v5834, 0.0
  %v6465 = vmax.f32 %v5835, 0.0
  %v6466 = vmax.f32 %v5836, 0.0
  %v6467 = vmax.f32 %v5837, 0.0
  %v6468 = vmax.f32 %v5838, 0.0
  %v6469 = vmax.f32 %v5839, 0.0
  %v6470 = vmax.f32 %v5840, 0.0
  %v6471 = vmax.f32 %v5841, 0.0
  %v6472 = vmax.f32 %v5842, 0.0
  %v6473 = vmax.f32 %v5843, 0.0
  %v6474 = vmax.f32 %v5844, 0.0
  %v6475 = vmax.f32 %v5845, 0.0
  %v6476 = vmax.f32 %v5846, 0.0
  %v6477 = vmax.f32 %v5847, 0.0
  %v6478 = vmax.f32 %v5848, 0.0
  %v6479 = vmax.f32 %v5849, 0.0
  %v6480 = vmax.f32 %v5850, 0.0
  %v6481 = vmax.f32 %v5851, 0.0
  %v6482 = vmax.f32 %v5852, 0.0
  %v6483 = vmax.f32 %v5853, 0.0
  %v6484 = vmax.f32 %v5854, 0.0
  %v6485 = vmax.f32 %v5855, 0.0
  %v6486 = vmax.f32 %v5856, 0.0
  %v6487 = vmax.f32 %v5857, 0.0
  %v6488 = vmax.f32 %v5858, 0.0
  %v6489 = vmax.f32 %v5859, 0.0
  %v6490 = vmax.f32 %v5860, 0.0
  %v6491 = vmax.f32 %v5861, 0.0
  %v6492 = vmax.f32 %v5862, 0.0
  %v6493 = vmax.f32 %v5863, 0.0
  %v6494 = vmax.f32 %v5864, 0.0
  %v6495 = vmax.f32 %v5865, 0.0
  %v6496 = vmax.f32 %v5866, 0.0
  %v6497 = vmax.f32 %v5867, 0.0
  %v6498 = vmax.f32 %v5868, 0.0
  %v6499 = vmax.f32 %v5869, 0.0
  %v6500 = vmax.f32 %v5870, 0.0
  %v6501 = vmax.f32 %v5871, 0.0
  %v6502 = vmax.f32 %v5872, 0.0
  %v6503 = vmax.f32 %v5873, 0.0
  %v6504 = vmax.f32 %v5874, 0.0
  %v6505 = vmax.f32 %v5875, 0.0
  %v6506 = vmax.f32 %v5876, 0.0
  %v6507 = vmax.f32 %v5877, 0.0
  %v6508 = vmax.f32 %v5878, 0.0
  %v6509 = vmax.f32 %v5879, 0.0
  %v6510 = vmax.f32 %v5880, 0.0
  %v6511 = vmax.f32 %v5881, 0.0
  %v6512 = vmax.f32 %v5882, 0.0
  %v6513 = vmax.f32 %v5883, 0.0
  %v6514 = vmax.f32 %v5884, 0.0
  %v6515 = vmax.f32 %v5885, 0.0
  %v6516 = vmax.f32 %v5886, 0.0
  %v6517 = vmax.f32 %v5887, 0.0
  %v6518 = vmax.f32 %v5888, 0.0
  %v6519 = vmax.f32 %v5889, 0.0
  %v6520 = vmax.f32 %v5890, 0.0
  %v6521 = vmax.f32 %v5891, 0.0
  %v6522 = vmax.f32 %v5892, 0.0
  %v6523 = vmax.f32 %v5893, 0.0
  %v6524 = vmax.f32 %v5894, 0.0
  %v6525 = vmax.f32 %v5895, 0.0
  %v6526 = vmax.f32 %v5896, 0.0
  %v6527 = vmax.f32 %v5897, 0.0
  %v6528 = vmax.f32 %v5898, 0.0
  %v6529 = vmax.f32 %v5899, 0.0
  %v6530 = vmax.f32 %v5900, 0.0
  %v6531 = vmax.f32 %v5901, 0.0
  %v6532 = vmax.f32 %v5902, 0.0
  %v6533 = vmax.f32 %v5903, 0.0
  %v6534 = vmax.f32 %v5904, 0.0
  %v6535 = vmax.f32 %v5905, 0.0
  %v6536 = vmax.f32 %v5906, 0.0
  %v6537 = vmax.f32 %v5907, 0.0
  %v6538 = vmax.f32 %v5908, 0.0
  %v6539 = vmax.f32 %v5909, 0.0
  %v6540 = vmax.f32 %v5910, 0.0
  %v6541 = vmax.f32 %v5911, 0.0
  %v6542 = vmax.f32 %v5912, 0.0
  %v6543 = vmax.f32 %v5913, 0.0
  %v6544 = vmax.f32 %v5914, 0.0
  %v6545 = vmax.f32 %v5915, 0.0
  %v6546 = vmax.f32 %v5916, 0.0
  %v6547 = vmax.f32 %v5917, 0.0
  %v6548 = vmax.f32 %v5918, 0.0
  %v6549 = vmax.f32 %v5919, 0.0
  %v6550 = vmax.f32 %v5920, 0.0
  %v6551 = vmax.f32 %v5921, 0.0
  %v6552 = vmax.f32 %v5922, 0.0
  %v6553 = vmax.f32 %v5923, 0.0
  %v6554 = vmax.f32 %v5924, 0.0
  %v6555 = vmax.f32 %v5925, 0.0
  %v6556 = vmax.f32 %v5926, 0.0
  %v6557 = vmax.f32 %v5927, 0.0
  %v6558 = vmax.f32 %v5928, 0.0
  %v6559 = vmax.f32 %v5929, 0.0
  %v6560 = vmax.f32 %v5930, 0.0
  %v6561 = vmax.f32 %v5931, 0.0
  %v6562 = vmax.f32 %v5932, 0.0
  %v6563 = vmax.f32 %v5933, 0.0
  %v6564 = vmax.f32 %v5934, 0.0
  %v6565 = vmax.f32 %v5935, 0.0
  %v6566 = vmax.f32 %v5936, 0.0
  %v6567 = vmax.f32 %v5937, 0.0
  %v6568 = vmax.f32 %v5938, 0.0
  %v6569 = vmax.f32 %v5939, 0.0
  %v6570 = vmax.f32 %v5940, 0.0
  %v6571 = vmax.f32 %v5941, 0.0
  %v6572 = vmax.f32 %v5942, 0.0
  %v6573 = vmax.f32 %v5943, 0.0
  %v6574 = vmax.f32 %v5944, 0.0
  %v6575 = vmax.f32 %v5945, 0.0
  %v6576 = vmax.f32 %v5946, 0.0
  %v6577 = vmax.f32 %v5947, 0.0
  %v6578 = vmax.f32 %v5948, 0.0
  %v6579 = vmax.f32 %v5949, 0.0
  %v6580 = vmax.f32 %v5950, 0.0
  %v6581 = vmax.f32 %v5951, 0.0
  %v6582 = vmax.f32 %v5952, 0.0
  %v6583 = vmax.f32 %v5953, 0.0
  %v6584 = vmax.f32 %v5954, 0.0
  %v6585 = vmax.f32 %v5955, 0.0
  %v6586 = vmax.f32 %v5956, 0.0
  %v6587 = vmax.f32 %v5957, 0.0
  %v6588 = vmax.f32 %v5958, 0.0
  %v6589 = vmax.f32 %v5959, 0.0
  %v6590 = vmax.f32 %v5960, 0.0
  %v6591 = vmax.f32 %v5961, 0.0
  %v6592 = vmax.f32 %v5962, 0.0
  %v6593 = vmax.f32 %v5963, 0.0
  %v6594 = vmax.f32 %v5964, 0.0
  %v6595 = vmax.f32 %v5965, 0.0
  %v6596 = vmax.f32 %v5966, 0.0
  %v6597 = vmax.f32 %v5967, 0.0
  %v6598 = vmax.f32 %v5968, 0.0
  %v6599 = vmax.f32 %v5969, 0.0
  %v6600 = vmax.f32 %v5970, 0.0
  %v6601 = vmax.f32 %v5971, 0.0
  %v6602 = vmax.f32 %v5972, 0.0
  %v6603 = vmax.f32 %v5973, 0.0
  %v6604 = vmax.f32 %v5974, 0.0
  %v6605 = vmax.f32 %v5975, 0.0
  %v6606 = vmax.f32 %v5976, 0.0
  %v6607 = vmax.f32 %v5977, 0.0
  %v6608 = vmax.f32 %v5978, 0.0
  %v6609 = vmax.f32 %v5979, 0.0
  %v6610 = vmax.f32 %v5980, 0.0
  %v6611 = vmax.f32 %v5981, 0.0
  %v6612 = vmax.f32 %v5982, 0.0
  %v6613 = vmax.f32 %v5983, 0.0
  %v6614 = vmax.f32 %v5984, 0.0
  %v6615 = vmax.f32 %v5985, 0.0
  %v6616 = vmax.f32 %v5986, 0.0
  %v6617 = vmax.f32 %v5987, 0.0
  %v6618 = vmax.f32 %v5988, 0.0
  %v6619 = vmax.f32 %v5989, 0.0
  %v6620 = vmax.f32 %v5990, 0.0
  %v6621 = vmax.f32 %v5991, 0.0
  %v6622 = vmax.f32 %v5992, 0.0
  %v6623 = vmax.f32 %v5993, 0.0
  %v6624 = vmax.f32 %v5994, 0.0
  %v6625 = vmax.f32 %v5995, 0.0
  %v6626 = vmax.f32 %v5996, 0.0
  %v6627 = vmax.f32 %v5997, 0.0
  %v6628 = vmax.f32 %v5998, 0.0
  %v6629 = vmax.f32 %v5999, 0.0
  %v6630 = vmax.f32 %v6000, 0.0
  %v6631 = vmax.f32 %v6001, 0.0
  %v6632 = vmax.f32 %v6002, 0.0
  %v6633 = vmax.f32 %v6003, 0.0
  %v6634 = vmax.f32 %v6004, 0.0
  %v6635 = vmax.f32 %v6005, 0.0
  %v6636 = vmax.f32 %v6006, 0.0
  %v6637 = vmax.f32 %v6007, 0.0
  %v6638 = vmax.f32 %v6008, 0.0
  %v6639 = vmax.f32 %v6009, 0.0
  %v6640 = vmax.f32 %v6010, 0.0
  %v6641 = vmax.f32 %v6011, 0.0
  %v6642 = vmax.f32 %v6012, 0.0
  %v6643 = vmax.f32 %v6013, 0.0
  %v6644 = vmax.f32 %v6014, 0.0
  %v6645 = vmax.f32 %v6015, 0.0
  %v6646 = vmax.f32 %v6016, 0.0
  %v6647 = vmax.f32 %v6017, 0.0
  %v6648 = vmax.f32 %v6018, 0.0
  %v6649 = vmax.f32 %v6019, 0.0
  %v6650 = vmax.f32 %v6020, 0.0
  %v6651 = vmax.f32 %v6021, 0.0
  %v6652 = vmax.f32 %v6022, 0.0
  %v6653 = vmax.f32 %v6023, 0.0
  %v6654 = vmax.f32 %v6024, 0.0
  %v6655 = vmax.f32 %v6025, 0.0
  %v6656 = vmax.f32 %v6026, 0.0
  %v6657 = vmax.f32 %v6027, 0.0
  %v6658 = vmax.f32 %v6028, 0.0
  %v6659 = vmax.f32 %v6029, 0.0
  %v6660 = vmax.f32 %v6030, 0.0
  %v6661 = vmax.f32 %v6031, 0.0
  %v6662 = vmax.f32 %v6032, 0.0
  %v6663 = vmax.f32 %v6033, 0.0
  %v6664 = vmax.f32 %v6034, 0.0
  %v6665 = vmax.f32 %v6035, 0.0
  %v6666 = vmax.f32 %v6036, 0.0
  %v6667 = vmax.f32 %v6037, 0.0
  %v6668 = vmax.f32 %v6038, 0.0
  %v6669 = vmax.f32 %v6039, 0.0
  %v6670 = vmax.f32 %v6040, 0.0
  %v6671 = vmax.f32 %v6041, 0.0
  %v6672 = vmax.f32 %v6042, 0.0
  %v6673 = vmax.f32 %v6043, 0.0
  %v6674 = vmax.f32 %v6044, 0.0
  %v6675 = vmax.f32 %v6045, 0.0
  %v6676 = vmax.f32 %v6046, 0.0
  %v6677 = vmax.f32 %v6047, 0.0
  %v6678 = vmax.f32 %v6048, 0.0
  %v6679 = vmax.f32 %v6049, 0.0
  %v6680 = vmax.f32 %v6050, 0.0
  %v6681 = vmax.f32 %v6051, 0.0
  %v6682 = vmax.f32 %v6052, 0.0
  %v6683 = vmax.f32 %v6053, 0.0
  %v6684 = vmax.f32 %v6054, 0.0
  %v6685 = vld [vmem:[%s1] sm:$0xff]
  %v6686 = vld [vmem:[%s1 + $0x8] sm:$0xff]
  %v6687 = vld [vmem:[%s1 + $0x10] sm:$0xff]
  %v6688 = vld [vmem:[%s1 + $0x18] sm:$0xff]
  %v6689 = vld [vmem:[%s1 + $0x20] sm:$0xff]
  %v6690 = vld [vmem:[%s1 + $0x28] sm:$0xff]
  %v6691 = vld [vmem:[%s1 + $0x30] sm:$0xff]
  %v6692 = vld [vmem:[%s1 + $0x38] sm:$0xff]
  %v6693 = vld [vmem:[%s1 + $0x40] sm:$0xff]
  %v6694 = vld [vmem:[%s1 + $0x48] sm:$0xff]
  %v6695 = vld [vmem:[%s1 + $0x50] sm:$0xff]
  %v6696 = vld [vmem:[%s1 + $0x58] sm:$0xff]
  %v6697 = vld [vmem:[%s1 + $0x60] sm:$0xff]
  %v6698 = vld [vmem:[%s1 + $0x68] sm:$0xff]
  %v6699 = vld [vmem:[%s1 + $0x70] sm:$0xff]
  %v6700 = vld [vmem:[%s1 + $0x78] sm:$0xff]
  %v6701 = vld [vmem:[%s1 + $0x80] sm:$0xff]
  %v6702 = vld [vmem:[%s1 + $0x88] sm:$0xff]
  %v6703 = vld [vmem:[%s1 + $0x90] sm:$0xff]
  %v6704 = vld [vmem:[%s1 + $0x98] sm:$0xff]
  %v6705 = vld [vmem:[%s1 + $0xa0] sm:$0xff]
  %v6706 = vld [vmem:[%s1 + $0xa8] sm:$0xff]
  %v6707 = vld [vmem:[%s1 + $0xb0] sm:$0xff]
  %v6708 = vld [vmem:[%s1 + $0xb8] sm:$0xff]
  %v6709 = vld [vmem:[%s1 + $0xc0] sm:$0xff]
  %v6710 = vld [vmem:[%s1 + $0xc8] sm:$0xff]
  %v6711 = vld [vmem:[%s1 + $0xd0] sm:$0xff]
  %v6712 = vld [vmem:[%s1 + $0xd8] sm:$0xff]
  %v6713 = vld [vmem:[%s1 + $0xe0] sm:$0xff]
  %v6714 = vld [vmem:[%s1 + $0xe8] sm:$0xff]
  %v6715 = vld [vmem:[%s1 + $0xf0] sm:$0xff]
  %v6716 = vld [vmem:[%s1 + $0xf8] sm:$0xff]
  %v6717 = vld [vmem:[%s1 + $0x100] sm:$0xff]
  %v6718 = vld [vmem:[%s1 + $0x108] sm:$0xff]
  %v6719 = vld [vmem:[%s1 + $0x110] sm:$0xff]
  %v6720 = vld [vmem:[%s1 + $0x118] sm:$0xff]
  %v6721 = vld [vmem:[%s1 + $0x120] sm:$0xff]
  %v6722 = vld [vmem:[%s1 + $0x128] sm:$0xff]
  %v6723 = vld [vmem:[%s1 + $0x130] sm:$0xff]
  %v6724 = vld [vmem:[%s1 + $0x138] sm:$0xff]
  %v6725 = vld [vmem:[%s1 + $0x140] sm:$0xff]
  %v6726 = vld [vmem:[%s1 + $0x148] sm:$0xff]
  %v6727 = vld [vmem:[%s1 + $0x150] sm:$0xff]
  %v6728 = vld [vmem:[%s1 + $0x158] sm:$0xff]
  %v6729 = vld [vmem:[%s1 + $0x160] sm:$0xff]
  %v6730 = vld [vmem:[%s1 + $0x168] sm:$0xff]
  %v6731 = vld [vmem:[%s1 + $0x170] sm:$0xff]
  %v6732 = vld [vmem:[%s1 + $0x178] sm:$0xff]
  %v6733 = vld [vmem:[%s1 + $0x180] sm:$0xff]
  %v6734 = vld [vmem:[%s1 + $0x188] sm:$0xff]
  %v6735 = vld [vmem:[%s1 + $0x190] sm:$0xff]
  %v6736 = vld [vmem:[%s1 + $0x198] sm:$0xff]
  %v6737 = vld [vmem:[%s1 + $0x1a0] sm:$0xff]
  %v6738 = vld [vmem:[%s1 + $0x1a8] sm:$0xff]
  %v6739 = vld [vmem:[%s1 + $0x1b0] sm:$0xff]
  %v6740 = vld [vmem:[%s1 + $0x1b8] sm:$0xff]
  %v6741 = vld [vmem:[%s1 + $0x1c0] sm:$0xff]
  %v6742 = vld [vmem:[%s1 + $0x1c8] sm:$0xff]
  %v6743 = vld [vmem:[%s1 + $0x1d0] sm:$0xff]
  %v6744 = vld [vmem:[%s1 + $0x1d8] sm:$0xff]
  %v6745 = vld [vmem:[%s1 + $0x1e0] sm:$0xff]
  %v6746 = vld [vmem:[%s1 + $0x1e8] sm:$0xff]
  %v6747 = vld [vmem:[%s1 + $0x1f0] sm:$0xff]
  %v6748 = vld [vmem:[%s1 + $0x1f8] sm:$0xff]
  %v6749 = vld [vmem:[%s1 + $0x200] sm:$0xff]
  %v6750 = vld [vmem:[%s1 + $0x208] sm:$0xff]
  %v6751 = vld [vmem:[%s1 + $0x210] sm:$0xff]
  %v6752 = vld [vmem:[%s1 + $0x218] sm:$0xff]
  %v6753 = vld [vmem:[%s1 + $0x220] sm:$0xff]
  %v6754 = vld [vmem:[%s1 + $0x228] sm:$0xff]
  %v6755 = vld [vmem:[%s1 + $0x230] sm:$0xff]
  %v6756 = vld [vmem:[%s1 + $0x238] sm:$0xff]
  %v6757 = vpack.c.bf16 %v6062, %v6055
  %v6758 = vpack.c.bf16 %v6063, %v6056
  %v6759 = vpack.c.bf16 %v6064, %v6057
  %v6760 = vpack.c.bf16 %v6065, %v6058
  %v6761 = vpack.c.bf16 %v6066, %v6059
  %v6762 = vpack.c.bf16 %v6067, %v6060
  %v6763 = vpack.c.bf16 %v6068, %v6061
  %v6764 = vpack.c.bf16 %v6076, %v6069
  %v6765 = vpack.c.bf16 %v6077, %v6070
  %v6766 = vpack.c.bf16 %v6078, %v6071
  %v6767 = vpack.c.bf16 %v6079, %v6072
  %v6768 = vpack.c.bf16 %v6080, %v6073
  %v6769 = vpack.c.bf16 %v6081, %v6074
  %v6770 = vpack.c.bf16 %v6082, %v6075
  %v6771 = vpack.c.bf16 %v6090, %v6083
  %v6772 = vpack.c.bf16 %v6091, %v6084
  %v6773 = vpack.c.bf16 %v6092, %v6085
  %v6774 = vpack.c.bf16 %v6093, %v6086
  %v6775 = vpack.c.bf16 %v6094, %v6087
  %v6776 = vpack.c.bf16 %v6095, %v6088
  %v6777 = vpack.c.bf16 %v6096, %v6089
  %v6778 = vpack.c.bf16 %v6104, %v6097
  %v6779 = vpack.c.bf16 %v6105, %v6098
  %v6780 = vpack.c.bf16 %v6106, %v6099
  %v6781 = vpack.c.bf16 %v6107, %v6100
  %v6782 = vpack.c.bf16 %v6108, %v6101
  %v6783 = vpack.c.bf16 %v6109, %v6102
  %v6784 = vpack.c.bf16 %v6110, %v6103
  %v6785 = vpack.c.bf16 %v6118, %v6111
  %v6786 = vpack.c.bf16 %v6119, %v6112
  %v6787 = vpack.c.bf16 %v6120, %v6113
  %v6788 = vpack.c.bf16 %v6121, %v6114
  %v6789 = vpack.c.bf16 %v6122, %v6115
  %v6790 = vpack.c.bf16 %v6123, %v6116
  %v6791 = vpack.c.bf16 %v6124, %v6117
  %v6792 = vpack.c.bf16 %v6132, %v6125
  %v6793 = vpack.c.bf16 %v6133, %v6126
  %v6794 = vpack.c.bf16 %v6134, %v6127
  %v6795 = vpack.c.bf16 %v6135, %v6128
  %v6796 = vpack.c.bf16 %v6136, %v6129
  %v6797 = vpack.c.bf16 %v6137, %v6130
  %v6798 = vpack.c.bf16 %v6138, %v6131
  %v6799 = vpack.c.bf16 %v6146, %v6139
  %v6800 = vpack.c.bf16 %v6147, %v6140
  %v6801 = vpack.c.bf16 %v6148, %v6141
  %v6802 = vpack.c.bf16 %v6149, %v6142
  %v6803 = vpack.c.bf16 %v6150, %v6143
  %v6804 = vpack.c.bf16 %v6151, %v6144
  %v6805 = vpack.c.bf16 %v6152, %v6145
  %v6806 = vpack.c.bf16 %v6160, %v6153
  %v6807 = vpack.c.bf16 %v6161, %v6154
  %v6808 = vpack.c.bf16 %v6162, %v6155
  %v6809 = vpack.c.bf16 %v6163, %v6156
  %v6810 = vpack.c.bf16 %v6164, %v6157
  %v6811 = vpack.c.bf16 %v6165, %v6158
  %v6812 = vpack.c.bf16 %v6166, %v6159
  %v6813 = vpack.c.bf16 %v6174, %v6167
  %v6814 = vpack.c.bf16 %v6175, %v6168
  %v6815 = vpack.c.bf16 %v6176, %v6169
  %v6816 = vpack.c.bf16 %v6177, %v6170
  %v6817 = vpack.c.bf16 %v6178, %v6171
  %v6818 = vpack.c.bf16 %v6179, %v6172
  %v6819 = vpack.c.bf16 %v6180, %v6173
  %v6820 = vpack.c.bf16 %v6188, %v6181
  %v6821 = vpack.c.bf16 %v6189, %v6182
  %v6822 = vpack.c.bf16 %v6190, %v6183
  %v6823 = vpack.c.bf16 %v6191, %v6184
  %v6824 = vpack.c.bf16 %v6192, %v6185
  %v6825 = vpack.c.bf16 %v6193, %v6186
  %v6826 = vpack.c.bf16 %v6194, %v6187
  %v6827 = vpack.c.bf16 %v6202, %v6195
  %v6828 = vpack.c.bf16 %v6203, %v6196
  %v6829 = vpack.c.bf16 %v6204, %v6197
  %v6830 = vpack.c.bf16 %v6205, %v6198
  %v6831 = vpack.c.bf16 %v6206, %v6199
  %v6832 = vpack.c.bf16 %v6207, %v6200
  %v6833 = vpack.c.bf16 %v6208, %v6201
  %v6834 = vpack.c.bf16 %v6216, %v6209
  %v6835 = vpack.c.bf16 %v6217, %v6210
  %v6836 = vpack.c.bf16 %v6218, %v6211
  %v6837 = vpack.c.bf16 %v6219, %v6212
  %v6838 = vpack.c.bf16 %v6220, %v6213
  %v6839 = vpack.c.bf16 %v6221, %v6214
  %v6840 = vpack.c.bf16 %v6222, %v6215
  %v6841 = vpack.c.bf16 %v6230, %v6223
  %v6842 = vpack.c.bf16 %v6231, %v6224
  %v6843 = vpack.c.bf16 %v6232, %v6225
  %v6844 = vpack.c.bf16 %v6233, %v6226
  %v6845 = vpack.c.bf16 %v6234, %v6227
  %v6846 = vpack.c.bf16 %v6235, %v6228
  %v6847 = vpack.c.bf16 %v6236, %v6229
  %v6848 = vpack.c.bf16 %v6244, %v6237
  %v6849 = vpack.c.bf16 %v6245, %v6238
  %v6850 = vpack.c.bf16 %v6246, %v6239
  %v6851 = vpack.c.bf16 %v6247, %v6240
  %v6852 = vpack.c.bf16 %v6248, %v6241
  %v6853 = vpack.c.bf16 %v6249, %v6242
  %v6854 = vpack.c.bf16 %v6250, %v6243
  %v6855 = vpack.c.bf16 %v6258, %v6251
  %v6856 = vpack.c.bf16 %v6259, %v6252
  %v6857 = vpack.c.bf16 %v6260, %v6253
  %v6858 = vpack.c.bf16 %v6261, %v6254
  %v6859 = vpack.c.bf16 %v6262, %v6255
  %v6860 = vpack.c.bf16 %v6263, %v6256
  %v6861 = vpack.c.bf16 %v6264, %v6257
  %v6862 = vpack.c.bf16 %v6272, %v6265
  %v6863 = vpack.c.bf16 %v6273, %v6266
  %v6864 = vpack.c.bf16 %v6274, %v6267
  %v6865 = vpack.c.bf16 %v6275, %v6268
  %v6866 = vpack.c.bf16 %v6276, %v6269
  %v6867 = vpack.c.bf16 %v6277, %v6270
  %v6868 = vpack.c.bf16 %v6278, %v6271
  %v6869 = vpack.c.bf16 %v6286, %v6279
  %v6870 = vpack.c.bf16 %v6287, %v6280
  %v6871 = vpack.c.bf16 %v6288, %v6281
  %v6872 = vpack.c.bf16 %v6289, %v6282
  %v6873 = vpack.c.bf16 %v6290, %v6283
  %v6874 = vpack.c.bf16 %v6291, %v6284
  %v6875 = vpack.c.bf16 %v6292, %v6285
  %v6876 = vpack.c.bf16 %v6300, %v6293
  %v6877 = vpack.c.bf16 %v6301, %v6294
  %v6878 = vpack.c.bf16 %v6302, %v6295
  %v6879 = vpack.c.bf16 %v6303, %v6296
  %v6880 = vpack.c.bf16 %v6304, %v6297
  %v6881 = vpack.c.bf16 %v6305, %v6298
  %v6882 = vpack.c.bf16 %v6306, %v6299
  %v6883 = vpack.c.bf16 %v6314, %v6307
  %v6884 = vpack.c.bf16 %v6315, %v6308
  %v6885 = vpack.c.bf16 %v6316, %v6309
  %v6886 = vpack.c.bf16 %v6317, %v6310
  %v6887 = vpack.c.bf16 %v6318, %v6311
  %v6888 = vpack.c.bf16 %v6319, %v6312
  %v6889 = vpack.c.bf16 %v6320, %v6313
  %v6890 = vpack.c.bf16 %v6328, %v6321
  %v6891 = vpack.c.bf16 %v6329, %v6322
  %v6892 = vpack.c.bf16 %v6330, %v6323
  %v6893 = vpack.c.bf16 %v6331, %v6324
  %v6894 = vpack.c.bf16 %v6332, %v6325
  %v6895 = vpack.c.bf16 %v6333, %v6326
  %v6896 = vpack.c.bf16 %v6334, %v6327
  %v6897 = vpack.c.bf16 %v6342, %v6335
  %v6898 = vpack.c.bf16 %v6343, %v6336
  %v6899 = vpack.c.bf16 %v6344, %v6337
  %v6900 = vpack.c.bf16 %v6345, %v6338
  %v6901 = vpack.c.bf16 %v6346, %v6339
  %v6902 = vpack.c.bf16 %v6347, %v6340
  %v6903 = vpack.c.bf16 %v6348, %v6341
  %v6904 = vpack.c.bf16 %v6356, %v6349
  %v6905 = vpack.c.bf16 %v6357, %v6350
  %v6906 = vpack.c.bf16 %v6358, %v6351
  %v6907 = vpack.c.bf16 %v6359, %v6352
  %v6908 = vpack.c.bf16 %v6360, %v6353
  %v6909 = vpack.c.bf16 %v6361, %v6354
  %v6910 = vpack.c.bf16 %v6362, %v6355
  %v6911 = vpack.c.bf16 %v6370, %v6363
  %v6912 = vpack.c.bf16 %v6371, %v6364
  %v6913 = vpack.c.bf16 %v6372, %v6365
  %v6914 = vpack.c.bf16 %v6373, %v6366
  %v6915 = vpack.c.bf16 %v6374, %v6367
  %v6916 = vpack.c.bf16 %v6375, %v6368
  %v6917 = vpack.c.bf16 %v6376, %v6369
  %v6918 = vpack.c.bf16 %v6384, %v6377
  %v6919 = vpack.c.bf16 %v6385, %v6378
  %v6920 = vpack.c.bf16 %v6386, %v6379
  %v6921 = vpack.c.bf16 %v6387, %v6380
  %v6922 = vpack.c.bf16 %v6388, %v6381
  %v6923 = vpack.c.bf16 %v6389, %v6382
  %v6924 = vpack.c.bf16 %v6390, %v6383
  %v6925 = vpack.c.bf16 %v6398, %v6391
  %v6926 = vpack.c.bf16 %v6399, %v6392
  %v6927 = vpack.c.bf16 %v6400, %v6393
  %v6928 = vpack.c.bf16 %v6401, %v6394
  %v6929 = vpack.c.bf16 %v6402, %v6395
  %v6930 = vpack.c.bf16 %v6403, %v6396
  %v6931 = vpack.c.bf16 %v6404, %v6397
  %v6932 = vpack.c.bf16 %v6412, %v6405
  %v6933 = vpack.c.bf16 %v6413, %v6406
  %v6934 = vpack.c.bf16 %v6414, %v6407
  %v6935 = vpack.c.bf16 %v6415, %v6408
  %v6936 = vpack.c.bf16 %v6416, %v6409
  %v6937 = vpack.c.bf16 %v6417, %v6410
  %v6938 = vpack.c.bf16 %v6418, %v6411
  %v6939 = vpack.c.bf16 %v6426, %v6419
  %v6940 = vpack.c.bf16 %v6427, %v6420
  %v6941 = vpack.c.bf16 %v6428, %v6421
  %v6942 = vpack.c.bf16 %v6429, %v6422
  %v6943 = vpack.c.bf16 %v6430, %v6423
  %v6944 = vpack.c.bf16 %v6431, %v6424
  %v6945 = vpack.c.bf16 %v6432, %v6425
  %v6946 = vpack.c.bf16 %v6440, %v6433
  %v6947 = vpack.c.bf16 %v6441, %v6434
  %v6948 = vpack.c.bf16 %v6442, %v6435
  %v6949 = vpack.c.bf16 %v6443, %v6436
  %v6950 = vpack.c.bf16 %v6444, %v6437
  %v6951 = vpack.c.bf16 %v6445, %v6438
  %v6952 = vpack.c.bf16 %v6446, %v6439
  %v6953 = vpack.c.bf16 %v6454, %v6447
  %v6954 = vpack.c.bf16 %v6455, %v6448
  %v6955 = vpack.c.bf16 %v6456, %v6449
  %v6956 = vpack.c.bf16 %v6457, %v6450
  %v6957 = vpack.c.bf16 %v6458, %v6451
  %v6958 = vpack.c.bf16 %v6459, %v6452
  %v6959 = vpack.c.bf16 %v6460, %v6453
  %v6960 = vpack.c.bf16 %v6468, %v6461
  %v6961 = vpack.c.bf16 %v6469, %v6462
  %v6962 = vpack.c.bf16 %v6470, %v6463
  %v6963 = vpack.c.bf16 %v6471, %v6464
  %v6964 = vpack.c.bf16 %v6472, %v6465
  %v6965 = vpack.c.bf16 %v6473, %v6466
  %v6966 = vpack.c.bf16 %v6474, %v6467
  %v6967 = vpack.c.bf16 %v6482, %v6475
  %v6968 = vpack.c.bf16 %v6483, %v6476
  %v6969 = vpack.c.bf16 %v6484, %v6477
  %v6970 = vpack.c.bf16 %v6485, %v6478
  %v6971 = vpack.c.bf16 %v6486, %v6479
  %v6972 = vpack.c.bf16 %v6487, %v6480
  %v6973 = vpack.c.bf16 %v6488, %v6481
  %v6974 = vpack.c.bf16 %v6496, %v6489
  %v6975 = vpack.c.bf16 %v6497, %v6490
  %v6976 = vpack.c.bf16 %v6498, %v6491
  %v6977 = vpack.c.bf16 %v6499, %v6492
  %v6978 = vpack.c.bf16 %v6500, %v6493
  %v6979 = vpack.c.bf16 %v6501, %v6494
  %v6980 = vpack.c.bf16 %v6502, %v6495
  %v6981 = vpack.c.bf16 %v6510, %v6503
  %v6982 = vpack.c.bf16 %v6511, %v6504
  %v6983 = vpack.c.bf16 %v6512, %v6505
  %v6984 = vpack.c.bf16 %v6513, %v6506
  %v6985 = vpack.c.bf16 %v6514, %v6507
  %v6986 = vpack.c.bf16 %v6515, %v6508
  %v6987 = vpack.c.bf16 %v6516, %v6509
  %v6988 = vpack.c.bf16 %v6524, %v6517
  %v6989 = vpack.c.bf16 %v6525, %v6518
  %v6990 = vpack.c.bf16 %v6526, %v6519
  %v6991 = vpack.c.bf16 %v6527, %v6520
  %v6992 = vpack.c.bf16 %v6528, %v6521
  %v6993 = vpack.c.bf16 %v6529, %v6522
  %v6994 = vpack.c.bf16 %v6530, %v6523
  %v6995 = vpack.c.bf16 %v6538, %v6531
  %v6996 = vpack.c.bf16 %v6539, %v6532
  %v6997 = vpack.c.bf16 %v6540, %v6533
  %v6998 = vpack.c.bf16 %v6541, %v6534
  %v6999 = vpack.c.bf16 %v6542, %v6535
  %v7000 = vpack.c.bf16 %v6543, %v6536
  %v7001 = vpack.c.bf16 %v6544, %v6537
  %v7002 = vpack.c.bf16 %v6552, %v6545
  %v7003 = vpack.c.bf16 %v6553, %v6546
  %v7004 = vpack.c.bf16 %v6554, %v6547
  %v7005 = vpack.c.bf16 %v6555, %v6548
  %v7006 = vpack.c.bf16 %v6556, %v6549
  %v7007 = vpack.c.bf16 %v6557, %v6550
  %v7008 = vpack.c.bf16 %v6558, %v6551
  %v7009 = vpack.c.bf16 %v6566, %v6559
  %v7010 = vpack.c.bf16 %v6567, %v6560
  %v7011 = vpack.c.bf16 %v6568, %v6561
  %v7012 = vpack.c.bf16 %v6569, %v6562
  %v7013 = vpack.c.bf16 %v6570, %v6563
  %v7014 = vpack.c.bf16 %v6571, %v6564
  %v7015 = vpack.c.bf16 %v6572, %v6565
  %v7016 = vpack.c.bf16 %v6580, %v6573
  %v7017 = vpack.c.bf16 %v6581, %v6574
  %v7018 = vpack.c.bf16 %v6582, %v6575
  %v7019 = vpack.c.bf16 %v6583, %v6576
  %v7020 = vpack.c.bf16 %v6584, %v6577
  %v7021 = vpack.c.bf16 %v6585, %v6578
  %v7022 = vpack.c.bf16 %v6586, %v6579
  %v7023 = vpack.c.bf16 %v6594, %v6587
  %v7024 = vpack.c.bf16 %v6595, %v6588
  %v7025 = vpack.c.bf16 %v6596, %v6589
  %v7026 = vpack.c.bf16 %v6597, %v6590
  %v7027 = vpack.c.bf16 %v6598, %v6591
  %v7028 = vpack.c.bf16 %v6599, %v6592
  %v7029 = vpack.c.bf16 %v6600, %v6593
  %v7030 = vpack.c.bf16 %v6608, %v6601
  %v7031 = vpack.c.bf16 %v6609, %v6602
  %v7032 = vpack.c.bf16 %v6610, %v6603
  %v7033 = vpack.c.bf16 %v6611, %v6604
  %v7034 = vpack.c.bf16 %v6612, %v6605
  %v7035 = vpack.c.bf16 %v6613, %v6606
  %v7036 = vpack.c.bf16 %v6614, %v6607
  %v7037 = vpack.c.bf16 %v6622, %v6615
  %v7038 = vpack.c.bf16 %v6623, %v6616
  %v7039 = vpack.c.bf16 %v6624, %v6617
  %v7040 = vpack.c.bf16 %v6625, %v6618
  %v7041 = vpack.c.bf16 %v6626, %v6619
  %v7042 = vpack.c.bf16 %v6627, %v6620
  %v7043 = vpack.c.bf16 %v6628, %v6621
  %v7044 = vpack.c.bf16 %v6636, %v6629
  %v7045 = vpack.c.bf16 %v6637, %v6630
  %v7046 = vpack.c.bf16 %v6638, %v6631
  %v7047 = vpack.c.bf16 %v6639, %v6632
  %v7048 = vpack.c.bf16 %v6640, %v6633
  %v7049 = vpack.c.bf16 %v6641, %v6634
  %v7050 = vpack.c.bf16 %v6642, %v6635
  %v7051 = vpack.c.bf16 %v6650, %v6643
  %v7052 = vpack.c.bf16 %v6651, %v6644
  %v7053 = vpack.c.bf16 %v6652, %v6645
  %v7054 = vpack.c.bf16 %v6653, %v6646
  %v7055 = vpack.c.bf16 %v6654, %v6647
  %v7056 = vpack.c.bf16 %v6655, %v6648
  %v7057 = vpack.c.bf16 %v6656, %v6649
  %v7058 = vpack.c.bf16 %v6664, %v6657
  %v7059 = vpack.c.bf16 %v6665, %v6658
  %v7060 = vpack.c.bf16 %v6666, %v6659
  %v7061 = vpack.c.bf16 %v6667, %v6660
  %v7062 = vpack.c.bf16 %v6668, %v6661
  %v7063 = vpack.c.bf16 %v6669, %v6662
  %v7064 = vpack.c.bf16 %v6670, %v6663
  %v7065 = vpack.c.bf16 %v6678, %v6671
  %v7066 = vpack.c.bf16 %v6679, %v6672
  %v7067 = vpack.c.bf16 %v6680, %v6673
  %v7068 = vpack.c.bf16 %v6681, %v6674
  %v7069 = vpack.c.bf16 %v6682, %v6675
  %v7070 = vpack.c.bf16 %v6683, %v6676
  %v7071 = vpack.c.bf16 %v6684, %v6677
  %v7144 = vunpack.c.l.b16 %v6685
  %v7145 = vunpack.c.h.b16 %v6685
  %v7146 = vunpack.c.l.b16 %v6686
  %v7147 = vunpack.c.h.b16 %v6686
  %v7148 = vunpack.c.l.b16 %v6687
  %v7149 = vunpack.c.h.b16 %v6687
  %v7150 = vunpack.c.l.b16 %v6688
  %v7151 = vunpack.c.h.b16 %v6688
  %v7152 = vunpack.c.l.b16 %v6689
  %v7153 = vunpack.c.h.b16 %v6689
  %v7154 = vunpack.c.l.b16 %v6690
  %v7155 = vunpack.c.h.b16 %v6690
  %v7156 = vunpack.c.l.b16 %v6691
  %v7157 = vunpack.c.h.b16 %v6691
  %v7158 = vunpack.c.l.b16 %v6692
  %v7159 = vunpack.c.h.b16 %v6692
  %v7160 = vunpack.c.l.b16 %v6693
  %v7161 = vunpack.c.h.b16 %v6693
  %v7162 = vunpack.c.l.b16 %v6694
  %v7163 = vunpack.c.h.b16 %v6694
  %v7164 = vunpack.c.l.b16 %v6695
  %v7165 = vunpack.c.h.b16 %v6695
  %v7166 = vunpack.c.l.b16 %v6696
  %v7167 = vunpack.c.h.b16 %v6696
  %v7168 = vunpack.c.l.b16 %v6697
  %v7169 = vunpack.c.h.b16 %v6697
  %v7170 = vunpack.c.l.b16 %v6698
  %v7171 = vunpack.c.h.b16 %v6698
  %v7172 = vunpack.c.l.b16 %v6699
  %v7173 = vunpack.c.h.b16 %v6699
  %v7174 = vunpack.c.l.b16 %v6700
  %v7175 = vunpack.c.h.b16 %v6700
  %v7176 = vunpack.c.l.b16 %v6701
  %v7177 = vunpack.c.h.b16 %v6701
  %v7178 = vunpack.c.l.b16 %v6702
  %v7179 = vunpack.c.h.b16 %v6702
  %v7180 = vunpack.c.l.b16 %v6703
  %v7181 = vunpack.c.h.b16 %v6703
  %v7182 = vunpack.c.l.b16 %v6704
  %v7183 = vunpack.c.h.b16 %v6704
  %v7184 = vunpack.c.l.b16 %v6705
  %v7185 = vunpack.c.h.b16 %v6705
  %v7186 = vunpack.c.l.b16 %v6706
  %v7187 = vunpack.c.h.b16 %v6706
  %v7188 = vunpack.c.l.b16 %v6707
  %v7189 = vunpack.c.h.b16 %v6707
  %v7190 = vunpack.c.l.b16 %v6708
  %v7191 = vunpack.c.h.b16 %v6708
  %v7192 = vunpack.c.l.b16 %v6709
  %v7193 = vunpack.c.h.b16 %v6709
  %v7194 = vunpack.c.l.b16 %v6710
  %v7195 = vunpack.c.h.b16 %v6710
  %v7196 = vunpack.c.l.b16 %v6711
  %v7197 = vunpack.c.h.b16 %v6711
  %v7198 = vunpack.c.l.b16 %v6712
  %v7199 = vunpack.c.h.b16 %v6712
  %v7200 = vunpack.c.l.b16 %v6713
  %v7201 = vunpack.c.h.b16 %v6713
  %v7202 = vunpack.c.l.b16 %v6714
  %v7203 = vunpack.c.h.b16 %v6714
  %v7204 = vunpack.c.l.b16 %v6715
  %v7205 = vunpack.c.h.b16 %v6715
  %v7206 = vunpack.c.l.b16 %v6716
  %v7207 = vunpack.c.h.b16 %v6716
  %v7208 = vunpack.c.l.b16 %v6717
  %v7209 = vunpack.c.h.b16 %v6717
  %v7210 = vunpack.c.l.b16 %v6718
  %v7211 = vunpack.c.h.b16 %v6718
  %v7212 = vunpack.c.l.b16 %v6719
  %v7213 = vunpack.c.h.b16 %v6719
  %v7214 = vunpack.c.l.b16 %v6720
  %v7215 = vunpack.c.h.b16 %v6720
  %v7216 = vunpack.c.l.b16 %v6721
  %v7217 = vunpack.c.h.b16 %v6721
  %v7218 = vunpack.c.l.b16 %v6722
  %v7219 = vunpack.c.h.b16 %v6722
  %v7220 = vunpack.c.l.b16 %v6723
  %v7221 = vunpack.c.h.b16 %v6723
  %v7222 = vunpack.c.l.b16 %v6724
  %v7223 = vunpack.c.h.b16 %v6724
  %v7224 = vunpack.c.l.b16 %v6725
  %v7225 = vunpack.c.h.b16 %v6725
  %v7226 = vunpack.c.l.b16 %v6726
  %v7227 = vunpack.c.h.b16 %v6726
  %v7228 = vunpack.c.l.b16 %v6727
  %v7229 = vunpack.c.h.b16 %v6727
  %v7230 = vunpack.c.l.b16 %v6728
  %v7231 = vunpack.c.h.b16 %v6728
  %v7232 = vunpack.c.l.b16 %v6729
  %v7233 = vunpack.c.h.b16 %v6729
  %v7234 = vunpack.c.l.b16 %v6730
  %v7235 = vunpack.c.h.b16 %v6730
  %v7236 = vunpack.c.l.b16 %v6731
  %v7237 = vunpack.c.h.b16 %v6731
  %v7238 = vunpack.c.l.b16 %v6732
  %v7239 = vunpack.c.h.b16 %v6732
  %v7240 = vunpack.c.l.b16 %v6733
  %v7241 = vunpack.c.h.b16 %v6733
  %v7242 = vunpack.c.l.b16 %v6734
  %v7243 = vunpack.c.h.b16 %v6734
  %v7244 = vunpack.c.l.b16 %v6735
  %v7245 = vunpack.c.h.b16 %v6735
  %v7246 = vunpack.c.l.b16 %v6736
  %v7247 = vunpack.c.h.b16 %v6736
  %v7248 = vunpack.c.l.b16 %v6737
  %v7249 = vunpack.c.h.b16 %v6737
  %v7250 = vunpack.c.l.b16 %v6738
  %v7251 = vunpack.c.h.b16 %v6738
  %v7252 = vunpack.c.l.b16 %v6739
  %v7253 = vunpack.c.h.b16 %v6739
  %v7254 = vunpack.c.l.b16 %v6740
  %v7255 = vunpack.c.h.b16 %v6740
  %v7256 = vunpack.c.l.b16 %v6741
  %v7257 = vunpack.c.h.b16 %v6741
  %v7258 = vunpack.c.l.b16 %v6742
  %v7259 = vunpack.c.h.b16 %v6742
  %v7260 = vunpack.c.l.b16 %v6743
  %v7261 = vunpack.c.h.b16 %v6743
  %v7262 = vunpack.c.l.b16 %v6744
  %v7263 = vunpack.c.h.b16 %v6744
  %v7264 = vunpack.c.l.b16 %v6745
  %v7265 = vunpack.c.h.b16 %v6745
  %v7266 = vunpack.c.l.b16 %v6746
  %v7267 = vunpack.c.h.b16 %v6746
  %v7268 = vunpack.c.l.b16 %v6747
  %v7269 = vunpack.c.h.b16 %v6747
  %v7270 = vunpack.c.l.b16 %v6748
  %v7271 = vunpack.c.h.b16 %v6748
  %v7272 = vunpack.c.l.b16 %v6749
  %v7273 = vunpack.c.h.b16 %v6749
  %v7274 = vunpack.c.l.b16 %v6750
  %v7275 = vunpack.c.h.b16 %v6750
  %v7276 = vunpack.c.l.b16 %v6751
  %v7277 = vunpack.c.h.b16 %v6751
  %v7278 = vunpack.c.l.b16 %v6752
  %v7279 = vunpack.c.h.b16 %v6752
  %v7280 = vunpack.c.l.b16 %v6753
  %v7281 = vunpack.c.h.b16 %v6753
  %v7282 = vunpack.c.l.b16 %v6754
  %v7283 = vunpack.c.h.b16 %v6754
  %v7284 = vunpack.c.l.b16 %v6755
  %v7285 = vunpack.c.h.b16 %v6755
  %v7286 = vunpack.c.l.b16 %v6756
  %v7287 = vunpack.c.h.b16 %v6756
  %v7288 = vpack.c.b16 %v7150, %v7144
  %v7289 = vpack.c.b16 %v7151, %v7145
  %v7290 = vpack.c.b16 %v7152, %v7146
  %v7291 = vpack.c.b16 %v7153, %v7147
  %v7292 = vpack.c.b16 %v7154, %v7148
  %v7293 = vpack.c.b16 %v7155, %v7149
  %v7294 = vpack.c.b16 %v7162, %v7156
  %v7295 = vpack.c.b16 %v7163, %v7157
  %v7296 = vpack.c.b16 %v7164, %v7158
  %v7297 = vpack.c.b16 %v7165, %v7159
  %v7298 = vpack.c.b16 %v7166, %v7160
  %v7299 = vpack.c.b16 %v7167, %v7161
  %v7300 = vpack.c.b16 %v7174, %v7168
  %v7301 = vpack.c.b16 %v7175, %v7169
  %v7302 = vpack.c.b16 %v7176, %v7170
  %v7303 = vpack.c.b16 %v7177, %v7171
  %v7304 = vpack.c.b16 %v7178, %v7172
  %v7305 = vpack.c.b16 %v7179, %v7173
  %v7306 = vpack.c.b16 %v7186, %v7180
  %v7307 = vpack.c.b16 %v7187, %v7181
  %v7308 = vpack.c.b16 %v7188, %v7182
  %v7309 = vpack.c.b16 %v7189, %v7183
  %v7310 = vpack.c.b16 %v7190, %v7184
  %v7311 = vpack.c.b16 %v7191, %v7185
  %v7312 = vpack.c.b16 %v7198, %v7192
  %v7313 = vpack.c.b16 %v7199, %v7193
  %v7314 = vpack.c.b16 %v7200, %v7194
  %v7315 = vpack.c.b16 %v7201, %v7195
  %v7316 = vpack.c.b16 %v7202, %v7196
  %v7317 = vpack.c.b16 %v7203, %v7197
  %v7318 = vpack.c.b16 %v7210, %v7204
  %v7319 = vpack.c.b16 %v7211, %v7205
  %v7320 = vpack.c.b16 %v7212, %v7206
  %v7321 = vpack.c.b16 %v7213, %v7207
  %v7322 = vpack.c.b16 %v7214, %v7208
  %v7323 = vpack.c.b16 %v7215, %v7209
  %v7324 = vpack.c.b16 %v7222, %v7216
  %v7325 = vpack.c.b16 %v7223, %v7217
  %v7326 = vpack.c.b16 %v7224, %v7218
  %v7327 = vpack.c.b16 %v7225, %v7219
  %v7328 = vpack.c.b16 %v7226, %v7220
  %v7329 = vpack.c.b16 %v7227, %v7221
  %v7330 = vpack.c.b16 %v7234, %v7228
  %v7331 = vpack.c.b16 %v7235, %v7229
  %v7332 = vpack.c.b16 %v7236, %v7230
  %v7333 = vpack.c.b16 %v7237, %v7231
  %v7334 = vpack.c.b16 %v7238, %v7232
  %v7335 = vpack.c.b16 %v7239, %v7233
  %v7336 = vpack.c.b16 %v7246, %v7240
  %v7337 = vpack.c.b16 %v7247, %v7241
  %v7338 = vpack.c.b16 %v7248, %v7242
  %v7339 = vpack.c.b16 %v7249, %v7243
  %v7340 = vpack.c.b16 %v7250, %v7244
  %v7341 = vpack.c.b16 %v7251, %v7245
  %v7342 = vpack.c.b16 %v7258, %v7252
  %v7343 = vpack.c.b16 %v7259, %v7253
  %v7344 = vpack.c.b16 %v7260, %v7254
  %v7345 = vpack.c.b16 %v7261, %v7255
  %v7346 = vpack.c.b16 %v7262, %v7256
  %v7347 = vpack.c.b16 %v7263, %v7257
  %v7348 = vpack.c.b16 %v7270, %v7264
  %v7349 = vpack.c.b16 %v7271, %v7265
  %v7350 = vpack.c.b16 %v7272, %v7266
  %v7351 = vpack.c.b16 %v7273, %v7267
  %v7352 = vpack.c.b16 %v7274, %v7268
  %v7353 = vpack.c.b16 %v7275, %v7269
  %v7354 = vpack.c.b16 %v7282, %v7276
  %v7355 = vpack.c.b16 %v7283, %v7277
  %v7356 = vpack.c.b16 %v7284, %v7278
  %v7357 = vpack.c.b16 %v7285, %v7279
  %v7358 = vpack.c.b16 %v7286, %v7280
  %v7359 = vpack.c.b16 %v7287, %v7281
  %vm7420 = vcmask 654336
  %v7422 = vsel %vm7420, %v7293, 0
  %v7425 = vsel %vm7420, %v7299, 0
  %v7428 = vsel %vm7420, %v7305, 0
  %v7431 = vsel %vm7420, %v7311, 0
  %v7434 = vsel %vm7420, %v7317, 0
  %v7437 = vsel %vm7420, %v7323, 0
  %v7440 = vsel %vm7420, %v7329, 0
  %v7443 = vsel %vm7420, %v7335, 0
  %v7446 = vsel %vm7420, %v7341, 0
  %v7449 = vsel %vm7420, %v7347, 0
  %v7452 = vsel %vm7420, %v7353, 0
  %v7455 = vsel %vm7420, %v7359, 0
  %7457 = vmatprep.subr.bf16.mxu0 %v6758
  %7458 = vmatpush1.bf16.msra.mxu0 %v6757
  %7459 = vmatprep.subr.bf16.mxu0 %v6765
  %7460 = vmatpush1.bf16.msra.mxu0 %v6764
  %7461 = vmatprep.subr.bf16.mxu0 %v6772
  %7462 = vmatpush1.bf16.msra.mxu0 %v6771
  %7463 = vmatprep.subr.bf16.mxu0 %v6779
  %7464 = vmatpush1.bf16.msra.mxu0 %v6778
  %7465 = vmatprep.subr.bf16.mxu0 %v6786
  %7466 = vmatpush1.bf16.msra.mxu0 %v6785
  %7467 = vmatprep.subr.bf16.mxu0 %v6793
  %7468 = vmatpush1.bf16.msra.mxu0 %v6792
  %7469 = vmatprep.subr.bf16.mxu0 %v6800
  %7470 = vmatpush1.bf16.msra.mxu0 %v6799
  %7471 = vmatprep.subr.bf16.mxu0 %v6807
  %7472 = vmatpush1.bf16.msra.mxu0 %v6806
  %7473 = vmatprep.subr.bf16.mxu0 %v6814
  %7474 = vmatpush1.bf16.msra.mxu0 %v6813
  %7475 = vmatprep.subr.bf16.mxu0 %v6821
  %7476 = vmatpush1.bf16.msra.mxu0 %v6820
  %7477 = vmatprep.subr.bf16.mxu0 %v6828
  %7478 = vmatpush1.bf16.msra.mxu0 %v6827
  %7479 = vmatprep.subr.bf16.mxu0 %v6835
  %7480 = vmatpush1.bf16.msra.mxu0 %v6834
  %7481 = vmatprep.subr.bf16.mxu0 %v6842
  %7482 = vmatpush1.bf16.msra.mxu0 %v6841
  %7483 = vmatprep.subr.bf16.mxu0 %v6849
  %7484 = vmatpush1.bf16.msra.mxu0 %v6848
  %7485 = vmatprep.subr.bf16.mxu0 %v6856
  %7486 = vmatpush1.bf16.msra.mxu0 %v6855
  %7487 = vmatprep.subr.bf16.mxu0 %v6863
  %7488 = vmatpush1.bf16.msra.mxu0 %v6862
  %7489 = vmatprep.mubr.bf16.mxu0 %v7289
  %7490 = vmatmul.mubr.bf16.gmra.mrb[0].mxu0 %v7288
  %v7491 = vpop.f32.mrb[0].mxu0
  %v7492 = vadd.f32 0.0, %v7491
  %v7493 = vpop.f32.mrb[0].mxu0
  %v7494 = vadd.f32 0.0, %v7493
  %v7495 = vpop.f32.mrb[0].mxu0
  %v7496 = vadd.f32 0.0, %v7495
  %v7497 = vpop.f32.mrb[0].mxu0
  %v7498 = vadd.f32 0.0, %v7497
  %7499 = vmatprep.mubr.bf16.mxu0 %v7295
  %7500 = vmatmul.mubr.bf16.gmra.mrb[0].mxu0 %v7294
  %v7501 = vpop.f32.mrb[0].mxu0
  %v7502 = vadd.f32 0.0, %v7501
  %v7503 = vpop.f32.mrb[0].mxu0
  %v7504 = vadd.f32 0.0, %v7503
  %v7505 = vpop.f32.mrb[0].mxu0
  %v7506 = vadd.f32 0.0, %v7505
  %v7507 = vpop.f32.mrb[0].mxu0
  %v7508 = vadd.f32 0.0, %v7507
  %7509 = vmatprep.mubr.bf16.mxu0 %v7301
  %7510 = vmatmul.mubr.bf16.gmra.mrb[0].mxu0 %v7300
  %v7511 = vpop.f32.mrb[0].mxu0
  %v7512 = vadd.f32 0.0, %v7511
  %v7513 = vpop.f32.mrb[0].mxu0
  %v7514 = vadd.f32 0.0, %v7513
  %v7515 = vpop.f32.mrb[0].mxu0
  %v7516 = vadd.f32 0.0, %v7515
  %v7517 = vpop.f32.mrb[0].mxu0
  %v7518 = vadd.f32 0.0, %v7517
  %7519 = vmatprep.mubr.bf16.mxu0 %v7307
  %7520 = vmatmul.mubr.bf16.gmra.mrb[0].mxu0 %v7306
  %v7521 = vpop.f32.mrb[0].mxu0
  %v7522 = vadd.f32 0.0, %v7521
  %v7523 = vpop.f32.mrb[0].mxu0
  %v7524 = vadd.f32 0.0, %v7523
  %v7525 = vpop.f32.mrb[0].mxu0
  %v7526 = vadd.f32 0.0, %v7525
  %v7527 = vpop.f32.mrb[0].mxu0
  %v7528 = vadd.f32 0.0, %v7527
  %7529 = vmatprep.mubr.bf16.mxu0 %v7313
  %7530 = vmatmul.mubr.bf16.gmra.mrb[0].mxu0 %v7312
  %v7531 = vpop.f32.mrb[0].mxu0
  %v7532 = vadd.f32 0.0, %v7531
  %v7533 = vpop.f32.mrb[0].mxu0
  %v7534 = vadd.f32 0.0, %v7533
  %v7535 = vpop.f32.mrb[0].mxu0
  %v7536 = vadd.f32 0.0, %v7535
  %v7537 = vpop.f32.mrb[0].mxu0
  %v7538 = vadd.f32 0.0, %v7537
  %7539 = vmatprep.mubr.bf16.mxu0 %v7319
  %7540 = vmatmul.mubr.bf16.gmra.mrb[0].mxu0 %v7318
  %v7541 = vpop.f32.mrb[0].mxu0
  %v7542 = vadd.f32 0.0, %v7541
  %v7543 = vpop.f32.mrb[0].mxu0
  %v7544 = vadd.f32 0.0, %v7543
  %v7545 = vpop.f32.mrb[0].mxu0
  %v7546 = vadd.f32 0.0, %v7545
  %v7547 = vpop.f32.mrb[0].mxu0
  %v7548 = vadd.f32 0.0, %v7547
  %7549 = vmatprep.mubr.bf16.mxu0 %v7325
  %7550 = vmatmul.mubr.bf16.gmra.mrb[0].mxu0 %v7324
  %v7551 = vpop.f32.mrb[0].mxu0
  %v7552 = vadd.f32 0.0, %v7551
  %v7553 = vpop.f32.mrb[0].mxu0
  %v7554 = vadd.f32 0.0, %v7553
  %v7555 = vpop.f32.mrb[0].mxu0
  %v7556 = vadd.f32 0.0, %v7555
  %v7557 = vpop.f32.mrb[0].mxu0
  %v7558 = vadd.f32 0.0, %v7557
  %7559 = vmatprep.mubr.bf16.mxu0 %v7331
  %7560 = vmatmul.mubr.bf16.gmra.mrb[0].mxu0 %v7330
  %v7561 = vpop.f32.mrb[0].mxu0
  %v7562 = vadd.f32 0.0, %v7561
  %v7563 = vpop.f32.mrb[0].mxu0
  %v7564 = vadd.f32 0.0, %v7563
  %v7565 = vpop.f32.mrb[0].mxu0
  %v7566 = vadd.f32 0.0, %v7565
  %v7567 = vpop.f32.mrb[0].mxu0
  %v7568 = vadd.f32 0.0, %v7567
  %7569 = vmatprep.mubr.bf16.mxu0 %v7337
  %7570 = vmatmul.mubr.bf16.gmra.mrb[0].mxu0 %v7336
  %v7571 = vpop.f32.mrb[0].mxu0
  %v7572 = vadd.f32 0.0, %v7571
  %v7573 = vpop.f32.mrb[0].mxu0
  %v7574 = vadd.f32 0.0, %v7573
  %v7575 = vpop.f32.mrb[0].mxu0
  %v7576 = vadd.f32 0.0, %v7575
  %v7577 = vpop.f32.mrb[0].mxu0
  %v7578 = vadd.f32 0.0, %v7577
  %7579 = vmatprep.mubr.bf16.mxu0 %v7343
  %7580 = vmatmul.mubr.bf16.gmra.mrb[0].mxu0 %v7342
  %v7581 = vpop.f32.mrb[0].mxu0
  %v7582 = vadd.f32 0.0, %v7581
  %v7583 = vpop.f32.mrb[0].mxu0
  %v7584 = vadd.f32 0.0, %v7583
  %v7585 = vpop.f32.mrb[0].mxu0
  %v7586 = vadd.f32 0.0, %v7585
  %v7587 = vpop.f32.mrb[0].mxu0
  %v7588 = vadd.f32 0.0, %v7587
  %7589 = vmatprep.mubr.bf16.mxu0 %v7349
  %7590 = vmatmul.mubr.bf16.gmra.mrb[0].mxu0 %v7348
  %v7591 = vpop.f32.mrb[0].mxu0
  %v7592 = vadd.f32 0.0, %v7591
  %v7593 = vpop.f32.mrb[0].mxu0
  %v7594 = vadd.f32 0.0, %v7593
  %v7595 = vpop.f32.mrb[0].mxu0
  %v7596 = vadd.f32 0.0, %v7595
  %v7597 = vpop.f32.mrb[0].mxu0
  %v7598 = vadd.f32 0.0, %v7597
  %7599 = vmatprep.mubr.bf16.mxu0 %v7355
  %7600 = vmatmul.mubr.bf16.gmra.mrb[0].mxu0 %v7354
  %v7601 = vpop.f32.mrb[0].mxu0
  %v7602 = vadd.f32 0.0, %v7601
  %v7603 = vpop.f32.mrb[0].mxu0
  %v7604 = vadd.f32 0.0, %v7603
  %v7605 = vpop.f32.mrb[0].mxu0
  %v7606 = vadd.f32 0.0, %v7605
  %v7607 = vpop.f32.mrb[0].mxu0
  %v7608 = vadd.f32 0.0, %v7607
  %7609 = vdwg.mxu0
  %7610 = vmatprep.subr.bf16.mxu0 %v6870
  %7611 = vmatpush1.bf16.msra.mxu0 %v6869
  %7612 = vmatprep.subr.bf16.mxu0 %v6877
  %7613 = vmatpush1.bf16.msra.mxu0 %v6876
  %7614 = vmatprep.subr.bf16.mxu0 %v6884
  %7615 = vmatpush1.bf16.msra.mxu0 %v6883
  %7616 = vmatprep.subr.bf16.mxu0 %v6891
  %7617 = vmatpush1.bf16.msra.mxu0 %v6890
  %7618 = vmatprep.subr.bf16.mxu0 %v6898
  %7619 = vmatpush1.bf16.msra.mxu0 %v6897
  %7620 = vmatprep.subr.bf16.mxu0 %v6905
  %7621 = vmatpush1.bf16.msra.mxu0 %v6904
  %7622 = vmatprep.subr.bf16.mxu0 %v6912
  %7623 = vmatpush1.bf16.msra.mxu0 %v6911
  %7624 = vmatprep.subr.bf16.mxu0 %v6919
  %7625 = vmatpush1.bf16.msra.mxu0 %v6918
  %7626 = vmatprep.subr.bf16.mxu0 %v6926
  %7627 = vmatpush1.bf16.msra.mxu0 %v6925
  %7628 = vmatprep.subr.bf16.mxu0 %v6933
  %7629 = vmatpush1.bf16.msra.mxu0 %v6932
  %7630 = vmatprep.subr.bf16.mxu0 %v6940
  %7631 = vmatpush1.bf16.msra.mxu0 %v6939
  %7632 = vmatprep.subr.bf16.mxu0 %v6947
  %7633 = vmatpush1.bf16.msra.mxu0 %v6946
  %7634 = vmatprep.subr.bf16.mxu0 %v6954
  %7635 = vmatpush1.bf16.msra.mxu0 %v6953
  %7636 = vmatprep.subr.bf16.mxu0 %v6961
  %7637 = vmatpush1.bf16.msra.mxu0 %v6960
  %7638 = vmatprep.subr.bf16.mxu0 %v6968
  %7639 = vmatpush1.bf16.msra.mxu0 %v6967
  %7640 = vmatprep.subr.bf16.mxu0 %v6975
  %7641 = vmatpush1.bf16.msra.mxu0 %v6974
  %7642 = vmatprep.mubr.bf16.mxu0 %v7291
  %7643 = vmatmul.mubr.bf16.gmra.mrb[0].mxu0 %v7290
  %v7644 = vpop.f32.mrb[0].mxu0
  %v7645 = vadd.f32 %v7492, %v7644
  %v7646 = vpop.f32.mrb[0].mxu0
  %v7647 = vadd.f32 %v7494, %v7646
  %v7648 = vpop.f32.mrb[0].mxu0
  %v7649 = vadd.f32 %v7496, %v7648
  %v7650 = vpop.f32.mrb[0].mxu0
  %v7651 = vadd.f32 %v7498, %v7650
  %7652 = vmatprep.mubr.bf16.mxu0 %v7297
  %7653 = vmatmul.mubr.bf16.gmra.mrb[0].mxu0 %v7296
  %v7654 = vpop.f32.mrb[0].mxu0
  %v7655 = vadd.f32 %v7502, %v7654
  %v7656 = vpop.f32.mrb[0].mxu0
  %v7657 = vadd.f32 %v7504, %v7656
  %v7658 = vpop.f32.mrb[0].mxu0
  %v7659 = vadd.f32 %v7506, %v7658
  %v7660 = vpop.f32.mrb[0].mxu0
  %v7661 = vadd.f32 %v7508, %v7660
  %7662 = vmatprep.mubr.bf16.mxu0 %v7303
  %7663 = vmatmul.mubr.bf16.gmra.mrb[0].mxu0 %v7302
  %v7664 = vpop.f32.mrb[0].mxu0
  %v7665 = vadd.f32 %v7512, %v7664
  %v7666 = vpop.f32.mrb[0].mxu0
  %v7667 = vadd.f32 %v7514, %v7666
  %v7668 = vpop.f32.mrb[0].mxu0
  %v7669 = vadd.f32 %v7516, %v7668
  %v7670 = vpop.f32.mrb[0].mxu0
  %v7671 = vadd.f32 %v7518, %v7670
  %7672 = vmatprep.mubr.bf16.mxu0 %v7309
  %7673 = vmatmul.mubr.bf16.gmra.mrb[0].mxu0 %v7308
  %v7674 = vpop.f32.mrb[0].mxu0
  %v7675 = vadd.f32 %v7522, %v7674
  %v7676 = vpop.f32.mrb[0].mxu0
  %v7677 = vadd.f32 %v7524, %v7676
  %v7678 = vpop.f32.mrb[0].mxu0
  %v7679 = vadd.f32 %v7526, %v7678
  %v7680 = vpop.f32.mrb[0].mxu0
  %v7681 = vadd.f32 %v7528, %v7680
  %7682 = vmatprep.mubr.bf16.mxu0 %v7315
  %7683 = vmatmul.mubr.bf16.gmra.mrb[0].mxu0 %v7314
  %v7684 = vpop.f32.mrb[0].mxu0
  %v7685 = vadd.f32 %v7532, %v7684
  %v7686 = vpop.f32.mrb[0].mxu0
  %v7687 = vadd.f32 %v7534, %v7686
  %v7688 = vpop.f32.mrb[0].mxu0
  %v7689 = vadd.f32 %v7536, %v7688
  %v7690 = vpop.f32.mrb[0].mxu0
  %v7691 = vadd.f32 %v7538, %v7690
  %7692 = vmatprep.mubr.bf16.mxu0 %v7321
  %7693 = vmatmul.mubr.bf16.gmra.mrb[0].mxu0 %v7320
  %v7694 = vpop.f32.mrb[0].mxu0
  %v7695 = vadd.f32 %v7542, %v7694
  %v7696 = vpop.f32.mrb[0].mxu0
  %v7697 = vadd.f32 %v7544, %v7696
  %v7698 = vpop.f32.mrb[0].mxu0
  %v7699 = vadd.f32 %v7546, %v7698
  %v7700 = vpop.f32.mrb[0].mxu0
  %v7701 = vadd.f32 %v7548, %v7700
  %7702 = vmatprep.mubr.bf16.mxu0 %v7327
  %7703 = vmatmul.mubr.bf16.gmra.mrb[0].mxu0 %v7326
  %v7704 = vpop.f32.mrb[0].mxu0
  %v7705 = vadd.f32 %v7552, %v7704
  %v7706 = vpop.f32.mrb[0].mxu0
  %v7707 = vadd.f32 %v7554, %v7706
  %v7708 = vpop.f32.mrb[0].mxu0
  %v7709 = vadd.f32 %v7556, %v7708
  %v7710 = vpop.f32.mrb[0].mxu0
  %v7711 = vadd.f32 %v7558, %v7710
  %7712 = vmatprep.mubr.bf16.mxu0 %v7333
  %7713 = vmatmul.mubr.bf16.gmra.mrb[0].mxu0 %v7332
  %v7714 = vpop.f32.mrb[0].mxu0
  %v7715 = vadd.f32 %v7562, %v7714
  %v7716 = vpop.f32.mrb[0].mxu0
  %v7717 = vadd.f32 %v7564, %v7716
  %v7718 = vpop.f32.mrb[0].mxu0
  %v7719 = vadd.f32 %v7566, %v7718
  %v7720 = vpop.f32.mrb[0].mxu0
  %v7721 = vadd.f32 %v7568, %v7720
  %7722 = vmatprep.mubr.bf16.mxu0 %v7339
  %7723 = vmatmul.mubr.bf16.gmra.mrb[0].mxu0 %v7338
  %v7724 = vpop.f32.mrb[0].mxu0
  %v7725 = vadd.f32 %v7572, %v7724
  %v7726 = vpop.f32.mrb[0].mxu0
  %v7727 = vadd.f32 %v7574, %v7726
  %v7728 = vpop.f32.mrb[0].mxu0
  %v7729 = vadd.f32 %v7576, %v7728
  %v7730 = vpop.f32.mrb[0].mxu0
  %v7731 = vadd.f32 %v7578, %v7730
  %7732 = vmatprep.mubr.bf16.mxu0 %v7345
  %7733 = vmatmul.mubr.bf16.gmra.mrb[0].mxu0 %v7344
  %v7734 = vpop.f32.mrb[0].mxu0
  %v7735 = vadd.f32 %v7582, %v7734
  %v7736 = vpop.f32.mrb[0].mxu0
  %v7737 = vadd.f32 %v7584, %v7736
  %v7738 = vpop.f32.mrb[0].mxu0
  %v7739 = vadd.f32 %v7586, %v7738
  %v7740 = vpop.f32.mrb[0].mxu0
  %v7741 = vadd.f32 %v7588, %v7740
  %7742 = vmatprep.mubr.bf16.mxu0 %v7351
  %7743 = vmatmul.mubr.bf16.gmra.mrb[0].mxu0 %v7350
  %v7744 = vpop.f32.mrb[0].mxu0
  %v7745 = vadd.f32 %v7592, %v7744
  %v7746 = vpop.f32.mrb[0].mxu0
  %v7747 = vadd.f32 %v7594, %v7746
  %v7748 = vpop.f32.mrb[0].mxu0
  %v7749 = vadd.f32 %v7596, %v7748
  %v7750 = vpop.f32.mrb[0].mxu0
  %v7751 = vadd.f32 %v7598, %v7750
  %7752 = vmatprep.mubr.bf16.mxu0 %v7357
  %7753 = vmatmul.mubr.bf16.gmra.mrb[0].mxu0 %v7356
  %v7754 = vpop.f32.mrb[0].mxu0
  %v7755 = vadd.f32 %v7602, %v7754
  %v7756 = vpop.f32.mrb[0].mxu0
  %v7757 = vadd.f32 %v7604, %v7756
  %v7758 = vpop.f32.mrb[0].mxu0
  %v7759 = vadd.f32 %v7606, %v7758
  %v7760 = vpop.f32.mrb[0].mxu0
  %v7761 = vadd.f32 %v7608, %v7760
  %7762 = vdwg.mxu0
  %7763 = vmatprep.subr.bf16.mxu0 %v6982
  %7764 = vmatpush1.bf16.msra.mxu0 %v6981
  %7765 = vmatprep.subr.bf16.mxu0 %v6989
  %7766 = vmatpush1.bf16.msra.mxu0 %v6988
  %7767 = vmatprep.subr.bf16.mxu0 %v6996
  %7768 = vmatpush1.bf16.msra.mxu0 %v6995
  %7769 = vmatprep.subr.bf16.mxu0 %v7003
  %7770 = vmatpush1.bf16.msra.mxu0 %v7002
  %7771 = vmatprep.subr.bf16.mxu0 %v7010
  %7772 = vmatpush1.bf16.msra.mxu0 %v7009
  %7773 = vmatprep.subr.bf16.mxu0 %v7017
  %7774 = vmatpush1.bf16.msra.mxu0 %v7016
  %7775 = vmatprep.subr.bf16.mxu0 %v7024
  %7776 = vmatpush1.bf16.msra.mxu0 %v7023
  %7777 = vmatprep.subr.bf16.mxu0 %v7031
  %7778 = vmatpush1.bf16.msra.mxu0 %v7030
  %7779 = vmatprep.subr.bf16.mxu0 %v7038
  %7780 = vmatpush1.bf16.msra.mxu0 %v7037
  %7781 = vmatprep.subr.bf16.mxu0 %v7045
  %7782 = vmatpush1.bf16.msra.mxu0 %v7044
  %7783 = vmatprep.subr.bf16.mxu0 %v7052
  %7784 = vmatpush1.bf16.msra.mxu0 %v7051
  %7785 = vmatprep.subr.bf16.mxu0 %v7059
  %7786 = vmatpush1.bf16.msra.mxu0 %v7058
  %7787 = vmatprep.subr.bf16.mxu0 %v7066
  %7788 = vmatpush1.bf16.msra.mxu0 %v7065
  %7789 = vmatprep.subr.bf16.mxu0 0
  %7790 = vmatpush1.bf16.msra.mxu0 0
  %7791 = vmatprep.subr.bf16.mxu0 0
  %7792 = vmatpush1.bf16.msra.mxu0 0
  %7793 = vmatprep.subr.bf16.mxu0 0
  %7794 = vmatpush1.bf16.msra.mxu0 0
  %7795 = vmatprep.mubr.bf16.mxu0 %v7422
  %7796 = vmatmul.mubr.bf16.gmra.mrb[0].mxu0 %v7292
  %v7797 = vpop.f32.mrb[0].mxu0
  %v7798 = vadd.f32 %v7645, %v7797
  %v7799 = vpop.f32.mrb[0].mxu0
  %v7800 = vadd.f32 %v7647, %v7799
  %v7801 = vpop.f32.mrb[0].mxu0
  %v7802 = vadd.f32 %v7649, %v7801
  %v7803 = vpop.f32.mrb[0].mxu0
  %v7804 = vadd.f32 %v7651, %v7803
  %7805 = vmatprep.mubr.bf16.mxu0 %v7425
  %7806 = vmatmul.mubr.bf16.gmra.mrb[0].mxu0 %v7298
  %v7807 = vpop.f32.mrb[0].mxu0
  %v7808 = vadd.f32 %v7655, %v7807
  %v7809 = vpop.f32.mrb[0].mxu0
  %v7810 = vadd.f32 %v7657, %v7809
  %v7811 = vpop.f32.mrb[0].mxu0
  %v7812 = vadd.f32 %v7659, %v7811
  %v7813 = vpop.f32.mrb[0].mxu0
  %v7814 = vadd.f32 %v7661, %v7813
  %7815 = vmatprep.mubr.bf16.mxu0 %v7428
  %7816 = vmatmul.mubr.bf16.gmra.mrb[0].mxu0 %v7304
  %v7817 = vpop.f32.mrb[0].mxu0
  %v7818 = vadd.f32 %v7665, %v7817
  %v7819 = vpop.f32.mrb[0].mxu0
  %v7820 = vadd.f32 %v7667, %v7819
  %v7821 = vpop.f32.mrb[0].mxu0
  %v7822 = vadd.f32 %v7669, %v7821
  %v7823 = vpop.f32.mrb[0].mxu0
  %v7824 = vadd.f32 %v7671, %v7823
  %7825 = vmatprep.mubr.bf16.mxu0 %v7431
  %7826 = vmatmul.mubr.bf16.gmra.mrb[0].mxu0 %v7310
  %v7827 = vpop.f32.mrb[0].mxu0
  %v7828 = vadd.f32 %v7675, %v7827
  %v7829 = vpop.f32.mrb[0].mxu0
  %v7830 = vadd.f32 %v7677, %v7829
  %v7831 = vpop.f32.mrb[0].mxu0
  %v7832 = vadd.f32 %v7679, %v7831
  %v7833 = vpop.f32.mrb[0].mxu0
  %v7834 = vadd.f32 %v7681, %v7833
  %7835 = vmatprep.mubr.bf16.mxu0 %v7434
  %7836 = vmatmul.mubr.bf16.gmra.mrb[0].mxu0 %v7316
  %v7837 = vpop.f32.mrb[0].mxu0
  %v7838 = vadd.f32 %v7685, %v7837
  %v7839 = vpop.f32.mrb[0].mxu0
  %v7840 = vadd.f32 %v7687, %v7839
  %v7841 = vpop.f32.mrb[0].mxu0
  %v7842 = vadd.f32 %v7689, %v7841
  %v7843 = vpop.f32.mrb[0].mxu0
  %v7844 = vadd.f32 %v7691, %v7843
  %7845 = vmatprep.mubr.bf16.mxu0 %v7437
  %7846 = vmatmul.mubr.bf16.gmra.mrb[0].mxu0 %v7322
  %v7847 = vpop.f32.mrb[0].mxu0
  %v7848 = vadd.f32 %v7695, %v7847
  %v7849 = vpop.f32.mrb[0].mxu0
  %v7850 = vadd.f32 %v7697, %v7849
  %v7851 = vpop.f32.mrb[0].mxu0
  %v7852 = vadd.f32 %v7699, %v7851
  %v7853 = vpop.f32.mrb[0].mxu0
  %v7854 = vadd.f32 %v7701, %v7853
  %7855 = vmatprep.mubr.bf16.mxu0 %v7440
  %7856 = vmatmul.mubr.bf16.gmra.mrb[0].mxu0 %v7328
  %v7857 = vpop.f32.mrb[0].mxu0
  %v7858 = vadd.f32 %v7705, %v7857
  %v7859 = vpop.f32.mrb[0].mxu0
  %v7860 = vadd.f32 %v7707, %v7859
  %v7861 = vpop.f32.mrb[0].mxu0
  %v7862 = vadd.f32 %v7709, %v7861
  %v7863 = vpop.f32.mrb[0].mxu0
  %v7864 = vadd.f32 %v7711, %v7863
  %7865 = vmatprep.mubr.bf16.mxu0 %v7443
  %7866 = vmatmul.mubr.bf16.gmra.mrb[0].mxu0 %v7334
  %v7867 = vpop.f32.mrb[0].mxu0
  %v7868 = vadd.f32 %v7715, %v7867
  %v7869 = vpop.f32.mrb[0].mxu0
  %v7870 = vadd.f32 %v7717, %v7869
  %v7871 = vpop.f32.mrb[0].mxu0
  %v7872 = vadd.f32 %v7719, %v7871
  %v7873 = vpop.f32.mrb[0].mxu0
  %v7874 = vadd.f32 %v7721, %v7873
  %7875 = vmatprep.mubr.bf16.mxu0 %v7446
  %7876 = vmatmul.mubr.bf16.gmra.mrb[0].mxu0 %v7340
  %v7877 = vpop.f32.mrb[0].mxu0
  %v7878 = vadd.f32 %v7725, %v7877
  %v7879 = vpop.f32.mrb[0].mxu0
  %v7880 = vadd.f32 %v7727, %v7879
  %v7881 = vpop.f32.mrb[0].mxu0
  %v7882 = vadd.f32 %v7729, %v7881
  %v7883 = vpop.f32.mrb[0].mxu0
  %v7884 = vadd.f32 %v7731, %v7883
  %7885 = vmatprep.mubr.bf16.mxu0 %v7449
  %7886 = vmatmul.mubr.bf16.gmra.mrb[0].mxu0 %v7346
  %v7887 = vpop.f32.mrb[0].mxu0
  %v7888 = vadd.f32 %v7735, %v7887
  %v7889 = vpop.f32.mrb[0].mxu0
  %v7890 = vadd.f32 %v7737, %v7889
  %v7891 = vpop.f32.mrb[0].mxu0
  %v7892 = vadd.f32 %v7739, %v7891
  %v7893 = vpop.f32.mrb[0].mxu0
  %v7894 = vadd.f32 %v7741, %v7893
  %7895 = vmatprep.mubr.bf16.mxu0 %v7452
  %7896 = vmatmul.mubr.bf16.gmra.mrb[0].mxu0 %v7352
  %v7897 = vpop.f32.mrb[0].mxu0
  %v7898 = vadd.f32 %v7745, %v7897
  %v7899 = vpop.f32.mrb[0].mxu0
  %v7900 = vadd.f32 %v7747, %v7899
  %v7901 = vpop.f32.mrb[0].mxu0
  %v7902 = vadd.f32 %v7749, %v7901
  %v7903 = vpop.f32.mrb[0].mxu0
  %v7904 = vadd.f32 %v7751, %v7903
  %7905 = vmatprep.mubr.bf16.mxu0 %v7455
  %7906 = vmatmul.mubr.bf16.gmra.mrb[0].mxu0 %v7358
  %v7907 = vpop.f32.mrb[0].mxu0
  %v7908 = vadd.f32 %v7755, %v7907
  %v7909 = vpop.f32.mrb[0].mxu0
  %v7910 = vadd.f32 %v7757, %v7909
  %v7911 = vpop.f32.mrb[0].mxu0
  %v7912 = vadd.f32 %v7759, %v7911
  %v7913 = vpop.f32.mrb[0].mxu0
  %v7914 = vadd.f32 %v7761, %v7913
  %7915 = vdwg.mxu0
  %7916 = vmatprep.subr.bf16.mxu0 %v6760
  %7917 = vmatpush1.bf16.msra.mxu0 %v6759
  %7918 = vmatprep.subr.bf16.mxu0 %v6767
  %7919 = vmatpush1.bf16.msra.mxu0 %v6766
  %7920 = vmatprep.subr.bf16.mxu0 %v6774
  %7921 = vmatpush1.bf16.msra.mxu0 %v6773
  %7922 = vmatprep.subr.bf16.mxu0 %v6781
  %7923 = vmatpush1.bf16.msra.mxu0 %v6780
  %7924 = vmatprep.subr.bf16.mxu0 %v6788
  %7925 = vmatpush1.bf16.msra.mxu0 %v6787
  %7926 = vmatprep.subr.bf16.mxu0 %v6795
  %7927 = vmatpush1.bf16.msra.mxu0 %v6794
  %7928 = vmatprep.subr.bf16.mxu0 %v6802
  %7929 = vmatpush1.bf16.msra.mxu0 %v6801
  %7930 = vmatprep.subr.bf16.mxu0 %v6809
  %7931 = vmatpush1.bf16.msra.mxu0 %v6808
  %7932 = vmatprep.subr.bf16.mxu0 %v6816
  %7933 = vmatpush1.bf16.msra.mxu0 %v6815
  %7934 = vmatprep.subr.bf16.mxu0 %v6823
  %7935 = vmatpush1.bf16.msra.mxu0 %v6822
  %7936 = vmatprep.subr.bf16.mxu0 %v6830
  %7937 = vmatpush1.bf16.msra.mxu0 %v6829
  %7938 = vmatprep.subr.bf16.mxu0 %v6837
  %7939 = vmatpush1.bf16.msra.mxu0 %v6836
  %7940 = vmatprep.subr.bf16.mxu0 %v6844
  %7941 = vmatpush1.bf16.msra.mxu0 %v6843
  %7942 = vmatprep.subr.bf16.mxu0 %v6851
  %7943 = vmatpush1.bf16.msra.mxu0 %v6850
  %7944 = vmatprep.subr.bf16.mxu0 %v6858
  %7945 = vmatpush1.bf16.msra.mxu0 %v6857
  %7946 = vmatprep.subr.bf16.mxu0 %v6865
  %7947 = vmatpush1.bf16.msra.mxu0 %v6864
  %7948 = vmatprep.mubr.bf16.mxu0 %v7289
  %7949 = vmatmul.mubr.bf16.gmra.mrb[0].mxu0 %v7288
  %v7950 = vpop.f32.mrb[0].mxu0
  %v7951 = vadd.f32 0.0, %v7950
  %v7952 = vpop.f32.mrb[0].mxu0
  %v7953 = vadd.f32 0.0, %v7952
  %v7954 = vpop.f32.mrb[0].mxu0
  %v7955 = vadd.f32 0.0, %v7954
  %v7956 = vpop.f32.mrb[0].mxu0
  %v7957 = vadd.f32 0.0, %v7956
  %7958 = vmatprep.mubr.bf16.mxu0 %v7295
  %7959 = vmatmul.mubr.bf16.gmra.mrb[0].mxu0 %v7294
  %v7960 = vpop.f32.mrb[0].mxu0
  %v7961 = vadd.f32 0.0, %v7960
  %v7962 = vpop.f32.mrb[0].mxu0
  %v7963 = vadd.f32 0.0, %v7962
  %v7964 = vpop.f32.mrb[0].mxu0
  %v7965 = vadd.f32 0.0, %v7964
  %v7966 = vpop.f32.mrb[0].mxu0
  %v7967 = vadd.f32 0.0, %v7966
  %7968 = vmatprep.mubr.bf16.mxu0 %v7301
  %7969 = vmatmul.mubr.bf16.gmra.mrb[0].mxu0 %v7300
  %v7970 = vpop.f32.mrb[0].mxu0
  %v7971 = vadd.f32 0.0, %v7970
  %v7972 = vpop.f32.mrb[0].mxu0
  %v7973 = vadd.f32 0.0, %v7972
  %v7974 = vpop.f32.mrb[0].mxu0
  %v7975 = vadd.f32 0.0, %v7974
  %v7976 = vpop.f32.mrb[0].mxu0
  %v7977 = vadd.f32 0.0, %v7976
  %7978 = vmatprep.mubr.bf16.mxu0 %v7307
  %7979 = vmatmul.mubr.bf16.gmra.mrb[0].mxu0 %v7306
  %v7980 = vpop.f32.mrb[0].mxu0
  %v7981 = vadd.f32 0.0, %v7980
  %v7982 = vpop.f32.mrb[0].mxu0
  %v7983 = vadd.f32 0.0, %v7982
  %v7984 = vpop.f32.mrb[0].mxu0
  %v7985 = vadd.f32 0.0, %v7984
  %v7986 = vpop.f32.mrb[0].mxu0
  %v7987 = vadd.f32 0.0, %v7986
  %7988 = vmatprep.mubr.bf16.mxu0 %v7313
  %7989 = vmatmul.mubr.bf16.gmra.mrb[0].mxu0 %v7312
  %v7990 = vpop.f32.mrb[0].mxu0
  %v7991 = vadd.f32 0.0, %v7990
  %v7992 = vpop.f32.mrb[0].mxu0
  %v7993 = vadd.f32 0.0, %v7992
  %v7994 = vpop.f32.mrb[0].mxu0
  %v7995 = vadd.f32 0.0, %v7994
  %v7996 = vpop.f32.mrb[0].mxu0
  %v7997 = vadd.f32 0.0, %v7996
  %7998 = vmatprep.mubr.bf16.mxu0 %v7319
  %7999 = vmatmul.mubr.bf16.gmra.mrb[0].mxu0 %v7318
  %v8000 = vpop.f32.mrb[0].mxu0
  %v8001 = vadd.f32 0.0, %v8000
  %v8002 = vpop.f32.mrb[0].mxu0
  %v8003 = vadd.f32 0.0, %v8002
  %v8004 = vpop.f32.mrb[0].mxu0
  %v8005 = vadd.f32 0.0, %v8004
  %v8006 = vpop.f32.mrb[0].mxu0
  %v8007 = vadd.f32 0.0, %v8006
  %8008 = vmatprep.mubr.bf16.mxu0 %v7325
  %8009 = vmatmul.mubr.bf16.gmra.mrb[0].mxu0 %v7324
  %v8010 = vpop.f32.mrb[0].mxu0
  %v8011 = vadd.f32 0.0, %v8010
  %v8012 = vpop.f32.mrb[0].mxu0
  %v8013 = vadd.f32 0.0, %v8012
  %v8014 = vpop.f32.mrb[0].mxu0
  %v8015 = vadd.f32 0.0, %v8014
  %v8016 = vpop.f32.mrb[0].mxu0
  %v8017 = vadd.f32 0.0, %v8016
  %8018 = vmatprep.mubr.bf16.mxu0 %v7331
  %8019 = vmatmul.mubr.bf16.gmra.mrb[0].mxu0 %v7330
  %v8020 = vpop.f32.mrb[0].mxu0
  %v8021 = vadd.f32 0.0, %v8020
  %v8022 = vpop.f32.mrb[0].mxu0
  %v8023 = vadd.f32 0.0, %v8022
  %v8024 = vpop.f32.mrb[0].mxu0
  %v8025 = vadd.f32 0.0, %v8024
  %v8026 = vpop.f32.mrb[0].mxu0
  %v8027 = vadd.f32 0.0, %v8026
  %8028 = vmatprep.mubr.bf16.mxu0 %v7337
  %8029 = vmatmul.mubr.bf16.gmra.mrb[0].mxu0 %v7336
  %v8030 = vpop.f32.mrb[0].mxu0
  %v8031 = vadd.f32 0.0, %v8030
  %v8032 = vpop.f32.mrb[0].mxu0
  %v8033 = vadd.f32 0.0, %v8032
  %v8034 = vpop.f32.mrb[0].mxu0
  %v8035 = vadd.f32 0.0, %v8034
  %v8036 = vpop.f32.mrb[0].mxu0
  %v8037 = vadd.f32 0.0, %v8036
  %8038 = vmatprep.mubr.bf16.mxu0 %v7343
  %8039 = vmatmul.mubr.bf16.gmra.mrb[0].mxu0 %v7342
  %v8040 = vpop.f32.mrb[0].mxu0
  %v8041 = vadd.f32 0.0, %v8040
  %v8042 = vpop.f32.mrb[0].mxu0
  %v8043 = vadd.f32 0.0, %v8042
  %v8044 = vpop.f32.mrb[0].mxu0
  %v8045 = vadd.f32 0.0, %v8044
  %v8046 = vpop.f32.mrb[0].mxu0
  %v8047 = vadd.f32 0.0, %v8046
  %8048 = vmatprep.mubr.bf16.mxu0 %v7349
  %8049 = vmatmul.mubr.bf16.gmra.mrb[0].mxu0 %v7348
  %v8050 = vpop.f32.mrb[0].mxu0
  %v8051 = vadd.f32 0.0, %v8050
  %v8052 = vpop.f32.mrb[0].mxu0
  %v8053 = vadd.f32 0.0, %v8052
  %v8054 = vpop.f32.mrb[0].mxu0
  %v8055 = vadd.f32 0.0, %v8054
  %v8056 = vpop.f32.mrb[0].mxu0
  %v8057 = vadd.f32 0.0, %v8056
  %8058 = vmatprep.mubr.bf16.mxu0 %v7355
  %8059 = vmatmul.mubr.bf16.gmra.mrb[0].mxu0 %v7354
  %v8060 = vpop.f32.mrb[0].mxu0
  %v8061 = vadd.f32 0.0, %v8060
  %v8062 = vpop.f32.mrb[0].mxu0
  %v8063 = vadd.f32 0.0, %v8062
  %v8064 = vpop.f32.mrb[0].mxu0
  %v8065 = vadd.f32 0.0, %v8064
  %v8066 = vpop.f32.mrb[0].mxu0
  %v8067 = vadd.f32 0.0, %v8066
  %8068 = vdwg.mxu0
  %8069 = vmatprep.subr.bf16.mxu0 %v6872
  %8070 = vmatpush1.bf16.msra.mxu0 %v6871
  %8071 = vmatprep.subr.bf16.mxu0 %v6879
  %8072 = vmatpush1.bf16.msra.mxu0 %v6878
  %8073 = vmatprep.subr.bf16.mxu0 %v6886
  %8074 = vmatpush1.bf16.msra.mxu0 %v6885
  %8075 = vmatprep.subr.bf16.mxu0 %v6893
  %8076 = vmatpush1.bf16.msra.mxu0 %v6892
  %8077 = vmatprep.subr.bf16.mxu0 %v6900
  %8078 = vmatpush1.bf16.msra.mxu0 %v6899
  %8079 = vmatprep.subr.bf16.mxu0 %v6907
  %8080 = vmatpush1.bf16.msra.mxu0 %v6906
  %8081 = vmatprep.subr.bf16.mxu0 %v6914
  %8082 = vmatpush1.bf16.msra.mxu0 %v6913
  %8083 = vmatprep.subr.bf16.mxu0 %v6921
  %8084 = vmatpush1.bf16.msra.mxu0 %v6920
  %8085 = vmatprep.subr.bf16.mxu0 %v6928
  %8086 = vmatpush1.bf16.msra.mxu0 %v6927
  %8087 = vmatprep.subr.bf16.mxu0 %v6935
  %8088 = vmatpush1.bf16.msra.mxu0 %v6934
  %8089 = vmatprep.subr.bf16.mxu0 %v6942
  %8090 = vmatpush1.bf16.msra.mxu0 %v6941
  %8091 = vmatprep.subr.bf16.mxu0 %v6949
  %8092 = vmatpush1.bf16.msra.mxu0 %v6948
  %8093 = vmatprep.subr.bf16.mxu0 %v6956
  %8094 = vmatpush1.bf16.msra.mxu0 %v6955
  %8095 = vmatprep.subr.bf16.mxu0 %v6963
  %8096 = vmatpush1.bf16.msra.mxu0 %v6962
  %8097 = vmatprep.subr.bf16.mxu0 %v6970
  %8098 = vmatpush1.bf16.msra.mxu0 %v6969
  %8099 = vmatprep.subr.bf16.mxu0 %v6977
  %8100 = vmatpush1.bf16.msra.mxu0 %v6976
  %8101 = vmatprep.mubr.bf16.mxu0 %v7291
  %8102 = vmatmul.mubr.bf16.gmra.mrb[0].mxu0 %v7290
  %v8103 = vpop.f32.mrb[0].mxu0
  %v8104 = vadd.f32 %v7951, %v8103
  %v8105 = vpop.f32.mrb[0].mxu0
  %v8106 = vadd.f32 %v7953, %v8105
  %v8107 = vpop.f32.mrb[0].mxu0
  %v8108 = vadd.f32 %v7955, %v8107
  %v8109 = vpop.f32.mrb[0].mxu0
  %v8110 = vadd.f32 %v7957, %v8109
  %8111 = vmatprep.mubr.bf16.mxu0 %v7297
  %8112 = vmatmul.mubr.bf16.gmra.mrb[0].mxu0 %v7296
  %v8113 = vpop.f32.mrb[0].mxu0
  %v8114 = vadd.f32 %v7961, %v8113
  %v8115 = vpop.f32.mrb[0].mxu0
  %v8116 = vadd.f32 %v7963, %v8115
  %v8117 = vpop.f32.mrb[0].mxu0
  %v8118 = vadd.f32 %v7965, %v8117
  %v8119 = vpop.f32.mrb[0].mxu0
  %v8120 = vadd.f32 %v7967, %v8119
  %8121 = vmatprep.mubr.bf16.mxu0 %v7303
  %8122 = vmatmul.mubr.bf16.gmra.mrb[0].mxu0 %v7302
  %v8123 = vpop.f32.mrb[0].mxu0
  %v8124 = vadd.f32 %v7971, %v8123
  %v8125 = vpop.f32.mrb[0].mxu0
  %v8126 = vadd.f32 %v7973, %v8125
  %v8127 = vpop.f32.mrb[0].mxu0
  %v8128 = vadd.f32 %v7975, %v8127
  %v8129 = vpop.f32.mrb[0].mxu0
  %v8130 = vadd.f32 %v7977, %v8129
  %8131 = vmatprep.mubr.bf16.mxu0 %v7309
  %8132 = vmatmul.mubr.bf16.gmra.mrb[0].mxu0 %v7308
  %v8133 = vpop.f32.mrb[0].mxu0
  %v8134 = vadd.f32 %v7981, %v8133
  %v8135 = vpop.f32.mrb[0].mxu0
  %v8136 = vadd.f32 %v7983, %v8135
  %v8137 = vpop.f32.mrb[0].mxu0
  %v8138 = vadd.f32 %v7985, %v8137
  %v8139 = vpop.f32.mrb[0].mxu0
  %v8140 = vadd.f32 %v7987, %v8139
  %8141 = vmatprep.mubr.bf16.mxu0 %v7315
  %8142 = vmatmul.mubr.bf16.gmra.mrb[0].mxu0 %v7314
  %v8143 = vpop.f32.mrb[0].mxu0
  %v8144 = vadd.f32 %v7991, %v8143
  %v8145 = vpop.f32.mrb[0].mxu0
  %v8146 = vadd.f32 %v7993, %v8145
  %v8147 = vpop.f32.mrb[0].mxu0
  %v8148 = vadd.f32 %v7995, %v8147
  %v8149 = vpop.f32.mrb[0].mxu0
  %v8150 = vadd.f32 %v7997, %v8149
  %8151 = vmatprep.mubr.bf16.mxu0 %v7321
  %8152 = vmatmul.mubr.bf16.gmra.mrb[0].mxu0 %v7320
  %v8153 = vpop.f32.mrb[0].mxu0
  %v8154 = vadd.f32 %v8001, %v8153
  %v8155 = vpop.f32.mrb[0].mxu0
  %v8156 = vadd.f32 %v8003, %v8155
  %v8157 = vpop.f32.mrb[0].mxu0
  %v8158 = vadd.f32 %v8005, %v8157
  %v8159 = vpop.f32.mrb[0].mxu0
  %v8160 = vadd.f32 %v8007, %v8159
  %8161 = vmatprep.mubr.bf16.mxu0 %v7327
  %8162 = vmatmul.mubr.bf16.gmra.mrb[0].mxu0 %v7326
  %v8163 = vpop.f32.mrb[0].mxu0
  %v8164 = vadd.f32 %v8011, %v8163
  %v8165 = vpop.f32.mrb[0].mxu0
  %v8166 = vadd.f32 %v8013, %v8165
  %v8167 = vpop.f32.mrb[0].mxu0
  %v8168 = vadd.f32 %v8015, %v8167
  %v8169 = vpop.f32.mrb[0].mxu0
  %v8170 = vadd.f32 %v8017, %v8169
  %8171 = vmatprep.mubr.bf16.mxu0 %v7333
  %8172 = vmatmul.mubr.bf16.gmra.mrb[0].mxu0 %v7332
  %v8173 = vpop.f32.mrb[0].mxu0
  %v8174 = vadd.f32 %v8021, %v8173
  %v8175 = vpop.f32.mrb[0].mxu0
  %v8176 = vadd.f32 %v8023, %v8175
  %v8177 = vpop.f32.mrb[0].mxu0
  %v8178 = vadd.f32 %v8025, %v8177
  %v8179 = vpop.f32.mrb[0].mxu0
  %v8180 = vadd.f32 %v8027, %v8179
  %8181 = vmatprep.mubr.bf16.mxu0 %v7339
  %8182 = vmatmul.mubr.bf16.gmra.mrb[0].mxu0 %v7338
  %v8183 = vpop.f32.mrb[0].mxu0
  %v8184 = vadd.f32 %v8031, %v8183
  %v8185 = vpop.f32.mrb[0].mxu0
  %v8186 = vadd.f32 %v8033, %v8185
  %v8187 = vpop.f32.mrb[0].mxu0
  %v8188 = vadd.f32 %v8035, %v8187
  %v8189 = vpop.f32.mrb[0].mxu0
  %v8190 = vadd.f32 %v8037, %v8189
  %8191 = vmatprep.mubr.bf16.mxu0 %v7345
  %8192 = vmatmul.mubr.bf16.gmra.mrb[0].mxu0 %v7344
  %v8193 = vpop.f32.mrb[0].mxu0
  %v8194 = vadd.f32 %v8041, %v8193
  %v8195 = vpop.f32.mrb[0].mxu0
  %v8196 = vadd.f32 %v8043, %v8195
  %v8197 = vpop.f32.mrb[0].mxu0
  %v8198 = vadd.f32 %v8045, %v8197
  %v8199 = vpop.f32.mrb[0].mxu0
  %v8200 = vadd.f32 %v8047, %v8199
  %8201 = vmatprep.mubr.bf16.mxu0 %v7351
  %8202 = vmatmul.mubr.bf16.gmra.mrb[0].mxu0 %v7350
  %v8203 = vpop.f32.mrb[0].mxu0
  %v8204 = vadd.f32 %v8051, %v8203
  %v8205 = vpop.f32.mrb[0].mxu0
  %v8206 = vadd.f32 %v8053, %v8205
  %v8207 = vpop.f32.mrb[0].mxu0
  %v8208 = vadd.f32 %v8055, %v8207
  %v8209 = vpop.f32.mrb[0].mxu0
  %v8210 = vadd.f32 %v8057, %v8209
  %8211 = vmatprep.mubr.bf16.mxu0 %v7357
  %8212 = vmatmul.mubr.bf16.gmra.mrb[0].mxu0 %v7356
  %v8213 = vpop.f32.mrb[0].mxu0
  %v8214 = vadd.f32 %v8061, %v8213
  %v8215 = vpop.f32.mrb[0].mxu0
  %v8216 = vadd.f32 %v8063, %v8215
  %v8217 = vpop.f32.mrb[0].mxu0
  %v8218 = vadd.f32 %v8065, %v8217
  %v8219 = vpop.f32.mrb[0].mxu0
  %v8220 = vadd.f32 %v8067, %v8219
  %8221 = vdwg.mxu0
  %8222 = vmatprep.subr.bf16.mxu0 %v6984
  %8223 = vmatpush1.bf16.msra.mxu0 %v6983
  %8224 = vmatprep.subr.bf16.mxu0 %v6991
  %8225 = vmatpush1.bf16.msra.mxu0 %v6990
  %8226 = vmatprep.subr.bf16.mxu0 %v6998
  %8227 = vmatpush1.bf16.msra.mxu0 %v6997
  %8228 = vmatprep.subr.bf16.mxu0 %v7005
  %8229 = vmatpush1.bf16.msra.mxu0 %v7004
  %8230 = vmatprep.subr.bf16.mxu0 %v7012
  %8231 = vmatpush1.bf16.msra.mxu0 %v7011
  %8232 = vmatprep.subr.bf16.mxu0 %v7019
  %8233 = vmatpush1.bf16.msra.mxu0 %v7018
  %8234 = vmatprep.subr.bf16.mxu0 %v7026
  %8235 = vmatpush1.bf16.msra.mxu0 %v7025
  %8236 = vmatprep.subr.bf16.mxu0 %v7033
  %8237 = vmatpush1.bf16.msra.mxu0 %v7032
  %8238 = vmatprep.subr.bf16.mxu0 %v7040
  %8239 = vmatpush1.bf16.msra.mxu0 %v7039
  %8240 = vmatprep.subr.bf16.mxu0 %v7047
  %8241 = vmatpush1.bf16.msra.mxu0 %v7046
  %8242 = vmatprep.subr.bf16.mxu0 %v7054
  %8243 = vmatpush1.bf16.msra.mxu0 %v7053
  %8244 = vmatprep.subr.bf16.mxu0 %v7061
  %8245 = vmatpush1.bf16.msra.mxu0 %v7060
  %8246 = vmatprep.subr.bf16.mxu0 %v7068
  %8247 = vmatpush1.bf16.msra.mxu0 %v7067
  %8248 = vmatprep.subr.bf16.mxu0 0
  %8249 = vmatpush1.bf16.msra.mxu0 0
  %8250 = vmatprep.subr.bf16.mxu0 0
  %8251 = vmatpush1.bf16.msra.mxu0 0
  %8252 = vmatprep.subr.bf16.mxu0 0
  %8253 = vmatpush1.bf16.msra.mxu0 0
  %8254 = vmatprep.mubr.bf16.mxu0 %v7422
  %8255 = vmatmul.mubr.bf16.gmra.mrb[0].mxu0 %v7292
  %v8256 = vpop.f32.mrb[0].mxu0
  %v8257 = vadd.f32 %v8104, %v8256
  %v8258 = vpop.f32.mrb[0].mxu0
  %v8259 = vadd.f32 %v8106, %v8258
  %v8260 = vpop.f32.mrb[0].mxu0
  %v8261 = vadd.f32 %v8108, %v8260
  %v8262 = vpop.f32.mrb[0].mxu0
  %v8263 = vadd.f32 %v8110, %v8262
  %8264 = vmatprep.mubr.bf16.mxu0 %v7425
  %8265 = vmatmul.mubr.bf16.gmra.mrb[0].mxu0 %v7298
  %v8266 = vpop.f32.mrb[0].mxu0
  %v8267 = vadd.f32 %v8114, %v8266
  %v8268 = vpop.f32.mrb[0].mxu0
  %v8269 = vadd.f32 %v8116, %v8268
  %v8270 = vpop.f32.mrb[0].mxu0
  %v8271 = vadd.f32 %v8118, %v8270
  %v8272 = vpop.f32.mrb[0].mxu0
  %v8273 = vadd.f32 %v8120, %v8272
  %8274 = vmatprep.mubr.bf16.mxu0 %v7428
  %8275 = vmatmul.mubr.bf16.gmra.mrb[0].mxu0 %v7304
  %v8276 = vpop.f32.mrb[0].mxu0
  %v8277 = vadd.f32 %v8124, %v8276
  %v8278 = vpop.f32.mrb[0].mxu0
  %v8279 = vadd.f32 %v8126, %v8278
  %v8280 = vpop.f32.mrb[0].mxu0
  %v8281 = vadd.f32 %v8128, %v8280
  %v8282 = vpop.f32.mrb[0].mxu0
  %v8283 = vadd.f32 %v8130, %v8282
  %8284 = vmatprep.mubr.bf16.mxu0 %v7431
  %8285 = vmatmul.mubr.bf16.gmra.mrb[0].mxu0 %v7310
  %v8286 = vpop.f32.mrb[0].mxu0
  %v8287 = vadd.f32 %v8134, %v8286
  %v8288 = vpop.f32.mrb[0].mxu0
  %v8289 = vadd.f32 %v8136, %v8288
  %v8290 = vpop.f32.mrb[0].mxu0
  %v8291 = vadd.f32 %v8138, %v8290
  %v8292 = vpop.f32.mrb[0].mxu0
  %v8293 = vadd.f32 %v8140, %v8292
  %8294 = vmatprep.mubr.bf16.mxu0 %v7434
  %8295 = vmatmul.mubr.bf16.gmra.mrb[0].mxu0 %v7316
  %v8296 = vpop.f32.mrb[0].mxu0
  %v8297 = vadd.f32 %v8144, %v8296
  %v8298 = vpop.f32.mrb[0].mxu0
  %v8299 = vadd.f32 %v8146, %v8298
  %v8300 = vpop.f32.mrb[0].mxu0
  %v8301 = vadd.f32 %v8148, %v8300
  %v8302 = vpop.f32.mrb[0].mxu0
  %v8303 = vadd.f32 %v8150, %v8302
  %8304 = vmatprep.mubr.bf16.mxu0 %v7437
  %8305 = vmatmul.mubr.bf16.gmra.mrb[0].mxu0 %v7322
  %v8306 = vpop.f32.mrb[0].mxu0
  %v8307 = vadd.f32 %v8154, %v8306
  %v8308 = vpop.f32.mrb[0].mxu0
  %v8309 = vadd.f32 %v8156, %v8308
  %v8310 = vpop.f32.mrb[0].mxu0
  %v8311 = vadd.f32 %v8158, %v8310
  %v8312 = vpop.f32.mrb[0].mxu0
  %v8313 = vadd.f32 %v8160, %v8312
  %8314 = vmatprep.mubr.bf16.mxu0 %v7440
  %8315 = vmatmul.mubr.bf16.gmra.mrb[0].mxu0 %v7328
  %v8316 = vpop.f32.mrb[0].mxu0
  %v8317 = vadd.f32 %v8164, %v8316
  %v8318 = vpop.f32.mrb[0].mxu0
  %v8319 = vadd.f32 %v8166, %v8318
  %v8320 = vpop.f32.mrb[0].mxu0
  %v8321 = vadd.f32 %v8168, %v8320
  %v8322 = vpop.f32.mrb[0].mxu0
  %v8323 = vadd.f32 %v8170, %v8322
  %8324 = vmatprep.mubr.bf16.mxu0 %v7443
  %8325 = vmatmul.mubr.bf16.gmra.mrb[0].mxu0 %v7334
  %v8326 = vpop.f32.mrb[0].mxu0
  %v8327 = vadd.f32 %v8174, %v8326
  %v8328 = vpop.f32.mrb[0].mxu0
  %v8329 = vadd.f32 %v8176, %v8328
  %v8330 = vpop.f32.mrb[0].mxu0
  %v8331 = vadd.f32 %v8178, %v8330
  %v8332 = vpop.f32.mrb[0].mxu0
  %v8333 = vadd.f32 %v8180, %v8332
  %8334 = vmatprep.mubr.bf16.mxu0 %v7446
  %8335 = vmatmul.mubr.bf16.gmra.mrb[0].mxu0 %v7340
  %v8336 = vpop.f32.mrb[0].mxu0
  %v8337 = vadd.f32 %v8184, %v8336
  %v8338 = vpop.f32.mrb[0].mxu0
  %v8339 = vadd.f32 %v8186, %v8338
  %v8340 = vpop.f32.mrb[0].mxu0
  %v8341 = vadd.f32 %v8188, %v8340
  %v8342 = vpop.f32.mrb[0].mxu0
  %v8343 = vadd.f32 %v8190, %v8342
  %8344 = vmatprep.mubr.bf16.mxu0 %v7449
  %8345 = vmatmul.mubr.bf16.gmra.mrb[0].mxu0 %v7346
  %v8346 = vpop.f32.mrb[0].mxu0
  %v8347 = vadd.f32 %v8194, %v8346
  %v8348 = vpop.f32.mrb[0].mxu0
  %v8349 = vadd.f32 %v8196, %v8348
  %v8350 = vpop.f32.mrb[0].mxu0
  %v8351 = vadd.f32 %v8198, %v8350
  %v8352 = vpop.f32.mrb[0].mxu0
  %v8353 = vadd.f32 %v8200, %v8352
  %8354 = vmatprep.mubr.bf16.mxu0 %v7452
  %8355 = vmatmul.mubr.bf16.gmra.mrb[0].mxu0 %v7352
  %v8356 = vpop.f32.mrb[0].mxu0
  %v8357 = vadd.f32 %v8204, %v8356
  %v8358 = vpop.f32.mrb[0].mxu0
  %v8359 = vadd.f32 %v8206, %v8358
  %v8360 = vpop.f32.mrb[0].mxu0
  %v8361 = vadd.f32 %v8208, %v8360
  %v8362 = vpop.f32.mrb[0].mxu0
  %v8363 = vadd.f32 %v8210, %v8362
  %8364 = vmatprep.mubr.bf16.mxu0 %v7455
  %8365 = vmatmul.mubr.bf16.gmra.mrb[0].mxu0 %v7358
  %v8366 = vpop.f32.mrb[0].mxu0
  %v8367 = vadd.f32 %v8214, %v8366
  %v8368 = vpop.f32.mrb[0].mxu0
  %v8369 = vadd.f32 %v8216, %v8368
  %v8370 = vpop.f32.mrb[0].mxu0
  %v8371 = vadd.f32 %v8218, %v8370
  %v8372 = vpop.f32.mrb[0].mxu0
  %v8373 = vadd.f32 %v8220, %v8372
  %8374 = vdwg.mxu0
  %8375 = vmatprep.subr.bf16.mxu0 %v6762
  %8376 = vmatpush1.bf16.msra.mxu0 %v6761
  %8377 = vmatprep.subr.bf16.mxu0 %v6769
  %8378 = vmatpush1.bf16.msra.mxu0 %v6768
  %8379 = vmatprep.subr.bf16.mxu0 %v6776
  %8380 = vmatpush1.bf16.msra.mxu0 %v6775
  %8381 = vmatprep.subr.bf16.mxu0 %v6783
  %8382 = vmatpush1.bf16.msra.mxu0 %v6782
  %8383 = vmatprep.subr.bf16.mxu0 %v6790
  %8384 = vmatpush1.bf16.msra.mxu0 %v6789
  %8385 = vmatprep.subr.bf16.mxu0 %v6797
  %8386 = vmatpush1.bf16.msra.mxu0 %v6796
  %8387 = vmatprep.subr.bf16.mxu0 %v6804
  %8388 = vmatpush1.bf16.msra.mxu0 %v6803
  %8389 = vmatprep.subr.bf16.mxu0 %v6811
  %8390 = vmatpush1.bf16.msra.mxu0 %v6810
  %8391 = vmatprep.subr.bf16.mxu0 %v6818
  %8392 = vmatpush1.bf16.msra.mxu0 %v6817
  %8393 = vmatprep.subr.bf16.mxu0 %v6825
  %8394 = vmatpush1.bf16.msra.mxu0 %v6824
  %8395 = vmatprep.subr.bf16.mxu0 %v6832
  %8396 = vmatpush1.bf16.msra.mxu0 %v6831
  %8397 = vmatprep.subr.bf16.mxu0 %v6839
  %8398 = vmatpush1.bf16.msra.mxu0 %v6838
  %8399 = vmatprep.subr.bf16.mxu0 %v6846
  %8400 = vmatpush1.bf16.msra.mxu0 %v6845
  %8401 = vmatprep.subr.bf16.mxu0 %v6853
  %8402 = vmatpush1.bf16.msra.mxu0 %v6852
  %8403 = vmatprep.subr.bf16.mxu0 %v6860
  %8404 = vmatpush1.bf16.msra.mxu0 %v6859
  %8405 = vmatprep.subr.bf16.mxu0 %v6867
  %8406 = vmatpush1.bf16.msra.mxu0 %v6866
  %8407 = vmatprep.mubr.bf16.mxu0 %v7289
  %8408 = vmatmul.mubr.bf16.gmra.mrb[0].mxu0 %v7288
  %v8409 = vpop.f32.mrb[0].mxu0
  %v8410 = vadd.f32 0.0, %v8409
  %v8411 = vpop.f32.mrb[0].mxu0
  %v8412 = vadd.f32 0.0, %v8411
  %v8413 = vpop.f32.mrb[0].mxu0
  %v8414 = vadd.f32 0.0, %v8413
  %v8415 = vpop.f32.mrb[0].mxu0
  %v8416 = vadd.f32 0.0, %v8415
  %8417 = vmatprep.mubr.bf16.mxu0 %v7295
  %8418 = vmatmul.mubr.bf16.gmra.mrb[0].mxu0 %v7294
  %v8419 = vpop.f32.mrb[0].mxu0
  %v8420 = vadd.f32 0.0, %v8419
  %v8421 = vpop.f32.mrb[0].mxu0
  %v8422 = vadd.f32 0.0, %v8421
  %v8423 = vpop.f32.mrb[0].mxu0
  %v8424 = vadd.f32 0.0, %v8423
  %v8425 = vpop.f32.mrb[0].mxu0
  %v8426 = vadd.f32 0.0, %v8425
  %8427 = vmatprep.mubr.bf16.mxu0 %v7301
  %8428 = vmatmul.mubr.bf16.gmra.mrb[0].mxu0 %v7300
  %v8429 = vpop.f32.mrb[0].mxu0
  %v8430 = vadd.f32 0.0, %v8429
  %v8431 = vpop.f32.mrb[0].mxu0
  %v8432 = vadd.f32 0.0, %v8431
  %v8433 = vpop.f32.mrb[0].mxu0
  %v8434 = vadd.f32 0.0, %v8433
  %v8435 = vpop.f32.mrb[0].mxu0
  %v8436 = vadd.f32 0.0, %v8435
  %8437 = vmatprep.mubr.bf16.mxu0 %v7307
  %8438 = vmatmul.mubr.bf16.gmra.mrb[0].mxu0 %v7306
  %v8439 = vpop.f32.mrb[0].mxu0
  %v8440 = vadd.f32 0.0, %v8439
  %v8441 = vpop.f32.mrb[0].mxu0
  %v8442 = vadd.f32 0.0, %v8441
  %v8443 = vpop.f32.mrb[0].mxu0
  %v8444 = vadd.f32 0.0, %v8443
  %v8445 = vpop.f32.mrb[0].mxu0
  %v8446 = vadd.f32 0.0, %v8445
  %8447 = vmatprep.mubr.bf16.mxu0 %v7313
  %8448 = vmatmul.mubr.bf16.gmra.mrb[0].mxu0 %v7312
  %v8449 = vpop.f32.mrb[0].mxu0
  %v8450 = vadd.f32 0.0, %v8449
  %v8451 = vpop.f32.mrb[0].mxu0
  %v8452 = vadd.f32 0.0, %v8451
  %v8453 = vpop.f32.mrb[0].mxu0
  %v8454 = vadd.f32 0.0, %v8453
  %v8455 = vpop.f32.mrb[0].mxu0
  %v8456 = vadd.f32 0.0, %v8455
  %8457 = vmatprep.mubr.bf16.mxu0 %v7319
  %8458 = vmatmul.mubr.bf16.gmra.mrb[0].mxu0 %v7318
  %v8459 = vpop.f32.mrb[0].mxu0
  %v8460 = vadd.f32 0.0, %v8459
  %v8461 = vpop.f32.mrb[0].mxu0
  %v8462 = vadd.f32 0.0, %v8461
  %v8463 = vpop.f32.mrb[0].mxu0
  %v8464 = vadd.f32 0.0, %v8463
  %v8465 = vpop.f32.mrb[0].mxu0
  %v8466 = vadd.f32 0.0, %v8465
  %8467 = vmatprep.mubr.bf16.mxu0 %v7325
  %8468 = vmatmul.mubr.bf16.gmra.mrb[0].mxu0 %v7324
  %v8469 = vpop.f32.mrb[0].mxu0
  %v8470 = vadd.f32 0.0, %v8469
  %v8471 = vpop.f32.mrb[0].mxu0
  %v8472 = vadd.f32 0.0, %v8471
  %v8473 = vpop.f32.mrb[0].mxu0
  %v8474 = vadd.f32 0.0, %v8473
  %v8475 = vpop.f32.mrb[0].mxu0
  %v8476 = vadd.f32 0.0, %v8475
  %8477 = vmatprep.mubr.bf16.mxu0 %v7331
  %8478 = vmatmul.mubr.bf16.gmra.mrb[0].mxu0 %v7330
  %v8479 = vpop.f32.mrb[0].mxu0
  %v8480 = vadd.f32 0.0, %v8479
  %v8481 = vpop.f32.mrb[0].mxu0
  %v8482 = vadd.f32 0.0, %v8481
  %v8483 = vpop.f32.mrb[0].mxu0
  %v8484 = vadd.f32 0.0, %v8483
  %v8485 = vpop.f32.mrb[0].mxu0
  %v8486 = vadd.f32 0.0, %v8485
  %8487 = vmatprep.mubr.bf16.mxu0 %v7337
  %8488 = vmatmul.mubr.bf16.gmra.mrb[0].mxu0 %v7336
  %v8489 = vpop.f32.mrb[0].mxu0
  %v8490 = vadd.f32 0.0, %v8489
  %v8491 = vpop.f32.mrb[0].mxu0
  %v8492 = vadd.f32 0.0, %v8491
  %v8493 = vpop.f32.mrb[0].mxu0
  %v8494 = vadd.f32 0.0, %v8493
  %v8495 = vpop.f32.mrb[0].mxu0
  %v8496 = vadd.f32 0.0, %v8495
  %8497 = vmatprep.mubr.bf16.mxu0 %v7343
  %8498 = vmatmul.mubr.bf16.gmra.mrb[0].mxu0 %v7342
  %v8499 = vpop.f32.mrb[0].mxu0
  %v8500 = vadd.f32 0.0, %v8499
  %v8501 = vpop.f32.mrb[0].mxu0
  %v8502 = vadd.f32 0.0, %v8501
  %v8503 = vpop.f32.mrb[0].mxu0
  %v8504 = vadd.f32 0.0, %v8503
  %v8505 = vpop.f32.mrb[0].mxu0
  %v8506 = vadd.f32 0.0, %v8505
  %8507 = vmatprep.mubr.bf16.mxu0 %v7349
  %8508 = vmatmul.mubr.bf16.gmra.mrb[0].mxu0 %v7348
  %v8509 = vpop.f32.mrb[0].mxu0
  %v8510 = vadd.f32 0.0, %v8509
  %v8511 = vpop.f32.mrb[0].mxu0
  %v8512 = vadd.f32 0.0, %v8511
  %v8513 = vpop.f32.mrb[0].mxu0
  %v8514 = vadd.f32 0.0, %v8513
  %v8515 = vpop.f32.mrb[0].mxu0
  %v8516 = vadd.f32 0.0, %v8515
  %8517 = vmatprep.mubr.bf16.mxu0 %v7355
  %8518 = vmatmul.mubr.bf16.gmra.mrb[0].mxu0 %v7354
  %v8519 = vpop.f32.mrb[0].mxu0
  %v8520 = vadd.f32 0.0, %v8519
  %v8521 = vpop.f32.mrb[0].mxu0
  %v8522 = vadd.f32 0.0, %v8521
  %v8523 = vpop.f32.mrb[0].mxu0
  %v8524 = vadd.f32 0.0, %v8523
  %v8525 = vpop.f32.mrb[0].mxu0
  %v8526 = vadd.f32 0.0, %v8525
  %8527 = vdwg.mxu0
  %8528 = vmatprep.subr.bf16.mxu0 %v6874
  %8529 = vmatpush1.bf16.msra.mxu0 %v6873
  %8530 = vmatprep.subr.bf16.mxu0 %v6881
  %8531 = vmatpush1.bf16.msra.mxu0 %v6880
  %8532 = vmatprep.subr.bf16.mxu0 %v6888
  %8533 = vmatpush1.bf16.msra.mxu0 %v6887
  %8534 = vmatprep.subr.bf16.mxu0 %v6895
  %8535 = vmatpush1.bf16.msra.mxu0 %v6894
  %8536 = vmatprep.subr.bf16.mxu0 %v6902
  %8537 = vmatpush1.bf16.msra.mxu0 %v6901
  %8538 = vmatprep.subr.bf16.mxu0 %v6909
  %8539 = vmatpush1.bf16.msra.mxu0 %v6908
  %8540 = vmatprep.subr.bf16.mxu0 %v6916
  %8541 = vmatpush1.bf16.msra.mxu0 %v6915
  %8542 = vmatprep.subr.bf16.mxu0 %v6923
  %8543 = vmatpush1.bf16.msra.mxu0 %v6922
  %8544 = vmatprep.subr.bf16.mxu0 %v6930
  %8545 = vmatpush1.bf16.msra.mxu0 %v6929
  %8546 = vmatprep.subr.bf16.mxu0 %v6937
  %8547 = vmatpush1.bf16.msra.mxu0 %v6936
  %8548 = vmatprep.subr.bf16.mxu0 %v6944
  %8549 = vmatpush1.bf16.msra.mxu0 %v6943
  %8550 = vmatprep.subr.bf16.mxu0 %v6951
  %8551 = vmatpush1.bf16.msra.mxu0 %v6950
  %8552 = vmatprep.subr.bf16.mxu0 %v6958
  %8553 = vmatpush1.bf16.msra.mxu0 %v6957
  %8554 = vmatprep.subr.bf16.mxu0 %v6965
  %8555 = vmatpush1.bf16.msra.mxu0 %v6964
  %8556 = vmatprep.subr.bf16.mxu0 %v6972
  %8557 = vmatpush1.bf16.msra.mxu0 %v6971
  %8558 = vmatprep.subr.bf16.mxu0 %v6979
  %8559 = vmatpush1.bf16.msra.mxu0 %v6978
  %8560 = vmatprep.mubr.bf16.mxu0 %v7291
  %8561 = vmatmul.mubr.bf16.gmra.mrb[0].mxu0 %v7290
  %v8562 = vpop.f32.mrb[0].mxu0
  %v8563 = vadd.f32 %v8410, %v8562
  %v8564 = vpop.f32.mrb[0].mxu0
  %v8565 = vadd.f32 %v8412, %v8564
  %v8566 = vpop.f32.mrb[0].mxu0
  %v8567 = vadd.f32 %v8414, %v8566
  %v8568 = vpop.f32.mrb[0].mxu0
  %v8569 = vadd.f32 %v8416, %v8568
  %8570 = vmatprep.mubr.bf16.mxu0 %v7297
  %8571 = vmatmul.mubr.bf16.gmra.mrb[0].mxu0 %v7296
  %v8572 = vpop.f32.mrb[0].mxu0
  %v8573 = vadd.f32 %v8420, %v8572
  %v8574 = vpop.f32.mrb[0].mxu0
  %v8575 = vadd.f32 %v8422, %v8574
  %v8576 = vpop.f32.mrb[0].mxu0
  %v8577 = vadd.f32 %v8424, %v8576
  %v8578 = vpop.f32.mrb[0].mxu0
  %v8579 = vadd.f32 %v8426, %v8578
  %8580 = vmatprep.mubr.bf16.mxu0 %v7303
  %8581 = vmatmul.mubr.bf16.gmra.mrb[0].mxu0 %v7302
  %v8582 = vpop.f32.mrb[0].mxu0
  %v8583 = vadd.f32 %v8430, %v8582
  %v8584 = vpop.f32.mrb[0].mxu0
  %v8585 = vadd.f32 %v8432, %v8584
  %v8586 = vpop.f32.mrb[0].mxu0
  %v8587 = vadd.f32 %v8434, %v8586
  %v8588 = vpop.f32.mrb[0].mxu0
  %v8589 = vadd.f32 %v8436, %v8588
  %8590 = vmatprep.mubr.bf16.mxu0 %v7309
  %8591 = vmatmul.mubr.bf16.gmra.mrb[0].mxu0 %v7308
  %v8592 = vpop.f32.mrb[0].mxu0
  %v8593 = vadd.f32 %v8440, %v8592
  %v8594 = vpop.f32.mrb[0].mxu0
  %v8595 = vadd.f32 %v8442, %v8594
  %v8596 = vpop.f32.mrb[0].mxu0
  %v8597 = vadd.f32 %v8444, %v8596
  %v8598 = vpop.f32.mrb[0].mxu0
  %v8599 = vadd.f32 %v8446, %v8598
  %8600 = vmatprep.mubr.bf16.mxu0 %v7315
  %8601 = vmatmul.mubr.bf16.gmra.mrb[0].mxu0 %v7314
  %v8602 = vpop.f32.mrb[0].mxu0
  %v8603 = vadd.f32 %v8450, %v8602
  %v8604 = vpop.f32.mrb[0].mxu0
  %v8605 = vadd.f32 %v8452, %v8604
  %v8606 = vpop.f32.mrb[0].mxu0
  %v8607 = vadd.f32 %v8454, %v8606
  %v8608 = vpop.f32.mrb[0].mxu0
  %v8609 = vadd.f32 %v8456, %v8608
  %8610 = vmatprep.mubr.bf16.mxu0 %v7321
  %8611 = vmatmul.mubr.bf16.gmra.mrb[0].mxu0 %v7320
  %v8612 = vpop.f32.mrb[0].mxu0
  %v8613 = vadd.f32 %v8460, %v8612
  %v8614 = vpop.f32.mrb[0].mxu0
  %v8615 = vadd.f32 %v8462, %v8614
  %v8616 = vpop.f32.mrb[0].mxu0
  %v8617 = vadd.f32 %v8464, %v8616
  %v8618 = vpop.f32.mrb[0].mxu0
  %v8619 = vadd.f32 %v8466, %v8618
  %8620 = vmatprep.mubr.bf16.mxu0 %v7327
  %8621 = vmatmul.mubr.bf16.gmra.mrb[0].mxu0 %v7326
  %v8622 = vpop.f32.mrb[0].mxu0
  %v8623 = vadd.f32 %v8470, %v8622
  %v8624 = vpop.f32.mrb[0].mxu0
  %v8625 = vadd.f32 %v8472, %v8624
  %v8626 = vpop.f32.mrb[0].mxu0
  %v8627 = vadd.f32 %v8474, %v8626
  %v8628 = vpop.f32.mrb[0].mxu0
  %v8629 = vadd.f32 %v8476, %v8628
  %8630 = vmatprep.mubr.bf16.mxu0 %v7333
  %8631 = vmatmul.mubr.bf16.gmra.mrb[0].mxu0 %v7332
  %v8632 = vpop.f32.mrb[0].mxu0
  %v8633 = vadd.f32 %v8480, %v8632
  %v8634 = vpop.f32.mrb[0].mxu0
  %v8635 = vadd.f32 %v8482, %v8634
  %v8636 = vpop.f32.mrb[0].mxu0
  %v8637 = vadd.f32 %v8484, %v8636
  %v8638 = vpop.f32.mrb[0].mxu0
  %v8639 = vadd.f32 %v8486, %v8638
  %8640 = vmatprep.mubr.bf16.mxu0 %v7339
  %8641 = vmatmul.mubr.bf16.gmra.mrb[0].mxu0 %v7338
  %v8642 = vpop.f32.mrb[0].mxu0
  %v8643 = vadd.f32 %v8490, %v8642
  %v8644 = vpop.f32.mrb[0].mxu0
  %v8645 = vadd.f32 %v8492, %v8644
  %v8646 = vpop.f32.mrb[0].mxu0
  %v8647 = vadd.f32 %v8494, %v8646
  %v8648 = vpop.f32.mrb[0].mxu0
  %v8649 = vadd.f32 %v8496, %v8648
  %8650 = vmatprep.mubr.bf16.mxu0 %v7345
  %8651 = vmatmul.mubr.bf16.gmra.mrb[0].mxu0 %v7344
  %v8652 = vpop.f32.mrb[0].mxu0
  %v8653 = vadd.f32 %v8500, %v8652
  %v8654 = vpop.f32.mrb[0].mxu0
  %v8655 = vadd.f32 %v8502, %v8654
  %v8656 = vpop.f32.mrb[0].mxu0
  %v8657 = vadd.f32 %v8504, %v8656
  %v8658 = vpop.f32.mrb[0].mxu0
  %v8659 = vadd.f32 %v8506, %v8658
  %8660 = vmatprep.mubr.bf16.mxu0 %v7351
  %8661 = vmatmul.mubr.bf16.gmra.mrb[0].mxu0 %v7350
  %v8662 = vpop.f32.mrb[0].mxu0
  %v8663 = vadd.f32 %v8510, %v8662
  %v8664 = vpop.f32.mrb[0].mxu0
  %v8665 = vadd.f32 %v8512, %v8664
  %v8666 = vpop.f32.mrb[0].mxu0
  %v8667 = vadd.f32 %v8514, %v8666
  %v8668 = vpop.f32.mrb[0].mxu0
  %v8669 = vadd.f32 %v8516, %v8668
  %8670 = vmatprep.mubr.bf16.mxu0 %v7357
  %8671 = vmatmul.mubr.bf16.gmra.mrb[0].mxu0 %v7356
  %v8672 = vpop.f32.mrb[0].mxu0
  %v8673 = vadd.f32 %v8520, %v8672
  %v8674 = vpop.f32.mrb[0].mxu0
  %v8675 = vadd.f32 %v8522, %v8674
  %v8676 = vpop.f32.mrb[0].mxu0
  %v8677 = vadd.f32 %v8524, %v8676
  %v8678 = vpop.f32.mrb[0].mxu0
  %v8679 = vadd.f32 %v8526, %v8678
  %8680 = vdwg.mxu0
  %8681 = vmatprep.subr.bf16.mxu0 %v6986
  %8682 = vmatpush1.bf16.msra.mxu0 %v6985
  %8683 = vmatprep.subr.bf16.mxu0 %v6993
  %8684 = vmatpush1.bf16.msra.mxu0 %v6992
  %8685 = vmatprep.subr.bf16.mxu0 %v7000
  %8686 = vmatpush1.bf16.msra.mxu0 %v6999
  %8687 = vmatprep.subr.bf16.mxu0 %v7007
  %8688 = vmatpush1.bf16.msra.mxu0 %v7006
  %8689 = vmatprep.subr.bf16.mxu0 %v7014
  %8690 = vmatpush1.bf16.msra.mxu0 %v7013
  %8691 = vmatprep.subr.bf16.mxu0 %v7021
  %8692 = vmatpush1.bf16.msra.mxu0 %v7020
  %8693 = vmatprep.subr.bf16.mxu0 %v7028
  %8694 = vmatpush1.bf16.msra.mxu0 %v7027
  %8695 = vmatprep.subr.bf16.mxu0 %v7035
  %8696 = vmatpush1.bf16.msra.mxu0 %v7034
  %8697 = vmatprep.subr.bf16.mxu0 %v7042
  %8698 = vmatpush1.bf16.msra.mxu0 %v7041
  %8699 = vmatprep.subr.bf16.mxu0 %v7049
  %8700 = vmatpush1.bf16.msra.mxu0 %v7048
  %8701 = vmatprep.subr.bf16.mxu0 %v7056
  %8702 = vmatpush1.bf16.msra.mxu0 %v7055
  %8703 = vmatprep.subr.bf16.mxu0 %v7063
  %8704 = vmatpush1.bf16.msra.mxu0 %v7062
  %8705 = vmatprep.subr.bf16.mxu0 %v7070
  %8706 = vmatpush1.bf16.msra.mxu0 %v7069
  %8707 = vmatprep.subr.bf16.mxu0 0
  %8708 = vmatpush1.bf16.msra.mxu0 0
  %8709 = vmatprep.subr.bf16.mxu0 0
  %8710 = vmatpush1.bf16.msra.mxu0 0
  %8711 = vmatprep.subr.bf16.mxu0 0
  %8712 = vmatpush1.bf16.msra.mxu0 0
  %8713 = vmatprep.mubr.bf16.mxu0 %v7422
  %8714 = vmatmul.mubr.bf16.gmra.mrb[0].mxu0 %v7292
  %v8715 = vpop.f32.mrb[0].mxu0
  %v8716 = vadd.f32 %v8563, %v8715
  %v8717 = vpop.f32.mrb[0].mxu0
  %v8718 = vadd.f32 %v8565, %v8717
  %v8719 = vpop.f32.mrb[0].mxu0
  %v8720 = vadd.f32 %v8567, %v8719
  %v8721 = vpop.f32.mrb[0].mxu0
  %v8722 = vadd.f32 %v8569, %v8721
  %8723 = vmatprep.mubr.bf16.mxu0 %v7425
  %8724 = vmatmul.mubr.bf16.gmra.mrb[0].mxu0 %v7298
  %v8725 = vpop.f32.mrb[0].mxu0
  %v8726 = vadd.f32 %v8573, %v8725
  %v8727 = vpop.f32.mrb[0].mxu0
  %v8728 = vadd.f32 %v8575, %v8727
  %v8729 = vpop.f32.mrb[0].mxu0
  %v8730 = vadd.f32 %v8577, %v8729
  %v8731 = vpop.f32.mrb[0].mxu0
  %v8732 = vadd.f32 %v8579, %v8731
  %8733 = vmatprep.mubr.bf16.mxu0 %v7428
  %8734 = vmatmul.mubr.bf16.gmra.mrb[0].mxu0 %v7304
  %v8735 = vpop.f32.mrb[0].mxu0
  %v8736 = vadd.f32 %v8583, %v8735
  %v8737 = vpop.f32.mrb[0].mxu0
  %v8738 = vadd.f32 %v8585, %v8737
  %v8739 = vpop.f32.mrb[0].mxu0
  %v8740 = vadd.f32 %v8587, %v8739
  %v8741 = vpop.f32.mrb[0].mxu0
  %v8742 = vadd.f32 %v8589, %v8741
  %8743 = vmatprep.mubr.bf16.mxu0 %v7431
  %8744 = vmatmul.mubr.bf16.gmra.mrb[0].mxu0 %v7310
  %v8745 = vpop.f32.mrb[0].mxu0
  %v8746 = vadd.f32 %v8593, %v8745
  %v8747 = vpop.f32.mrb[0].mxu0
  %v8748 = vadd.f32 %v8595, %v8747
  %v8749 = vpop.f32.mrb[0].mxu0
  %v8750 = vadd.f32 %v8597, %v8749
  %v8751 = vpop.f32.mrb[0].mxu0
  %v8752 = vadd.f32 %v8599, %v8751
  %8753 = vmatprep.mubr.bf16.mxu0 %v7434
  %8754 = vmatmul.mubr.bf16.gmra.mrb[0].mxu0 %v7316
  %v8755 = vpop.f32.mrb[0].mxu0
  %v8756 = vadd.f32 %v8603, %v8755
  %v8757 = vpop.f32.mrb[0].mxu0
  %v8758 = vadd.f32 %v8605, %v8757
  %v8759 = vpop.f32.mrb[0].mxu0
  %v8760 = vadd.f32 %v8607, %v8759
  %v8761 = vpop.f32.mrb[0].mxu0
  %v8762 = vadd.f32 %v8609, %v8761
  %8763 = vmatprep.mubr.bf16.mxu0 %v7437
  %8764 = vmatmul.mubr.bf16.gmra.mrb[0].mxu0 %v7322
  %v8765 = vpop.f32.mrb[0].mxu0
  %v8766 = vadd.f32 %v8613, %v8765
  %v8767 = vpop.f32.mrb[0].mxu0
  %v8768 = vadd.f32 %v8615, %v8767
  %v8769 = vpop.f32.mrb[0].mxu0
  %v8770 = vadd.f32 %v8617, %v8769
  %v8771 = vpop.f32.mrb[0].mxu0
  %v8772 = vadd.f32 %v8619, %v8771
  %8773 = vmatprep.mubr.bf16.mxu0 %v7440
  %8774 = vmatmul.mubr.bf16.gmra.mrb[0].mxu0 %v7328
  %v8775 = vpop.f32.mrb[0].mxu0
  %v8776 = vadd.f32 %v8623, %v8775
  %v8777 = vpop.f32.mrb[0].mxu0
  %v8778 = vadd.f32 %v8625, %v8777
  %v8779 = vpop.f32.mrb[0].mxu0
  %v8780 = vadd.f32 %v8627, %v8779
  %v8781 = vpop.f32.mrb[0].mxu0
  %v8782 = vadd.f32 %v8629, %v8781
  %8783 = vmatprep.mubr.bf16.mxu0 %v7443
  %8784 = vmatmul.mubr.bf16.gmra.mrb[0].mxu0 %v7334
  %v8785 = vpop.f32.mrb[0].mxu0
  %v8786 = vadd.f32 %v8633, %v8785
  %v8787 = vpop.f32.mrb[0].mxu0
  %v8788 = vadd.f32 %v8635, %v8787
  %v8789 = vpop.f32.mrb[0].mxu0
  %v8790 = vadd.f32 %v8637, %v8789
  %v8791 = vpop.f32.mrb[0].mxu0
  %v8792 = vadd.f32 %v8639, %v8791
  %8793 = vmatprep.mubr.bf16.mxu0 %v7446
  %8794 = vmatmul.mubr.bf16.gmra.mrb[0].mxu0 %v7340
  %v8795 = vpop.f32.mrb[0].mxu0
  %v8796 = vadd.f32 %v8643, %v8795
  %v8797 = vpop.f32.mrb[0].mxu0
  %v8798 = vadd.f32 %v8645, %v8797
  %v8799 = vpop.f32.mrb[0].mxu0
  %v8800 = vadd.f32 %v8647, %v8799
  %v8801 = vpop.f32.mrb[0].mxu0
  %v8802 = vadd.f32 %v8649, %v8801
  %8803 = vmatprep.mubr.bf16.mxu0 %v7449
  %8804 = vmatmul.mubr.bf16.gmra.mrb[0].mxu0 %v7346
  %v8805 = vpop.f32.mrb[0].mxu0
  %v8806 = vadd.f32 %v8653, %v8805
  %v8807 = vpop.f32.mrb[0].mxu0
  %v8808 = vadd.f32 %v8655, %v8807
  %v8809 = vpop.f32.mrb[0].mxu0
  %v8810 = vadd.f32 %v8657, %v8809
  %v8811 = vpop.f32.mrb[0].mxu0
  %v8812 = vadd.f32 %v8659, %v8811
  %8813 = vmatprep.mubr.bf16.mxu0 %v7452
  %8814 = vmatmul.mubr.bf16.gmra.mrb[0].mxu0 %v7352
  %v8815 = vpop.f32.mrb[0].mxu0
  %v8816 = vadd.f32 %v8663, %v8815
  %v8817 = vpop.f32.mrb[0].mxu0
  %v8818 = vadd.f32 %v8665, %v8817
  %v8819 = vpop.f32.mrb[0].mxu0
  %v8820 = vadd.f32 %v8667, %v8819
  %v8821 = vpop.f32.mrb[0].mxu0
  %v8822 = vadd.f32 %v8669, %v8821
  %8823 = vmatprep.mubr.bf16.mxu0 %v7455
  %8824 = vmatmul.mubr.bf16.gmra.mrb[0].mxu0 %v7358
  %v8825 = vpop.f32.mrb[0].mxu0
  %v8826 = vadd.f32 %v8673, %v8825
  %v8827 = vpop.f32.mrb[0].mxu0
  %v8828 = vadd.f32 %v8675, %v8827
  %v8829 = vpop.f32.mrb[0].mxu0
  %v8830 = vadd.f32 %v8677, %v8829
  %v8831 = vpop.f32.mrb[0].mxu0
  %v8832 = vadd.f32 %v8679, %v8831
  %8833 = vdwg.mxu0
  %8834 = vmatprep.subr.bf16.mxu0 0
  %8835 = vmatpush1.bf16.msra.mxu0 %v6763
  %8836 = vmatprep.subr.bf16.mxu0 0
  %8837 = vmatpush1.bf16.msra.mxu0 %v6770
  %8838 = vmatprep.subr.bf16.mxu0 0
  %8839 = vmatpush1.bf16.msra.mxu0 %v6777
  %8840 = vmatprep.subr.bf16.mxu0 0
  %8841 = vmatpush1.bf16.msra.mxu0 %v6784
  %8842 = vmatprep.subr.bf16.mxu0 0
  %8843 = vmatpush1.bf16.msra.mxu0 %v6791
  %8844 = vmatprep.subr.bf16.mxu0 0
  %8845 = vmatpush1.bf16.msra.mxu0 %v6798
  %8846 = vmatprep.subr.bf16.mxu0 0
  %8847 = vmatpush1.bf16.msra.mxu0 %v6805
  %8848 = vmatprep.subr.bf16.mxu0 0
  %8849 = vmatpush1.bf16.msra.mxu0 %v6812
  %8850 = vmatprep.subr.bf16.mxu0 0
  %8851 = vmatpush1.bf16.msra.mxu0 %v6819
  %8852 = vmatprep.subr.bf16.mxu0 0
  %8853 = vmatpush1.bf16.msra.mxu0 %v6826
  %8854 = vmatprep.subr.bf16.mxu0 0
  %8855 = vmatpush1.bf16.msra.mxu0 %v6833
  %8856 = vmatprep.subr.bf16.mxu0 0
  %8857 = vmatpush1.bf16.msra.mxu0 %v6840
  %8858 = vmatprep.subr.bf16.mxu0 0
  %8859 = vmatpush1.bf16.msra.mxu0 %v6847
  %8860 = vmatprep.subr.bf16.mxu0 0
  %8861 = vmatpush1.bf16.msra.mxu0 %v6854
  %8862 = vmatprep.subr.bf16.mxu0 0
  %8863 = vmatpush1.bf16.msra.mxu0 %v6861
  %8864 = vmatprep.subr.bf16.mxu0 0
  %8865 = vmatpush1.bf16.msra.mxu0 %v6868
  %8866 = vmatprep.mubr.bf16.mxu0 %v7289
  %8867 = vmatmul.mubr.bf16.gmra.mrb[0].mxu0 %v7288
  %v8868 = vpop.f32.mrb[0].mxu0
  %v8869 = vadd.f32 0.0, %v8868
  %v8870 = vpop.f32.mrb[0].mxu0
  %v8871 = vpop.f32.mrb[0].mxu0
  %v8872 = vadd.f32 0.0, %v8871
  %v8873 = vpop.f32.mrb[0].mxu0
  %8874 = vmatprep.mubr.bf16.mxu0 %v7295
  %8875 = vmatmul.mubr.bf16.gmra.mrb[0].mxu0 %v7294
  %v8876 = vpop.f32.mrb[0].mxu0
  %v8877 = vadd.f32 0.0, %v8876
  %v8878 = vpop.f32.mrb[0].mxu0
  %v8879 = vpop.f32.mrb[0].mxu0
  %v8880 = vadd.f32 0.0, %v8879
  %v8881 = vpop.f32.mrb[0].mxu0
  %8882 = vmatprep.mubr.bf16.mxu0 %v7301
  %8883 = vmatmul.mubr.bf16.gmra.mrb[0].mxu0 %v7300
  %v8884 = vpop.f32.mrb[0].mxu0
  %v8885 = vadd.f32 0.0, %v8884
  %v8886 = vpop.f32.mrb[0].mxu0
  %v8887 = vpop.f32.mrb[0].mxu0
  %v8888 = vadd.f32 0.0, %v8887
  %v8889 = vpop.f32.mrb[0].mxu0
  %8890 = vmatprep.mubr.bf16.mxu0 %v7307
  %8891 = vmatmul.mubr.bf16.gmra.mrb[0].mxu0 %v7306
  %v8892 = vpop.f32.mrb[0].mxu0
  %v8893 = vadd.f32 0.0, %v8892
  %v8894 = vpop.f32.mrb[0].mxu0
  %v8895 = vpop.f32.mrb[0].mxu0
  %v8896 = vadd.f32 0.0, %v8895
  %v8897 = vpop.f32.mrb[0].mxu0
  %8898 = vmatprep.mubr.bf16.mxu0 %v7313
  %8899 = vmatmul.mubr.bf16.gmra.mrb[0].mxu0 %v7312
  %v8900 = vpop.f32.mrb[0].mxu0
  %v8901 = vadd.f32 0.0, %v8900
  %v8902 = vpop.f32.mrb[0].mxu0
  %v8903 = vpop.f32.mrb[0].mxu0
  %v8904 = vadd.f32 0.0, %v8903
  %v8905 = vpop.f32.mrb[0].mxu0
  %8906 = vmatprep.mubr.bf16.mxu0 %v7319
  %8907 = vmatmul.mubr.bf16.gmra.mrb[0].mxu0 %v7318
  %v8908 = vpop.f32.mrb[0].mxu0
  %v8909 = vadd.f32 0.0, %v8908
  %v8910 = vpop.f32.mrb[0].mxu0
  %v8911 = vpop.f32.mrb[0].mxu0
  %v8912 = vadd.f32 0.0, %v8911
  %v8913 = vpop.f32.mrb[0].mxu0
  %8914 = vmatprep.mubr.bf16.mxu0 %v7325
  %8915 = vmatmul.mubr.bf16.gmra.mrb[0].mxu0 %v7324
  %v8916 = vpop.f32.mrb[0].mxu0
  %v8917 = vadd.f32 0.0, %v8916
  %v8918 = vpop.f32.mrb[0].mxu0
  %v8919 = vpop.f32.mrb[0].mxu0
  %v8920 = vadd.f32 0.0, %v8919
  %v8921 = vpop.f32.mrb[0].mxu0
  %8922 = vmatprep.mubr.bf16.mxu0 %v7331
  %8923 = vmatmul.mubr.bf16.gmra.mrb[0].mxu0 %v7330
  %v8924 = vpop.f32.mrb[0].mxu0
  %v8925 = vadd.f32 0.0, %v8924
  %v8926 = vpop.f32.mrb[0].mxu0
  %v8927 = vpop.f32.mrb[0].mxu0
  %v8928 = vadd.f32 0.0, %v8927
  %v8929 = vpop.f32.mrb[0].mxu0
  %8930 = vmatprep.mubr.bf16.mxu0 %v7337
  %8931 = vmatmul.mubr.bf16.gmra.mrb[0].mxu0 %v7336
  %v8932 = vpop.f32.mrb[0].mxu0
  %v8933 = vadd.f32 0.0, %v8932
  %v8934 = vpop.f32.mrb[0].mxu0
  %v8935 = vpop.f32.mrb[0].mxu0
  %v8936 = vadd.f32 0.0, %v8935
  %v8937 = vpop.f32.mrb[0].mxu0
  %8938 = vmatprep.mubr.bf16.mxu0 %v7343
  %8939 = vmatmul.mubr.bf16.gmra.mrb[0].mxu0 %v7342
  %v8940 = vpop.f32.mrb[0].mxu0
  %v8941 = vadd.f32 0.0, %v8940
  %v8942 = vpop.f32.mrb[0].mxu0
  %v8943 = vpop.f32.mrb[0].mxu0
  %v8944 = vadd.f32 0.0, %v8943
  %v8945 = vpop.f32.mrb[0].mxu0
  %8946 = vmatprep.mubr.bf16.mxu0 %v7349
  %8947 = vmatmul.mubr.bf16.gmra.mrb[0].mxu0 %v7348
  %v8948 = vpop.f32.mrb[0].mxu0
  %v8949 = vadd.f32 0.0, %v8948
  %v8950 = vpop.f32.mrb[0].mxu0
  %v8951 = vpop.f32.mrb[0].mxu0
  %v8952 = vadd.f32 0.0, %v8951
  %v8953 = vpop.f32.mrb[0].mxu0
  %8954 = vmatprep.mubr.bf16.mxu0 %v7355
  %8955 = vmatmul.mubr.bf16.gmra.mrb[0].mxu0 %v7354
  %v8956 = vpop.f32.mrb[0].mxu0
  %v8957 = vadd.f32 0.0, %v8956
  %v8958 = vpop.f32.mrb[0].mxu0
  %v8959 = vpop.f32.mrb[0].mxu0
  %v8960 = vadd.f32 0.0, %v8959
  %v8961 = vpop.f32.mrb[0].mxu0
  %8962 = vdwg.mxu0
  %8963 = vmatprep.subr.bf16.mxu0 0
  %8964 = vmatpush1.bf16.msra.mxu0 %v6875
  %8965 = vmatprep.subr.bf16.mxu0 0
  %8966 = vmatpush1.bf16.msra.mxu0 %v6882
  %8967 = vmatprep.subr.bf16.mxu0 0
  %8968 = vmatpush1.bf16.msra.mxu0 %v6889
  %8969 = vmatprep.subr.bf16.mxu0 0
  %8970 = vmatpush1.bf16.msra.mxu0 %v6896
  %8971 = vmatprep.subr.bf16.mxu0 0
  %8972 = vmatpush1.bf16.msra.mxu0 %v6903
  %8973 = vmatprep.subr.bf16.mxu0 0
  %8974 = vmatpush1.bf16.msra.mxu0 %v6910
  %8975 = vmatprep.subr.bf16.mxu0 0
  %8976 = vmatpush1.bf16.msra.mxu0 %v6917
  %8977 = vmatprep.subr.bf16.mxu0 0
  %8978 = vmatpush1.bf16.msra.mxu0 %v6924
  %8979 = vmatprep.subr.bf16.mxu0 0
  %8980 = vmatpush1.bf16.msra.mxu0 %v6931
  %8981 = vmatprep.subr.bf16.mxu0 0
  %8982 = vmatpush1.bf16.msra.mxu0 %v6938
  %8983 = vmatprep.subr.bf16.mxu0 0
  %8984 = vmatpush1.bf16.msra.mxu0 %v6945
  %8985 = vmatprep.subr.bf16.mxu0 0
  %8986 = vmatpush1.bf16.msra.mxu0 %v6952
  %8987 = vmatprep.subr.bf16.mxu0 0
  %8988 = vmatpush1.bf16.msra.mxu0 %v6959
  %8989 = vmatprep.subr.bf16.mxu0 0
  %8990 = vmatpush1.bf16.msra.mxu0 %v6966
  %8991 = vmatprep.subr.bf16.mxu0 0
  %8992 = vmatpush1.bf16.msra.mxu0 %v6973
  %8993 = vmatprep.subr.bf16.mxu0 0
  %8994 = vmatpush1.bf16.msra.mxu0 %v6980
  %8995 = vmatprep.mubr.bf16.mxu0 %v7291
  %8996 = vmatmul.mubr.bf16.gmra.mrb[0].mxu0 %v7290
  %v8997 = vpop.f32.mrb[0].mxu0
  %v8998 = vadd.f32 %v8869, %v8997
  %v8999 = vpop.f32.mrb[0].mxu0
  %v9000 = vpop.f32.mrb[0].mxu0
  %v9001 = vadd.f32 %v8872, %v9000
  %v9002 = vpop.f32.mrb[0].mxu0
  %9003 = vmatprep.mubr.bf16.mxu0 %v7297
  %9004 = vmatmul.mubr.bf16.gmra.mrb[0].mxu0 %v7296
  %v9005 = vpop.f32.mrb[0].mxu0
  %v9006 = vadd.f32 %v8877, %v9005
  %v9007 = vpop.f32.mrb[0].mxu0
  %v9008 = vpop.f32.mrb[0].mxu0
  %v9009 = vadd.f32 %v8880, %v9008
  %v9010 = vpop.f32.mrb[0].mxu0
  %9011 = vmatprep.mubr.bf16.mxu0 %v7303
  %9012 = vmatmul.mubr.bf16.gmra.mrb[0].mxu0 %v7302
  %v9013 = vpop.f32.mrb[0].mxu0
  %v9014 = vadd.f32 %v8885, %v9013
  %v9015 = vpop.f32.mrb[0].mxu0
  %v9016 = vpop.f32.mrb[0].mxu0
  %v9017 = vadd.f32 %v8888, %v9016
  %v9018 = vpop.f32.mrb[0].mxu0
  %9019 = vmatprep.mubr.bf16.mxu0 %v7309
  %9020 = vmatmul.mubr.bf16.gmra.mrb[0].mxu0 %v7308
  %v9021 = vpop.f32.mrb[0].mxu0
  %v9022 = vadd.f32 %v8893, %v9021
  %v9023 = vpop.f32.mrb[0].mxu0
  %v9024 = vpop.f32.mrb[0].mxu0
  %v9025 = vadd.f32 %v8896, %v9024
  %v9026 = vpop.f32.mrb[0].mxu0
  %9027 = vmatprep.mubr.bf16.mxu0 %v7315
  %9028 = vmatmul.mubr.bf16.gmra.mrb[0].mxu0 %v7314
  %v9029 = vpop.f32.mrb[0].mxu0
  %v9030 = vadd.f32 %v8901, %v9029
  %v9031 = vpop.f32.mrb[0].mxu0
  %v9032 = vpop.f32.mrb[0].mxu0
  %v9033 = vadd.f32 %v8904, %v9032
  %v9034 = vpop.f32.mrb[0].mxu0
  %9035 = vmatprep.mubr.bf16.mxu0 %v7321
  %9036 = vmatmul.mubr.bf16.gmra.mrb[0].mxu0 %v7320
  %v9037 = vpop.f32.mrb[0].mxu0
  %v9038 = vadd.f32 %v8909, %v9037
  %v9039 = vpop.f32.mrb[0].mxu0
  %v9040 = vpop.f32.mrb[0].mxu0
  %v9041 = vadd.f32 %v8912, %v9040
  %v9042 = vpop.f32.mrb[0].mxu0
  %9043 = vmatprep.mubr.bf16.mxu0 %v7327
  %9044 = vmatmul.mubr.bf16.gmra.mrb[0].mxu0 %v7326
  %v9045 = vpop.f32.mrb[0].mxu0
  %v9046 = vadd.f32 %v8917, %v9045
  %v9047 = vpop.f32.mrb[0].mxu0
  %v9048 = vpop.f32.mrb[0].mxu0
  %v9049 = vadd.f32 %v8920, %v9048
  %v9050 = vpop.f32.mrb[0].mxu0
  %9051 = vmatprep.mubr.bf16.mxu0 %v7333
  %9052 = vmatmul.mubr.bf16.gmra.mrb[0].mxu0 %v7332
  %v9053 = vpop.f32.mrb[0].mxu0
  %v9054 = vadd.f32 %v8925, %v9053
  %v9055 = vpop.f32.mrb[0].mxu0
  %v9056 = vpop.f32.mrb[0].mxu0
  %v9057 = vadd.f32 %v8928, %v9056
  %v9058 = vpop.f32.mrb[0].mxu0
  %9059 = vmatprep.mubr.bf16.mxu0 %v7339
  %9060 = vmatmul.mubr.bf16.gmra.mrb[0].mxu0 %v7338
  %v9061 = vpop.f32.mrb[0].mxu0
  %v9062 = vadd.f32 %v8933, %v9061
  %v9063 = vpop.f32.mrb[0].mxu0
  %v9064 = vpop.f32.mrb[0].mxu0
  %v9065 = vadd.f32 %v8936, %v9064
  %v9066 = vpop.f32.mrb[0].mxu0
  %9067 = vmatprep.mubr.bf16.mxu0 %v7345
  %9068 = vmatmul.mubr.bf16.gmra.mrb[0].mxu0 %v7344
  %v9069 = vpop.f32.mrb[0].mxu0
  %v9070 = vadd.f32 %v8941, %v9069
  %v9071 = vpop.f32.mrb[0].mxu0
  %v9072 = vpop.f32.mrb[0].mxu0
  %v9073 = vadd.f32 %v8944, %v9072
  %v9074 = vpop.f32.mrb[0].mxu0
  %9075 = vmatprep.mubr.bf16.mxu0 %v7351
  %9076 = vmatmul.mubr.bf16.gmra.mrb[0].mxu0 %v7350
  %v9077 = vpop.f32.mrb[0].mxu0
  %v9078 = vadd.f32 %v8949, %v9077
  %v9079 = vpop.f32.mrb[0].mxu0
  %v9080 = vpop.f32.mrb[0].mxu0
  %v9081 = vadd.f32 %v8952, %v9080
  %v9082 = vpop.f32.mrb[0].mxu0
  %9083 = vmatprep.mubr.bf16.mxu0 %v7357
  %9084 = vmatmul.mubr.bf16.gmra.mrb[0].mxu0 %v7356
  %v9085 = vpop.f32.mrb[0].mxu0
  %v9086 = vadd.f32 %v8957, %v9085
  %v9087 = vpop.f32.mrb[0].mxu0
  %v9088 = vpop.f32.mrb[0].mxu0
  %v9089 = vadd.f32 %v8960, %v9088
  %v9090 = vpop.f32.mrb[0].mxu0
  %9091 = vdwg.mxu0
  %9092 = vmatprep.subr.bf16.mxu0 0
  %9093 = vmatpush1.bf16.msra.mxu0 %v6987
  %9094 = vmatprep.subr.bf16.mxu0 0
  %9095 = vmatpush1.bf16.msra.mxu0 %v6994
  %9096 = vmatprep.subr.bf16.mxu0 0
  %9097 = vmatpush1.bf16.msra.mxu0 %v7001
  %9098 = vmatprep.subr.bf16.mxu0 0
  %9099 = vmatpush1.bf16.msra.mxu0 %v7008
  %9100 = vmatprep.subr.bf16.mxu0 0
  %9101 = vmatpush1.bf16.msra.mxu0 %v7015
  %9102 = vmatprep.subr.bf16.mxu0 0
  %9103 = vmatpush1.bf16.msra.mxu0 %v7022
  %9104 = vmatprep.subr.bf16.mxu0 0
  %9105 = vmatpush1.bf16.msra.mxu0 %v7029
  %9106 = vmatprep.subr.bf16.mxu0 0
  %9107 = vmatpush1.bf16.msra.mxu0 %v7036
  %9108 = vmatprep.subr.bf16.mxu0 0
  %9109 = vmatpush1.bf16.msra.mxu0 %v7043
  %9110 = vmatprep.subr.bf16.mxu0 0
  %9111 = vmatpush1.bf16.msra.mxu0 %v7050
  %9112 = vmatprep.subr.bf16.mxu0 0
  %9113 = vmatpush1.bf16.msra.mxu0 %v7057
  %9114 = vmatprep.subr.bf16.mxu0 0
  %9115 = vmatpush1.bf16.msra.mxu0 %v7064
  %9116 = vmatprep.subr.bf16.mxu0 0
  %9117 = vmatpush1.bf16.msra.mxu0 %v7071
  %9118 = vmatprep.subr.bf16.mxu0 0
  %9119 = vmatpush1.bf16.msra.mxu0 0
  %9120 = vmatprep.subr.bf16.mxu0 0
  %9121 = vmatpush1.bf16.msra.mxu0 0
  %9122 = vmatprep.subr.bf16.mxu0 0
  %9123 = vmatpush1.bf16.msra.mxu0 0
  %9124 = vmatprep.mubr.bf16.mxu0 %v7422
  %9125 = vmatmul.mubr.bf16.gmra.mrb[0].mxu0 %v7292
  %v9126 = vpop.f32.mrb[0].mxu0
  %v9127 = vadd.f32 %v8998, %v9126
  %v9128 = vpop.f32.mrb[0].mxu0
  %v9129 = vpop.f32.mrb[0].mxu0
  %v9130 = vadd.f32 %v9001, %v9129
  %v9131 = vpop.f32.mrb[0].mxu0
  %9132 = vmatprep.mubr.bf16.mxu0 %v7425
  %9133 = vmatmul.mubr.bf16.gmra.mrb[0].mxu0 %v7298
  %v9134 = vpop.f32.mrb[0].mxu0
  %v9135 = vadd.f32 %v9006, %v9134
  %v9136 = vpop.f32.mrb[0].mxu0
  %v9137 = vpop.f32.mrb[0].mxu0
  %v9138 = vadd.f32 %v9009, %v9137
  %v9139 = vpop.f32.mrb[0].mxu0
  %9140 = vmatprep.mubr.bf16.mxu0 %v7428
  %9141 = vmatmul.mubr.bf16.gmra.mrb[0].mxu0 %v7304
  %v9142 = vpop.f32.mrb[0].mxu0
  %v9143 = vadd.f32 %v9014, %v9142
  %v9144 = vpop.f32.mrb[0].mxu0
  %v9145 = vpop.f32.mrb[0].mxu0
  %v9146 = vadd.f32 %v9017, %v9145
  %v9147 = vpop.f32.mrb[0].mxu0
  %9148 = vmatprep.mubr.bf16.mxu0 %v7431
  %9149 = vmatmul.mubr.bf16.gmra.mrb[0].mxu0 %v7310
  %v9150 = vpop.f32.mrb[0].mxu0
  %v9151 = vadd.f32 %v9022, %v9150
  %v9152 = vpop.f32.mrb[0].mxu0
  %v9153 = vpop.f32.mrb[0].mxu0
  %v9154 = vadd.f32 %v9025, %v9153
  %v9155 = vpop.f32.mrb[0].mxu0
  %9156 = vmatprep.mubr.bf16.mxu0 %v7434
  %9157 = vmatmul.mubr.bf16.gmra.mrb[0].mxu0 %v7316
  %v9158 = vpop.f32.mrb[0].mxu0
  %v9159 = vadd.f32 %v9030, %v9158
  %v9160 = vpop.f32.mrb[0].mxu0
  %v9161 = vpop.f32.mrb[0].mxu0
  %v9162 = vadd.f32 %v9033, %v9161
  %v9163 = vpop.f32.mrb[0].mxu0
  %9164 = vmatprep.mubr.bf16.mxu0 %v7437
  %9165 = vmatmul.mubr.bf16.gmra.mrb[0].mxu0 %v7322
  %v9166 = vpop.f32.mrb[0].mxu0
  %v9167 = vadd.f32 %v9038, %v9166
  %v9168 = vpop.f32.mrb[0].mxu0
  %v9169 = vpop.f32.mrb[0].mxu0
  %v9170 = vadd.f32 %v9041, %v9169
  %v9171 = vpop.f32.mrb[0].mxu0
  %9172 = vmatprep.mubr.bf16.mxu0 %v7440
  %9173 = vmatmul.mubr.bf16.gmra.mrb[0].mxu0 %v7328
  %v9174 = vpop.f32.mrb[0].mxu0
  %v9175 = vadd.f32 %v9046, %v9174
  %v9176 = vpop.f32.mrb[0].mxu0
  %v9177 = vpop.f32.mrb[0].mxu0
  %v9178 = vadd.f32 %v9049, %v9177
  %v9179 = vpop.f32.mrb[0].mxu0
  %9180 = vmatprep.mubr.bf16.mxu0 %v7443
  %9181 = vmatmul.mubr.bf16.gmra.mrb[0].mxu0 %v7334
  %v9182 = vpop.f32.mrb[0].mxu0
  %v9183 = vadd.f32 %v9054, %v9182
  %v9184 = vpop.f32.mrb[0].mxu0
  %v9185 = vpop.f32.mrb[0].mxu0
  %v9186 = vadd.f32 %v9057, %v9185
  %v9187 = vpop.f32.mrb[0].mxu0
  %9188 = vmatprep.mubr.bf16.mxu0 %v7446
  %9189 = vmatmul.mubr.bf16.gmra.mrb[0].mxu0 %v7340
  %v9190 = vpop.f32.mrb[0].mxu0
  %v9191 = vadd.f32 %v9062, %v9190
  %v9192 = vpop.f32.mrb[0].mxu0
  %v9193 = vpop.f32.mrb[0].mxu0
  %v9194 = vadd.f32 %v9065, %v9193
  %v9195 = vpop.f32.mrb[0].mxu0
  %9196 = vmatprep.mubr.bf16.mxu0 %v7449
  %9197 = vmatmul.mubr.bf16.gmra.mrb[0].mxu0 %v7346
  %v9198 = vpop.f32.mrb[0].mxu0
  %v9199 = vadd.f32 %v9070, %v9198
  %v9200 = vpop.f32.mrb[0].mxu0
  %v9201 = vpop.f32.mrb[0].mxu0
  %v9202 = vadd.f32 %v9073, %v9201
  %v9203 = vpop.f32.mrb[0].mxu0
  %9204 = vmatprep.mubr.bf16.mxu0 %v7452
  %9205 = vmatmul.mubr.bf16.gmra.mrb[0].mxu0 %v7352
  %v9206 = vpop.f32.mrb[0].mxu0
  %v9207 = vadd.f32 %v9078, %v9206
  %v9208 = vpop.f32.mrb[0].mxu0
  %v9209 = vpop.f32.mrb[0].mxu0
  %v9210 = vadd.f32 %v9081, %v9209
  %v9211 = vpop.f32.mrb[0].mxu0
  %9212 = vmatprep.mubr.bf16.mxu0 %v7455
  %9213 = vmatmul.mubr.bf16.gmra.mrb[0].mxu0 %v7358
  %v9214 = vpop.f32.mrb[0].mxu0
  %v9215 = vadd.f32 %v9086, %v9214
  %v9216 = vpop.f32.mrb[0].mxu0
  %v9217 = vpop.f32.mrb[0].mxu0
  %v9218 = vadd.f32 %v9089, %v9217
  %v9219 = vpop.f32.mrb[0].mxu0
  %9220 = vdwg.mxu0
  %v9221 = vadd.f32 %v7798, %v7800
  %v9222 = vadd.f32 %v9221, %v8257
  %v9223 = vadd.f32 %v9222, %v8259
  %v9224 = vadd.f32 %v9223, %v8716
  %v9225 = vadd.f32 %v9224, %v8718
  %v9226 = vsel %vm659, %v9127, 0.0
  %v9227 = vadd.f32 %v9225, %v9226
  %9228 = vadd.xlane.f32.xlu0 %v9227
  %v9229 = vpop.xlane.xlu0 %9228
  %v9230 = vadd.f32 %v7802, %v7804
  %v9231 = vadd.f32 %v9230, %v8261
  %v9232 = vadd.f32 %v9231, %v8263
  %v9233 = vadd.f32 %v9232, %v8720
  %v9234 = vadd.f32 %v9233, %v8722
  %v9235 = vsel %vm659, %v9130, 0.0
  %v9236 = vadd.f32 %v9234, %v9235
  %9237 = vadd.xlane.f32.xlu0 %v9236
  %v9238 = vpop.xlane.xlu0 %9237
  %v9239 = vadd.f32 %v7808, %v7810
  %v9240 = vadd.f32 %v9239, %v8267
  %v9241 = vadd.f32 %v9240, %v8269
  %v9242 = vadd.f32 %v9241, %v8726
  %v9243 = vadd.f32 %v9242, %v8728
  %v9244 = vsel %vm659, %v9135, 0.0
  %v9245 = vadd.f32 %v9243, %v9244
  %9246 = vadd.xlane.f32.xlu0 %v9245
  %v9247 = vpop.xlane.xlu0 %9246
  %v9248 = vadd.f32 %v7812, %v7814
  %v9249 = vadd.f32 %v9248, %v8271
  %v9250 = vadd.f32 %v9249, %v8273
  %v9251 = vadd.f32 %v9250, %v8730
  %v9252 = vadd.f32 %v9251, %v8732
  %v9253 = vsel %vm659, %v9138, 0.0
  %v9254 = vadd.f32 %v9252, %v9253
  %9255 = vadd.xlane.f32.xlu0 %v9254
  %v9256 = vpop.xlane.xlu0 %9255
  %v9257 = vadd.f32 %v7818, %v7820
  %v9258 = vadd.f32 %v9257, %v8277
  %v9259 = vadd.f32 %v9258, %v8279
  %v9260 = vadd.f32 %v9259, %v8736
  %v9261 = vadd.f32 %v9260, %v8738
  %v9262 = vsel %vm659, %v9143, 0.0
  %v9263 = vadd.f32 %v9261, %v9262
  %9264 = vadd.xlane.f32.xlu0 %v9263
  %v9265 = vpop.xlane.xlu0 %9264
  %v9266 = vadd.f32 %v7822, %v7824
  %v9267 = vadd.f32 %v9266, %v8281
  %v9268 = vadd.f32 %v9267, %v8283
  %v9269 = vadd.f32 %v9268, %v8740
  %v9270 = vadd.f32 %v9269, %v8742
  %v9271 = vsel %vm659, %v9146, 0.0
  %v9272 = vadd.f32 %v9270, %v9271
  %9273 = vadd.xlane.f32.xlu0 %v9272
  %v9274 = vpop.xlane.xlu0 %9273
  %v9275 = vadd.f32 %v7828, %v7830
  %v9276 = vadd.f32 %v9275, %v8287
  %v9277 = vadd.f32 %v9276, %v8289
  %v9278 = vadd.f32 %v9277, %v8746
  %v9279 = vadd.f32 %v9278, %v8748
  %v9280 = vsel %vm659, %v9151, 0.0
  %v9281 = vadd.f32 %v9279, %v9280
  %9282 = vadd.xlane.f32.xlu0 %v9281
  %v9283 = vpop.xlane.xlu0 %9282
  %v9284 = vadd.f32 %v7832, %v7834
  %v9285 = vadd.f32 %v9284, %v8291
  %v9286 = vadd.f32 %v9285, %v8293
  %v9287 = vadd.f32 %v9286, %v8750
  %v9288 = vadd.f32 %v9287, %v8752
  %v9289 = vsel %vm659, %v9154, 0.0
  %v9290 = vadd.f32 %v9288, %v9289
  %9291 = vadd.xlane.f32.xlu0 %v9290
  %v9292 = vpop.xlane.xlu0 %9291
  %v9293 = vadd.f32 %v7838, %v7840
  %v9294 = vadd.f32 %v9293, %v8297
  %v9295 = vadd.f32 %v9294, %v8299
  %v9296 = vadd.f32 %v9295, %v8756
  %v9297 = vadd.f32 %v9296, %v8758
  %v9298 = vsel %vm659, %v9159, 0.0
  %v9299 = vadd.f32 %v9297, %v9298
  %9300 = vadd.xlane.f32.xlu0 %v9299
  %v9301 = vpop.xlane.xlu0 %9300
  %v9302 = vadd.f32 %v7842, %v7844
  %v9303 = vadd.f32 %v9302, %v8301
  %v9304 = vadd.f32 %v9303, %v8303
  %v9305 = vadd.f32 %v9304, %v8760
  %v9306 = vadd.f32 %v9305, %v8762
  %v9307 = vsel %vm659, %v9162, 0.0
  %v9308 = vadd.f32 %v9306, %v9307
  %9309 = vadd.xlane.f32.xlu0 %v9308
  %v9310 = vpop.xlane.xlu0 %9309
  %v9311 = vadd.f32 %v7848, %v7850
  %v9312 = vadd.f32 %v9311, %v8307
  %v9313 = vadd.f32 %v9312, %v8309
  %v9314 = vadd.f32 %v9313, %v8766
  %v9315 = vadd.f32 %v9314, %v8768
  %v9316 = vsel %vm659, %v9167, 0.0
  %v9317 = vadd.f32 %v9315, %v9316
  %9318 = vadd.xlane.f32.xlu0 %v9317
  %v9319 = vpop.xlane.xlu0 %9318
  %v9320 = vadd.f32 %v7852, %v7854
  %v9321 = vadd.f32 %v9320, %v8311
  %v9322 = vadd.f32 %v9321, %v8313
  %v9323 = vadd.f32 %v9322, %v8770
  %v9324 = vadd.f32 %v9323, %v8772
  %v9325 = vsel %vm659, %v9170, 0.0
  %v9326 = vadd.f32 %v9324, %v9325
  %9327 = vadd.xlane.f32.xlu0 %v9326
  %v9328 = vpop.xlane.xlu0 %9327
  %v9329 = vadd.f32 %v7858, %v7860
  %v9330 = vadd.f32 %v9329, %v8317
  %v9331 = vadd.f32 %v9330, %v8319
  %v9332 = vadd.f32 %v9331, %v8776
  %v9333 = vadd.f32 %v9332, %v8778
  %v9334 = vsel %vm659, %v9175, 0.0
  %v9335 = vadd.f32 %v9333, %v9334
  %9336 = vadd.xlane.f32.xlu0 %v9335
  %v9337 = vpop.xlane.xlu0 %9336
  %v9338 = vadd.f32 %v7862, %v7864
  %v9339 = vadd.f32 %v9338, %v8321
  %v9340 = vadd.f32 %v9339, %v8323
  %v9341 = vadd.f32 %v9340, %v8780
  %v9342 = vadd.f32 %v9341, %v8782
  %v9343 = vsel %vm659, %v9178, 0.0
  %v9344 = vadd.f32 %v9342, %v9343
  %9345 = vadd.xlane.f32.xlu0 %v9344
  %v9346 = vpop.xlane.xlu0 %9345
  %v9347 = vadd.f32 %v7868, %v7870
  %v9348 = vadd.f32 %v9347, %v8327
  %v9349 = vadd.f32 %v9348, %v8329
  %v9350 = vadd.f32 %v9349, %v8786
  %v9351 = vadd.f32 %v9350, %v8788
  %v9352 = vsel %vm659, %v9183, 0.0
  %v9353 = vadd.f32 %v9351, %v9352
  %9354 = vadd.xlane.f32.xlu0 %v9353
  %v9355 = vpop.xlane.xlu0 %9354
  %v9356 = vadd.f32 %v7872, %v7874
  %v9357 = vadd.f32 %v9356, %v8331
  %v9358 = vadd.f32 %v9357, %v8333
  %v9359 = vadd.f32 %v9358, %v8790
  %v9360 = vadd.f32 %v9359, %v8792
  %v9361 = vsel %vm659, %v9186, 0.0
  %v9362 = vadd.f32 %v9360, %v9361
  %9363 = vadd.xlane.f32.xlu0 %v9362
  %v9364 = vpop.xlane.xlu0 %9363
  %v9365 = vadd.f32 %v7878, %v7880
  %v9366 = vadd.f32 %v9365, %v8337
  %v9367 = vadd.f32 %v9366, %v8339
  %v9368 = vadd.f32 %v9367, %v8796
  %v9369 = vadd.f32 %v9368, %v8798
  %v9370 = vsel %vm659, %v9191, 0.0
  %v9371 = vadd.f32 %v9369, %v9370
  %9372 = vadd.xlane.f32.xlu0 %v9371
  %v9373 = vpop.xlane.xlu0 %9372
  %v9374 = vadd.f32 %v7882, %v7884
  %v9375 = vadd.f32 %v9374, %v8341
  %v9376 = vadd.f32 %v9375, %v8343
  %v9377 = vadd.f32 %v9376, %v8800
  %v9378 = vadd.f32 %v9377, %v8802
  %v9379 = vsel %vm659, %v9194, 0.0
  %v9380 = vadd.f32 %v9378, %v9379
  %9381 = vadd.xlane.f32.xlu0 %v9380
  %v9382 = vpop.xlane.xlu0 %9381
  %v9383 = vadd.f32 %v7888, %v7890
  %v9384 = vadd.f32 %v9383, %v8347
  %v9385 = vadd.f32 %v9384, %v8349
  %v9386 = vadd.f32 %v9385, %v8806
  %v9387 = vadd.f32 %v9386, %v8808
  %v9388 = vsel %vm659, %v9199, 0.0
  %v9389 = vadd.f32 %v9387, %v9388
  %9390 = vadd.xlane.f32.xlu0 %v9389
  %v9391 = vpop.xlane.xlu0 %9390
  %v9392 = vadd.f32 %v7892, %v7894
  %v9393 = vadd.f32 %v9392, %v8351
  %v9394 = vadd.f32 %v9393, %v8353
  %v9395 = vadd.f32 %v9394, %v8810
  %v9396 = vadd.f32 %v9395, %v8812
  %v9397 = vsel %vm659, %v9202, 0.0
  %v9398 = vadd.f32 %v9396, %v9397
  %9399 = vadd.xlane.f32.xlu0 %v9398
  %v9400 = vpop.xlane.xlu0 %9399
  %v9401 = vadd.f32 %v7898, %v7900
  %v9402 = vadd.f32 %v9401, %v8357
  %v9403 = vadd.f32 %v9402, %v8359
  %v9404 = vadd.f32 %v9403, %v8816
  %v9405 = vadd.f32 %v9404, %v8818
  %v9406 = vsel %vm659, %v9207, 0.0
  %v9407 = vadd.f32 %v9405, %v9406
  %9408 = vadd.xlane.f32.xlu0 %v9407
  %v9409 = vpop.xlane.xlu0 %9408
  %v9410 = vadd.f32 %v7902, %v7904
  %v9411 = vadd.f32 %v9410, %v8361
  %v9412 = vadd.f32 %v9411, %v8363
  %v9413 = vadd.f32 %v9412, %v8820
  %v9414 = vadd.f32 %v9413, %v8822
  %v9415 = vsel %vm659, %v9210, 0.0
  %v9416 = vadd.f32 %v9414, %v9415
  %9417 = vadd.xlane.f32.xlu0 %v9416
  %v9418 = vpop.xlane.xlu0 %9417
  %v9419 = vadd.f32 %v7908, %v7910
  %v9420 = vadd.f32 %v9419, %v8367
  %v9421 = vadd.f32 %v9420, %v8369
  %v9422 = vadd.f32 %v9421, %v8826
  %v9423 = vadd.f32 %v9422, %v8828
  %v9424 = vsel %vm659, %v9215, 0.0
  %v9425 = vadd.f32 %v9423, %v9424
  %9426 = vadd.xlane.f32.xlu0 %v9425
  %v9427 = vpop.xlane.xlu0 %9426
  %v9428 = vadd.f32 %v7912, %v7914
  %v9429 = vadd.f32 %v9428, %v8371
  %v9430 = vadd.f32 %v9429, %v8373
  %v9431 = vadd.f32 %v9430, %v8830
  %v9432 = vadd.f32 %v9431, %v8832
  %v9433 = vsel %vm659, %v9218, 0.0
  %v9434 = vadd.f32 %v9432, %v9433
  %9435 = vadd.xlane.f32.xlu0 %v9434
  %v9436 = vpop.xlane.xlu0 %9435
  %v9437 = vmul.f32 %v7798, %v7798
  %v9438 = vmul.f32 %v7800, %v7800
  %v9439 = vmul.f32 %v8257, %v8257
  %v9440 = vmul.f32 %v8259, %v8259
  %v9441 = vmul.f32 %v8716, %v8716
  %v9442 = vmul.f32 %v8718, %v8718
  %v9443 = vmul.f32 %v9127, %v9127
  %v9444 = vmul.f32 %v7802, %v7802
  %v9445 = vmul.f32 %v7804, %v7804
  %v9446 = vmul.f32 %v8261, %v8261
  %v9447 = vmul.f32 %v8263, %v8263
  %v9448 = vmul.f32 %v8720, %v8720
  %v9449 = vmul.f32 %v8722, %v8722
  %v9450 = vmul.f32 %v9130, %v9130
  %v9451 = vmul.f32 %v7808, %v7808
  %v9452 = vmul.f32 %v7810, %v7810
  %v9453 = vmul.f32 %v8267, %v8267
  %v9454 = vmul.f32 %v8269, %v8269
  %v9455 = vmul.f32 %v8726, %v8726
  %v9456 = vmul.f32 %v8728, %v8728
  %v9457 = vmul.f32 %v9135, %v9135
  %v9458 = vmul.f32 %v7812, %v7812
  %v9459 = vmul.f32 %v7814, %v7814
  %v9460 = vmul.f32 %v8271, %v8271
  %v9461 = vmul.f32 %v8273, %v8273
  %v9462 = vmul.f32 %v8730, %v8730
  %v9463 = vmul.f32 %v8732, %v8732
  %v9464 = vmul.f32 %v9138, %v9138
  %v9465 = vmul.f32 %v7818, %v7818
  %v9466 = vmul.f32 %v7820, %v7820
  %v9467 = vmul.f32 %v8277, %v8277
  %v9468 = vmul.f32 %v8279, %v8279
  %v9469 = vmul.f32 %v8736, %v8736
  %v9470 = vmul.f32 %v8738, %v8738
  %v9471 = vmul.f32 %v9143, %v9143
  %v9472 = vmul.f32 %v7822, %v7822
  %v9473 = vmul.f32 %v7824, %v7824
  %v9474 = vmul.f32 %v8281, %v8281
  %v9475 = vmul.f32 %v8283, %v8283
  %v9476 = vmul.f32 %v8740, %v8740
  %v9477 = vmul.f32 %v8742, %v8742
  %v9478 = vmul.f32 %v9146, %v9146
  %v9479 = vmul.f32 %v7828, %v7828
  %v9480 = vmul.f32 %v7830, %v7830
  %v9481 = vmul.f32 %v8287, %v8287
  %v9482 = vmul.f32 %v8289, %v8289
  %v9483 = vmul.f32 %v8746, %v8746
  %v9484 = vmul.f32 %v8748, %v8748
  %v9485 = vmul.f32 %v9151, %v9151
  %v9486 = vmul.f32 %v7832, %v7832
  %v9487 = vmul.f32 %v7834, %v7834
  %v9488 = vmul.f32 %v8291, %v8291
  %v9489 = vmul.f32 %v8293, %v8293
  %v9490 = vmul.f32 %v8750, %v8750
  %v9491 = vmul.f32 %v8752, %v8752
  %v9492 = vmul.f32 %v9154, %v9154
  %v9493 = vmul.f32 %v7838, %v7838
  %v9494 = vmul.f32 %v7840, %v7840
  %v9495 = vmul.f32 %v8297, %v8297
  %v9496 = vmul.f32 %v8299, %v8299
  %v9497 = vmul.f32 %v8756, %v8756
  %v9498 = vmul.f32 %v8758, %v8758
  %v9499 = vmul.f32 %v9159, %v9159
  %v9500 = vmul.f32 %v7842, %v7842
  %v9501 = vmul.f32 %v7844, %v7844
  %v9502 = vmul.f32 %v8301, %v8301
  %v9503 = vmul.f32 %v8303, %v8303
  %v9504 = vmul.f32 %v8760, %v8760
  %v9505 = vmul.f32 %v8762, %v8762
  %v9506 = vmul.f32 %v9162, %v9162
  %v9507 = vmul.f32 %v7848, %v7848
  %v9508 = vmul.f32 %v7850, %v7850
  %v9509 = vmul.f32 %v8307, %v8307
  %v9510 = vmul.f32 %v8309, %v8309
  %v9511 = vmul.f32 %v8766, %v8766
  %v9512 = vmul.f32 %v8768, %v8768
  %v9513 = vmul.f32 %v9167, %v9167
  %v9514 = vmul.f32 %v7852, %v7852
  %v9515 = vmul.f32 %v7854, %v7854
  %v9516 = vmul.f32 %v8311, %v8311
  %v9517 = vmul.f32 %v8313, %v8313
  %v9518 = vmul.f32 %v8770, %v8770
  %v9519 = vmul.f32 %v8772, %v8772
  %v9520 = vmul.f32 %v9170, %v9170
  %v9521 = vmul.f32 %v7858, %v7858
  %v9522 = vmul.f32 %v7860, %v7860
  %v9523 = vmul.f32 %v8317, %v8317
  %v9524 = vmul.f32 %v8319, %v8319
  %v9525 = vmul.f32 %v8776, %v8776
  %v9526 = vmul.f32 %v8778, %v8778
  %v9527 = vmul.f32 %v9175, %v9175
  %v9528 = vmul.f32 %v7862, %v7862
  %v9529 = vmul.f32 %v7864, %v7864
  %v9530 = vmul.f32 %v8321, %v8321
  %v9531 = vmul.f32 %v8323, %v8323
  %v9532 = vmul.f32 %v8780, %v8780
  %v9533 = vmul.f32 %v8782, %v8782
  %v9534 = vmul.f32 %v9178, %v9178
  %v9535 = vmul.f32 %v7868, %v7868
  %v9536 = vmul.f32 %v7870, %v7870
  %v9537 = vmul.f32 %v8327, %v8327
  %v9538 = vmul.f32 %v8329, %v8329
  %v9539 = vmul.f32 %v8786, %v8786
  %v9540 = vmul.f32 %v8788, %v8788
  %v9541 = vmul.f32 %v9183, %v9183
  %v9542 = vmul.f32 %v7872, %v7872
  %v9543 = vmul.f32 %v7874, %v7874
  %v9544 = vmul.f32 %v8331, %v8331
  %v9545 = vmul.f32 %v8333, %v8333
  %v9546 = vmul.f32 %v8790, %v8790
  %v9547 = vmul.f32 %v8792, %v8792
  %v9548 = vmul.f32 %v9186, %v9186
  %v9549 = vmul.f32 %v7878, %v7878
  %v9550 = vmul.f32 %v7880, %v7880
  %v9551 = vmul.f32 %v8337, %v8337
  %v9552 = vmul.f32 %v8339, %v8339
  %v9553 = vmul.f32 %v8796, %v8796
  %v9554 = vmul.f32 %v8798, %v8798
  %v9555 = vmul.f32 %v9191, %v9191
  %v9556 = vmul.f32 %v7882, %v7882
  %v9557 = vmul.f32 %v7884, %v7884
  %v9558 = vmul.f32 %v8341, %v8341
  %v9559 = vmul.f32 %v8343, %v8343
  %v9560 = vmul.f32 %v8800, %v8800
  %v9561 = vmul.f32 %v8802, %v8802
  %v9562 = vmul.f32 %v9194, %v9194
  %v9563 = vmul.f32 %v7888, %v7888
  %v9564 = vmul.f32 %v7890, %v7890
  %v9565 = vmul.f32 %v8347, %v8347
  %v9566 = vmul.f32 %v8349, %v8349
  %v9567 = vmul.f32 %v8806, %v8806
  %v9568 = vmul.f32 %v8808, %v8808
  %v9569 = vmul.f32 %v9199, %v9199
  %v9570 = vmul.f32 %v7892, %v7892
  %v9571 = vmul.f32 %v7894, %v7894
  %v9572 = vmul.f32 %v8351, %v8351
  %v9573 = vmul.f32 %v8353, %v8353
  %v9574 = vmul.f32 %v8810, %v8810
  %v9575 = vmul.f32 %v8812, %v8812
  %v9576 = vmul.f32 %v9202, %v9202
  %v9577 = vmul.f32 %v7898, %v7898
  %v9578 = vmul.f32 %v7900, %v7900
  %v9579 = vmul.f32 %v8357, %v8357
  %v9580 = vmul.f32 %v8359, %v8359
  %v9581 = vmul.f32 %v8816, %v8816
  %v9582 = vmul.f32 %v8818, %v8818
  %v9583 = vmul.f32 %v9207, %v9207
  %v9584 = vmul.f32 %v7902, %v7902
  %v9585 = vmul.f32 %v7904, %v7904
  %v9586 = vmul.f32 %v8361, %v8361
  %v9587 = vmul.f32 %v8363, %v8363
  %v9588 = vmul.f32 %v8820, %v8820
  %v9589 = vmul.f32 %v8822, %v8822
  %v9590 = vmul.f32 %v9210, %v9210
  %v9591 = vmul.f32 %v7908, %v7908
  %v9592 = vmul.f32 %v7910, %v7910
  %v9593 = vmul.f32 %v8367, %v8367
  %v9594 = vmul.f32 %v8369, %v8369
  %v9595 = vmul.f32 %v8826, %v8826
  %v9596 = vmul.f32 %v8828, %v8828
  %v9597 = vmul.f32 %v9215, %v9215
  %v9598 = vmul.f32 %v7912, %v7912
  %v9599 = vmul.f32 %v7914, %v7914
  %v9600 = vmul.f32 %v8371, %v8371
  %v9601 = vmul.f32 %v8373, %v8373
  %v9602 = vmul.f32 %v8830, %v8830
  %v9603 = vmul.f32 %v8832, %v8832
  %v9604 = vmul.f32 %v9218, %v9218
  %v9605 = vadd.f32 %v9437, %v9438
  %v9606 = vadd.f32 %v9605, %v9439
  %v9607 = vadd.f32 %v9606, %v9440
  %v9608 = vadd.f32 %v9607, %v9441
  %v9609 = vadd.f32 %v9608, %v9442
  %v9610 = vsel %vm659, %v9443, 0.0
  %v9611 = vadd.f32 %v9609, %v9610
  %9612 = vadd.xlane.f32.xlu0 %v9611
  %v9613 = vpop.xlane.xlu0 %9612
  %v9614 = vadd.f32 %v9444, %v9445
  %v9615 = vadd.f32 %v9614, %v9446
  %v9616 = vadd.f32 %v9615, %v9447
  %v9617 = vadd.f32 %v9616, %v9448
  %v9618 = vadd.f32 %v9617, %v9449
  %v9619 = vsel %vm659, %v9450, 0.0
  %v9620 = vadd.f32 %v9618, %v9619
  %9621 = vadd.xlane.f32.xlu0 %v9620
  %v9622 = vpop.xlane.xlu0 %9621
  %v9623 = vadd.f32 %v9451, %v9452
  %v9624 = vadd.f32 %v9623, %v9453
  %v9625 = vadd.f32 %v9624, %v9454
  %v9626 = vadd.f32 %v9625, %v9455
  %v9627 = vadd.f32 %v9626, %v9456
  %v9628 = vsel %vm659, %v9457, 0.0
  %v9629 = vadd.f32 %v9627, %v9628
  %9630 = vadd.xlane.f32.xlu0 %v9629
  %v9631 = vpop.xlane.xlu0 %9630
  %v9632 = vadd.f32 %v9458, %v9459
  %v9633 = vadd.f32 %v9632, %v9460
  %v9634 = vadd.f32 %v9633, %v9461
  %v9635 = vadd.f32 %v9634, %v9462
  %v9636 = vadd.f32 %v9635, %v9463
  %v9637 = vsel %vm659, %v9464, 0.0
  %v9638 = vadd.f32 %v9636, %v9637
  %9639 = vadd.xlane.f32.xlu0 %v9638
  %v9640 = vpop.xlane.xlu0 %9639
  %v9641 = vadd.f32 %v9465, %v9466
  %v9642 = vadd.f32 %v9641, %v9467
  %v9643 = vadd.f32 %v9642, %v9468
  %v9644 = vadd.f32 %v9643, %v9469
  %v9645 = vadd.f32 %v9644, %v9470
  %v9646 = vsel %vm659, %v9471, 0.0
  %v9647 = vadd.f32 %v9645, %v9646
  %9648 = vadd.xlane.f32.xlu0 %v9647
  %v9649 = vpop.xlane.xlu0 %9648
  %v9650 = vadd.f32 %v9472, %v9473
  %v9651 = vadd.f32 %v9650, %v9474
  %v9652 = vadd.f32 %v9651, %v9475
  %v9653 = vadd.f32 %v9652, %v9476
  %v9654 = vadd.f32 %v9653, %v9477
  %v9655 = vsel %vm659, %v9478, 0.0
  %v9656 = vadd.f32 %v9654, %v9655
  %9657 = vadd.xlane.f32.xlu0 %v9656
  %v9658 = vpop.xlane.xlu0 %9657
  %v9659 = vadd.f32 %v9479, %v9480
  %v9660 = vadd.f32 %v9659, %v9481
  %v9661 = vadd.f32 %v9660, %v9482
  %v9662 = vadd.f32 %v9661, %v9483
  %v9663 = vadd.f32 %v9662, %v9484
  %v9664 = vsel %vm659, %v9485, 0.0
  %v9665 = vadd.f32 %v9663, %v9664
  %9666 = vadd.xlane.f32.xlu0 %v9665
  %v9667 = vpop.xlane.xlu0 %9666
  %v9668 = vadd.f32 %v9486, %v9487
  %v9669 = vadd.f32 %v9668, %v9488
  %v9670 = vadd.f32 %v9669, %v9489
  %v9671 = vadd.f32 %v9670, %v9490
  %v9672 = vadd.f32 %v9671, %v9491
  %v9673 = vsel %vm659, %v9492, 0.0
  %v9674 = vadd.f32 %v9672, %v9673
  %9675 = vadd.xlane.f32.xlu0 %v9674
  %v9676 = vpop.xlane.xlu0 %9675
  %v9677 = vadd.f32 %v9493, %v9494
  %v9678 = vadd.f32 %v9677, %v9495
  %v9679 = vadd.f32 %v9678, %v9496
  %v9680 = vadd.f32 %v9679, %v9497
  %v9681 = vadd.f32 %v9680, %v9498
  %v9682 = vsel %vm659, %v9499, 0.0
  %v9683 = vadd.f32 %v9681, %v9682
  %9684 = vadd.xlane.f32.xlu0 %v9683
  %v9685 = vpop.xlane.xlu0 %9684
  %v9686 = vadd.f32 %v9500, %v9501
  %v9687 = vadd.f32 %v9686, %v9502
  %v9688 = vadd.f32 %v9687, %v9503
  %v9689 = vadd.f32 %v9688, %v9504
  %v9690 = vadd.f32 %v9689, %v9505
  %v9691 = vsel %vm659, %v9506, 0.0
  %v9692 = vadd.f32 %v9690, %v9691
  %9693 = vadd.xlane.f32.xlu0 %v9692
  %v9694 = vpop.xlane.xlu0 %9693
  %v9695 = vadd.f32 %v9507, %v9508
  %v9696 = vadd.f32 %v9695, %v9509
  %v9697 = vadd.f32 %v9696, %v9510
  %v9698 = vadd.f32 %v9697, %v9511
  %v9699 = vadd.f32 %v9698, %v9512
  %v9700 = vsel %vm659, %v9513, 0.0
  %v9701 = vadd.f32 %v9699, %v9700
  %9702 = vadd.xlane.f32.xlu0 %v9701
  %v9703 = vpop.xlane.xlu0 %9702
  %v9704 = vadd.f32 %v9514, %v9515
  %v9705 = vadd.f32 %v9704, %v9516
  %v9706 = vadd.f32 %v9705, %v9517
  %v9707 = vadd.f32 %v9706, %v9518
  %v9708 = vadd.f32 %v9707, %v9519
  %v9709 = vsel %vm659, %v9520, 0.0
  %v9710 = vadd.f32 %v9708, %v9709
  %9711 = vadd.xlane.f32.xlu0 %v9710
  %v9712 = vpop.xlane.xlu0 %9711
  %v9713 = vadd.f32 %v9521, %v9522
  %v9714 = vadd.f32 %v9713, %v9523
  %v9715 = vadd.f32 %v9714, %v9524
  %v9716 = vadd.f32 %v9715, %v9525
  %v9717 = vadd.f32 %v9716, %v9526
  %v9718 = vsel %vm659, %v9527, 0.0
  %v9719 = vadd.f32 %v9717, %v9718
  %9720 = vadd.xlane.f32.xlu0 %v9719
  %v9721 = vpop.xlane.xlu0 %9720
  %v9722 = vadd.f32 %v9528, %v9529
  %v9723 = vadd.f32 %v9722, %v9530
  %v9724 = vadd.f32 %v9723, %v9531
  %v9725 = vadd.f32 %v9724, %v9532
  %v9726 = vadd.f32 %v9725, %v9533
  %v9727 = vsel %vm659, %v9534, 0.0
  %v9728 = vadd.f32 %v9726, %v9727
  %9729 = vadd.xlane.f32.xlu0 %v9728
  %v9730 = vpop.xlane.xlu0 %9729
  %v9731 = vadd.f32 %v9535, %v9536
  %v9732 = vadd.f32 %v9731, %v9537
  %v9733 = vadd.f32 %v9732, %v9538
  %v9734 = vadd.f32 %v9733, %v9539
  %v9735 = vadd.f32 %v9734, %v9540
  %v9736 = vsel %vm659, %v9541, 0.0
  %v9737 = vadd.f32 %v9735, %v9736
  %9738 = vadd.xlane.f32.xlu0 %v9737
  %v9739 = vpop.xlane.xlu0 %9738
  %v9740 = vadd.f32 %v9542, %v9543
  %v9741 = vadd.f32 %v9740, %v9544
  %v9742 = vadd.f32 %v9741, %v9545
  %v9743 = vadd.f32 %v9742, %v9546
  %v9744 = vadd.f32 %v9743, %v9547
  %v9745 = vsel %vm659, %v9548, 0.0
  %v9746 = vadd.f32 %v9744, %v9745
  %9747 = vadd.xlane.f32.xlu0 %v9746
  %v9748 = vpop.xlane.xlu0 %9747
  %v9749 = vadd.f32 %v9549, %v9550
  %v9750 = vadd.f32 %v9749, %v9551
  %v9751 = vadd.f32 %v9750, %v9552
  %v9752 = vadd.f32 %v9751, %v9553
  %v9753 = vadd.f32 %v9752, %v9554
  %v9754 = vsel %vm659, %v9555, 0.0
  %v9755 = vadd.f32 %v9753, %v9754
  %9756 = vadd.xlane.f32.xlu0 %v9755
  %v9757 = vpop.xlane.xlu0 %9756
  %v9758 = vadd.f32 %v9556, %v9557
  %v9759 = vadd.f32 %v9758, %v9558
  %v9760 = vadd.f32 %v9759, %v9559
  %v9761 = vadd.f32 %v9760, %v9560
  %v9762 = vadd.f32 %v9761, %v9561
  %v9763 = vsel %vm659, %v9562, 0.0
  %v9764 = vadd.f32 %v9762, %v9763
  %9765 = vadd.xlane.f32.xlu0 %v9764
  %v9766 = vpop.xlane.xlu0 %9765
  %v9767 = vadd.f32 %v9563, %v9564
  %v9768 = vadd.f32 %v9767, %v9565
  %v9769 = vadd.f32 %v9768, %v9566
  %v9770 = vadd.f32 %v9769, %v9567
  %v9771 = vadd.f32 %v9770, %v9568
  %v9772 = vsel %vm659, %v9569, 0.0
  %v9773 = vadd.f32 %v9771, %v9772
  %9774 = vadd.xlane.f32.xlu0 %v9773
  %v9775 = vpop.xlane.xlu0 %9774
  %v9776 = vadd.f32 %v9570, %v9571
  %v9777 = vadd.f32 %v9776, %v9572
  %v9778 = vadd.f32 %v9777, %v9573
  %v9779 = vadd.f32 %v9778, %v9574
  %v9780 = vadd.f32 %v9779, %v9575
  %v9781 = vsel %vm659, %v9576, 0.0
  %v9782 = vadd.f32 %v9780, %v9781
  %9783 = vadd.xlane.f32.xlu0 %v9782
  %v9784 = vpop.xlane.xlu0 %9783
  %v9785 = vadd.f32 %v9577, %v9578
  %v9786 = vadd.f32 %v9785, %v9579
  %v9787 = vadd.f32 %v9786, %v9580
  %v9788 = vadd.f32 %v9787, %v9581
  %v9789 = vadd.f32 %v9788, %v9582
  %v9790 = vsel %vm659, %v9583, 0.0
  %v9791 = vadd.f32 %v9789, %v9790
  %9792 = vadd.xlane.f32.xlu0 %v9791
  %v9793 = vpop.xlane.xlu0 %9792
  %v9794 = vadd.f32 %v9584, %v9585
  %v9795 = vadd.f32 %v9794, %v9586
  %v9796 = vadd.f32 %v9795, %v9587
  %v9797 = vadd.f32 %v9796, %v9588
  %v9798 = vadd.f32 %v9797, %v9589
  %v9799 = vsel %vm659, %v9590, 0.0
  %v9800 = vadd.f32 %v9798, %v9799
  %9801 = vadd.xlane.f32.xlu0 %v9800
  %v9802 = vpop.xlane.xlu0 %9801
  %v9803 = vadd.f32 %v9591, %v9592
  %v9804 = vadd.f32 %v9803, %v9593
  %v9805 = vadd.f32 %v9804, %v9594
  %v9806 = vadd.f32 %v9805, %v9595
  %v9807 = vadd.f32 %v9806, %v9596
  %v9808 = vsel %vm659, %v9597, 0.0
  %v9809 = vadd.f32 %v9807, %v9808
  %9810 = vadd.xlane.f32.xlu0 %v9809
  %v9811 = vpop.xlane.xlu0 %9810
  %v9812 = vadd.f32 %v9598, %v9599
  %v9813 = vadd.f32 %v9812, %v9600
  %v9814 = vadd.f32 %v9813, %v9601
  %v9815 = vadd.f32 %v9814, %v9602
  %v9816 = vadd.f32 %v9815, %v9603
  %v9817 = vsel %vm659, %v9604, 0.0
  %v9818 = vadd.f32 %v9816, %v9817
  %9819 = vadd.xlane.f32.xlu0 %v9818
  %v9820 = vpop.xlane.xlu0 %9819
  %v9821 = vmul.f32 %v9229, 0.0012755102
  %v9822 = vmul.f32 %v9238, 0.0012755102
  %v9823 = vmul.f32 %v9247, 0.0012755102
  %v9824 = vmul.f32 %v9256, 0.0012755102
  %v9825 = vmul.f32 %v9265, 0.0012755102
  %v9826 = vmul.f32 %v9274, 0.0012755102
  %v9827 = vmul.f32 %v9283, 0.0012755102
  %v9828 = vmul.f32 %v9292, 0.0012755102
  %v9829 = vmul.f32 %v9301, 0.0012755102
  %v9830 = vmul.f32 %v9310, 0.0012755102
  %v9831 = vmul.f32 %v9319, 0.0012755102
  %v9832 = vmul.f32 %v9328, 0.0012755102
  %v9833 = vmul.f32 %v9337, 0.0012755102
  %v9834 = vmul.f32 %v9346, 0.0012755102
  %v9835 = vmul.f32 %v9355, 0.0012755102
  %v9836 = vmul.f32 %v9364, 0.0012755102
  %v9837 = vmul.f32 %v9373, 0.0012755102
  %v9838 = vmul.f32 %v9382, 0.0012755102
  %v9839 = vmul.f32 %v9391, 0.0012755102
  %v9840 = vmul.f32 %v9400, 0.0012755102
  %v9841 = vmul.f32 %v9409, 0.0012755102
  %v9842 = vmul.f32 %v9418, 0.0012755102
  %v9843 = vmul.f32 %v9427, 0.0012755102
  %v9844 = vmul.f32 %v9436, 0.0012755102
  %v9845 = vmul.f32 %v9613, 0.0012755102
  %v9846 = vmul.f32 %v9622, 0.0012755102
  %v9847 = vmul.f32 %v9631, 0.0012755102
  %v9848 = vmul.f32 %v9640, 0.0012755102
  %v9849 = vmul.f32 %v9649, 0.0012755102
  %v9850 = vmul.f32 %v9658, 0.0012755102
  %v9851 = vmul.f32 %v9667, 0.0012755102
  %v9852 = vmul.f32 %v9676, 0.0012755102
  %v9853 = vmul.f32 %v9685, 0.0012755102
  %v9854 = vmul.f32 %v9694, 0.0012755102
  %v9855 = vmul.f32 %v9703, 0.0012755102
  %v9856 = vmul.f32 %v9712, 0.0012755102
  %v9857 = vmul.f32 %v9721, 0.0012755102
  %v9858 = vmul.f32 %v9730, 0.0012755102
  %v9859 = vmul.f32 %v9739, 0.0012755102
  %v9860 = vmul.f32 %v9748, 0.0012755102
  %v9861 = vmul.f32 %v9757, 0.0012755102
  %v9862 = vmul.f32 %v9766, 0.0012755102
  %v9863 = vmul.f32 %v9775, 0.0012755102
  %v9864 = vmul.f32 %v9784, 0.0012755102
  %v9865 = vmul.f32 %v9793, 0.0012755102
  %v9866 = vmul.f32 %v9802, 0.0012755102
  %v9867 = vmul.f32 %v9811, 0.0012755102
  %v9868 = vmul.f32 %v9820, 0.0012755102
  %v9869 = vmul.f32 %v9821, %v9821
  %v9870 = vmul.f32 %v9822, %v9822
  %v9871 = vmul.f32 %v9823, %v9823
  %v9872 = vmul.f32 %v9824, %v9824
  %v9873 = vmul.f32 %v9825, %v9825
  %v9874 = vmul.f32 %v9826, %v9826
  %v9875 = vmul.f32 %v9827, %v9827
  %v9876 = vmul.f32 %v9828, %v9828
  %v9877 = vmul.f32 %v9829, %v9829
  %v9878 = vmul.f32 %v9830, %v9830
  %v9879 = vmul.f32 %v9831, %v9831
  %v9880 = vmul.f32 %v9832, %v9832
  %v9881 = vmul.f32 %v9833, %v9833
  %v9882 = vmul.f32 %v9834, %v9834
  %v9883 = vmul.f32 %v9835, %v9835
  %v9884 = vmul.f32 %v9836, %v9836
  %v9885 = vmul.f32 %v9837, %v9837
  %v9886 = vmul.f32 %v9838, %v9838
  %v9887 = vmul.f32 %v9839, %v9839
  %v9888 = vmul.f32 %v9840, %v9840
  %v9889 = vmul.f32 %v9841, %v9841
  %v9890 = vmul.f32 %v9842, %v9842
  %v9891 = vmul.f32 %v9843, %v9843
  %v9892 = vmul.f32 %v9844, %v9844
  %v9893 = vsub.f32 %v9845, %v9869
  %v9894 = vsub.f32 %v9846, %v9870
  %v9895 = vsub.f32 %v9847, %v9871
  %v9896 = vsub.f32 %v9848, %v9872
  %v9897 = vsub.f32 %v9849, %v9873
  %v9898 = vsub.f32 %v9850, %v9874
  %v9899 = vsub.f32 %v9851, %v9875
  %v9900 = vsub.f32 %v9852, %v9876
  %v9901 = vsub.f32 %v9853, %v9877
  %v9902 = vsub.f32 %v9854, %v9878
  %v9903 = vsub.f32 %v9855, %v9879
  %v9904 = vsub.f32 %v9856, %v9880
  %v9905 = vsub.f32 %v9857, %v9881
  %v9906 = vsub.f32 %v9858, %v9882
  %v9907 = vsub.f32 %v9859, %v9883
  %v9908 = vsub.f32 %v9860, %v9884
  %v9909 = vsub.f32 %v9861, %v9885
  %v9910 = vsub.f32 %v9862, %v9886
  %v9911 = vsub.f32 %v9863, %v9887
  %v9912 = vsub.f32 %v9864, %v9888
  %v9913 = vsub.f32 %v9865, %v9889
  %v9914 = vsub.f32 %v9866, %v9890
  %v9915 = vsub.f32 %v9867, %v9891
  %v9916 = vsub.f32 %v9868, %v9892
  %v9917 = vadd.f32 %v9893, 1e-05
  %v9918 = vadd.f32 %v9894, 1e-05
  %v9919 = vadd.f32 %v9895, 1e-05
  %v9920 = vadd.f32 %v9896, 1e-05
  %v9921 = vadd.f32 %v9897, 1e-05
  %v9922 = vadd.f32 %v9898, 1e-05
  %v9923 = vadd.f32 %v9899, 1e-05
  %v9924 = vadd.f32 %v9900, 1e-05
  %v9925 = vadd.f32 %v9901, 1e-05
  %v9926 = vadd.f32 %v9902, 1e-05
  %v9927 = vadd.f32 %v9903, 1e-05
  %v9928 = vadd.f32 %v9904, 1e-05
  %v9929 = vadd.f32 %v9905, 1e-05
  %v9930 = vadd.f32 %v9906, 1e-05
  %v9931 = vadd.f32 %v9907, 1e-05
  %v9932 = vadd.f32 %v9908, 1e-05
  %v9933 = vadd.f32 %v9909, 1e-05
  %v9934 = vadd.f32 %v9910, 1e-05
  %v9935 = vadd.f32 %v9911, 1e-05
  %v9936 = vadd.f32 %v9912, 1e-05
  %v9937 = vadd.f32 %v9913, 1e-05
  %v9938 = vadd.f32 %v9914, 1e-05
  %v9939 = vadd.f32 %v9915, 1e-05
  %v9940 = vadd.f32 %v9916, 1e-05
  %v9941 = vrsqrt.pop %v9917
  %v9942 = vrsqrt.pop %v9918
  %v9943 = vrsqrt.pop %v9919
  %v9944 = vrsqrt.pop %v9920
  %v9945 = vrsqrt.pop %v9921
  %v9946 = vrsqrt.pop %v9922
  %v9947 = vrsqrt.pop %v9923
  %v9948 = vrsqrt.pop %v9924
  %v9949 = vrsqrt.pop %v9925
  %v9950 = vrsqrt.pop %v9926
  %v9951 = vrsqrt.pop %v9927
  %v9952 = vrsqrt.pop %v9928
  %v9953 = vrsqrt.pop %v9929
  %v9954 = vrsqrt.pop %v9930
  %v9955 = vrsqrt.pop %v9931
  %v9956 = vrsqrt.pop %v9932
  %v9957 = vrsqrt.pop %v9933
  %v9958 = vrsqrt.pop %v9934
  %v9959 = vrsqrt.pop %v9935
  %v9960 = vrsqrt.pop %v9936
  %v9961 = vrsqrt.pop %v9937
  %v9962 = vrsqrt.pop %v9938
  %v9963 = vrsqrt.pop %v9939
  %v9964 = vrsqrt.pop %v9940
  %v9965 = vld [vmem:[%s4] sm:$0xff]
  %v9966 = vld [vmem:[%s4 + $0x8] sm:$0xff]
  %v9967 = vld [vmem:[%s4 + $0x10] sm:$0xff]
  %v9968 = vld [vmem:[%s4 + $0x18] sm:$0xff]
  %v9969 = vld [vmem:[%s4 + $0x20] sm:$0xff]
  %v9970 = vld [vmem:[%s4 + $0x28] sm:$0xff]
  %v9971 = vld [vmem:[%s4 + $0x30] sm:$0xff]
  %v9972 = vld [vmem:[%s4 + $0x38] sm:$0xff]
  %v9973 = vld [vmem:[%s4 + $0x40] sm:$0xff]
  %v9974 = vld [vmem:[%s4 + $0x48] sm:$0xff]
  %v9975 = vld [vmem:[%s4 + $0x50] sm:$0xff]
  %v9976 = vld [vmem:[%s4 + $0x58] sm:$0xff]
  %v9977 = vld [vmem:[%s4 + $0x60] sm:$0xff]
  %v9978 = vld [vmem:[%s4 + $0x68] sm:$0xff]
  %v9979 = vld [vmem:[%s4 + $0x70] sm:$0xff]
  %v9980 = vld [vmem:[%s4 + $0x78] sm:$0xff]
  %v9981 = vld [vmem:[%s4 + $0x80] sm:$0xff]
  %v9982 = vld [vmem:[%s4 + $0x88] sm:$0xff]
  %v9983 = vld [vmem:[%s4 + $0x90] sm:$0xff]
  %v9984 = vld [vmem:[%s4 + $0x98] sm:$0xff]
  %v9985 = vld [vmem:[%s4 + $0xa0] sm:$0xff]
  %v9986 = vld [vmem:[%s4 + $0xa8] sm:$0xff]
  %v9987 = vld [vmem:[%s4 + $0xb0] sm:$0xff]
  %v9988 = vld [vmem:[%s4 + $0xb8] sm:$0xff]
  %v9989 = vmul.f32 %v9941, %v9965
  %v9990 = vmul.f32 %v9942, %v9966
  %v9991 = vmul.f32 %v9943, %v9967
  %v9992 = vmul.f32 %v9944, %v9968
  %v9993 = vmul.f32 %v9945, %v9969
  %v9994 = vmul.f32 %v9946, %v9970
  %v9995 = vmul.f32 %v9947, %v9971
  %v9996 = vmul.f32 %v9948, %v9972
  %v9997 = vmul.f32 %v9949, %v9973
  %v9998 = vmul.f32 %v9950, %v9974
  %v9999 = vmul.f32 %v9951, %v9975
  %v10000 = vmul.f32 %v9952, %v9976
  %v10001 = vmul.f32 %v9953, %v9977
  %v10002 = vmul.f32 %v9954, %v9978
  %v10003 = vmul.f32 %v9955, %v9979
  %v10004 = vmul.f32 %v9956, %v9980
  %v10005 = vmul.f32 %v9957, %v9981
  %v10006 = vmul.f32 %v9958, %v9982
  %v10007 = vmul.f32 %v9959, %v9983
  %v10008 = vmul.f32 %v9960, %v9984
  %v10009 = vmul.f32 %v9961, %v9985
  %v10010 = vmul.f32 %v9962, %v9986
  %v10011 = vmul.f32 %v9963, %v9987
  %v10012 = vmul.f32 %v9964, %v9988
  %v10013 = vld [vmem:[%s5] sm:$0xff]
  %v10014 = vld [vmem:[%s5 + $0x8] sm:$0xff]
  %v10015 = vld [vmem:[%s5 + $0x10] sm:$0xff]
  %v10016 = vld [vmem:[%s5 + $0x18] sm:$0xff]
  %v10017 = vld [vmem:[%s5 + $0x20] sm:$0xff]
  %v10018 = vld [vmem:[%s5 + $0x28] sm:$0xff]
  %v10019 = vld [vmem:[%s5 + $0x30] sm:$0xff]
  %v10020 = vld [vmem:[%s5 + $0x38] sm:$0xff]
  %v10021 = vld [vmem:[%s5 + $0x40] sm:$0xff]
  %v10022 = vld [vmem:[%s5 + $0x48] sm:$0xff]
  %v10023 = vld [vmem:[%s5 + $0x50] sm:$0xff]
  %v10024 = vld [vmem:[%s5 + $0x58] sm:$0xff]
  %v10025 = vld [vmem:[%s5 + $0x60] sm:$0xff]
  %v10026 = vld [vmem:[%s5 + $0x68] sm:$0xff]
  %v10027 = vld [vmem:[%s5 + $0x70] sm:$0xff]
  %v10028 = vld [vmem:[%s5 + $0x78] sm:$0xff]
  %v10029 = vld [vmem:[%s5 + $0x80] sm:$0xff]
  %v10030 = vld [vmem:[%s5 + $0x88] sm:$0xff]
  %v10031 = vld [vmem:[%s5 + $0x90] sm:$0xff]
  %v10032 = vld [vmem:[%s5 + $0x98] sm:$0xff]
  %v10033 = vld [vmem:[%s5 + $0xa0] sm:$0xff]
  %v10034 = vld [vmem:[%s5 + $0xa8] sm:$0xff]
  %v10035 = vld [vmem:[%s5 + $0xb0] sm:$0xff]
  %v10036 = vld [vmem:[%s5 + $0xb8] sm:$0xff]
  %v10037 = vmul.f32 %v9821, %v9989
  %v10038 = vmul.f32 %v9822, %v9990
  %v10039 = vmul.f32 %v9823, %v9991
  %v10040 = vmul.f32 %v9824, %v9992
  %v10041 = vmul.f32 %v9825, %v9993
  %v10042 = vmul.f32 %v9826, %v9994
  %v10043 = vmul.f32 %v9827, %v9995
  %v10044 = vmul.f32 %v9828, %v9996
  %v10045 = vmul.f32 %v9829, %v9997
  %v10046 = vmul.f32 %v9830, %v9998
  %v10047 = vmul.f32 %v9831, %v9999
  %v10048 = vmul.f32 %v9832, %v10000
  %v10049 = vmul.f32 %v9833, %v10001
  %v10050 = vmul.f32 %v9834, %v10002
  %v10051 = vmul.f32 %v9835, %v10003
  %v10052 = vmul.f32 %v9836, %v10004
  %v10053 = vmul.f32 %v9837, %v10005
  %v10054 = vmul.f32 %v9838, %v10006
  %v10055 = vmul.f32 %v9839, %v10007
  %v10056 = vmul.f32 %v9840, %v10008
  %v10057 = vmul.f32 %v9841, %v10009
  %v10058 = vmul.f32 %v9842, %v10010
  %v10059 = vmul.f32 %v9843, %v10011
  %v10060 = vmul.f32 %v9844, %v10012
  %v10061 = vsub.f32 %v10013, %v10037
  %v10062 = vsub.f32 %v10014, %v10038
  %v10063 = vsub.f32 %v10015, %v10039
  %v10064 = vsub.f32 %v10016, %v10040
  %v10065 = vsub.f32 %v10017, %v10041
  %v10066 = vsub.f32 %v10018, %v10042
  %v10067 = vsub.f32 %v10019, %v10043
  %v10068 = vsub.f32 %v10020, %v10044
  %v10069 = vsub.f32 %v10021, %v10045
  %v10070 = vsub.f32 %v10022, %v10046
  %v10071 = vsub.f32 %v10023, %v10047
  %v10072 = vsub.f32 %v10024, %v10048
  %v10073 = vsub.f32 %v10025, %v10049
  %v10074 = vsub.f32 %v10026, %v10050
  %v10075 = vsub.f32 %v10027, %v10051
  %v10076 = vsub.f32 %v10028, %v10052
  %v10077 = vsub.f32 %v10029, %v10053
  %v10078 = vsub.f32 %v10030, %v10054
  %v10079 = vsub.f32 %v10031, %v10055
  %v10080 = vsub.f32 %v10032, %v10056
  %v10081 = vsub.f32 %v10033, %v10057
  %v10082 = vsub.f32 %v10034, %v10058
  %v10083 = vsub.f32 %v10035, %v10059
  %v10084 = vsub.f32 %v10036, %v10060
  %10086 = vset.pattern.permute.xlu0 0
  %10087 = vperm.xlu0 %10086, %v9989
  %v10088 = vpop.permute.xlu0 %10087
  %10091 = vset.pattern.permute.xlu0 0
  %10092 = vperm.xlu0 %10091, %v9990
  %v10093 = vpop.permute.xlu0 %10092
  %10096 = vset.pattern.permute.xlu0 0
  %10097 = vperm.xlu0 %10096, %v9991
  %v10098 = vpop.permute.xlu0 %10097
  %10101 = vset.pattern.permute.xlu0 0
  %10102 = vperm.xlu0 %10101, %v9992
  %v10103 = vpop.permute.xlu0 %10102
  %10106 = vset.pattern.permute.xlu0 0
  %10107 = vperm.xlu0 %10106, %v9993
  %v10108 = vpop.permute.xlu0 %10107
  %10111 = vset.pattern.permute.xlu0 0
  %10112 = vperm.xlu0 %10111, %v9994
  %v10113 = vpop.permute.xlu0 %10112
  %10116 = vset.pattern.permute.xlu0 0
  %10117 = vperm.xlu0 %10116, %v9995
  %v10118 = vpop.permute.xlu0 %10117
  %10121 = vset.pattern.permute.xlu0 0
  %10122 = vperm.xlu0 %10121, %v9996
  %v10123 = vpop.permute.xlu0 %10122
  %10126 = vset.pattern.permute.xlu0 0
  %10127 = vperm.xlu0 %10126, %v9997
  %v10128 = vpop.permute.xlu0 %10127
  %10131 = vset.pattern.permute.xlu0 0
  %10132 = vperm.xlu0 %10131, %v9998
  %v10133 = vpop.permute.xlu0 %10132
  %10136 = vset.pattern.permute.xlu0 0
  %10137 = vperm.xlu0 %10136, %v9999
  %v10138 = vpop.permute.xlu0 %10137
  %10141 = vset.pattern.permute.xlu0 0
  %10142 = vperm.xlu0 %10141, %v10000
  %v10143 = vpop.permute.xlu0 %10142
  %10146 = vset.pattern.permute.xlu0 0
  %10147 = vperm.xlu0 %10146, %v10001
  %v10148 = vpop.permute.xlu0 %10147
  %10151 = vset.pattern.permute.xlu0 0
  %10152 = vperm.xlu0 %10151, %v10002
  %v10153 = vpop.permute.xlu0 %10152
  %10156 = vset.pattern.permute.xlu0 0
  %10157 = vperm.xlu0 %10156, %v10003
  %v10158 = vpop.permute.xlu0 %10157
  %10161 = vset.pattern.permute.xlu0 0
  %10162 = vperm.xlu0 %10161, %v10004
  %v10163 = vpop.permute.xlu0 %10162
  %10166 = vset.pattern.permute.xlu0 0
  %10167 = vperm.xlu0 %10166, %v10005
  %v10168 = vpop.permute.xlu0 %10167
  %10171 = vset.pattern.permute.xlu0 0
  %10172 = vperm.xlu0 %10171, %v10006
  %v10173 = vpop.permute.xlu0 %10172
  %10176 = vset.pattern.permute.xlu0 0
  %10177 = vperm.xlu0 %10176, %v10007
  %v10178 = vpop.permute.xlu0 %10177
  %10181 = vset.pattern.permute.xlu0 0
  %10182 = vperm.xlu0 %10181, %v10008
  %v10183 = vpop.permute.xlu0 %10182
  %10186 = vset.pattern.permute.xlu0 0
  %10187 = vperm.xlu0 %10186, %v10009
  %v10188 = vpop.permute.xlu0 %10187
  %10191 = vset.pattern.permute.xlu0 0
  %10192 = vperm.xlu0 %10191, %v10010
  %v10193 = vpop.permute.xlu0 %10192
  %10196 = vset.pattern.permute.xlu0 0
  %10197 = vperm.xlu0 %10196, %v10011
  %v10198 = vpop.permute.xlu0 %10197
  %10201 = vset.pattern.permute.xlu0 0
  %10202 = vperm.xlu0 %10201, %v10012
  %v10203 = vpop.permute.xlu0 %10202
  %v10205 = vmul.f32 %v7798, %v10088
  %v10206 = vmul.f32 %v7800, %v10088
  %v10207 = vmul.f32 %v8257, %v10088
  %v10208 = vmul.f32 %v8259, %v10088
  %v10209 = vmul.f32 %v8716, %v10088
  %v10210 = vmul.f32 %v8718, %v10088
  %v10211 = vmul.f32 %v9127, %v10088
  %v10212 = vmul.f32 %v7802, %v10093
  %v10213 = vmul.f32 %v7804, %v10093
  %v10214 = vmul.f32 %v8261, %v10093
  %v10215 = vmul.f32 %v8263, %v10093
  %v10216 = vmul.f32 %v8720, %v10093
  %v10217 = vmul.f32 %v8722, %v10093
  %v10218 = vmul.f32 %v9130, %v10093
  %v10219 = vmul.f32 %v7808, %v10098
  %v10220 = vmul.f32 %v7810, %v10098
  %v10221 = vmul.f32 %v8267, %v10098
  %v10222 = vmul.f32 %v8269, %v10098
  %v10223 = vmul.f32 %v8726, %v10098
  %v10224 = vmul.f32 %v8728, %v10098
  %v10225 = vmul.f32 %v9135, %v10098
  %v10226 = vmul.f32 %v7812, %v10103
  %v10227 = vmul.f32 %v7814, %v10103
  %v10228 = vmul.f32 %v8271, %v10103
  %v10229 = vmul.f32 %v8273, %v10103
  %v10230 = vmul.f32 %v8730, %v10103
  %v10231 = vmul.f32 %v8732, %v10103
  %v10232 = vmul.f32 %v9138, %v10103
  %v10233 = vmul.f32 %v7818, %v10108
  %v10234 = vmul.f32 %v7820, %v10108
  %v10235 = vmul.f32 %v8277, %v10108
  %v10236 = vmul.f32 %v8279, %v10108
  %v10237 = vmul.f32 %v8736, %v10108
  %v10238 = vmul.f32 %v8738, %v10108
  %v10239 = vmul.f32 %v9143, %v10108
  %v10240 = vmul.f32 %v7822, %v10113
  %v10241 = vmul.f32 %v7824, %v10113
  %v10242 = vmul.f32 %v8281, %v10113
  %v10243 = vmul.f32 %v8283, %v10113
  %v10244 = vmul.f32 %v8740, %v10113
  %v10245 = vmul.f32 %v8742, %v10113
  %v10246 = vmul.f32 %v9146, %v10113
  %v10247 = vmul.f32 %v7828, %v10118
  %v10248 = vmul.f32 %v7830, %v10118
  %v10249 = vmul.f32 %v8287, %v10118
  %v10250 = vmul.f32 %v8289, %v10118
  %v10251 = vmul.f32 %v8746, %v10118
  %v10252 = vmul.f32 %v8748, %v10118
  %v10253 = vmul.f32 %v9151, %v10118
  %v10254 = vmul.f32 %v7832, %v10123
  %v10255 = vmul.f32 %v7834, %v10123
  %v10256 = vmul.f32 %v8291, %v10123
  %v10257 = vmul.f32 %v8293, %v10123
  %v10258 = vmul.f32 %v8750, %v10123
  %v10259 = vmul.f32 %v8752, %v10123
  %v10260 = vmul.f32 %v9154, %v10123
  %v10261 = vmul.f32 %v7838, %v10128
  %v10262 = vmul.f32 %v7840, %v10128
  %v10263 = vmul.f32 %v8297, %v10128
  %v10264 = vmul.f32 %v8299, %v10128
  %v10265 = vmul.f32 %v8756, %v10128
  %v10266 = vmul.f32 %v8758, %v10128
  %v10267 = vmul.f32 %v9159, %v10128
  %v10268 = vmul.f32 %v7842, %v10133
  %v10269 = vmul.f32 %v7844, %v10133
  %v10270 = vmul.f32 %v8301, %v10133
  %v10271 = vmul.f32 %v8303, %v10133
  %v10272 = vmul.f32 %v8760, %v10133
  %v10273 = vmul.f32 %v8762, %v10133
  %v10274 = vmul.f32 %v9162, %v10133
  %v10275 = vmul.f32 %v7848, %v10138
  %v10276 = vmul.f32 %v7850, %v10138
  %v10277 = vmul.f32 %v8307, %v10138
  %v10278 = vmul.f32 %v8309, %v10138
  %v10279 = vmul.f32 %v8766, %v10138
  %v10280 = vmul.f32 %v8768, %v10138
  %v10281 = vmul.f32 %v9167, %v10138
  %v10282 = vmul.f32 %v7852, %v10143
  %v10283 = vmul.f32 %v7854, %v10143
  %v10284 = vmul.f32 %v8311, %v10143
  %v10285 = vmul.f32 %v8313, %v10143
  %v10286 = vmul.f32 %v8770, %v10143
  %v10287 = vmul.f32 %v8772, %v10143
  %v10288 = vmul.f32 %v9170, %v10143
  %v10289 = vmul.f32 %v7858, %v10148
  %v10290 = vmul.f32 %v7860, %v10148
  %v10291 = vmul.f32 %v8317, %v10148
  %v10292 = vmul.f32 %v8319, %v10148
  %v10293 = vmul.f32 %v8776, %v10148
  %v10294 = vmul.f32 %v8778, %v10148
  %v10295 = vmul.f32 %v9175, %v10148
  %v10296 = vmul.f32 %v7862, %v10153
  %v10297 = vmul.f32 %v7864, %v10153
  %v10298 = vmul.f32 %v8321, %v10153
  %v10299 = vmul.f32 %v8323, %v10153
  %v10300 = vmul.f32 %v8780, %v10153
  %v10301 = vmul.f32 %v8782, %v10153
  %v10302 = vmul.f32 %v9178, %v10153
  %v10303 = vmul.f32 %v7868, %v10158
  %v10304 = vmul.f32 %v7870, %v10158
  %v10305 = vmul.f32 %v8327, %v10158
  %v10306 = vmul.f32 %v8329, %v10158
  %v10307 = vmul.f32 %v8786, %v10158
  %v10308 = vmul.f32 %v8788, %v10158
  %v10309 = vmul.f32 %v9183, %v10158
  %v10310 = vmul.f32 %v7872, %v10163
  %v10311 = vmul.f32 %v7874, %v10163
  %v10312 = vmul.f32 %v8331, %v10163
  %v10313 = vmul.f32 %v8333, %v10163
  %v10314 = vmul.f32 %v8790, %v10163
  %v10315 = vmul.f32 %v8792, %v10163
  %v10316 = vmul.f32 %v9186, %v10163
  %v10317 = vmul.f32 %v7878, %v10168
  %v10318 = vmul.f32 %v7880, %v10168
  %v10319 = vmul.f32 %v8337, %v10168
  %v10320 = vmul.f32 %v8339, %v10168
  %v10321 = vmul.f32 %v8796, %v10168
  %v10322 = vmul.f32 %v8798, %v10168
  %v10323 = vmul.f32 %v9191, %v10168
  %v10324 = vmul.f32 %v7882, %v10173
  %v10325 = vmul.f32 %v7884, %v10173
  %v10326 = vmul.f32 %v8341, %v10173
  %v10327 = vmul.f32 %v8343, %v10173
  %v10328 = vmul.f32 %v8800, %v10173
  %v10329 = vmul.f32 %v8802, %v10173
  %v10330 = vmul.f32 %v9194, %v10173
  %v10331 = vmul.f32 %v7888, %v10178
  %v10332 = vmul.f32 %v7890, %v10178
  %v10333 = vmul.f32 %v8347, %v10178
  %v10334 = vmul.f32 %v8349, %v10178
  %v10335 = vmul.f32 %v8806, %v10178
  %v10336 = vmul.f32 %v8808, %v10178
  %v10337 = vmul.f32 %v9199, %v10178
  %v10338 = vmul.f32 %v7892, %v10183
  %v10339 = vmul.f32 %v7894, %v10183
  %v10340 = vmul.f32 %v8351, %v10183
  %v10341 = vmul.f32 %v8353, %v10183
  %v10342 = vmul.f32 %v8810, %v10183
  %v10343 = vmul.f32 %v8812, %v10183
  %v10344 = vmul.f32 %v9202, %v10183
  %v10345 = vmul.f32 %v7898, %v10188
  %v10346 = vmul.f32 %v7900, %v10188
  %v10347 = vmul.f32 %v8357, %v10188
  %v10348 = vmul.f32 %v8359, %v10188
  %v10349 = vmul.f32 %v8816, %v10188
  %v10350 = vmul.f32 %v8818, %v10188
  %v10351 = vmul.f32 %v9207, %v10188
  %v10352 = vmul.f32 %v7902, %v10193
  %v10353 = vmul.f32 %v7904, %v10193
  %v10354 = vmul.f32 %v8361, %v10193
  %v10355 = vmul.f32 %v8363, %v10193
  %v10356 = vmul.f32 %v8820, %v10193
  %v10357 = vmul.f32 %v8822, %v10193
  %v10358 = vmul.f32 %v9210, %v10193
  %v10359 = vmul.f32 %v7908, %v10198
  %v10360 = vmul.f32 %v7910, %v10198
  %v10361 = vmul.f32 %v8367, %v10198
  %v10362 = vmul.f32 %v8369, %v10198
  %v10363 = vmul.f32 %v8826, %v10198
  %v10364 = vmul.f32 %v8828, %v10198
  %v10365 = vmul.f32 %v9215, %v10198
  %v10366 = vmul.f32 %v7912, %v10203
  %v10367 = vmul.f32 %v7914, %v10203
  %v10368 = vmul.f32 %v8371, %v10203
  %v10369 = vmul.f32 %v8373, %v10203
  %v10370 = vmul.f32 %v8830, %v10203
  %v10371 = vmul.f32 %v8832, %v10203
  %v10372 = vmul.f32 %v9218, %v10203
  %10374 = vset.pattern.permute.xlu0 0
  %10375 = vperm.xlu0 %10374, %v10061
  %v10376 = vpop.permute.xlu0 %10375
  %10379 = vset.pattern.permute.xlu0 0
  %10380 = vperm.xlu0 %10379, %v10062
  %v10381 = vpop.permute.xlu0 %10380
  %10384 = vset.pattern.permute.xlu0 0
  %10385 = vperm.xlu0 %10384, %v10063
  %v10386 = vpop.permute.xlu0 %10385
  %10389 = vset.pattern.permute.xlu0 0
  %10390 = vperm.xlu0 %10389, %v10064
  %v10391 = vpop.permute.xlu0 %10390
  %10394 = vset.pattern.permute.xlu0 0
  %10395 = vperm.xlu0 %10394, %v10065
  %v10396 = vpop.permute.xlu0 %10395
  %10399 = vset.pattern.permute.xlu0 0
  %10400 = vperm.xlu0 %10399, %v10066
  %v10401 = vpop.permute.xlu0 %10400
  %10404 = vset.pattern.permute.xlu0 0
  %10405 = vperm.xlu0 %10404, %v10067
  %v10406 = vpop.permute.xlu0 %10405
  %10409 = vset.pattern.permute.xlu0 0
  %10410 = vperm.xlu0 %10409, %v10068
  %v10411 = vpop.permute.xlu0 %10410
  %10414 = vset.pattern.permute.xlu0 0
  %10415 = vperm.xlu0 %10414, %v10069
  %v10416 = vpop.permute.xlu0 %10415
  %10419 = vset.pattern.permute.xlu0 0
  %10420 = vperm.xlu0 %10419, %v10070
  %v10421 = vpop.permute.xlu0 %10420
  %10424 = vset.pattern.permute.xlu0 0
  %10425 = vperm.xlu0 %10424, %v10071
  %v10426 = vpop.permute.xlu0 %10425
  %10429 = vset.pattern.permute.xlu0 0
  %10430 = vperm.xlu0 %10429, %v10072
  %v10431 = vpop.permute.xlu0 %10430
  %10434 = vset.pattern.permute.xlu0 0
  %10435 = vperm.xlu0 %10434, %v10073
  %v10436 = vpop.permute.xlu0 %10435
  %10439 = vset.pattern.permute.xlu0 0
  %10440 = vperm.xlu0 %10439, %v10074
  %v10441 = vpop.permute.xlu0 %10440
  %10444 = vset.pattern.permute.xlu0 0
  %10445 = vperm.xlu0 %10444, %v10075
  %v10446 = vpop.permute.xlu0 %10445
  %10449 = vset.pattern.permute.xlu0 0
  %10450 = vperm.xlu0 %10449, %v10076
  %v10451 = vpop.permute.xlu0 %10450
  %10454 = vset.pattern.permute.xlu0 0
  %10455 = vperm.xlu0 %10454, %v10077
  %v10456 = vpop.permute.xlu0 %10455
  %10459 = vset.pattern.permute.xlu0 0
  %10460 = vperm.xlu0 %10459, %v10078
  %v10461 = vpop.permute.xlu0 %10460
  %10464 = vset.pattern.permute.xlu0 0
  %10465 = vperm.xlu0 %10464, %v10079
  %v10466 = vpop.permute.xlu0 %10465
  %10469 = vset.pattern.permute.xlu0 0
  %10470 = vperm.xlu0 %10469, %v10080
  %v10471 = vpop.permute.xlu0 %10470
  %10474 = vset.pattern.permute.xlu0 0
  %10475 = vperm.xlu0 %10474, %v10081
  %v10476 = vpop.permute.xlu0 %10475
  %10479 = vset.pattern.permute.xlu0 0
  %10480 = vperm.xlu0 %10479, %v10082
  %v10481 = vpop.permute.xlu0 %10480
  %10484 = vset.pattern.permute.xlu0 0
  %10485 = vperm.xlu0 %10484, %v10083
  %v10486 = vpop.permute.xlu0 %10485
  %10489 = vset.pattern.permute.xlu0 0
  %10490 = vperm.xlu0 %10489, %v10084
  %v10491 = vpop.permute.xlu0 %10490
  %v10493 = vadd.f32 %v10205, %v10376
  %v10494 = vadd.f32 %v10206, %v10376
  %v10495 = vadd.f32 %v10207, %v10376
  %v10496 = vadd.f32 %v10208, %v10376
  %v10497 = vadd.f32 %v10209, %v10376
  %v10498 = vadd.f32 %v10210, %v10376
  %v10499 = vadd.f32 %v10211, %v10376
  %v10500 = vadd.f32 %v10212, %v10381
  %v10501 = vadd.f32 %v10213, %v10381
  %v10502 = vadd.f32 %v10214, %v10381
  %v10503 = vadd.f32 %v10215, %v10381
  %v10504 = vadd.f32 %v10216, %v10381
  %v10505 = vadd.f32 %v10217, %v10381
  %v10506 = vadd.f32 %v10218, %v10381
  %v10507 = vadd.f32 %v10219, %v10386
  %v10508 = vadd.f32 %v10220, %v10386
  %v10509 = vadd.f32 %v10221, %v10386
  %v10510 = vadd.f32 %v10222, %v10386
  %v10511 = vadd.f32 %v10223, %v10386
  %v10512 = vadd.f32 %v10224, %v10386
  %v10513 = vadd.f32 %v10225, %v10386
  %v10514 = vadd.f32 %v10226, %v10391
  %v10515 = vadd.f32 %v10227, %v10391
  %v10516 = vadd.f32 %v10228, %v10391
  %v10517 = vadd.f32 %v10229, %v10391
  %v10518 = vadd.f32 %v10230, %v10391
  %v10519 = vadd.f32 %v10231, %v10391
  %v10520 = vadd.f32 %v10232, %v10391
  %v10521 = vadd.f32 %v10233, %v10396
  %v10522 = vadd.f32 %v10234, %v10396
  %v10523 = vadd.f32 %v10235, %v10396
  %v10524 = vadd.f32 %v10236, %v10396
  %v10525 = vadd.f32 %v10237, %v10396
  %v10526 = vadd.f32 %v10238, %v10396
  %v10527 = vadd.f32 %v10239, %v10396
  %v10528 = vadd.f32 %v10240, %v10401
  %v10529 = vadd.f32 %v10241, %v10401
  %v10530 = vadd.f32 %v10242, %v10401
  %v10531 = vadd.f32 %v10243, %v10401
  %v10532 = vadd.f32 %v10244, %v10401
  %v10533 = vadd.f32 %v10245, %v10401
  %v10534 = vadd.f32 %v10246, %v10401
  %v10535 = vadd.f32 %v10247, %v10406
  %v10536 = vadd.f32 %v10248, %v10406
  %v10537 = vadd.f32 %v10249, %v10406
  %v10538 = vadd.f32 %v10250, %v10406
  %v10539 = vadd.f32 %v10251, %v10406
  %v10540 = vadd.f32 %v10252, %v10406
  %v10541 = vadd.f32 %v10253, %v10406
  %v10542 = vadd.f32 %v10254, %v10411
  %v10543 = vadd.f32 %v10255, %v10411
  %v10544 = vadd.f32 %v10256, %v10411
  %v10545 = vadd.f32 %v10257, %v10411
  %v10546 = vadd.f32 %v10258, %v10411
  %v10547 = vadd.f32 %v10259, %v10411
  %v10548 = vadd.f32 %v10260, %v10411
  %v10549 = vadd.f32 %v10261, %v10416
  %v10550 = vadd.f32 %v10262, %v10416
  %v10551 = vadd.f32 %v10263, %v10416
  %v10552 = vadd.f32 %v10264, %v10416
  %v10553 = vadd.f32 %v10265, %v10416
  %v10554 = vadd.f32 %v10266, %v10416
  %v10555 = vadd.f32 %v10267, %v10416
  %v10556 = vadd.f32 %v10268, %v10421
  %v10557 = vadd.f32 %v10269, %v10421
  %v10558 = vadd.f32 %v10270, %v10421
  %v10559 = vadd.f32 %v10271, %v10421
  %v10560 = vadd.f32 %v10272, %v10421
  %v10561 = vadd.f32 %v10273, %v10421
  %v10562 = vadd.f32 %v10274, %v10421
  %v10563 = vadd.f32 %v10275, %v10426
  %v10564 = vadd.f32 %v10276, %v10426
  %v10565 = vadd.f32 %v10277, %v10426
  %v10566 = vadd.f32 %v10278, %v10426
  %v10567 = vadd.f32 %v10279, %v10426
  %v10568 = vadd.f32 %v10280, %v10426
  %v10569 = vadd.f32 %v10281, %v10426
  %v10570 = vadd.f32 %v10282, %v10431
  %v10571 = vadd.f32 %v10283, %v10431
  %v10572 = vadd.f32 %v10284, %v10431
  %v10573 = vadd.f32 %v10285, %v10431
  %v10574 = vadd.f32 %v10286, %v10431
  %v10575 = vadd.f32 %v10287, %v10431
  %v10576 = vadd.f32 %v10288, %v10431
  %v10577 = vadd.f32 %v10289, %v10436
  %v10578 = vadd.f32 %v10290, %v10436
  %v10579 = vadd.f32 %v10291, %v10436
  %v10580 = vadd.f32 %v10292, %v10436
  %v10581 = vadd.f32 %v10293, %v10436
  %v10582 = vadd.f32 %v10294, %v10436
  %v10583 = vadd.f32 %v10295, %v10436
  %v10584 = vadd.f32 %v10296, %v10441
  %v10585 = vadd.f32 %v10297, %v10441
  %v10586 = vadd.f32 %v10298, %v10441
  %v10587 = vadd.f32 %v10299, %v10441
  %v10588 = vadd.f32 %v10300, %v10441
  %v10589 = vadd.f32 %v10301, %v10441
  %v10590 = vadd.f32 %v10302, %v10441
  %v10591 = vadd.f32 %v10303, %v10446
  %v10592 = vadd.f32 %v10304, %v10446
  %v10593 = vadd.f32 %v10305, %v10446
  %v10594 = vadd.f32 %v10306, %v10446
  %v10595 = vadd.f32 %v10307, %v10446
  %v10596 = vadd.f32 %v10308, %v10446
  %v10597 = vadd.f32 %v10309, %v10446
  %v10598 = vadd.f32 %v10310, %v10451
  %v10599 = vadd.f32 %v10311, %v10451
  %v10600 = vadd.f32 %v10312, %v10451
  %v10601 = vadd.f32 %v10313, %v10451
  %v10602 = vadd.f32 %v10314, %v10451
  %v10603 = vadd.f32 %v10315, %v10451
  %v10604 = vadd.f32 %v10316, %v10451
  %v10605 = vadd.f32 %v10317, %v10456
  %v10606 = vadd.f32 %v10318, %v10456
  %v10607 = vadd.f32 %v10319, %v10456
  %v10608 = vadd.f32 %v10320, %v10456
  %v10609 = vadd.f32 %v10321, %v10456
  %v10610 = vadd.f32 %v10322, %v10456
  %v10611 = vadd.f32 %v10323, %v10456
  %v10612 = vadd.f32 %v10324, %v10461
  %v10613 = vadd.f32 %v10325, %v10461
  %v10614 = vadd.f32 %v10326, %v10461
  %v10615 = vadd.f32 %v10327, %v10461
  %v10616 = vadd.f32 %v10328, %v10461
  %v10617 = vadd.f32 %v10329, %v10461
  %v10618 = vadd.f32 %v10330, %v10461
  %v10619 = vadd.f32 %v10331, %v10466
  %v10620 = vadd.f32 %v10332, %v10466
  %v10621 = vadd.f32 %v10333, %v10466
  %v10622 = vadd.f32 %v10334, %v10466
  %v10623 = vadd.f32 %v10335, %v10466
  %v10624 = vadd.f32 %v10336, %v10466
  %v10625 = vadd.f32 %v10337, %v10466
  %v10626 = vadd.f32 %v10338, %v10471
  %v10627 = vadd.f32 %v10339, %v10471
  %v10628 = vadd.f32 %v10340, %v10471
  %v10629 = vadd.f32 %v10341, %v10471
  %v10630 = vadd.f32 %v10342, %v10471
  %v10631 = vadd.f32 %v10343, %v10471
  %v10632 = vadd.f32 %v10344, %v10471
  %v10633 = vadd.f32 %v10345, %v10476
  %v10634 = vadd.f32 %v10346, %v10476
  %v10635 = vadd.f32 %v10347, %v10476
  %v10636 = vadd.f32 %v10348, %v10476
  %v10637 = vadd.f32 %v10349, %v10476
  %v10638 = vadd.f32 %v10350, %v10476
  %v10639 = vadd.f32 %v10351, %v10476
  %v10640 = vadd.f32 %v10352, %v10481
  %v10641 = vadd.f32 %v10353, %v10481
  %v10642 = vadd.f32 %v10354, %v10481
  %v10643 = vadd.f32 %v10355, %v10481
  %v10644 = vadd.f32 %v10356, %v10481
  %v10645 = vadd.f32 %v10357, %v10481
  %v10646 = vadd.f32 %v10358, %v10481
  %v10647 = vadd.f32 %v10359, %v10486
  %v10648 = vadd.f32 %v10360, %v10486
  %v10649 = vadd.f32 %v10361, %v10486
  %v10650 = vadd.f32 %v10362, %v10486
  %v10651 = vadd.f32 %v10363, %v10486
  %v10652 = vadd.f32 %v10364, %v10486
  %v10653 = vadd.f32 %v10365, %v10486
  %v10654 = vadd.f32 %v10366, %v10491
  %v10655 = vadd.f32 %v10367, %v10491
  %v10656 = vadd.f32 %v10368, %v10491
  %v10657 = vadd.f32 %v10369, %v10491
  %v10658 = vadd.f32 %v10370, %v10491
  %v10659 = vadd.f32 %v10371, %v10491
  %v10660 = vadd.f32 %v10372, %v10491
  %v10661 = vmax.f32 %v10493, 0.0
  %v10662 = vmax.f32 %v10494, 0.0
  %v10663 = vmax.f32 %v10495, 0.0
  %v10664 = vmax.f32 %v10496, 0.0
  %v10665 = vmax.f32 %v10497, 0.0
  %v10666 = vmax.f32 %v10498, 0.0
  %v10667 = vmax.f32 %v10499, 0.0
  %v10668 = vmax.f32 %v10500, 0.0
  %v10669 = vmax.f32 %v10501, 0.0
  %v10670 = vmax.f32 %v10502, 0.0
  %v10671 = vmax.f32 %v10503, 0.0
  %v10672 = vmax.f32 %v10504, 0.0
  %v10673 = vmax.f32 %v10505, 0.0
  %v10674 = vmax.f32 %v10506, 0.0
  %v10675 = vmax.f32 %v10507, 0.0
  %v10676 = vmax.f32 %v10508, 0.0
  %v10677 = vmax.f32 %v10509, 0.0
  %v10678 = vmax.f32 %v10510, 0.0
  %v10679 = vmax.f32 %v10511, 0.0
  %v10680 = vmax.f32 %v10512, 0.0
  %v10681 = vmax.f32 %v10513, 0.0
  %v10682 = vmax.f32 %v10514, 0.0
  %v10683 = vmax.f32 %v10515, 0.0
  %v10684 = vmax.f32 %v10516, 0.0
  %v10685 = vmax.f32 %v10517, 0.0
  %v10686 = vmax.f32 %v10518, 0.0
  %v10687 = vmax.f32 %v10519, 0.0
  %v10688 = vmax.f32 %v10520, 0.0
  %v10689 = vmax.f32 %v10521, 0.0
  %v10690 = vmax.f32 %v10522, 0.0
  %v10691 = vmax.f32 %v10523, 0.0
  %v10692 = vmax.f32 %v10524, 0.0
  %v10693 = vmax.f32 %v10525, 0.0
  %v10694 = vmax.f32 %v10526, 0.0
  %v10695 = vmax.f32 %v10527, 0.0
  %v10696 = vmax.f32 %v10528, 0.0
  %v10697 = vmax.f32 %v10529, 0.0
  %v10698 = vmax.f32 %v10530, 0.0
  %v10699 = vmax.f32 %v10531, 0.0
  %v10700 = vmax.f32 %v10532, 0.0
  %v10701 = vmax.f32 %v10533, 0.0
  %v10702 = vmax.f32 %v10534, 0.0
  %v10703 = vmax.f32 %v10535, 0.0
  %v10704 = vmax.f32 %v10536, 0.0
  %v10705 = vmax.f32 %v10537, 0.0
  %v10706 = vmax.f32 %v10538, 0.0
  %v10707 = vmax.f32 %v10539, 0.0
  %v10708 = vmax.f32 %v10540, 0.0
  %v10709 = vmax.f32 %v10541, 0.0
  %v10710 = vmax.f32 %v10542, 0.0
  %v10711 = vmax.f32 %v10543, 0.0
  %v10712 = vmax.f32 %v10544, 0.0
  %v10713 = vmax.f32 %v10545, 0.0
  %v10714 = vmax.f32 %v10546, 0.0
  %v10715 = vmax.f32 %v10547, 0.0
  %v10716 = vmax.f32 %v10548, 0.0
  %v10717 = vmax.f32 %v10549, 0.0
  %v10718 = vmax.f32 %v10550, 0.0
  %v10719 = vmax.f32 %v10551, 0.0
  %v10720 = vmax.f32 %v10552, 0.0
  %v10721 = vmax.f32 %v10553, 0.0
  %v10722 = vmax.f32 %v10554, 0.0
  %v10723 = vmax.f32 %v10555, 0.0
  %v10724 = vmax.f32 %v10556, 0.0
  %v10725 = vmax.f32 %v10557, 0.0
  %v10726 = vmax.f32 %v10558, 0.0
  %v10727 = vmax.f32 %v10559, 0.0
  %v10728 = vmax.f32 %v10560, 0.0
  %v10729 = vmax.f32 %v10561, 0.0
  %v10730 = vmax.f32 %v10562, 0.0
  %v10731 = vmax.f32 %v10563, 0.0
  %v10732 = vmax.f32 %v10564, 0.0
  %v10733 = vmax.f32 %v10565, 0.0
  %v10734 = vmax.f32 %v10566, 0.0
  %v10735 = vmax.f32 %v10567, 0.0
  %v10736 = vmax.f32 %v10568, 0.0
  %v10737 = vmax.f32 %v10569, 0.0
  %v10738 = vmax.f32 %v10570, 0.0
  %v10739 = vmax.f32 %v10571, 0.0
  %v10740 = vmax.f32 %v10572, 0.0
  %v10741 = vmax.f32 %v10573, 0.0
  %v10742 = vmax.f32 %v10574, 0.0
  %v10743 = vmax.f32 %v10575, 0.0
  %v10744 = vmax.f32 %v10576, 0.0
  %v10745 = vmax.f32 %v10577, 0.0
  %v10746 = vmax.f32 %v10578, 0.0
  %v10747 = vmax.f32 %v10579, 0.0
  %v10748 = vmax.f32 %v10580, 0.0
  %v10749 = vmax.f32 %v10581, 0.0
  %v10750 = vmax.f32 %v10582, 0.0
  %v10751 = vmax.f32 %v10583, 0.0
  %v10752 = vmax.f32 %v10584, 0.0
  %v10753 = vmax.f32 %v10585, 0.0
  %v10754 = vmax.f32 %v10586, 0.0
  %v10755 = vmax.f32 %v10587, 0.0
  %v10756 = vmax.f32 %v10588, 0.0
  %v10757 = vmax.f32 %v10589, 0.0
  %v10758 = vmax.f32 %v10590, 0.0
  %v10759 = vmax.f32 %v10591, 0.0
  %v10760 = vmax.f32 %v10592, 0.0
  %v10761 = vmax.f32 %v10593, 0.0
  %v10762 = vmax.f32 %v10594, 0.0
  %v10763 = vmax.f32 %v10595, 0.0
  %v10764 = vmax.f32 %v10596, 0.0
  %v10765 = vmax.f32 %v10597, 0.0
  %v10766 = vmax.f32 %v10598, 0.0
  %v10767 = vmax.f32 %v10599, 0.0
  %v10768 = vmax.f32 %v10600, 0.0
  %v10769 = vmax.f32 %v10601, 0.0
  %v10770 = vmax.f32 %v10602, 0.0
  %v10771 = vmax.f32 %v10603, 0.0
  %v10772 = vmax.f32 %v10604, 0.0
  %v10773 = vmax.f32 %v10605, 0.0
  %v10774 = vmax.f32 %v10606, 0.0
  %v10775 = vmax.f32 %v10607, 0.0
  %v10776 = vmax.f32 %v10608, 0.0
  %v10777 = vmax.f32 %v10609, 0.0
  %v10778 = vmax.f32 %v10610, 0.0
  %v10779 = vmax.f32 %v10611, 0.0
  %v10780 = vmax.f32 %v10612, 0.0
  %v10781 = vmax.f32 %v10613, 0.0
  %v10782 = vmax.f32 %v10614, 0.0
  %v10783 = vmax.f32 %v10615, 0.0
  %v10784 = vmax.f32 %v10616, 0.0
  %v10785 = vmax.f32 %v10617, 0.0
  %v10786 = vmax.f32 %v10618, 0.0
  %v10787 = vmax.f32 %v10619, 0.0
  %v10788 = vmax.f32 %v10620, 0.0
  %v10789 = vmax.f32 %v10621, 0.0
  %v10790 = vmax.f32 %v10622, 0.0
  %v10791 = vmax.f32 %v10623, 0.0
  %v10792 = vmax.f32 %v10624, 0.0
  %v10793 = vmax.f32 %v10625, 0.0
  %v10794 = vmax.f32 %v10626, 0.0
  %v10795 = vmax.f32 %v10627, 0.0
  %v10796 = vmax.f32 %v10628, 0.0
  %v10797 = vmax.f32 %v10629, 0.0
  %v10798 = vmax.f32 %v10630, 0.0
  %v10799 = vmax.f32 %v10631, 0.0
  %v10800 = vmax.f32 %v10632, 0.0
  %v10801 = vmax.f32 %v10633, 0.0
  %v10802 = vmax.f32 %v10634, 0.0
  %v10803 = vmax.f32 %v10635, 0.0
  %v10804 = vmax.f32 %v10636, 0.0
  %v10805 = vmax.f32 %v10637, 0.0
  %v10806 = vmax.f32 %v10638, 0.0
  %v10807 = vmax.f32 %v10639, 0.0
  %v10808 = vmax.f32 %v10640, 0.0
  %v10809 = vmax.f32 %v10641, 0.0
  %v10810 = vmax.f32 %v10642, 0.0
  %v10811 = vmax.f32 %v10643, 0.0
  %v10812 = vmax.f32 %v10644, 0.0
  %v10813 = vmax.f32 %v10645, 0.0
  %v10814 = vmax.f32 %v10646, 0.0
  %v10815 = vmax.f32 %v10647, 0.0
  %v10816 = vmax.f32 %v10648, 0.0
  %v10817 = vmax.f32 %v10649, 0.0
  %v10818 = vmax.f32 %v10650, 0.0
  %v10819 = vmax.f32 %v10651, 0.0
  %v10820 = vmax.f32 %v10652, 0.0
  %v10821 = vmax.f32 %v10653, 0.0
  %v10822 = vmax.f32 %v10654, 0.0
  %v10823 = vmax.f32 %v10655, 0.0
  %v10824 = vmax.f32 %v10656, 0.0
  %v10825 = vmax.f32 %v10657, 0.0
  %v10826 = vmax.f32 %v10658, 0.0
  %v10827 = vmax.f32 %v10659, 0.0
  %v10828 = vmax.f32 %v10660, 0.0
  %10829 = vst [vmem:[%s6] sm:$0xff] %v10661
  %10830 = vst [vmem:[%s6 + $0x8] sm:$0xff] %v10662
  %10831 = vst [vmem:[%s6 + $0x10] sm:$0xff] %v10663
  %10832 = vst [vmem:[%s6 + $0x18] sm:$0xff] %v10664
  %10833 = vst [vmem:[%s6 + $0x20] sm:$0xff] %v10665
  %10834 = vst [vmem:[%s6 + $0x28] sm:$0xff] %v10666
  %10835 = vst.msk [vmem:[%s6 + $0x30] sm:$0xff] %vm659, %v10667
  %10836 = vst [vmem:[%s6 + $0x38] sm:$0xff] %v10668
  %10837 = vst [vmem:[%s6 + $0x40] sm:$0xff] %v10669
  %10838 = vst [vmem:[%s6 + $0x48] sm:$0xff] %v10670
  %10839 = vst [vmem:[%s6 + $0x50] sm:$0xff] %v10671
  %10840 = vst [vmem:[%s6 + $0x58] sm:$0xff] %v10672
  %10841 = vst [vmem:[%s6 + $0x60] sm:$0xff] %v10673
  %10842 = vst.msk [vmem:[%s6 + $0x68] sm:$0xff] %vm659, %v10674
  %10843 = vst [vmem:[%s6 + $0x70] sm:$0xff] %v10675
  %10844 = vst [vmem:[%s6 + $0x78] sm:$0xff] %v10676
  %10845 = vst [vmem:[%s6 + $0x80] sm:$0xff] %v10677
  %10846 = vst [vmem:[%s6 + $0x88] sm:$0xff] %v10678
  %10847 = vst [vmem:[%s6 + $0x90] sm:$0xff] %v10679
  %10848 = vst [vmem:[%s6 + $0x98] sm:$0xff] %v10680
  %10849 = vst.msk [vmem:[%s6 + $0xa0] sm:$0xff] %vm659, %v10681
  %10850 = vst [vmem:[%s6 + $0xa8] sm:$0xff] %v10682
  %10851 = vst [vmem:[%s6 + $0xb0] sm:$0xff] %v10683
  %10852 = vst [vmem:[%s6 + $0xb8] sm:$0xff] %v10684
  %10853 = vst [vmem:[%s6 + $0xc0] sm:$0xff] %v10685
  %10854 = vst [vmem:[%s6 + $0xc8] sm:$0xff] %v10686
  %10855 = vst [vmem:[%s6 + $0xd0] sm:$0xff] %v10687
  %10856 = vst.msk [vmem:[%s6 + $0xd8] sm:$0xff] %vm659, %v10688
  %10857 = vst [vmem:[%s6 + $0xe0] sm:$0xff] %v10689
  %10858 = vst [vmem:[%s6 + $0xe8] sm:$0xff] %v10690
  %10859 = vst [vmem:[%s6 + $0xf0] sm:$0xff] %v10691
  %10860 = vst [vmem:[%s6 + $0xf8] sm:$0xff] %v10692
  %10861 = vst [vmem:[%s6 + $0x100] sm:$0xff] %v10693
  %10862 = vst [vmem:[%s6 + $0x108] sm:$0xff] %v10694
  %10863 = vst.msk [vmem:[%s6 + $0x110] sm:$0xff] %vm659, %v10695
  %10864 = vst [vmem:[%s6 + $0x118] sm:$0xff] %v10696
  %10865 = vst [vmem:[%s6 + $0x120] sm:$0xff] %v10697
  %10866 = vst [vmem:[%s6 + $0x128] sm:$0xff] %v10698
  %10867 = vst [vmem:[%s6 + $0x130] sm:$0xff] %v10699
  %10868 = vst [vmem:[%s6 + $0x138] sm:$0xff] %v10700
  %10869 = vst [vmem:[%s6 + $0x140] sm:$0xff] %v10701
  %10870 = vst.msk [vmem:[%s6 + $0x148] sm:$0xff] %vm659, %v10702
  %10871 = vst [vmem:[%s6 + $0x150] sm:$0xff] %v10703
  %10872 = vst [vmem:[%s6 + $0x158] sm:$0xff] %v10704
  %10873 = vst [vmem:[%s6 + $0x160] sm:$0xff] %v10705
  %10874 = vst [vmem:[%s6 + $0x168] sm:$0xff] %v10706
  %10875 = vst [vmem:[%s6 + $0x170] sm:$0xff] %v10707
  %10876 = vst [vmem:[%s6 + $0x178] sm:$0xff] %v10708
  %10877 = vst.msk [vmem:[%s6 + $0x180] sm:$0xff] %vm659, %v10709
  %10878 = vst [vmem:[%s6 + $0x188] sm:$0xff] %v10710
  %10879 = vst [vmem:[%s6 + $0x190] sm:$0xff] %v10711
  %10880 = vst [vmem:[%s6 + $0x198] sm:$0xff] %v10712
  %10881 = vst [vmem:[%s6 + $0x1a0] sm:$0xff] %v10713
  %10882 = vst [vmem:[%s6 + $0x1a8] sm:$0xff] %v10714
  %10883 = vst [vmem:[%s6 + $0x1b0] sm:$0xff] %v10715
  %10884 = vst.msk [vmem:[%s6 + $0x1b8] sm:$0xff] %vm659, %v10716
  %10885 = vst [vmem:[%s6 + $0x1c0] sm:$0xff] %v10717
  %10886 = vst [vmem:[%s6 + $0x1c8] sm:$0xff] %v10718
  %10887 = vst [vmem:[%s6 + $0x1d0] sm:$0xff] %v10719
  %10888 = vst [vmem:[%s6 + $0x1d8] sm:$0xff] %v10720
  %10889 = vst [vmem:[%s6 + $0x1e0] sm:$0xff] %v10721
  %10890 = vst [vmem:[%s6 + $0x1e8] sm:$0xff] %v10722
  %10891 = vst.msk [vmem:[%s6 + $0x1f0] sm:$0xff] %vm659, %v10723
  %10892 = vst [vmem:[%s6 + $0x1f8] sm:$0xff] %v10724
  %10893 = vst [vmem:[%s6 + $0x200] sm:$0xff] %v10725
  %10894 = vst [vmem:[%s6 + $0x208] sm:$0xff] %v10726
  %10895 = vst [vmem:[%s6 + $0x210] sm:$0xff] %v10727
  %10896 = vst [vmem:[%s6 + $0x218] sm:$0xff] %v10728
  %10897 = vst [vmem:[%s6 + $0x220] sm:$0xff] %v10729
  %10898 = vst.msk [vmem:[%s6 + $0x228] sm:$0xff] %vm659, %v10730
  %10899 = vst [vmem:[%s6 + $0x230] sm:$0xff] %v10731
  %10900 = vst [vmem:[%s6 + $0x238] sm:$0xff] %v10732
  %10901 = vst [vmem:[%s6 + $0x240] sm:$0xff] %v10733
  %10902 = vst [vmem:[%s6 + $0x248] sm:$0xff] %v10734
  %10903 = vst [vmem:[%s6 + $0x250] sm:$0xff] %v10735
  %10904 = vst [vmem:[%s6 + $0x258] sm:$0xff] %v10736
  %10905 = vst.msk [vmem:[%s6 + $0x260] sm:$0xff] %vm659, %v10737
  %10906 = vst [vmem:[%s6 + $0x268] sm:$0xff] %v10738
  %10907 = vst [vmem:[%s6 + $0x270] sm:$0xff] %v10739
  %10908 = vst [vmem:[%s6 + $0x278] sm:$0xff] %v10740
  %10909 = vst [vmem:[%s6 + $0x280] sm:$0xff] %v10741
  %10910 = vst [vmem:[%s6 + $0x288] sm:$0xff] %v10742
  %10911 = vst [vmem:[%s6 + $0x290] sm:$0xff] %v10743
  %10912 = vst.msk [vmem:[%s6 + $0x298] sm:$0xff] %vm659, %v10744
  %10913 = vst [vmem:[%s6 + $0x2a0] sm:$0xff] %v10745
  %10914 = vst [vmem:[%s6 + $0x2a8] sm:$0xff] %v10746
  %10915 = vst [vmem:[%s6 + $0x2b0] sm:$0xff] %v10747
  %10916 = vst [vmem:[%s6 + $0x2b8] sm:$0xff] %v10748
  %10917 = vst [vmem:[%s6 + $0x2c0] sm:$0xff] %v10749
  %10918 = vst [vmem:[%s6 + $0x2c8] sm:$0xff] %v10750
  %10919 = vst.msk [vmem:[%s6 + $0x2d0] sm:$0xff] %vm659, %v10751
  %10920 = vst [vmem:[%s6 + $0x2d8] sm:$0xff] %v10752
  %10921 = vst [vmem:[%s6 + $0x2e0] sm:$0xff] %v10753
  %10922 = vst [vmem:[%s6 + $0x2e8] sm:$0xff] %v10754
  %10923 = vst [vmem:[%s6 + $0x2f0] sm:$0xff] %v10755
  %10924 = vst [vmem:[%s6 + $0x2f8] sm:$0xff] %v10756
  %10925 = vst [vmem:[%s6 + $0x300] sm:$0xff] %v10757
  %10926 = vst.msk [vmem:[%s6 + $0x308] sm:$0xff] %vm659, %v10758
  %10927 = vst [vmem:[%s6 + $0x310] sm:$0xff] %v10759
  %10928 = vst [vmem:[%s6 + $0x318] sm:$0xff] %v10760
  %10929 = vst [vmem:[%s6 + $0x320] sm:$0xff] %v10761
  %10930 = vst [vmem:[%s6 + $0x328] sm:$0xff] %v10762
  %10931 = vst [vmem:[%s6 + $0x330] sm:$0xff] %v10763
  %10932 = vst [vmem:[%s6 + $0x338] sm:$0xff] %v10764
  %10933 = vst.msk [vmem:[%s6 + $0x340] sm:$0xff] %vm659, %v10765
  %10934 = vst [vmem:[%s6 + $0x348] sm:$0xff] %v10766
  %10935 = vst [vmem:[%s6 + $0x350] sm:$0xff] %v10767
  %10936 = vst [vmem:[%s6 + $0x358] sm:$0xff] %v10768
  %10937 = vst [vmem:[%s6 + $0x360] sm:$0xff] %v10769
  %10938 = vst [vmem:[%s6 + $0x368] sm:$0xff] %v10770
  %10939 = vst [vmem:[%s6 + $0x370] sm:$0xff] %v10771
  %10940 = vst.msk [vmem:[%s6 + $0x378] sm:$0xff] %vm659, %v10772
  %10941 = vst [vmem:[%s6 + $0x380] sm:$0xff] %v10773
  %10942 = vst [vmem:[%s6 + $0x388] sm:$0xff] %v10774
  %10943 = vst [vmem:[%s6 + $0x390] sm:$0xff] %v10775
  %10944 = vst [vmem:[%s6 + $0x398] sm:$0xff] %v10776
  %10945 = vst [vmem:[%s6 + $0x3a0] sm:$0xff] %v10777
  %10946 = vst [vmem:[%s6 + $0x3a8] sm:$0xff] %v10778
  %10947 = vst.msk [vmem:[%s6 + $0x3b0] sm:$0xff] %vm659, %v10779
  %10948 = vst [vmem:[%s6 + $0x3b8] sm:$0xff] %v10780
  %10949 = vst [vmem:[%s6 + $0x3c0] sm:$0xff] %v10781
  %10950 = vst [vmem:[%s6 + $0x3c8] sm:$0xff] %v10782
  %10951 = vst [vmem:[%s6 + $0x3d0] sm:$0xff] %v10783
  %10952 = vst [vmem:[%s6 + $0x3d8] sm:$0xff] %v10784
  %10953 = vst [vmem:[%s6 + $0x3e0] sm:$0xff] %v10785
  %10954 = vst.msk [vmem:[%s6 + $0x3e8] sm:$0xff] %vm659, %v10786
  %10955 = vst [vmem:[%s6 + $0x3f0] sm:$0xff] %v10787
  %10956 = vst [vmem:[%s6 + $0x3f8] sm:$0xff] %v10788
  %10957 = vst [vmem:[%s6 + $0x400] sm:$0xff] %v10789
  %10958 = vst [vmem:[%s6 + $0x408] sm:$0xff] %v10790
  %10959 = vst [vmem:[%s6 + $0x410] sm:$0xff] %v10791
  %10960 = vst [vmem:[%s6 + $0x418] sm:$0xff] %v10792
  %10961 = vst.msk [vmem:[%s6 + $0x420] sm:$0xff] %vm659, %v10793
  %10962 = vst [vmem:[%s6 + $0x428] sm:$0xff] %v10794
  %10963 = vst [vmem:[%s6 + $0x430] sm:$0xff] %v10795
  %10964 = vst [vmem:[%s6 + $0x438] sm:$0xff] %v10796
  %10965 = vst [vmem:[%s6 + $0x440] sm:$0xff] %v10797
  %10966 = vst [vmem:[%s6 + $0x448] sm:$0xff] %v10798
  %10967 = vst [vmem:[%s6 + $0x450] sm:$0xff] %v10799
  %10968 = vst.msk [vmem:[%s6 + $0x458] sm:$0xff] %vm659, %v10800
  %10969 = vst [vmem:[%s6 + $0x460] sm:$0xff] %v10801
  %10970 = vst [vmem:[%s6 + $0x468] sm:$0xff] %v10802
  %10971 = vst [vmem:[%s6 + $0x470] sm:$0xff] %v10803
  %10972 = vst [vmem:[%s6 + $0x478] sm:$0xff] %v10804
  %10973 = vst [vmem:[%s6 + $0x480] sm:$0xff] %v10805
  %10974 = vst [vmem:[%s6 + $0x488] sm:$0xff] %v10806
  %10975 = vst.msk [vmem:[%s6 + $0x490] sm:$0xff] %vm659, %v10807
  %10976 = vst [vmem:[%s6 + $0x498] sm:$0xff] %v10808
  %10977 = vst [vmem:[%s6 + $0x4a0] sm:$0xff] %v10809
  %10978 = vst [vmem:[%s6 + $0x4a8] sm:$0xff] %v10810
  %10979 = vst [vmem:[%s6 + $0x4b0] sm:$0xff] %v10811
  %10980 = vst [vmem:[%s6 + $0x4b8] sm:$0xff] %v10812
  %10981 = vst [vmem:[%s6 + $0x4c0] sm:$0xff] %v10813
  %10982 = vst.msk [vmem:[%s6 + $0x4c8] sm:$0xff] %vm659, %v10814
  %10983 = vst [vmem:[%s6 + $0x4d0] sm:$0xff] %v10815
  %10984 = vst [vmem:[%s6 + $0x4d8] sm:$0xff] %v10816
  %10985 = vst [vmem:[%s6 + $0x4e0] sm:$0xff] %v10817
  %10986 = vst [vmem:[%s6 + $0x4e8] sm:$0xff] %v10818
  %10987 = vst [vmem:[%s6 + $0x4f0] sm:$0xff] %v10819
  %10988 = vst [vmem:[%s6 + $0x4f8] sm:$0xff] %v10820
  %10989 = vst.msk [vmem:[%s6 + $0x500] sm:$0xff] %vm659, %v10821
  %10990 = vst [vmem:[%s6 + $0x508] sm:$0xff] %v10822
  %10991 = vst [vmem:[%s6 + $0x510] sm:$0xff] %v10823
  %10992 = vst [vmem:[%s6 + $0x518] sm:$0xff] %v10824
  %10993 = vst [vmem:[%s6 + $0x520] sm:$0xff] %v10825
  %10994 = vst [vmem:[%s6 + $0x528] sm:$0xff] %v10826
  %10995 = vst [vmem:[%s6 + $0x530] sm:$0xff] %v10827
  %10996 = vst.msk [vmem:[%s6 + $0x538] sm:$0xff] %vm659, %v10828
  // Predicated region
  $region26: #{fused_forward.1} parent=0 // pred_check
    _
  $region27: #{fused_forward.1} parent=0 // pred_check_branch
    %10998 = sbr.rel (0) target = $region29
  $region28: #{fused_forward.1} parent=0 // pred_region
    _
  $region29: #{fused_forward.1} parent=0 // pred_fallthru
    _
  // Predicated region
  $region30: #{fused_forward.1} parent=0 // pred_check
    _
  $region31: #{fused_forward.1} parent=0 // pred_check_branch
    %11000 = sbr.rel (0) target = $region33
  $region32: #{fused_forward.1} parent=0 // pred_region
    _
  $region33: #{fused_forward.1} parent=0 // pred_fallthru
    _

</llo_original>
